<compile_context>
chip_gen: v7x
topology: tpu7x:2x2x1
jax: 0.10.0
libtpu: 0.0.40
codegen_flags: <defaults>
</compile_context>

<pallas_src>
import math

import numpy as np
import jax
import jax.numpy as jnp
from jax.experimental import pallas as pl
from jax.experimental.pallas import tpu as pltpu

# ----------------------------- configuration -----------------------------
BATCH = 2
IN_CHANNELS = 4
IMAGE_SIZE = 16
HIDDEN_CHANNELS = 8
CHANNEL_FACTOR = (0, 0)                              # -> hidden_dims = [8, 8]
HIDDEN_DIMS = [HIDDEN_CHANNELS * 2 ** c for c in CHANNEL_FACTOR]
LATENT = 16
assert IMAGE_SIZE % 2 ** (len(CHANNEL_FACTOR) + 1) == 0
assert len(HIDDEN_DIMS) == 2, "fused kernel is specialized to 2+2 conv stages"
assert all(h == HIDDEN_DIMS[0] for h in HIDDEN_DIMS)
C_HID = HIDDEN_DIMS[0]                               # 8
CB = C_HID * BATCH                                   # 16 rows (batch-major (b, c))
SPATIAL = IMAGE_SIZE // 2 ** len(CHANNEL_FACTOR)     # encoder output spatial (4)
SS = SPATIAL * SPATIAL                               # 16
FEAT = C_HID * SS                                    # 128
assert LATENT == SS          # lets mu / decoder_in share the fold matrices

# decoder spatial: 4 -> 7 (ConvT opad 0) -> 14 (ConvT opad 1) -> 14 (conv+tanh)
DEC_MID = (SPATIAL - 1) * 2 - 2 + 3                  # 7
DEC_HW = (DEC_MID - 1) * 2 - 2 + 3 + 1               # 14
PADDED = DEC_HW + 2                                  # 16: ring-embedded map side
OP1 = 128                                            # padded lanes, enc stage 1 (64 valid)
OP2 = 128                                            # padded lanes, enc stage 2 (16 valid)
OP3 = 128                                            # padded lanes, dec stage 1 (49 valid)
OP4 = PADDED * PADDED                                # 256: ring-embedded 16x16 map

_BN_EPS = 1e-5
_LRELU_SLOPE = 0.2
_VMEM = pl.BlockSpec(memory_space=pltpu.MemorySpace.VMEM)


# --------------------- host-side ONE-TIME packing helpers -----------------
def _sel_conv(h, w, stride, pad, k=3):
    """0/1 spatial selection matrices for Conv2d: (9, H*W, OH*OW)."""
    oh = (h + 2 * pad - k) // stride + 1
    ow = (w + 2 * pad - k) // stride + 1
    s = np.zeros((9, h * w, oh * ow), np.float32)
    for kh in range(k):
        for kw in range(k):
            t = kh * 3 + kw
            for o_h in range(oh):
                ih = stride * o_h + kh - pad
                if not 0 <= ih < h:
                    continue
                for o_w in range(ow):
                    iw = stride * o_w + kw - pad
                    if not 0 <= iw < w:
                        continue
                    s[t, ih * w + iw, o_h * ow + o_w] = 1.0
    return s, oh, ow


def _sel_convT(h, w, stride, pad, opad, k=3):
    """0/1 spatial selection matrices for ConvTranspose2d (dilation/pad folded in)."""
    oh = (h - 1) * stride - 2 * pad + k + opad
    ow = (w - 1) * stride - 2 * pad + k + opad
    pe = k - 1 - pad
    hd, wd = (h - 1) * stride + 1, (w - 1) * stride + 1
    s = np.zeros((9, h * w, oh * ow), np.float32)
    for kh in range(k):            # tap index of the equivalent (flipped-weight) conv
        for kw in range(k):
            t = kh * 3 + kw
            for o_h in range(oh):
                a = o_h + kh - pe
                if not (0 <= a < hd) or a % stride:
                    continue
                ih = a // stride
                for o_w in range(ow):
                    c_ = o_w + kw - pe
                    if not (0 <= c_ < wd) or c_ % stride:
                        continue
                    iw = c_ // stride
                    s[t, ih * w + iw, o_h * ow + o_w] = 1.0
    return s, oh, ow


def _cat_taps(sel9, rows_pad, ocols, omap=None):
    """Concat 9 taps along lanes -> (rows_pad, 9*ocols); each tap 128-lane aligned."""
    _, hw, ohw = sel9.shape
    cols = np.arange(ohw) if omap is None else np.asarray(omap)
    out = np.zeros((rows_pad, 9 * ocols), np.float32)
    for t in range(9):
        out[:hw, t * ocols + cols] = sel9[t]
    return out


def _kron_taps(w_conv, batch):
    """(Cout,Cin,3,3) -> (9, B*Cout, B*Cin) block-diag channel mix, batch-major rows."""
    w = np.asarray(w_conv, np.float32)
    cout, cin = w.shape[:2]
    out = np.zeros((9, batch * cout, batch * cin), np.float32)
    for kh in range(3):
        for kw in range(3):
            t = kh * 3 + kw
            for b in range(batch):
                out[t, b * cout:(b + 1) * cout, b * cin:(b + 1) * cin] = w[:, :, kh, kw]
    return out


def _bn_rows(gamma, beta, batch):
    """(B*C, 2) per-row [gamma, beta] for batch-major (b, c) rows."""
    g = np.tile(np.asarray(gamma, np.float32), batch)[:, None]
    b = np.tile(np.asarray(beta, np.float32), batch)[:, None]
    return np.concatenate([g, b], axis=1).astype(np.float32)


# --------------------------- fused Pallas kernel ---------------------------
def _vae_fused_kernel(
        x_ref, eps_ref, gsum_ref,
        s1_ref, wk1_ref, ab1_ref,
        s2_ref, wk2_ref, ab2_ref,
        amu_ref, bmu_ref, wd2_ref, bd0_ref,
        mmask_ref, frow_ref, frowt_ref, fcol_ref,
        s3_ref, wk3_ref, ab3_ref,
        s4_ref, wk4_ref, ab4_ref,
        rmask_ref, wk5_ref, bout_ref,
        recon_ref, mu_ref):
    f32 = jnp.float32
    bf16 = jnp.bfloat16
    gsum = gsum_ref[...]

    def conv_cat(x, s_ref, wk_ref, ocols):
        # ONE lane-dense gather GEMM (all 9 taps concatenated & 128-padded on
        # lanes), then 9 tile-aligned tiny channel-mix GEMMs.  bf16 in, f32 acc.
        xs = jnp.dot(x.astype(bf16), s_ref[...],
                     preferred_element_type=f32).astype(bf16)
        y = None
        for t in range(9):
            blk = xs[:, t * ocols:(t + 1) * ocols]
            c = jnp.dot(wk_ref[t], blk, preferred_element_type=f32)
            y = c if y is None else y + c
        return y

    def bn_lrelu(y, ab_ref, n_valid):
        # training-mode BatchNorm2d; padded lanes are exact zeros pre-BN so the
        # lane reductions are exact.  Lane reduce first, then a tiny group dot.
        rs = jnp.sum(y, axis=1, keepdims=True)                       # (CB, 1)
        rq = jnp.sum(y * y, axis=1, keepdims=True)
        csum = jnp.dot(gsum, rs, preferred_element_type=f32)         # per channel
        csq = jnp.dot(gsum, rq, preferred_element_type=f32)
        inv_n = 1.0 / n_valid
        mean = csum * inv_n
        var = jnp.maximum(csq * inv_n - mean * mean, 0.0)            # clamp >= 0
        yn = (y - mean) * jax.lax.rsqrt(var + _BN_EPS)
        yn = yn * ab_ref[:, 0:1] + ab_ref[:, 1:2]
        return jnp.where(yn >= 0.0, yn, _LRELU_SLOPE * yn)           # LeakyReLU(0.2)

    # ------------------------------ encoder -------------------------------
    h = bn_lrelu(conv_cat(x_ref[...], s1_ref, wk1_ref, OP1), ab1_ref,
                 BATCH * (IMAGE_SIZE // 2) ** 2)                     # (16, 128)
    h = bn_lrelu(conv_cat(h, s2_ref, wk2_ref, OP2), ab2_ref, BATCH * SS)

    # -------------- mu (mu_theta reused for log_std, ref. quirk) ----------
    g = jnp.dot(h, amu_ref[...], preferred_element_type=f32)         # (16, C*L)
    g = g * mmask_ref[...]
    mu = jnp.dot(jnp.dot(frow_ref[...], g, preferred_element_type=f32),
                 fcol_ref[...], preferred_element_type=f32) + bmu_ref[...]
    mu_ref[...] = mu
    log_var = mu                     # reference quirk: log_std = self.mu_theta(out)

    # ---------------------------- reparametrize ---------------------------
    z = mu + eps_ref[...] * jnp.exp(0.5 * log_var)                   # (B, L)

    # --------- decoder_in + view(B, C0, 4, 4) via fold GEMMs (no scratch) --
    zz = jnp.dot(z, wd2_ref[...], preferred_element_type=f32)        # (B, C0*SS)
    rep = jnp.dot(frowt_ref[...], zz, preferred_element_type=f32)    # (16, C0*SS)
    d = jnp.dot(rep * mmask_ref[...], fcol_ref[...],
                preferred_element_type=f32) + bd0_ref[...]           # (16, SS)

    # ------------------------------ decoder -------------------------------
    d = bn_lrelu(conv_cat(d, s3_ref, wk3_ref, OP3), ab3_ref,
                 BATCH * DEC_MID * DEC_MID)                          # (16, 128)
    d = bn_lrelu(conv_cat(d, s4_ref, wk4_ref, OP4), ab4_ref,
                 BATCH * DEC_HW * DEC_HW)                            # (16, 256)
    d = d * rmask_ref[...]           # exact zero ring around the 14x14 map

    # final Conv(3x3, s=1, p=1) + bias + Tanh via 9 lane rolls on the
    # ring-embedded 16x16 map (no gather matrix, no edge masks needed).
    y = None
    for kh in range(3):
        for kw in range(3):
            t = kh * 3 + kw
            sft = (kh - 1) * PADDED + (kw - 1)
            xt = d if sft == 0 else pltpu.roll(d, shift=(-sft) % OP4, axis=1)
            c = jnp.dot(wk5_ref[t], xt.astype(bf16), preferred_element_type=f32)
            y = c if y is None else y + c
    recon_ref[...] = jnp.tanh(y + bout_ref[...])                     # (8, 256)


# ------------------------------ parameters --------------------------------
def _uinit(key, shape, fan_in):
    bound = 1.0 / math.sqrt(fan_in)
    return jax.random.uniform(key, shape, jnp.float32, minval=-bound, maxval=bound)


def init_params(key):
    """Raw (PyTorch-layout) parameters. Conv/ConvT biases before training-mode
    BatchNorm are omitted: the batch-mean subtraction cancels them exactly."""
    ks = iter(jax.random.split(key, 16))
    p = {"enc": [], "dec_ct": []}
    in_c = IN_CHANNELS
    for hd in HIDDEN_DIMS:                               # encoder conv stages
        w = _uinit(next(ks), (hd, in_c, 3, 3), in_c * 9)
        p["enc"].append((w, jnp.ones((hd,), jnp.float32), jnp.zeros((hd,), jnp.float32)))
        in_c = hd
    p["mu_w"] = _uinit(next(ks), (LATENT, FEAT), FEAT)   # torch Linear (out, in)
    p["mu_b"] = _uinit(next(ks), (LATENT,), FEAT)
    # sigma_theta exists in the reference __init__ but is never used in forward.
    p["dec_w"] = _uinit(next(ks), (FEAT, LATENT), LATENT)
    p["dec_b"] = _uinit(next(ks), (FEAT,), LATENT)
    in_c = HIDDEN_DIMS[-1]
    ct_outs = list(reversed(HIDDEN_DIMS[1:])) + [HIDDEN_DIMS[0]]
    for hd in ct_outs:                                   # decoder ConvT stages
        w = _uinit(next(ks), (in_c, hd, 3, 3), hd * 9)   # torch ConvT (Cin, Cout, k, k)
        p["dec_ct"].append((w, jnp.ones((hd,), jnp.float32), jnp.zeros((hd,), jnp.float32)))
        in_c = hd
    p["out_w"] = _uinit(next(ks), (IN_CHANNELS, HIDDEN_DIMS[0], 3, 3), HIDDEN_DIMS[0] * 9)
    p["out_b"] = _uinit(next(ks), (IN_CHANNELS,), HIDDEN_DIMS[0] * 9)
    return p


def pack_params(p):
    """One-time host-side packing: bf16 for the MXU packs, f32 elsewhere."""
    bf = lambda a: jnp.asarray(np.asarray(a, np.float32), dtype=jnp.bfloat16)
    f32 = lambda a: jnp.asarray(np.asarray(a, np.float32))

    r = np.arange(CB)
    gsum = (r[:, None] % C_HID == r[None, :] % C_HID).astype(np.float32)

    (w1, g1, b1), (w2, g2, b2) = p["enc"]
    # encoder conv 1: 16x16 -> 8x8
    sel1, oh1, ow1 = _sel_conv(IMAGE_SIZE, IMAGE_SIZE, stride=2, pad=1)
    s1 = _cat_taps(sel1, IMAGE_SIZE * IMAGE_SIZE, OP1)
    wk1 = _kron_taps(w1, BATCH)
    ab1 = _bn_rows(g1, b1, BATCH)
    # encoder conv 2: 8x8 -> 4x4 (input lanes padded to OP1; pad rows are zero)
    sel2, oh2, ow2 = _sel_conv(oh1, ow1, stride=2, pad=1)
    s2 = _cat_taps(sel2, OP1, OP2)
    wk2 = _kron_taps(w2, BATCH)
    ab2 = _bn_rows(g2, b2, BATCH)
    assert (oh2, ow2) == (SPATIAL, SPATIAL)

    # mu linear repacked for the fused fold GEMMs: amu[ss, c*L + l] = W[l, c*SS + ss]
    mu_w = np.asarray(p["mu_w"], np.float32)
    amu = np.zeros((OP2, C_HID * LATENT), np.float32)
    for c in range(C_HID):
        amu[:SS, c * LATENT:(c + 1) * LATENT] = mu_w[:, c * SS:(c + 1) * SS].T
    bmu = np.asarray(p["mu_b"], np.float32).reshape(1, LATENT)

    # decoder_in linear
    wd2 = np.ascontiguousarray(np.asarray(p["dec_w"], np.float32).T)   # (L, C*SS)
    bd0 = np.tile(np.asarray(p["dec_b"], np.float32).reshape(C_HID, SS), (BATCH, 1))

    # shared 0/1 fold / mask matrices (valid because LATENT == SS)
    q = np.arange(C_HID * LATENT)
    mmask = ((r[:, None] % C_HID) == (q[None, :] // LATENT)).astype(np.float32)
    frow = (np.arange(BATCH)[:, None] == (r[None, :] // C_HID)).astype(np.float32)
    frowt = np.ascontiguousarray(frow.T)
    fcol = ((q[:, None] % LATENT) == np.arange(LATENT)[None, :]).astype(np.float32)

    (wt1, g3, b3), (wt2, g4, b4) = p["dec_ct"]
    # decoder ConvT 1: 4x4 -> 7x7 (weight flip/transpose folded into the pack)
    selT1, ohT1, owT1 = _sel_convT(SPATIAL, SPATIAL, stride=2, pad=1, opad=0)
    assert (ohT1, owT1) == (DEC_MID, DEC_MID)
    s3 = _cat_taps(selT1, SS, OP3)
    wk3 = _kron_taps(np.transpose(np.asarray(wt1, np.float32)[:, :, ::-1, ::-1],
                                  (1, 0, 2, 3)).copy(), BATCH)
    ab3 = _bn_rows(g3, b3, BATCH)

    # decoder ConvT 2: 7x7 -> 14x14, ring-embedded into a zero-padded 16x16 map
    selT2, ohT2, owT2 = _sel_convT(DEC_MID, DEC_MID, stride=2, pad=1, opad=1)
    assert (ohT2, owT2) == (DEC_HW, DEC_HW)
    omap = np.array([(oh + 1) * PADDED + (ow + 1)
                     for oh in range(DEC_HW) for ow in range(DEC_HW)], np.int64)
    s4 = _cat_taps(selT2, OP3, OP4, omap)
    wk4 = _kron_taps(np.transpose(np.asarray(wt2, np.float32)[:, :, ::-1, ::-1],
                                  (1, 0, 2, 3)).copy(), BATCH)
    ab4 = _bn_rows(g4, b4, BATCH)

    rmask = np.zeros((1, OP4), np.float32)
    rmask[0, omap] = 1.0

    # final conv + tanh: taps become lane rolls in-kernel; only the mix is packed
    wk5 = _kron_taps(p["out_w"], BATCH)
    bout = np.tile(np.asarray(p["out_b"], np.float32), BATCH).reshape(BATCH * IN_CHANNELS, 1)

    return (f32(gsum),
            bf(s1), bf(wk1), f32(ab1),
            bf(s2), bf(wk2), f32(ab2),
            f32(amu), f32(bmu), f32(wd2), f32(bd0),
            f32(mmask), f32(frow), f32(frowt), f32(fcol),
            bf(s3), bf(wk3), f32(ab3),
            bf(s4), bf(wk4), f32(ab4),
            f32(rmask), bf(wk5), f32(bout))


# ------------------------------- forward ----------------------------------
def vae_forward(packed, x, eps):
    assert x.shape == (BATCH, IN_CHANNELS, IMAGE_SIZE, IMAGE_SIZE)
    x2d = x.reshape(BATCH * IN_CHANNELS, IMAGE_SIZE * IMAGE_SIZE)   # zero-copy NCHW view
    args = (x2d, eps) + tuple(packed)
    recon2d, mu = pl.pallas_call(
        _vae_fused_kernel,
        out_shape=(
            jax.ShapeDtypeStruct((BATCH * IN_CHANNELS, OP4), jnp.float32),  # lane-dense
            jax.ShapeDtypeStruct((BATCH, LATENT), jnp.float32),
        ),
        in_specs=[_VMEM for _ in args],
        out_specs=(_VMEM, _VMEM),
    )(*args)
    # lane-dense padded 16x16 map -> NCHW, strip the zero ring back to 14x14
    recon = recon2d.reshape(BATCH, IN_CHANNELS, PADDED, PADDED)[:, :, 1:-1, 1:-1]
    log_var = mu                      # reference: log_std = self.mu_theta(out)
    return recon, x, mu, log_var


if __name__ == "__main__":
    key = jax.random.PRNGKey(0)
    kx, keps, kp = jax.random.split(key, 3)
    x = jax.random.normal(kx, (BATCH, IN_CHANNELS, IMAGE_SIZE, IMAGE_SIZE), jnp.float32)
    eps = jax.random.normal(keps, (BATCH, LATENT), jnp.float32)     # torch.randn_like(sigma)
    params = init_params(kp)
    packed = pack_params(params)      # one-time pre-packing (no per-forward repack)

    fwd = jax.jit(vae_forward)
    recon, x_out, mu, log_var = fwd(packed, x, eps)
    jax.block_until_ready((recon, x_out, mu, log_var))

    # decoder spatial: 4 -> 7 (ConvT, op=0) -> 14 (ConvT, op=1) -> 14 (conv+tanh)
    assert recon.shape == (BATCH, IN_CHANNELS, DEC_HW, DEC_HW)
    assert x_out.shape == x.shape
    assert mu.shape == (BATCH, LATENT) and log_var.shape == (BATCH, LATENT)
    assert bool(jnp.all(jnp.isfinite(recon)))
    assert bool(jnp.all(jnp.isfinite(mu)))
    print("KERNEL_OK")
</pallas_src>

<mosaic_0001>
module attributes {stable_mosaic.version = 11 : i64} {
  func.func @_vae_fused_kernel(%arg0: memref<8x256xf32, #tpu.memory_space<vmem>>, %arg1: memref<2x16xf32, #tpu.memory_space<vmem>>, %arg2: memref<16x16xf32, #tpu.memory_space<vmem>>, %arg3: memref<256x1152xbf16, #tpu.memory_space<vmem>>, %arg4: memref<9x16x8xbf16, #tpu.memory_space<vmem>>, %arg5: memref<16x2xf32, #tpu.memory_space<vmem>>, %arg6: memref<128x1152xbf16, #tpu.memory_space<vmem>>, %arg7: memref<9x16x16xbf16, #tpu.memory_space<vmem>>, %arg8: memref<16x2xf32, #tpu.memory_space<vmem>>, %arg9: memref<128x128xf32, #tpu.memory_space<vmem>>, %arg10: memref<1x16xf32, #tpu.memory_space<vmem>>, %arg11: memref<16x128xf32, #tpu.memory_space<vmem>>, %arg12: memref<16x16xf32, #tpu.memory_space<vmem>>, %arg13: memref<16x128xf32, #tpu.memory_space<vmem>>, %arg14: memref<2x16xf32, #tpu.memory_space<vmem>>, %arg15: memref<16x2xf32, #tpu.memory_space<vmem>>, %arg16: memref<128x16xf32, #tpu.memory_space<vmem>>, %arg17: memref<16x1152xbf16, #tpu.memory_space<vmem>>, %arg18: memref<9x16x16xbf16, #tpu.memory_space<vmem>>, %arg19: memref<16x2xf32, #tpu.memory_space<vmem>>, %arg20: memref<128x2304xbf16, #tpu.memory_space<vmem>>, %arg21: memref<9x16x16xbf16, #tpu.memory_space<vmem>>, %arg22: memref<16x2xf32, #tpu.memory_space<vmem>>, %arg23: memref<1x256xf32, #tpu.memory_space<vmem>>, %arg24: memref<9x8x16xbf16, #tpu.memory_space<vmem>>, %arg25: memref<8x1xf32, #tpu.memory_space<vmem>>, %arg26: memref<8x256xf32, #tpu.memory_space<vmem>>, %arg27: memref<2x16xf32, #tpu.memory_space<vmem>>) attributes {dimension_semantics = [], scalar_prefetch = 0 : i64, scratch_operands = 0 : i64, tpu.core_type = #tpu.core_type<tc>} {
    %c0 = arith.constant 0 : index
    %c0_0 = arith.constant 0 : index
    %0 = vector.load %arg2[%c0, %c0_0] : memref<16x16xf32, #tpu.memory_space<vmem>>, vector<16x16xf32>
    %c0_1 = arith.constant 0 : index
    %c0_2 = arith.constant 0 : index
    %1 = vector.load %arg0[%c0_1, %c0_2] : memref<8x256xf32, #tpu.memory_space<vmem>>, vector<8x256xf32>
    %2 = arith.truncf %1 : vector<8x256xf32> to vector<8x256xbf16>
    %c0_3 = arith.constant 0 : index
    %c0_4 = arith.constant 0 : index
    %3 = vector.load %arg3[%c0_3, %c0_4] : memref<256x1152xbf16, #tpu.memory_space<vmem>>, vector<256x1152xbf16>
    %cst = arith.constant dense<0.000000e+00> : vector<8x1152xf32>
    %4 = tpu.matmul %2, %3, %cst {dimension_numbers = #tpu.dot_dimension_numbers<[1], [0], [0], [1], [0, 0, 1, 1], [], []>} : vector<8x256xbf16>, vector<256x1152xbf16>, vector<8x1152xf32> -> vector<8x1152xf32>
    %5 = arith.truncf %4 : vector<8x1152xf32> to vector<8x1152xbf16>
    %6 = vector.extract_strided_slice %5 {offsets = [0, 0], sizes = [8, 128], strides = [1, 1]} : vector<8x1152xbf16> to vector<8x128xbf16>
    %c0_5 = arith.constant 0 : index
    %c0_6 = arith.constant 0 : index
    %c0_7 = arith.constant 0 : index
    %7 = vector.load %arg4[%c0_5, %c0_6, %c0_7] : memref<9x16x8xbf16, #tpu.memory_space<vmem>>, vector<1x16x8xbf16>
    %8 = vector.shape_cast %7 : vector<1x16x8xbf16> to vector<16x8xbf16>
    %cst_8 = arith.constant dense<0.000000e+00> : vector<16x128xf32>
    %9 = tpu.matmul %8, %6, %cst_8 {dimension_numbers = #tpu.dot_dimension_numbers<[1], [0], [0], [1], [0, 0, 1, 1], [], []>} : vector<16x8xbf16>, vector<8x128xbf16>, vector<16x128xf32> -> vector<16x128xf32>
    %10 = vector.extract_strided_slice %5 {offsets = [0, 128], sizes = [8, 128], strides = [1, 1]} : vector<8x1152xbf16> to vector<8x128xbf16>
    %c1 = arith.constant 1 : index
    %c0_9 = arith.constant 0 : index
    %c0_10 = arith.constant 0 : index
    %11 = vector.load %arg4[%c1, %c0_9, %c0_10] : memref<9x16x8xbf16, #tpu.memory_space<vmem>>, vector<1x16x8xbf16>
    %12 = vector.shape_cast %11 : vector<1x16x8xbf16> to vector<16x8xbf16>
    %cst_11 = arith.constant dense<0.000000e+00> : vector<16x128xf32>
    %13 = tpu.matmul %12, %10, %cst_11 {dimension_numbers = #tpu.dot_dimension_numbers<[1], [0], [0], [1], [0, 0, 1, 1], [], []>} : vector<16x8xbf16>, vector<8x128xbf16>, vector<16x128xf32> -> vector<16x128xf32>
    %14 = arith.addf %9, %13 : vector<16x128xf32>
    %15 = vector.extract_strided_slice %5 {offsets = [0, 256], sizes = [8, 128], strides = [1, 1]} : vector<8x1152xbf16> to vector<8x128xbf16>
    %c2 = arith.constant 2 : index
    %c0_12 = arith.constant 0 : index
    %c0_13 = arith.constant 0 : index
    %16 = vector.load %arg4[%c2, %c0_12, %c0_13] : memref<9x16x8xbf16, #tpu.memory_space<vmem>>, vector<1x16x8xbf16>
    %17 = vector.shape_cast %16 : vector<1x16x8xbf16> to vector<16x8xbf16>
    %cst_14 = arith.constant dense<0.000000e+00> : vector<16x128xf32>
    %18 = tpu.matmul %17, %15, %cst_14 {dimension_numbers = #tpu.dot_dimension_numbers<[1], [0], [0], [1], [0, 0, 1, 1], [], []>} : vector<16x8xbf16>, vector<8x128xbf16>, vector<16x128xf32> -> vector<16x128xf32>
    %19 = arith.addf %14, %18 : vector<16x128xf32>
    %20 = vector.extract_strided_slice %5 {offsets = [0, 384], sizes = [8, 128], strides = [1, 1]} : vector<8x1152xbf16> to vector<8x128xbf16>
    %c3 = arith.constant 3 : index
    %c0_15 = arith.constant 0 : index
    %c0_16 = arith.constant 0 : index
    %21 = vector.load %arg4[%c3, %c0_15, %c0_16] : memref<9x16x8xbf16, #tpu.memory_space<vmem>>, vector<1x16x8xbf16>
    %22 = vector.shape_cast %21 : vector<1x16x8xbf16> to vector<16x8xbf16>
    %cst_17 = arith.constant dense<0.000000e+00> : vector<16x128xf32>
    %23 = tpu.matmul %22, %20, %cst_17 {dimension_numbers = #tpu.dot_dimension_numbers<[1], [0], [0], [1], [0, 0, 1, 1], [], []>} : vector<16x8xbf16>, vector<8x128xbf16>, vector<16x128xf32> -> vector<16x128xf32>
    %24 = arith.addf %19, %23 : vector<16x128xf32>
    %25 = vector.extract_strided_slice %5 {offsets = [0, 512], sizes = [8, 128], strides = [1, 1]} : vector<8x1152xbf16> to vector<8x128xbf16>
    %c4 = arith.constant 4 : index
    %c0_18 = arith.constant 0 : index
    %c0_19 = arith.constant 0 : index
    %26 = vector.load %arg4[%c4, %c0_18, %c0_19] : memref<9x16x8xbf16, #tpu.memory_space<vmem>>, vector<1x16x8xbf16>
    %27 = vector.shape_cast %26 : vector<1x16x8xbf16> to vector<16x8xbf16>
    %cst_20 = arith.constant dense<0.000000e+00> : vector<16x128xf32>
    %28 = tpu.matmul %27, %25, %cst_20 {dimension_numbers = #tpu.dot_dimension_numbers<[1], [0], [0], [1], [0, 0, 1, 1], [], []>} : vector<16x8xbf16>, vector<8x128xbf16>, vector<16x128xf32> -> vector<16x128xf32>
    %29 = arith.addf %24, %28 : vector<16x128xf32>
    %30 = vector.extract_strided_slice %5 {offsets = [0, 640], sizes = [8, 128], strides = [1, 1]} : vector<8x1152xbf16> to vector<8x128xbf16>
    %c5 = arith.constant 5 : index
    %c0_21 = arith.constant 0 : index
    %c0_22 = arith.constant 0 : index
    %31 = vector.load %arg4[%c5, %c0_21, %c0_22] : memref<9x16x8xbf16, #tpu.memory_space<vmem>>, vector<1x16x8xbf16>
    %32 = vector.shape_cast %31 : vector<1x16x8xbf16> to vector<16x8xbf16>
    %cst_23 = arith.constant dense<0.000000e+00> : vector<16x128xf32>
    %33 = tpu.matmul %32, %30, %cst_23 {dimension_numbers = #tpu.dot_dimension_numbers<[1], [0], [0], [1], [0, 0, 1, 1], [], []>} : vector<16x8xbf16>, vector<8x128xbf16>, vector<16x128xf32> -> vector<16x128xf32>
    %34 = arith.addf %29, %33 : vector<16x128xf32>
    %35 = vector.extract_strided_slice %5 {offsets = [0, 768], sizes = [8, 128], strides = [1, 1]} : vector<8x1152xbf16> to vector<8x128xbf16>
    %c6 = arith.constant 6 : index
    %c0_24 = arith.constant 0 : index
    %c0_25 = arith.constant 0 : index
    %36 = vector.load %arg4[%c6, %c0_24, %c0_25] : memref<9x16x8xbf16, #tpu.memory_space<vmem>>, vector<1x16x8xbf16>
    %37 = vector.shape_cast %36 : vector<1x16x8xbf16> to vector<16x8xbf16>
    %cst_26 = arith.constant dense<0.000000e+00> : vector<16x128xf32>
    %38 = tpu.matmul %37, %35, %cst_26 {dimension_numbers = #tpu.dot_dimension_numbers<[1], [0], [0], [1], [0, 0, 1, 1], [], []>} : vector<16x8xbf16>, vector<8x128xbf16>, vector<16x128xf32> -> vector<16x128xf32>
    %39 = arith.addf %34, %38 : vector<16x128xf32>
    %40 = vector.extract_strided_slice %5 {offsets = [0, 896], sizes = [8, 128], strides = [1, 1]} : vector<8x1152xbf16> to vector<8x128xbf16>
    %c7 = arith.constant 7 : index
    %c0_27 = arith.constant 0 : index
    %c0_28 = arith.constant 0 : index
    %41 = vector.load %arg4[%c7, %c0_27, %c0_28] : memref<9x16x8xbf16, #tpu.memory_space<vmem>>, vector<1x16x8xbf16>
    %42 = vector.shape_cast %41 : vector<1x16x8xbf16> to vector<16x8xbf16>
    %cst_29 = arith.constant dense<0.000000e+00> : vector<16x128xf32>
    %43 = tpu.matmul %42, %40, %cst_29 {dimension_numbers = #tpu.dot_dimension_numbers<[1], [0], [0], [1], [0, 0, 1, 1], [], []>} : vector<16x8xbf16>, vector<8x128xbf16>, vector<16x128xf32> -> vector<16x128xf32>
    %44 = arith.addf %39, %43 : vector<16x128xf32>
    %45 = vector.extract_strided_slice %5 {offsets = [0, 1024], sizes = [8, 128], strides = [1, 1]} : vector<8x1152xbf16> to vector<8x128xbf16>
    %c8 = arith.constant 8 : index
    %c0_30 = arith.constant 0 : index
    %c0_31 = arith.constant 0 : index
    %46 = vector.load %arg4[%c8, %c0_30, %c0_31] : memref<9x16x8xbf16, #tpu.memory_space<vmem>>, vector<1x16x8xbf16>
    %47 = vector.shape_cast %46 : vector<1x16x8xbf16> to vector<16x8xbf16>
    %cst_32 = arith.constant dense<0.000000e+00> : vector<16x128xf32>
    %48 = tpu.matmul %47, %45, %cst_32 {dimension_numbers = #tpu.dot_dimension_numbers<[1], [0], [0], [1], [0, 0, 1, 1], [], []>} : vector<16x8xbf16>, vector<8x128xbf16>, vector<16x128xf32> -> vector<16x128xf32>
    %49 = arith.addf %44, %48 : vector<16x128xf32>
    %cst_33 = arith.constant dense<0.000000e+00> : vector<16xf32>
    %50 = vector.multi_reduction <add>, %49, %cst_33 [1] : vector<16x128xf32> to vector<16xf32>
    %51 = vector.shape_cast %50 : vector<16xf32> to vector<16x1xf32>
    %52 = arith.mulf %49, %49 : vector<16x128xf32>
    %cst_34 = arith.constant dense<0.000000e+00> : vector<16xf32>
    %53 = vector.multi_reduction <add>, %52, %cst_34 [1] : vector<16x128xf32> to vector<16xf32>
    %54 = vector.shape_cast %53 : vector<16xf32> to vector<16x1xf32>
    %cst_35 = arith.constant dense<0.000000e+00> : vector<16x1xf32>
    %55 = tpu.matmul %0, %51, %cst_35 {dimension_numbers = #tpu.dot_dimension_numbers<[1], [0], [0], [1], [0, 0, 1, 1], [], []>} : vector<16x16xf32>, vector<16x1xf32>, vector<16x1xf32> -> vector<16x1xf32>
    %cst_36 = arith.constant dense<0.000000e+00> : vector<16x1xf32>
    %56 = tpu.matmul %0, %54, %cst_36 {dimension_numbers = #tpu.dot_dimension_numbers<[1], [0], [0], [1], [0, 0, 1, 1], [], []>} : vector<16x16xf32>, vector<16x1xf32>, vector<16x1xf32> -> vector<16x1xf32>
    %cst_37 = arith.constant 7.812500e-03 : f32
    %57 = vector.broadcast %cst_37 : f32 to vector<16x1xf32>
    %58 = arith.mulf %55, %57 : vector<16x1xf32>
    %cst_38 = arith.constant 7.812500e-03 : f32
    %59 = vector.broadcast %cst_38 : f32 to vector<16x1xf32>
    %60 = arith.mulf %56, %59 : vector<16x1xf32>
    %61 = arith.mulf %58, %58 : vector<16x1xf32>
    %62 = arith.subf %60, %61 : vector<16x1xf32>
    %cst_39 = arith.constant 0.000000e+00 : f32
    %63 = vector.broadcast %cst_39 : f32 to vector<16x1xf32>
    %64 = arith.maximumf %62, %63 : vector<16x1xf32>
    %65 = vector.broadcast %58 : vector<16x1xf32> to vector<16x128xf32>
    %66 = arith.subf %49, %65 : vector<16x128xf32>
    %cst_40 = arith.constant 9.99999974E-6 : f32
    %67 = vector.broadcast %cst_40 : f32 to vector<16x1xf32>
    %68 = arith.addf %64, %67 : vector<16x1xf32>
    %69 = math.rsqrt %68 : vector<16x1xf32>
    %70 = vector.broadcast %69 : vector<16x1xf32> to vector<16x128xf32>
    %71 = arith.mulf %66, %70 : vector<16x128xf32>
    %c0_41 = arith.constant 0 : index
    %c0_42 = arith.constant 0 : index
    %72 = vector.load %arg5[%c0_41, %c0_42] : memref<16x2xf32, #tpu.memory_space<vmem>>, vector<16x1xf32>
    %73 = vector.broadcast %72 : vector<16x1xf32> to vector<16x128xf32>
    %74 = arith.mulf %71, %73 : vector<16x128xf32>
    %c0_43 = arith.constant 0 : index
    %c1_44 = arith.constant 1 : index
    %75 = vector.load %arg5[%c0_43, %c1_44] : memref<16x2xf32, #tpu.memory_space<vmem>>, vector<16x1xf32>
    %76 = vector.broadcast %75 : vector<16x1xf32> to vector<16x128xf32>
    %77 = arith.addf %74, %76 : vector<16x128xf32>
    %cst_45 = arith.constant 0.000000e+00 : f32
    %78 = vector.broadcast %cst_45 : f32 to vector<16x128xf32>
    %79 = arith.cmpf oge, %77, %78 : vector<16x128xf32>
    %cst_46 = arith.constant 2.000000e-01 : f32
    %80 = vector.broadcast %cst_46 : f32 to vector<16x128xf32>
    %81 = arith.mulf %80, %77 : vector<16x128xf32>
    %82 = arith.select %79, %77, %81 : vector<16x128xi1>, vector<16x128xf32>
    %83 = arith.truncf %82 : vector<16x128xf32> to vector<16x128xbf16>
    %c0_47 = arith.constant 0 : index
    %c0_48 = arith.constant 0 : index
    %84 = vector.load %arg6[%c0_47, %c0_48] : memref<128x1152xbf16, #tpu.memory_space<vmem>>, vector<128x1152xbf16>
    %cst_49 = arith.constant dense<0.000000e+00> : vector<16x1152xf32>
    %85 = tpu.matmul %83, %84, %cst_49 {dimension_numbers = #tpu.dot_dimension_numbers<[1], [0], [0], [1], [0, 0, 1, 1], [], []>} : vector<16x128xbf16>, vector<128x1152xbf16>, vector<16x1152xf32> -> vector<16x1152xf32>
    %86 = arith.truncf %85 : vector<16x1152xf32> to vector<16x1152xbf16>
    %87 = vector.extract_strided_slice %86 {offsets = [0, 0], sizes = [16, 128], strides = [1, 1]} : vector<16x1152xbf16> to vector<16x128xbf16>
    %c0_50 = arith.constant 0 : index
    %c0_51 = arith.constant 0 : index
    %c0_52 = arith.constant 0 : index
    %88 = vector.load %arg7[%c0_50, %c0_51, %c0_52] : memref<9x16x16xbf16, #tpu.memory_space<vmem>>, vector<1x16x16xbf16>
    %89 = vector.shape_cast %88 : vector<1x16x16xbf16> to vector<16x16xbf16>
    %cst_53 = arith.constant dense<0.000000e+00> : vector<16x128xf32>
    %90 = tpu.matmul %89, %87, %cst_53 {dimension_numbers = #tpu.dot_dimension_numbers<[1], [0], [0], [1], [0, 0, 1, 1], [], []>} : vector<16x16xbf16>, vector<16x128xbf16>, vector<16x128xf32> -> vector<16x128xf32>
    %91 = vector.extract_strided_slice %86 {offsets = [0, 128], sizes = [16, 128], strides = [1, 1]} : vector<16x1152xbf16> to vector<16x128xbf16>
    %c1_54 = arith.constant 1 : index
    %c0_55 = arith.constant 0 : index
    %c0_56 = arith.constant 0 : index
    %92 = vector.load %arg7[%c1_54, %c0_55, %c0_56] : memref<9x16x16xbf16, #tpu.memory_space<vmem>>, vector<1x16x16xbf16>
    %93 = vector.shape_cast %92 : vector<1x16x16xbf16> to vector<16x16xbf16>
    %cst_57 = arith.constant dense<0.000000e+00> : vector<16x128xf32>
    %94 = tpu.matmul %93, %91, %cst_57 {dimension_numbers = #tpu.dot_dimension_numbers<[1], [0], [0], [1], [0, 0, 1, 1], [], []>} : vector<16x16xbf16>, vector<16x128xbf16>, vector<16x128xf32> -> vector<16x128xf32>
    %95 = arith.addf %90, %94 : vector<16x128xf32>
    %96 = vector.extract_strided_slice %86 {offsets = [0, 256], sizes = [16, 128], strides = [1, 1]} : vector<16x1152xbf16> to vector<16x128xbf16>
    %c2_58 = arith.constant 2 : index
    %c0_59 = arith.constant 0 : index
    %c0_60 = arith.constant 0 : index
    %97 = vector.load %arg7[%c2_58, %c0_59, %c0_60] : memref<9x16x16xbf16, #tpu.memory_space<vmem>>, vector<1x16x16xbf16>
    %98 = vector.shape_cast %97 : vector<1x16x16xbf16> to vector<16x16xbf16>
    %cst_61 = arith.constant dense<0.000000e+00> : vector<16x128xf32>
    %99 = tpu.matmul %98, %96, %cst_61 {dimension_numbers = #tpu.dot_dimension_numbers<[1], [0], [0], [1], [0, 0, 1, 1], [], []>} : vector<16x16xbf16>, vector<16x128xbf16>, vector<16x128xf32> -> vector<16x128xf32>
    %100 = arith.addf %95, %99 : vector<16x128xf32>
    %101 = vector.extract_strided_slice %86 {offsets = [0, 384], sizes = [16, 128], strides = [1, 1]} : vector<16x1152xbf16> to vector<16x128xbf16>
    %c3_62 = arith.constant 3 : index
    %c0_63 = arith.constant 0 : index
    %c0_64 = arith.constant 0 : index
    %102 = vector.load %arg7[%c3_62, %c0_63, %c0_64] : memref<9x16x16xbf16, #tpu.memory_space<vmem>>, vector<1x16x16xbf16>
    %103 = vector.shape_cast %102 : vector<1x16x16xbf16> to vector<16x16xbf16>
    %cst_65 = arith.constant dense<0.000000e+00> : vector<16x128xf32>
    %104 = tpu.matmul %103, %101, %cst_65 {dimension_numbers = #tpu.dot_dimension_numbers<[1], [0], [0], [1], [0, 0, 1, 1], [], []>} : vector<16x16xbf16>, vector<16x128xbf16>, vector<16x128xf32> -> vector<16x128xf32>
    %105 = arith.addf %100, %104 : vector<16x128xf32>
    %106 = vector.extract_strided_slice %86 {offsets = [0, 512], sizes = [16, 128], strides = [1, 1]} : vector<16x1152xbf16> to vector<16x128xbf16>
    %c4_66 = arith.constant 4 : index
    %c0_67 = arith.constant 0 : index
    %c0_68 = arith.constant 0 : index
    %107 = vector.load %arg7[%c4_66, %c0_67, %c0_68] : memref<9x16x16xbf16, #tpu.memory_space<vmem>>, vector<1x16x16xbf16>
    %108 = vector.shape_cast %107 : vector<1x16x16xbf16> to vector<16x16xbf16>
    %cst_69 = arith.constant dense<0.000000e+00> : vector<16x128xf32>
    %109 = tpu.matmul %108, %106, %cst_69 {dimension_numbers = #tpu.dot_dimension_numbers<[1], [0], [0], [1], [0, 0, 1, 1], [], []>} : vector<16x16xbf16>, vector<16x128xbf16>, vector<16x128xf32> -> vector<16x128xf32>
    %110 = arith.addf %105, %109 : vector<16x128xf32>
    %111 = vector.extract_strided_slice %86 {offsets = [0, 640], sizes = [16, 128], strides = [1, 1]} : vector<16x1152xbf16> to vector<16x128xbf16>
    %c5_70 = arith.constant 5 : index
    %c0_71 = arith.constant 0 : index
    %c0_72 = arith.constant 0 : index
    %112 = vector.load %arg7[%c5_70, %c0_71, %c0_72] : memref<9x16x16xbf16, #tpu.memory_space<vmem>>, vector<1x16x16xbf16>
    %113 = vector.shape_cast %112 : vector<1x16x16xbf16> to vector<16x16xbf16>
    %cst_73 = arith.constant dense<0.000000e+00> : vector<16x128xf32>
    %114 = tpu.matmul %113, %111, %cst_73 {dimension_numbers = #tpu.dot_dimension_numbers<[1], [0], [0], [1], [0, 0, 1, 1], [], []>} : vector<16x16xbf16>, vector<16x128xbf16>, vector<16x128xf32> -> vector<16x128xf32>
    %115 = arith.addf %110, %114 : vector<16x128xf32>
    %116 = vector.extract_strided_slice %86 {offsets = [0, 768], sizes = [16, 128], strides = [1, 1]} : vector<16x1152xbf16> to vector<16x128xbf16>
    %c6_74 = arith.constant 6 : index
    %c0_75 = arith.constant 0 : index
    %c0_76 = arith.constant 0 : index
    %117 = vector.load %arg7[%c6_74, %c0_75, %c0_76] : memref<9x16x16xbf16, #tpu.memory_space<vmem>>, vector<1x16x16xbf16>
    %118 = vector.shape_cast %117 : vector<1x16x16xbf16> to vector<16x16xbf16>
    %cst_77 = arith.constant dense<0.000000e+00> : vector<16x128xf32>
    %119 = tpu.matmul %118, %116, %cst_77 {dimension_numbers = #tpu.dot_dimension_numbers<[1], [0], [0], [1], [0, 0, 1, 1], [], []>} : vector<16x16xbf16>, vector<16x128xbf16>, vector<16x128xf32> -> vector<16x128xf32>
    %120 = arith.addf %115, %119 : vector<16x128xf32>
    %121 = vector.extract_strided_slice %86 {offsets = [0, 896], sizes = [16, 128], strides = [1, 1]} : vector<16x1152xbf16> to vector<16x128xbf16>
    %c7_78 = arith.constant 7 : index
    %c0_79 = arith.constant 0 : index
    %c0_80 = arith.constant 0 : index
    %122 = vector.load %arg7[%c7_78, %c0_79, %c0_80] : memref<9x16x16xbf16, #tpu.memory_space<vmem>>, vector<1x16x16xbf16>
    %123 = vector.shape_cast %122 : vector<1x16x16xbf16> to vector<16x16xbf16>
    %cst_81 = arith.constant dense<0.000000e+00> : vector<16x128xf32>
    %124 = tpu.matmul %123, %121, %cst_81 {dimension_numbers = #tpu.dot_dimension_numbers<[1], [0], [0], [1], [0, 0, 1, 1], [], []>} : vector<16x16xbf16>, vector<16x128xbf16>, vector<16x128xf32> -> vector<16x128xf32>
    %125 = arith.addf %120, %124 : vector<16x128xf32>
    %126 = vector.extract_strided_slice %86 {offsets = [0, 1024], sizes = [16, 128], strides = [1, 1]} : vector<16x1152xbf16> to vector<16x128xbf16>
    %c8_82 = arith.constant 8 : index
    %c0_83 = arith.constant 0 : index
    %c0_84 = arith.constant 0 : index
    %127 = vector.load %arg7[%c8_82, %c0_83, %c0_84] : memref<9x16x16xbf16, #tpu.memory_space<vmem>>, vector<1x16x16xbf16>
    %128 = vector.shape_cast %127 : vector<1x16x16xbf16> to vector<16x16xbf16>
    %cst_85 = arith.constant dense<0.000000e+00> : vector<16x128xf32>
    %129 = tpu.matmul %128, %126, %cst_85 {dimension_numbers = #tpu.dot_dimension_numbers<[1], [0], [0], [1], [0, 0, 1, 1], [], []>} : vector<16x16xbf16>, vector<16x128xbf16>, vector<16x128xf32> -> vector<16x128xf32>
    %130 = arith.addf %125, %129 : vector<16x128xf32>
    %cst_86 = arith.constant dense<0.000000e+00> : vector<16xf32>
    %131 = vector.multi_reduction <add>, %130, %cst_86 [1] : vector<16x128xf32> to vector<16xf32>
    %132 = vector.shape_cast %131 : vector<16xf32> to vector<16x1xf32>
    %133 = arith.mulf %130, %130 : vector<16x128xf32>
    %cst_87 = arith.constant dense<0.000000e+00> : vector<16xf32>
    %134 = vector.multi_reduction <add>, %133, %cst_87 [1] : vector<16x128xf32> to vector<16xf32>
    %135 = vector.shape_cast %134 : vector<16xf32> to vector<16x1xf32>
    %cst_88 = arith.constant dense<0.000000e+00> : vector<16x1xf32>
    %136 = tpu.matmul %0, %132, %cst_88 {dimension_numbers = #tpu.dot_dimension_numbers<[1], [0], [0], [1], [0, 0, 1, 1], [], []>} : vector<16x16xf32>, vector<16x1xf32>, vector<16x1xf32> -> vector<16x1xf32>
    %cst_89 = arith.constant dense<0.000000e+00> : vector<16x1xf32>
    %137 = tpu.matmul %0, %135, %cst_89 {dimension_numbers = #tpu.dot_dimension_numbers<[1], [0], [0], [1], [0, 0, 1, 1], [], []>} : vector<16x16xf32>, vector<16x1xf32>, vector<16x1xf32> -> vector<16x1xf32>
    %cst_90 = arith.constant 3.125000e-02 : f32
    %138 = vector.broadcast %cst_90 : f32 to vector<16x1xf32>
    %139 = arith.mulf %136, %138 : vector<16x1xf32>
    %cst_91 = arith.constant 3.125000e-02 : f32
    %140 = vector.broadcast %cst_91 : f32 to vector<16x1xf32>
    %141 = arith.mulf %137, %140 : vector<16x1xf32>
    %142 = arith.mulf %139, %139 : vector<16x1xf32>
    %143 = arith.subf %141, %142 : vector<16x1xf32>
    %cst_92 = arith.constant 0.000000e+00 : f32
    %144 = vector.broadcast %cst_92 : f32 to vector<16x1xf32>
    %145 = arith.maximumf %143, %144 : vector<16x1xf32>
    %146 = vector.broadcast %139 : vector<16x1xf32> to vector<16x128xf32>
    %147 = arith.subf %130, %146 : vector<16x128xf32>
    %cst_93 = arith.constant 9.99999974E-6 : f32
    %148 = vector.broadcast %cst_93 : f32 to vector<16x1xf32>
    %149 = arith.addf %145, %148 : vector<16x1xf32>
    %150 = math.rsqrt %149 : vector<16x1xf32>
    %151 = vector.broadcast %150 : vector<16x1xf32> to vector<16x128xf32>
    %152 = arith.mulf %147, %151 : vector<16x128xf32>
    %c0_94 = arith.constant 0 : index
    %c0_95 = arith.constant 0 : index
    %153 = vector.load %arg8[%c0_94, %c0_95] : memref<16x2xf32, #tpu.memory_space<vmem>>, vector<16x1xf32>
    %154 = vector.broadcast %153 : vector<16x1xf32> to vector<16x128xf32>
    %155 = arith.mulf %152, %154 : vector<16x128xf32>
    %c0_96 = arith.constant 0 : index
    %c1_97 = arith.constant 1 : index
    %156 = vector.load %arg8[%c0_96, %c1_97] : memref<16x2xf32, #tpu.memory_space<vmem>>, vector<16x1xf32>
    %157 = vector.broadcast %156 : vector<16x1xf32> to vector<16x128xf32>
    %158 = arith.addf %155, %157 : vector<16x128xf32>
    %cst_98 = arith.constant 0.000000e+00 : f32
    %159 = vector.broadcast %cst_98 : f32 to vector<16x128xf32>
    %160 = arith.cmpf oge, %158, %159 : vector<16x128xf32>
    %cst_99 = arith.constant 2.000000e-01 : f32
    %161 = vector.broadcast %cst_99 : f32 to vector<16x128xf32>
    %162 = arith.mulf %161, %158 : vector<16x128xf32>
    %163 = arith.select %160, %158, %162 : vector<16x128xi1>, vector<16x128xf32>
    %c0_100 = arith.constant 0 : index
    %c0_101 = arith.constant 0 : index
    %164 = vector.load %arg9[%c0_100, %c0_101] : memref<128x128xf32, #tpu.memory_space<vmem>>, vector<128x128xf32>
    %cst_102 = arith.constant dense<0.000000e+00> : vector<16x128xf32>
    %165 = tpu.matmul %163, %164, %cst_102 {dimension_numbers = #tpu.dot_dimension_numbers<[1], [0], [0], [1], [0, 0, 1, 1], [], []>} : vector<16x128xf32>, vector<128x128xf32>, vector<16x128xf32> -> vector<16x128xf32>
    %c0_103 = arith.constant 0 : index
    %c0_104 = arith.constant 0 : index
    %166 = vector.load %arg13[%c0_103, %c0_104] : memref<16x128xf32, #tpu.memory_space<vmem>>, vector<16x128xf32>
    %167 = arith.mulf %165, %166 : vector<16x128xf32>
    %c0_105 = arith.constant 0 : index
    %c0_106 = arith.constant 0 : index
    %168 = vector.load %arg14[%c0_105, %c0_106] : memref<2x16xf32, #tpu.memory_space<vmem>>, vector<2x16xf32>
    %cst_107 = arith.constant dense<0.000000e+00> : vector<2x128xf32>
    %169 = tpu.matmul %168, %167, %cst_107 {dimension_numbers = #tpu.dot_dimension_numbers<[1], [0], [0], [1], [0, 0, 1, 1], [], []>} : vector<2x16xf32>, vector<16x128xf32>, vector<2x128xf32> -> vector<2x128xf32>
    %c0_108 = arith.constant 0 : index
    %c0_109 = arith.constant 0 : index
    %170 = vector.load %arg16[%c0_108, %c0_109] : memref<128x16xf32, #tpu.memory_space<vmem>>, vector<128x16xf32>
    %cst_110 = arith.constant dense<0.000000e+00> : vector<2x16xf32>
    %171 = tpu.matmul %169, %170, %cst_110 {dimension_numbers = #tpu.dot_dimension_numbers<[1], [0], [0], [1], [0, 0, 1, 1], [], []>} : vector<2x128xf32>, vector<128x16xf32>, vector<2x16xf32> -> vector<2x16xf32>
    %c0_111 = arith.constant 0 : index
    %c0_112 = arith.constant 0 : index
    %172 = vector.load %arg10[%c0_111, %c0_112] : memref<1x16xf32, #tpu.memory_space<vmem>>, vector<1x16xf32>
    %173 = vector.broadcast %172 : vector<1x16xf32> to vector<2x16xf32>
    %174 = arith.addf %171, %173 : vector<2x16xf32>
    %c0_113 = arith.constant 0 : index
    %c0_114 = arith.constant 0 : index
    %175 = vector.load %arg27[%c0_113, %c0_114] : memref<2x16xf32, #tpu.memory_space<vmem>>, vector<2x16xf32>
    tpu.vector_store %arg27[%c0_113, %c0_114], %174 {strides = array<i32>} : memref<2x16xf32, #tpu.memory_space<vmem>>, vector<2x16xf32>,
    %c0_115 = arith.constant 0 : index
    %c0_116 = arith.constant 0 : index
    %176 = vector.load %arg1[%c0_115, %c0_116] : memref<2x16xf32, #tpu.memory_space<vmem>>, vector<2x16xf32>
    %cst_117 = arith.constant 5.000000e-01 : f32
    %177 = vector.broadcast %cst_117 : f32 to vector<2x16xf32>
    %178 = arith.mulf %177, %174 : vector<2x16xf32>
    %179 = math.exp %178 : vector<2x16xf32>
    %180 = arith.mulf %176, %179 : vector<2x16xf32>
    %181 = arith.addf %174, %180 : vector<2x16xf32>
    %c0_118 = arith.constant 0 : index
    %c0_119 = arith.constant 0 : index
    %182 = vector.load %arg11[%c0_118, %c0_119] : memref<16x128xf32, #tpu.memory_space<vmem>>, vector<16x128xf32>
    %cst_120 = arith.constant dense<0.000000e+00> : vector<2x128xf32>
    %183 = tpu.matmul %181, %182, %cst_120 {dimension_numbers = #tpu.dot_dimension_numbers<[1], [0], [0], [1], [0, 0, 1, 1], [], []>} : vector<2x16xf32>, vector<16x128xf32>, vector<2x128xf32> -> vector<2x128xf32>
    %c0_121 = arith.constant 0 : index
    %c0_122 = arith.constant 0 : index
    %184 = vector.load %arg15[%c0_121, %c0_122] : memref<16x2xf32, #tpu.memory_space<vmem>>, vector<16x2xf32>
    %cst_123 = arith.constant dense<0.000000e+00> : vector<16x128xf32>
    %185 = tpu.matmul %184, %183, %cst_123 {dimension_numbers = #tpu.dot_dimension_numbers<[1], [0], [0], [1], [0, 0, 1, 1], [], []>} : vector<16x2xf32>, vector<2x128xf32>, vector<16x128xf32> -> vector<16x128xf32>
    %c0_124 = arith.constant 0 : index
    %c0_125 = arith.constant 0 : index
    %186 = vector.load %arg13[%c0_124, %c0_125] : memref<16x128xf32, #tpu.memory_space<vmem>>, vector<16x128xf32>
    %187 = arith.mulf %185, %186 : vector<16x128xf32>
    %c0_126 = arith.constant 0 : index
    %c0_127 = arith.constant 0 : index
    %188 = vector.load %arg16[%c0_126, %c0_127] : memref<128x16xf32, #tpu.memory_space<vmem>>, vector<128x16xf32>
    %cst_128 = arith.constant dense<0.000000e+00> : vector<16x16xf32>
    %189 = tpu.matmul %187, %188, %cst_128 {dimension_numbers = #tpu.dot_dimension_numbers<[1], [0], [0], [1], [0, 0, 1, 1], [], []>} : vector<16x128xf32>, vector<128x16xf32>, vector<16x16xf32> -> vector<16x16xf32>
    %c0_129 = arith.constant 0 : index
    %c0_130 = arith.constant 0 : index
    %190 = vector.load %arg12[%c0_129, %c0_130] : memref<16x16xf32, #tpu.memory_space<vmem>>, vector<16x16xf32>
    %191 = arith.addf %189, %190 : vector<16x16xf32>
    %192 = arith.truncf %191 : vector<16x16xf32> to vector<16x16xbf16>
    %c0_131 = arith.constant 0 : index
    %c0_132 = arith.constant 0 : index
    %193 = vector.load %arg17[%c0_131, %c0_132] : memref<16x1152xbf16, #tpu.memory_space<vmem>>, vector<16x1152xbf16>
    %cst_133 = arith.constant dense<0.000000e+00> : vector<16x1152xf32>
    %194 = tpu.matmul %192, %193, %cst_133 {dimension_numbers = #tpu.dot_dimension_numbers<[1], [0], [0], [1], [0, 0, 1, 1], [], []>} : vector<16x16xbf16>, vector<16x1152xbf16>, vector<16x1152xf32> -> vector<16x1152xf32>
    %195 = arith.truncf %194 : vector<16x1152xf32> to vector<16x1152xbf16>
    %196 = vector.extract_strided_slice %195 {offsets = [0, 0], sizes = [16, 128], strides = [1, 1]} : vector<16x1152xbf16> to vector<16x128xbf16>
    %c0_134 = arith.constant 0 : index
    %c0_135 = arith.constant 0 : index
    %c0_136 = arith.constant 0 : index
    %197 = vector.load %arg18[%c0_134, %c0_135, %c0_136] : memref<9x16x16xbf16, #tpu.memory_space<vmem>>, vector<1x16x16xbf16>
    %198 = vector.shape_cast %197 : vector<1x16x16xbf16> to vector<16x16xbf16>
    %cst_137 = arith.constant dense<0.000000e+00> : vector<16x128xf32>
    %199 = tpu.matmul %198, %196, %cst_137 {dimension_numbers = #tpu.dot_dimension_numbers<[1], [0], [0], [1], [0, 0, 1, 1], [], []>} : vector<16x16xbf16>, vector<16x128xbf16>, vector<16x128xf32> -> vector<16x128xf32>
    %200 = vector.extract_strided_slice %195 {offsets = [0, 128], sizes = [16, 128], strides = [1, 1]} : vector<16x1152xbf16> to vector<16x128xbf16>
    %c1_138 = arith.constant 1 : index
    %c0_139 = arith.constant 0 : index
    %c0_140 = arith.constant 0 : index
    %201 = vector.load %arg18[%c1_138, %c0_139, %c0_140] : memref<9x16x16xbf16, #tpu.memory_space<vmem>>, vector<1x16x16xbf16>
    %202 = vector.shape_cast %201 : vector<1x16x16xbf16> to vector<16x16xbf16>
    %cst_141 = arith.constant dense<0.000000e+00> : vector<16x128xf32>
    %203 = tpu.matmul %202, %200, %cst_141 {dimension_numbers = #tpu.dot_dimension_numbers<[1], [0], [0], [1], [0, 0, 1, 1], [], []>} : vector<16x16xbf16>, vector<16x128xbf16>, vector<16x128xf32> -> vector<16x128xf32>
    %204 = arith.addf %199, %203 : vector<16x128xf32>
    %205 = vector.extract_strided_slice %195 {offsets = [0, 256], sizes = [16, 128], strides = [1, 1]} : vector<16x1152xbf16> to vector<16x128xbf16>
    %c2_142 = arith.constant 2 : index
    %c0_143 = arith.constant 0 : index
    %c0_144 = arith.constant 0 : index
    %206 = vector.load %arg18[%c2_142, %c0_143, %c0_144] : memref<9x16x16xbf16, #tpu.memory_space<vmem>>, vector<1x16x16xbf16>
    %207 = vector.shape_cast %206 : vector<1x16x16xbf16> to vector<16x16xbf16>
    %cst_145 = arith.constant dense<0.000000e+00> : vector<16x128xf32>
    %208 = tpu.matmul %207, %205, %cst_145 {dimension_numbers = #tpu.dot_dimension_numbers<[1], [0], [0], [1], [0, 0, 1, 1], [], []>} : vector<16x16xbf16>, vector<16x128xbf16>, vector<16x128xf32> -> vector<16x128xf32>
    %209 = arith.addf %204, %208 : vector<16x128xf32>
    %210 = vector.extract_strided_slice %195 {offsets = [0, 384], sizes = [16, 128], strides = [1, 1]} : vector<16x1152xbf16> to vector<16x128xbf16>
    %c3_146 = arith.constant 3 : index
    %c0_147 = arith.constant 0 : index
    %c0_148 = arith.constant 0 : index
    %211 = vector.load %arg18[%c3_146, %c0_147, %c0_148] : memref<9x16x16xbf16, #tpu.memory_space<vmem>>, vector<1x16x16xbf16>
    %212 = vector.shape_cast %211 : vector<1x16x16xbf16> to vector<16x16xbf16>
    %cst_149 = arith.constant dense<0.000000e+00> : vector<16x128xf32>
    %213 = tpu.matmul %212, %210, %cst_149 {dimension_numbers = #tpu.dot_dimension_numbers<[1], [0], [0], [1], [0, 0, 1, 1], [], []>} : vector<16x16xbf16>, vector<16x128xbf16>, vector<16x128xf32> -> vector<16x128xf32>
    %214 = arith.addf %209, %213 : vector<16x128xf32>
    %215 = vector.extract_strided_slice %195 {offsets = [0, 512], sizes = [16, 128], strides = [1, 1]} : vector<16x1152xbf16> to vector<16x128xbf16>
    %c4_150 = arith.constant 4 : index
    %c0_151 = arith.constant 0 : index
    %c0_152 = arith.constant 0 : index
    %216 = vector.load %arg18[%c4_150, %c0_151, %c0_152] : memref<9x16x16xbf16, #tpu.memory_space<vmem>>, vector<1x16x16xbf16>
    %217 = vector.shape_cast %216 : vector<1x16x16xbf16> to vector<16x16xbf16>
    %cst_153 = arith.constant dense<0.000000e+00> : vector<16x128xf32>
    %218 = tpu.matmul %217, %215, %cst_153 {dimension_numbers = #tpu.dot_dimension_numbers<[1], [0], [0], [1], [0, 0, 1, 1], [], []>} : vector<16x16xbf16>, vector<16x128xbf16>, vector<16x128xf32> -> vector<16x128xf32>
    %219 = arith.addf %214, %218 : vector<16x128xf32>
    %220 = vector.extract_strided_slice %195 {offsets = [0, 640], sizes = [16, 128], strides = [1, 1]} : vector<16x1152xbf16> to vector<16x128xbf16>
    %c5_154 = arith.constant 5 : index
    %c0_155 = arith.constant 0 : index
    %c0_156 = arith.constant 0 : index
    %221 = vector.load %arg18[%c5_154, %c0_155, %c0_156] : memref<9x16x16xbf16, #tpu.memory_space<vmem>>, vector<1x16x16xbf16>
    %222 = vector.shape_cast %221 : vector<1x16x16xbf16> to vector<16x16xbf16>
    %cst_157 = arith.constant dense<0.000000e+00> : vector<16x128xf32>
    %223 = tpu.matmul %222, %220, %cst_157 {dimension_numbers = #tpu.dot_dimension_numbers<[1], [0], [0], [1], [0, 0, 1, 1], [], []>} : vector<16x16xbf16>, vector<16x128xbf16>, vector<16x128xf32> -> vector<16x128xf32>
    %224 = arith.addf %219, %223 : vector<16x128xf32>
    %225 = vector.extract_strided_slice %195 {offsets = [0, 768], sizes = [16, 128], strides = [1, 1]} : vector<16x1152xbf16> to vector<16x128xbf16>
    %c6_158 = arith.constant 6 : index
    %c0_159 = arith.constant 0 : index
    %c0_160 = arith.constant 0 : index
    %226 = vector.load %arg18[%c6_158, %c0_159, %c0_160] : memref<9x16x16xbf16, #tpu.memory_space<vmem>>, vector<1x16x16xbf16>
    %227 = vector.shape_cast %226 : vector<1x16x16xbf16> to vector<16x16xbf16>
    %cst_161 = arith.constant dense<0.000000e+00> : vector<16x128xf32>
    %228 = tpu.matmul %227, %225, %cst_161 {dimension_numbers = #tpu.dot_dimension_numbers<[1], [0], [0], [1], [0, 0, 1, 1], [], []>} : vector<16x16xbf16>, vector<16x128xbf16>, vector<16x128xf32> -> vector<16x128xf32>
    %229 = arith.addf %224, %228 : vector<16x128xf32>
    %230 = vector.extract_strided_slice %195 {offsets = [0, 896], sizes = [16, 128], strides = [1, 1]} : vector<16x1152xbf16> to vector<16x128xbf16>
    %c7_162 = arith.constant 7 : index
    %c0_163 = arith.constant 0 : index
    %c0_164 = arith.constant 0 : index
    %231 = vector.load %arg18[%c7_162, %c0_163, %c0_164] : memref<9x16x16xbf16, #tpu.memory_space<vmem>>, vector<1x16x16xbf16>
    %232 = vector.shape_cast %231 : vector<1x16x16xbf16> to vector<16x16xbf16>
    %cst_165 = arith.constant dense<0.000000e+00> : vector<16x128xf32>
    %233 = tpu.matmul %232, %230, %cst_165 {dimension_numbers = #tpu.dot_dimension_numbers<[1], [0], [0], [1], [0, 0, 1, 1], [], []>} : vector<16x16xbf16>, vector<16x128xbf16>, vector<16x128xf32> -> vector<16x128xf32>
    %234 = arith.addf %229, %233 : vector<16x128xf32>
    %235 = vector.extract_strided_slice %195 {offsets = [0, 1024], sizes = [16, 128], strides = [1, 1]} : vector<16x1152xbf16> to vector<16x128xbf16>
    %c8_166 = arith.constant 8 : index
    %c0_167 = arith.constant 0 : index
    %c0_168 = arith.constant 0 : index
    %236 = vector.load %arg18[%c8_166, %c0_167, %c0_168] : memref<9x16x16xbf16, #tpu.memory_space<vmem>>, vector<1x16x16xbf16>
    %237 = vector.shape_cast %236 : vector<1x16x16xbf16> to vector<16x16xbf16>
    %cst_169 = arith.constant dense<0.000000e+00> : vector<16x128xf32>
    %238 = tpu.matmul %237, %235, %cst_169 {dimension_numbers = #tpu.dot_dimension_numbers<[1], [0], [0], [1], [0, 0, 1, 1], [], []>} : vector<16x16xbf16>, vector<16x128xbf16>, vector<16x128xf32> -> vector<16x128xf32>
    %239 = arith.addf %234, %238 : vector<16x128xf32>
    %cst_170 = arith.constant dense<0.000000e+00> : vector<16xf32>
    %240 = vector.multi_reduction <add>, %239, %cst_170 [1] : vector<16x128xf32> to vector<16xf32>
    %241 = vector.shape_cast %240 : vector<16xf32> to vector<16x1xf32>
    %242 = arith.mulf %239, %239 : vector<16x128xf32>
    %cst_171 = arith.constant dense<0.000000e+00> : vector<16xf32>
    %243 = vector.multi_reduction <add>, %242, %cst_171 [1] : vector<16x128xf32> to vector<16xf32>
    %244 = vector.shape_cast %243 : vector<16xf32> to vector<16x1xf32>
    %cst_172 = arith.constant dense<0.000000e+00> : vector<16x1xf32>
    %245 = tpu.matmul %0, %241, %cst_172 {dimension_numbers = #tpu.dot_dimension_numbers<[1], [0], [0], [1], [0, 0, 1, 1], [], []>} : vector<16x16xf32>, vector<16x1xf32>, vector<16x1xf32> -> vector<16x1xf32>
    %cst_173 = arith.constant dense<0.000000e+00> : vector<16x1xf32>
    %246 = tpu.matmul %0, %244, %cst_173 {dimension_numbers = #tpu.dot_dimension_numbers<[1], [0], [0], [1], [0, 0, 1, 1], [], []>} : vector<16x16xf32>, vector<16x1xf32>, vector<16x1xf32> -> vector<16x1xf32>
    %cst_174 = arith.constant 0.0102040814 : f32
    %247 = vector.broadcast %cst_174 : f32 to vector<16x1xf32>
    %248 = arith.mulf %245, %247 : vector<16x1xf32>
    %cst_175 = arith.constant 0.0102040814 : f32
    %249 = vector.broadcast %cst_175 : f32 to vector<16x1xf32>
    %250 = arith.mulf %246, %249 : vector<16x1xf32>
    %251 = arith.mulf %248, %248 : vector<16x1xf32>
    %252 = arith.subf %250, %251 : vector<16x1xf32>
    %cst_176 = arith.constant 0.000000e+00 : f32
    %253 = vector.broadcast %cst_176 : f32 to vector<16x1xf32>
    %254 = arith.maximumf %252, %253 : vector<16x1xf32>
    %255 = vector.broadcast %248 : vector<16x1xf32> to vector<16x128xf32>
    %256 = arith.subf %239, %255 : vector<16x128xf32>
    %cst_177 = arith.constant 9.99999974E-6 : f32
    %257 = vector.broadcast %cst_177 : f32 to vector<16x1xf32>
    %258 = arith.addf %254, %257 : vector<16x1xf32>
    %259 = math.rsqrt %258 : vector<16x1xf32>
    %260 = vector.broadcast %259 : vector<16x1xf32> to vector<16x128xf32>
    %261 = arith.mulf %256, %260 : vector<16x128xf32>
    %c0_178 = arith.constant 0 : index
    %c0_179 = arith.constant 0 : index
    %262 = vector.load %arg19[%c0_178, %c0_179] : memref<16x2xf32, #tpu.memory_space<vmem>>, vector<16x1xf32>
    %263 = vector.broadcast %262 : vector<16x1xf32> to vector<16x128xf32>
    %264 = arith.mulf %261, %263 : vector<16x128xf32>
    %c0_180 = arith.constant 0 : index
    %c1_181 = arith.constant 1 : index
    %265 = vector.load %arg19[%c0_180, %c1_181] : memref<16x2xf32, #tpu.memory_space<vmem>>, vector<16x1xf32>
    %266 = vector.broadcast %265 : vector<16x1xf32> to vector<16x128xf32>
    %267 = arith.addf %264, %266 : vector<16x128xf32>
    %cst_182 = arith.constant 0.000000e+00 : f32
    %268 = vector.broadcast %cst_182 : f32 to vector<16x128xf32>
    %269 = arith.cmpf oge, %267, %268 : vector<16x128xf32>
    %cst_183 = arith.constant 2.000000e-01 : f32
    %270 = vector.broadcast %cst_183 : f32 to vector<16x128xf32>
    %271 = arith.mulf %270, %267 : vector<16x128xf32>
    %272 = arith.select %269, %267, %271 : vector<16x128xi1>, vector<16x128xf32>
    %273 = arith.truncf %272 : vector<16x128xf32> to vector<16x128xbf16>
    %c0_184 = arith.constant 0 : index
    %c0_185 = arith.constant 0 : index
    %274 = vector.load %arg20[%c0_184, %c0_185] : memref<128x2304xbf16, #tpu.memory_space<vmem>>, vector<128x2304xbf16>
    %cst_186 = arith.constant dense<0.000000e+00> : vector<16x2304xf32>
    %275 = tpu.matmul %273, %274, %cst_186 {dimension_numbers = #tpu.dot_dimension_numbers<[1], [0], [0], [1], [0, 0, 1, 1], [], []>} : vector<16x128xbf16>, vector<128x2304xbf16>, vector<16x2304xf32> -> vector<16x2304xf32>
    %276 = arith.truncf %275 : vector<16x2304xf32> to vector<16x2304xbf16>
    %277 = vector.extract_strided_slice %276 {offsets = [0, 0], sizes = [16, 256], strides = [1, 1]} : vector<16x2304xbf16> to vector<16x256xbf16>
    %c0_187 = arith.constant 0 : index
    %c0_188 = arith.constant 0 : index
    %c0_189 = arith.constant 0 : index
    %278 = vector.load %arg21[%c0_187, %c0_188, %c0_189] : memref<9x16x16xbf16, #tpu.memory_space<vmem>>, vector<1x16x16xbf16>
    %279 = vector.shape_cast %278 : vector<1x16x16xbf16> to vector<16x16xbf16>
    %cst_190 = arith.constant dense<0.000000e+00> : vector<16x256xf32>
    %280 = tpu.matmul %279, %277, %cst_190 {dimension_numbers = #tpu.dot_dimension_numbers<[1], [0], [0], [1], [0, 0, 1, 1], [], []>} : vector<16x16xbf16>, vector<16x256xbf16>, vector<16x256xf32> -> vector<16x256xf32>
    %281 = vector.extract_strided_slice %276 {offsets = [0, 256], sizes = [16, 256], strides = [1, 1]} : vector<16x2304xbf16> to vector<16x256xbf16>
    %c1_191 = arith.constant 1 : index
    %c0_192 = arith.constant 0 : index
    %c0_193 = arith.constant 0 : index
    %282 = vector.load %arg21[%c1_191, %c0_192, %c0_193] : memref<9x16x16xbf16, #tpu.memory_space<vmem>>, vector<1x16x16xbf16>
    %283 = vector.shape_cast %282 : vector<1x16x16xbf16> to vector<16x16xbf16>
    %cst_194 = arith.constant dense<0.000000e+00> : vector<16x256xf32>
    %284 = tpu.matmul %283, %281, %cst_194 {dimension_numbers = #tpu.dot_dimension_numbers<[1], [0], [0], [1], [0, 0, 1, 1], [], []>} : vector<16x16xbf16>, vector<16x256xbf16>, vector<16x256xf32> -> vector<16x256xf32>
    %285 = arith.addf %280, %284 : vector<16x256xf32>
    %286 = vector.extract_strided_slice %276 {offsets = [0, 512], sizes = [16, 256], strides = [1, 1]} : vector<16x2304xbf16> to vector<16x256xbf16>
    %c2_195 = arith.constant 2 : index
    %c0_196 = arith.constant 0 : index
    %c0_197 = arith.constant 0 : index
    %287 = vector.load %arg21[%c2_195, %c0_196, %c0_197] : memref<9x16x16xbf16, #tpu.memory_space<vmem>>, vector<1x16x16xbf16>
    %288 = vector.shape_cast %287 : vector<1x16x16xbf16> to vector<16x16xbf16>
    %cst_198 = arith.constant dense<0.000000e+00> : vector<16x256xf32>
    %289 = tpu.matmul %288, %286, %cst_198 {dimension_numbers = #tpu.dot_dimension_numbers<[1], [0], [0], [1], [0, 0, 1, 1], [], []>} : vector<16x16xbf16>, vector<16x256xbf16>, vector<16x256xf32> -> vector<16x256xf32>
    %290 = arith.addf %285, %289 : vector<16x256xf32>
    %291 = vector.extract_strided_slice %276 {offsets = [0, 768], sizes = [16, 256], strides = [1, 1]} : vector<16x2304xbf16> to vector<16x256xbf16>
    %c3_199 = arith.constant 3 : index
    %c0_200 = arith.constant 0 : index
    %c0_201 = arith.constant 0 : index
    %292 = vector.load %arg21[%c3_199, %c0_200, %c0_201] : memref<9x16x16xbf16, #tpu.memory_space<vmem>>, vector<1x16x16xbf16>
    %293 = vector.shape_cast %292 : vector<1x16x16xbf16> to vector<16x16xbf16>
    %cst_202 = arith.constant dense<0.000000e+00> : vector<16x256xf32>
    %294 = tpu.matmul %293, %291, %cst_202 {dimension_numbers = #tpu.dot_dimension_numbers<[1], [0], [0], [1], [0, 0, 1, 1], [], []>} : vector<16x16xbf16>, vector<16x256xbf16>, vector<16x256xf32> -> vector<16x256xf32>
    %295 = arith.addf %290, %294 : vector<16x256xf32>
    %296 = vector.extract_strided_slice %276 {offsets = [0, 1024], sizes = [16, 256], strides = [1, 1]} : vector<16x2304xbf16> to vector<16x256xbf16>
    %c4_203 = arith.constant 4 : index
    %c0_204 = arith.constant 0 : index
    %c0_205 = arith.constant 0 : index
    %297 = vector.load %arg21[%c4_203, %c0_204, %c0_205] : memref<9x16x16xbf16, #tpu.memory_space<vmem>>, vector<1x16x16xbf16>
    %298 = vector.shape_cast %297 : vector<1x16x16xbf16> to vector<16x16xbf16>
    %cst_206 = arith.constant dense<0.000000e+00> : vector<16x256xf32>
    %299 = tpu.matmul %298, %296, %cst_206 {dimension_numbers = #tpu.dot_dimension_numbers<[1], [0], [0], [1], [0, 0, 1, 1], [], []>} : vector<16x16xbf16>, vector<16x256xbf16>, vector<16x256xf32> -> vector<16x256xf32>
    %300 = arith.addf %295, %299 : vector<16x256xf32>
    %301 = vector.extract_strided_slice %276 {offsets = [0, 1280], sizes = [16, 256], strides = [1, 1]} : vector<16x2304xbf16> to vector<16x256xbf16>
    %c5_207 = arith.constant 5 : index
    %c0_208 = arith.constant 0 : index
    %c0_209 = arith.constant 0 : index
    %302 = vector.load %arg21[%c5_207, %c0_208, %c0_209] : memref<9x16x16xbf16, #tpu.memory_space<vmem>>, vector<1x16x16xbf16>
    %303 = vector.shape_cast %302 : vector<1x16x16xbf16> to vector<16x16xbf16>
    %cst_210 = arith.constant dense<0.000000e+00> : vector<16x256xf32>
    %304 = tpu.matmul %303, %301, %cst_210 {dimension_numbers = #tpu.dot_dimension_numbers<[1], [0], [0], [1], [0, 0, 1, 1], [], []>} : vector<16x16xbf16>, vector<16x256xbf16>, vector<16x256xf32> -> vector<16x256xf32>
    %305 = arith.addf %300, %304 : vector<16x256xf32>
    %306 = vector.extract_strided_slice %276 {offsets = [0, 1536], sizes = [16, 256], strides = [1, 1]} : vector<16x2304xbf16> to vector<16x256xbf16>
    %c6_211 = arith.constant 6 : index
    %c0_212 = arith.constant 0 : index
    %c0_213 = arith.constant 0 : index
    %307 = vector.load %arg21[%c6_211, %c0_212, %c0_213] : memref<9x16x16xbf16, #tpu.memory_space<vmem>>, vector<1x16x16xbf16>
    %308 = vector.shape_cast %307 : vector<1x16x16xbf16> to vector<16x16xbf16>
    %cst_214 = arith.constant dense<0.000000e+00> : vector<16x256xf32>
    %309 = tpu.matmul %308, %306, %cst_214 {dimension_numbers = #tpu.dot_dimension_numbers<[1], [0], [0], [1], [0, 0, 1, 1], [], []>} : vector<16x16xbf16>, vector<16x256xbf16>, vector<16x256xf32> -> vector<16x256xf32>
    %310 = arith.addf %305, %309 : vector<16x256xf32>
    %311 = vector.extract_strided_slice %276 {offsets = [0, 1792], sizes = [16, 256], strides = [1, 1]} : vector<16x2304xbf16> to vector<16x256xbf16>
    %c7_215 = arith.constant 7 : index
    %c0_216 = arith.constant 0 : index
    %c0_217 = arith.constant 0 : index
    %312 = vector.load %arg21[%c7_215, %c0_216, %c0_217] : memref<9x16x16xbf16, #tpu.memory_space<vmem>>, vector<1x16x16xbf16>
    %313 = vector.shape_cast %312 : vector<1x16x16xbf16> to vector<16x16xbf16>
    %cst_218 = arith.constant dense<0.000000e+00> : vector<16x256xf32>
    %314 = tpu.matmul %313, %311, %cst_218 {dimension_numbers = #tpu.dot_dimension_numbers<[1], [0], [0], [1], [0, 0, 1, 1], [], []>} : vector<16x16xbf16>, vector<16x256xbf16>, vector<16x256xf32> -> vector<16x256xf32>
    %315 = arith.addf %310, %314 : vector<16x256xf32>
    %316 = vector.extract_strided_slice %276 {offsets = [0, 2048], sizes = [16, 256], strides = [1, 1]} : vector<16x2304xbf16> to vector<16x256xbf16>
    %c8_219 = arith.constant 8 : index
    %c0_220 = arith.constant 0 : index
    %c0_221 = arith.constant 0 : index
    %317 = vector.load %arg21[%c8_219, %c0_220, %c0_221] : memref<9x16x16xbf16, #tpu.memory_space<vmem>>, vector<1x16x16xbf16>
    %318 = vector.shape_cast %317 : vector<1x16x16xbf16> to vector<16x16xbf16>
    %cst_222 = arith.constant dense<0.000000e+00> : vector<16x256xf32>
    %319 = tpu.matmul %318, %316, %cst_222 {dimension_numbers = #tpu.dot_dimension_numbers<[1], [0], [0], [1], [0, 0, 1, 1], [], []>} : vector<16x16xbf16>, vector<16x256xbf16>, vector<16x256xf32> -> vector<16x256xf32>
    %320 = arith.addf %315, %319 : vector<16x256xf32>
    %cst_223 = arith.constant dense<0.000000e+00> : vector<16xf32>
    %321 = vector.multi_reduction <add>, %320, %cst_223 [1] : vector<16x256xf32> to vector<16xf32>
    %322 = vector.shape_cast %321 : vector<16xf32> to vector<16x1xf32>
    %323 = arith.mulf %320, %320 : vector<16x256xf32>
    %cst_224 = arith.constant dense<0.000000e+00> : vector<16xf32>
    %324 = vector.multi_reduction <add>, %323, %cst_224 [1] : vector<16x256xf32> to vector<16xf32>
    %325 = vector.shape_cast %324 : vector<16xf32> to vector<16x1xf32>
    %cst_225 = arith.constant dense<0.000000e+00> : vector<16x1xf32>
    %326 = tpu.matmul %0, %322, %cst_225 {dimension_numbers = #tpu.dot_dimension_numbers<[1], [0], [0], [1], [0, 0, 1, 1], [], []>} : vector<16x16xf32>, vector<16x1xf32>, vector<16x1xf32> -> vector<16x1xf32>
    %cst_226 = arith.constant dense<0.000000e+00> : vector<16x1xf32>
    %327 = tpu.matmul %0, %325, %cst_226 {dimension_numbers = #tpu.dot_dimension_numbers<[1], [0], [0], [1], [0, 0, 1, 1], [], []>} : vector<16x16xf32>, vector<16x1xf32>, vector<16x1xf32> -> vector<16x1xf32>
    %cst_227 = arith.constant 0.00255102036 : f32
    %328 = vector.broadcast %cst_227 : f32 to vector<16x1xf32>
    %329 = arith.mulf %326, %328 : vector<16x1xf32>
    %cst_228 = arith.constant 0.00255102036 : f32
    %330 = vector.broadcast %cst_228 : f32 to vector<16x1xf32>
    %331 = arith.mulf %327, %330 : vector<16x1xf32>
    %332 = arith.mulf %329, %329 : vector<16x1xf32>
    %333 = arith.subf %331, %332 : vector<16x1xf32>
    %cst_229 = arith.constant 0.000000e+00 : f32
    %334 = vector.broadcast %cst_229 : f32 to vector<16x1xf32>
    %335 = arith.maximumf %333, %334 : vector<16x1xf32>
    %336 = vector.broadcast %329 : vector<16x1xf32> to vector<16x256xf32>
    %337 = arith.subf %320, %336 : vector<16x256xf32>
    %cst_230 = arith.constant 9.99999974E-6 : f32
    %338 = vector.broadcast %cst_230 : f32 to vector<16x1xf32>
    %339 = arith.addf %335, %338 : vector<16x1xf32>
    %340 = math.rsqrt %339 : vector<16x1xf32>
    %341 = vector.broadcast %340 : vector<16x1xf32> to vector<16x256xf32>
    %342 = arith.mulf %337, %341 : vector<16x256xf32>
    %c0_231 = arith.constant 0 : index
    %c0_232 = arith.constant 0 : index
    %343 = vector.load %arg22[%c0_231, %c0_232] : memref<16x2xf32, #tpu.memory_space<vmem>>, vector<16x1xf32>
    %344 = vector.broadcast %343 : vector<16x1xf32> to vector<16x256xf32>
    %345 = arith.mulf %342, %344 : vector<16x256xf32>
    %c0_233 = arith.constant 0 : index
    %c1_234 = arith.constant 1 : index
    %346 = vector.load %arg22[%c0_233, %c1_234] : memref<16x2xf32, #tpu.memory_space<vmem>>, vector<16x1xf32>
    %347 = vector.broadcast %346 : vector<16x1xf32> to vector<16x256xf32>
    %348 = arith.addf %345, %347 : vector<16x256xf32>
    %cst_235 = arith.constant 0.000000e+00 : f32
    %349 = vector.broadcast %cst_235 : f32 to vector<16x256xf32>
    %350 = arith.cmpf oge, %348, %349 : vector<16x256xf32>
    %cst_236 = arith.constant 2.000000e-01 : f32
    %351 = vector.broadcast %cst_236 : f32 to vector<16x256xf32>
    %352 = arith.mulf %351, %348 : vector<16x256xf32>
    %353 = arith.select %350, %348, %352 : vector<16x256xi1>, vector<16x256xf32>
    %c0_237 = arith.constant 0 : index
    %c0_238 = arith.constant 0 : index
    %354 = vector.load %arg23[%c0_237, %c0_238] : memref<1x256xf32, #tpu.memory_space<vmem>>, vector<1x256xf32>
    %355 = vector.broadcast %354 : vector<1x256xf32> to vector<16x256xf32>
    %356 = arith.mulf %353, %355 : vector<16x256xf32>
    %c17_i32 = arith.constant 17 : i32
    %357 = tpu.dynamic_rotate %356 by %c17_i32 dim 1 : vector<16x256xf32>, i32 -> vector<16x256xf32>
    %c0_239 = arith.constant 0 : index
    %c0_240 = arith.constant 0 : index
    %c0_241 = arith.constant 0 : index
    %358 = vector.load %arg24[%c0_239, %c0_240, %c0_241] : memref<9x8x16xbf16, #tpu.memory_space<vmem>>, vector<1x8x16xbf16>
    %359 = vector.shape_cast %358 : vector<1x8x16xbf16> to vector<8x16xbf16>
    %360 = arith.truncf %357 : vector<16x256xf32> to vector<16x256xbf16>
    %cst_242 = arith.constant dense<0.000000e+00> : vector<8x256xf32>
    %361 = tpu.matmul %359, %360, %cst_242 {dimension_numbers = #tpu.dot_dimension_numbers<[1], [0], [0], [1], [0, 0, 1, 1], [], []>} : vector<8x16xbf16>, vector<16x256xbf16>, vector<8x256xf32> -> vector<8x256xf32>
    %c16_i32 = arith.constant 16 : i32
    %362 = tpu.dynamic_rotate %356 by %c16_i32 dim 1 : vector<16x256xf32>, i32 -> vector<16x256xf32>
    %c1_243 = arith.constant 1 : index
    %c0_244 = arith.constant 0 : index
    %c0_245 = arith.constant 0 : index
    %363 = vector.load %arg24[%c1_243, %c0_244, %c0_245] : memref<9x8x16xbf16, #tpu.memory_space<vmem>>, vector<1x8x16xbf16>
    %364 = vector.shape_cast %363 : vector<1x8x16xbf16> to vector<8x16xbf16>
    %365 = arith.truncf %362 : vector<16x256xf32> to vector<16x256xbf16>
    %cst_246 = arith.constant dense<0.000000e+00> : vector<8x256xf32>
    %366 = tpu.matmul %364, %365, %cst_246 {dimension_numbers = #tpu.dot_dimension_numbers<[1], [0], [0], [1], [0, 0, 1, 1], [], []>} : vector<8x16xbf16>, vector<16x256xbf16>, vector<8x256xf32> -> vector<8x256xf32>
    %367 = arith.addf %361, %366 : vector<8x256xf32>
    %c15_i32 = arith.constant 15 : i32
    %368 = tpu.dynamic_rotate %356 by %c15_i32 dim 1 : vector<16x256xf32>, i32 -> vector<16x256xf32>
    %c2_247 = arith.constant 2 : index
    %c0_248 = arith.constant 0 : index
    %c0_249 = arith.constant 0 : index
    %369 = vector.load %arg24[%c2_247, %c0_248, %c0_249] : memref<9x8x16xbf16, #tpu.memory_space<vmem>>, vector<1x8x16xbf16>
    %370 = vector.shape_cast %369 : vector<1x8x16xbf16> to vector<8x16xbf16>
    %371 = arith.truncf %368 : vector<16x256xf32> to vector<16x256xbf16>
    %cst_250 = arith.constant dense<0.000000e+00> : vector<8x256xf32>
    %372 = tpu.matmul %370, %371, %cst_250 {dimension_numbers = #tpu.dot_dimension_numbers<[1], [0], [0], [1], [0, 0, 1, 1], [], []>} : vector<8x16xbf16>, vector<16x256xbf16>, vector<8x256xf32> -> vector<8x256xf32>
    %373 = arith.addf %367, %372 : vector<8x256xf32>
    %c1_i32 = arith.constant 1 : i32
    %374 = tpu.dynamic_rotate %356 by %c1_i32 dim 1 : vector<16x256xf32>, i32 -> vector<16x256xf32>
    %c3_251 = arith.constant 3 : index
    %c0_252 = arith.constant 0 : index
    %c0_253 = arith.constant 0 : index
    %375 = vector.load %arg24[%c3_251, %c0_252, %c0_253] : memref<9x8x16xbf16, #tpu.memory_space<vmem>>, vector<1x8x16xbf16>
    %376 = vector.shape_cast %375 : vector<1x8x16xbf16> to vector<8x16xbf16>
    %377 = arith.truncf %374 : vector<16x256xf32> to vector<16x256xbf16>
    %cst_254 = arith.constant dense<0.000000e+00> : vector<8x256xf32>
    %378 = tpu.matmul %376, %377, %cst_254 {dimension_numbers = #tpu.dot_dimension_numbers<[1], [0], [0], [1], [0, 0, 1, 1], [], []>} : vector<8x16xbf16>, vector<16x256xbf16>, vector<8x256xf32> -> vector<8x256xf32>
    %379 = arith.addf %373, %378 : vector<8x256xf32>
    %c4_255 = arith.constant 4 : index
    %c0_256 = arith.constant 0 : index
    %c0_257 = arith.constant 0 : index
    %380 = vector.load %arg24[%c4_255, %c0_256, %c0_257] : memref<9x8x16xbf16, #tpu.memory_space<vmem>>, vector<1x8x16xbf16>
    %381 = vector.shape_cast %380 : vector<1x8x16xbf16> to vector<8x16xbf16>
    %382 = arith.truncf %356 : vector<16x256xf32> to vector<16x256xbf16>
    %cst_258 = arith.constant dense<0.000000e+00> : vector<8x256xf32>
    %383 = tpu.matmul %381, %382, %cst_258 {dimension_numbers = #tpu.dot_dimension_numbers<[1], [0], [0], [1], [0, 0, 1, 1], [], []>} : vector<8x16xbf16>, vector<16x256xbf16>, vector<8x256xf32> -> vector<8x256xf32>
    %384 = arith.addf %379, %383 : vector<8x256xf32>
    %c255_i32 = arith.constant 255 : i32
    %385 = tpu.dynamic_rotate %356 by %c255_i32 dim 1 : vector<16x256xf32>, i32 -> vector<16x256xf32>
    %c5_259 = arith.constant 5 : index
    %c0_260 = arith.constant 0 : index
    %c0_261 = arith.constant 0 : index
    %386 = vector.load %arg24[%c5_259, %c0_260, %c0_261] : memref<9x8x16xbf16, #tpu.memory_space<vmem>>, vector<1x8x16xbf16>
    %387 = vector.shape_cast %386 : vector<1x8x16xbf16> to vector<8x16xbf16>
    %388 = arith.truncf %385 : vector<16x256xf32> to vector<16x256xbf16>
    %cst_262 = arith.constant dense<0.000000e+00> : vector<8x256xf32>
    %389 = tpu.matmul %387, %388, %cst_262 {dimension_numbers = #tpu.dot_dimension_numbers<[1], [0], [0], [1], [0, 0, 1, 1], [], []>} : vector<8x16xbf16>, vector<16x256xbf16>, vector<8x256xf32> -> vector<8x256xf32>
    %390 = arith.addf %384, %389 : vector<8x256xf32>
    %c241_i32 = arith.constant 241 : i32
    %391 = tpu.dynamic_rotate %356 by %c241_i32 dim 1 : vector<16x256xf32>, i32 -> vector<16x256xf32>
    %c6_263 = arith.constant 6 : index
    %c0_264 = arith.constant 0 : index
    %c0_265 = arith.constant 0 : index
    %392 = vector.load %arg24[%c6_263, %c0_264, %c0_265] : memref<9x8x16xbf16, #tpu.memory_space<vmem>>, vector<1x8x16xbf16>
    %393 = vector.shape_cast %392 : vector<1x8x16xbf16> to vector<8x16xbf16>
    %394 = arith.truncf %391 : vector<16x256xf32> to vector<16x256xbf16>
    %cst_266 = arith.constant dense<0.000000e+00> : vector<8x256xf32>
    %395 = tpu.matmul %393, %394, %cst_266 {dimension_numbers = #tpu.dot_dimension_numbers<[1], [0], [0], [1], [0, 0, 1, 1], [], []>} : vector<8x16xbf16>, vector<16x256xbf16>, vector<8x256xf32> -> vector<8x256xf32>
    %396 = arith.addf %390, %395 : vector<8x256xf32>
    %c240_i32 = arith.constant 240 : i32
    %397 = tpu.dynamic_rotate %356 by %c240_i32 dim 1 : vector<16x256xf32>, i32 -> vector<16x256xf32>
    %c7_267 = arith.constant 7 : index
    %c0_268 = arith.constant 0 : index
    %c0_269 = arith.constant 0 : index
    %398 = vector.load %arg24[%c7_267, %c0_268, %c0_269] : memref<9x8x16xbf16, #tpu.memory_space<vmem>>, vector<1x8x16xbf16>
    %399 = vector.shape_cast %398 : vector<1x8x16xbf16> to vector<8x16xbf16>
    %400 = arith.truncf %397 : vector<16x256xf32> to vector<16x256xbf16>
    %cst_270 = arith.constant dense<0.000000e+00> : vector<8x256xf32>
    %401 = tpu.matmul %399, %400, %cst_270 {dimension_numbers = #tpu.dot_dimension_numbers<[1], [0], [0], [1], [0, 0, 1, 1], [], []>} : vector<8x16xbf16>, vector<16x256xbf16>, vector<8x256xf32> -> vector<8x256xf32>
    %402 = arith.addf %396, %401 : vector<8x256xf32>
    %c239_i32 = arith.constant 239 : i32
    %403 = tpu.dynamic_rotate %356 by %c239_i32 dim 1 : vector<16x256xf32>, i32 -> vector<16x256xf32>
    %c8_271 = arith.constant 8 : index
    %c0_272 = arith.constant 0 : index
    %c0_273 = arith.constant 0 : index
    %404 = vector.load %arg24[%c8_271, %c0_272, %c0_273] : memref<9x8x16xbf16, #tpu.memory_space<vmem>>, vector<1x8x16xbf16>
    %405 = vector.shape_cast %404 : vector<1x8x16xbf16> to vector<8x16xbf16>
    %406 = arith.truncf %403 : vector<16x256xf32> to vector<16x256xbf16>
    %cst_274 = arith.constant dense<0.000000e+00> : vector<8x256xf32>
    %407 = tpu.matmul %405, %406, %cst_274 {dimension_numbers = #tpu.dot_dimension_numbers<[1], [0], [0], [1], [0, 0, 1, 1], [], []>} : vector<8x16xbf16>, vector<16x256xbf16>, vector<8x256xf32> -> vector<8x256xf32>
    %408 = arith.addf %402, %407 : vector<8x256xf32>
    %c0_275 = arith.constant 0 : index
    %c0_276 = arith.constant 0 : index
    %409 = vector.load %arg25[%c0_275, %c0_276] : memref<8x1xf32, #tpu.memory_space<vmem>>, vector<8x1xf32>
    %410 = vector.broadcast %409 : vector<8x1xf32> to vector<8x256xf32>
    %411 = arith.addf %408, %410 : vector<8x256xf32>
    %412 = math.tanh %411 : vector<8x256xf32>
    %c0_277 = arith.constant 0 : index
    %c0_278 = arith.constant 0 : index
    %413 = vector.load %arg26[%c0_277, %c0_278] : memref<8x256xf32, #tpu.memory_space<vmem>>, vector<8x256xf32>
    tpu.vector_store %arg26[%c0_277, %c0_278], %412 {strides = array<i32>} : memref<8x256xf32, #tpu.memory_space<vmem>>, vector<8x256xf32>,
    return
  }
}

</mosaic_0001>

<llo_original>
// kernel: vae_forward.1
$region0: #{vae_forward.1}
  #allocation0 [shape = 'u32[]', space=smem, size = 0x4, offset = 0x4, fixed_abs, tag = 'smem constant byte address 0x4 - core index']
  #allocation1 [shape = 'u32[144,128]{1,0:T(1,128)}', space=vmem, size = 0x12000, scoped, tag = 'internal scratch']
  %s0 = inlined_call_operand.vmem [shape: f32[8,256], index: 0, kind: input, shape index: {}]
  %s1 = inlined_call_operand.vmem [shape: f32[2,16], index: 1, kind: input, shape index: {}]
  %s2 = inlined_call_operand.hbm [shape: f32[16,16], index: 2, kind: input, shape index: {}]
  %s3 = inlined_call_operand.hbm [shape: bf16[256,1152], index: 3, kind: input, shape index: {}]
  %s4 = inlined_call_operand.vmem [shape: bf16[9,16,8], index: 4, kind: input, shape index: {}]
  %s5 = inlined_call_operand.vmem [shape: f32[16,2], index: 5, kind: input, shape index: {}]
  %s6 = inlined_call_operand.hbm [shape: bf16[128,1152], index: 6, kind: input, shape index: {}]
  %s7 = inlined_call_operand.vmem [shape: bf16[9,16,16], index: 7, kind: input, shape index: {}]
  %s8 = inlined_call_operand.vmem [shape: f32[16,2], index: 8, kind: input, shape index: {}]
  %s9 = inlined_call_operand.vmem [shape: f32[128,128], index: 9, kind: input, shape index: {}]
  %s10 = inlined_call_operand.vmem [shape: f32[1,16], index: 10, kind: input, shape index: {}]
  %s11 = inlined_call_operand.hbm [shape: f32[16,128], index: 11, kind: input, shape index: {}]
  %s12 = inlined_call_operand.hbm [shape: f32[16,16], index: 12, kind: input, shape index: {}]
  %s13 = inlined_call_operand.hbm [shape: f32[16,128], index: 13, kind: input, shape index: {}]
  %s14 = inlined_call_operand.vmem [shape: f32[2,16], index: 14, kind: input, shape index: {}]
  %s15 = inlined_call_operand.vmem [shape: f32[16,2], index: 15, kind: input, shape index: {}]
  %s16 = inlined_call_operand.vmem [shape: f32[128,16], index: 16, kind: input, shape index: {}]
  %s17 = inlined_call_operand.vmem [shape: bf16[16,1152], index: 17, kind: input, shape index: {}]
  %s18 = inlined_call_operand.vmem [shape: bf16[9,16,16], index: 18, kind: input, shape index: {}]
  %s19 = inlined_call_operand.vmem [shape: f32[16,2], index: 19, kind: input, shape index: {}]
  %s20 = inlined_call_operand.hbm [shape: bf16[128,2304], index: 20, kind: input, shape index: {}]
  %s21 = inlined_call_operand.vmem [shape: bf16[9,16,16], index: 21, kind: input, shape index: {}]
  %s22 = inlined_call_operand.vmem [shape: f32[16,2], index: 22, kind: input, shape index: {}]
  %s23 = inlined_call_operand.vmem [shape: f32[1,256], index: 23, kind: input, shape index: {}]
  %s24 = inlined_call_operand.hbm [shape: bf16[9,8,16], index: 24, kind: input, shape index: {}]
  %s25 = inlined_call_operand.vmem [shape: f32[8,1], index: 25, kind: input, shape index: {}]
  %s26 = inlined_call_operand.vmem [shape: f32[8,256], index: 26, kind: output, shape index: {0}]
  %s27 = inlined_call_operand.vmem [shape: f32[2,16], index: 27, kind: output, shape index: {1}]
  %28 = xla_tuple %s26, %s27
  %s29 = sld [smem:[#allocation0]]
  $region154: #{vae_forward.1} parent=0
    _
  %s31 = ssub.s32 1, %s29
  %s32 = scalar_select 0, %s31, %s29
  $region1: #{vae_forward.1} parent=0
    #allocation2 [shape = 'u8[8192]{0}', space=vmem, size = 0x2000, scoped, tag = 'input window, operand 2, single buffered']
    #allocation3 [shape = 's32[1]{0}', space=sflag, size = 0x4, scoped, tag = 'scoped memory for vae_forward.1']
    #allocation4 [shape = 'u8[589824]{0}', space=vmem, size = 0x90000, scoped, tag = 'input window, operand 3, single buffered']
    #allocation5 [shape = 's32[1]{0}', space=sflag, size = 0x4, scoped, tag = 'scoped memory for vae_forward.1']
    #allocation6 [shape = 'u8[294912]{0}', space=vmem, size = 0x48000, scoped, tag = 'input window, operand 6, single buffered']
    #allocation7 [shape = 'u8[8192]{0}', space=vmem, size = 0x2000, scoped, tag = 'input window, operand 11, single buffered']
    #allocation8 [shape = 's32[1]{0}', space=sflag, size = 0x4, scoped, tag = 'scoped memory for vae_forward.1']
    #allocation9 [shape = 'u8[8192]{0}', space=vmem, size = 0x2000, scoped, tag = 'input window, operand 12, single buffered']
    #allocation10 [shape = 'u8[8192]{0}', space=vmem, size = 0x2000, scoped, tag = 'input window, operand 13, single buffered']
    #allocation11 [shape = 's32[1]{0}', space=sflag, size = 0x4, scoped, tag = 'scoped memory for vae_forward.1']
    #allocation12 [shape = 'u8[589824]{0}', space=vmem, size = 0x90000, scoped, tag = 'input window, operand 20, single buffered']
    #allocation13 [shape = 'u8[18432]{0}', space=vmem, size = 0x4800, scoped, tag = 'input window, operand 24, single buffered']
    #allocation14 [shape = 's32[1]{0}', space=sflag, size = 0x4, scoped, tag = 'scoped memory for vae_forward.1']
    %33 = vsyncpa [#allocation3], 0
    %34 = vsyncpa [#allocation5], 0
    %35 = vsyncpa [#allocation8], 0
    %36 = vsyncpa [#allocation11], 0
    %37 = vsyncpa [#allocation14], 0
    // Predicated region
    $region2: #{vae_forward.1} parent=1 // pred_check
      _
    $region3: #{vae_forward.1} parent=1 // pred_check_branch
      %39 = sbr.rel (0) target = $region5
    $region4: #{vae_forward.1} parent=1 // pred_region
      _
    $region5: #{vae_forward.1} parent=1 // pred_fallthru
      _
    // Predicated region
    $region6: #{vae_forward.1} parent=1 // pred_check
      _
    $region7: #{vae_forward.1} parent=1 // pred_check_branch
      %41 = sbr.rel (0) target = $region9
    $region8: #{vae_forward.1} parent=1 // pred_region
      _
    $region9: #{vae_forward.1} parent=1 // pred_fallthru
      _
    // Predicated region
    $region10: #{vae_forward.1} parent=1 // pred_check
      _
    $region11: #{vae_forward.1} parent=1 // pred_check_branch
      %43 = sbr.rel (0) target = $region13
    $region12: #{vae_forward.1} parent=1 // pred_region
      %s45 = ssub.s32 256, 256
      %46 = vsyncadd [#allocation3], %s45
      %s47 = sshll.u32 [#allocation2], 4
      %s48 = int_to_ptr.vmem [resolvable:$true] %s47
      %53 = dma.hbm_to_vmem [thread:$0]  %s2, 256, %s48, [#allocation3], 128, 128, 8
    $region13: #{vae_forward.1} parent=1 // pred_fallthru
      _
    // Predicated region
    $region14: #{vae_forward.1} parent=1 // pred_check
      _
    $region15: #{vae_forward.1} parent=1 // pred_check_branch
      %55 = sbr.rel (0) target = $region17
    $region16: #{vae_forward.1} parent=1 // pred_region
      %s57 = ssub.s32 18432, 18432
      %58 = vsyncadd [#allocation5], %s57
      %s59 = sshll.u32 [#allocation4], 4
      %s60 = int_to_ptr.vmem [resolvable:$true] %s59
      %65 = dma.hbm_to_vmem [thread:$0]  %s3, 18432, %s60, [#allocation5], 576, 576, 36
    $region17: #{vae_forward.1} parent=1 // pred_fallthru
      _
    // Predicated region
    $region18: #{vae_forward.1} parent=1 // pred_check
      _
    $region19: #{vae_forward.1} parent=1 // pred_check_branch
      %67 = sbr.rel (0) target = $region21
    $region20: #{vae_forward.1} parent=1 // pred_region
      _
    $region21: #{vae_forward.1} parent=1 // pred_fallthru
      _
    // Predicated region
    $region22: #{vae_forward.1} parent=1 // pred_check
      _
    $region23: #{vae_forward.1} parent=1 // pred_check_branch
      %69 = sbr.rel (0) target = $region25
    $region24: #{vae_forward.1} parent=1 // pred_region
      _
    $region25: #{vae_forward.1} parent=1 // pred_fallthru
      _
    // Predicated region
    $region26: #{vae_forward.1} parent=1 // pred_check
      _
    $region27: #{vae_forward.1} parent=1 // pred_check_branch
      %71 = sbr.rel (0) target = $region29
    $region28: #{vae_forward.1} parent=1 // pred_region
      %s73 = ssub.s32 9216, 9216
      %74 = vsyncadd [#allocation5], %s73
      %s75 = sshll.u32 [#allocation6], 4
      %s76 = int_to_ptr.vmem [resolvable:$true] %s75
      %81 = dma.hbm_to_vmem [thread:$0]  %s6, 9216, %s76, [#allocation5], 576, 576, 36
    $region29: #{vae_forward.1} parent=1 // pred_fallthru
      _
    // Predicated region
    $region30: #{vae_forward.1} parent=1 // pred_check
      _
    $region31: #{vae_forward.1} parent=1 // pred_check_branch
      %83 = sbr.rel (0) target = $region33
    $region32: #{vae_forward.1} parent=1 // pred_region
      _
    $region33: #{vae_forward.1} parent=1 // pred_fallthru
      _
    // Predicated region
    $region34: #{vae_forward.1} parent=1 // pred_check
      _
    $region35: #{vae_forward.1} parent=1 // pred_check_branch
      %85 = sbr.rel (0) target = $region37
    $region36: #{vae_forward.1} parent=1 // pred_region
      _
    $region37: #{vae_forward.1} parent=1 // pred_fallthru
      _
    // Predicated region
    $region38: #{vae_forward.1} parent=1 // pred_check
      _
    $region39: #{vae_forward.1} parent=1 // pred_check_branch
      %87 = sbr.rel (0) target = $region41
    $region40: #{vae_forward.1} parent=1 // pred_region
      _
    $region41: #{vae_forward.1} parent=1 // pred_fallthru
      _
    // Predicated region
    $region42: #{vae_forward.1} parent=1 // pred_check
      _
    $region43: #{vae_forward.1} parent=1 // pred_check_branch
      %89 = sbr.rel (0) target = $region45
    $region44: #{vae_forward.1} parent=1 // pred_region
      _
    $region45: #{vae_forward.1} parent=1 // pred_fallthru
      _
    // Predicated region
    $region46: #{vae_forward.1} parent=1 // pred_check
      _
    $region47: #{vae_forward.1} parent=1 // pred_check_branch
      %91 = sbr.rel (0) target = $region49
    $region48: #{vae_forward.1} parent=1 // pred_region
      %s93 = ssub.s32 256, 256
      %94 = vsyncadd [#allocation8], %s93
      %s95 = sshll.u32 [#allocation7], 4
      %s96 = int_to_ptr.vmem [resolvable:$true] %s95
      %101 = dma.hbm_to_vmem [thread:$0]  %s11, 256, %s96, [#allocation8], 128, 128, 8
    $region49: #{vae_forward.1} parent=1 // pred_fallthru
      _
    // Predicated region
    $region50: #{vae_forward.1} parent=1 // pred_check
      _
    $region51: #{vae_forward.1} parent=1 // pred_check_branch
      %103 = sbr.rel (0) target = $region53
    $region52: #{vae_forward.1} parent=1 // pred_region
      %s105 = ssub.s32 256, 256
      %106 = vsyncadd [#allocation8], %s105
      %s107 = sshll.u32 [#allocation9], 4
      %s108 = int_to_ptr.vmem [resolvable:$true] %s107
      %113 = dma.hbm_to_vmem [thread:$0]  %s12, 256, %s108, [#allocation8], 128, 128, 8
    $region53: #{vae_forward.1} parent=1 // pred_fallthru
      _
    // Predicated region
    $region54: #{vae_forward.1} parent=1 // pred_check
      _
    $region55: #{vae_forward.1} parent=1 // pred_check_branch
      %115 = sbr.rel (0) target = $region57
    $region56: #{vae_forward.1} parent=1 // pred_region
      %s117 = ssub.s32 256, 256
      %118 = vsyncadd [#allocation11], %s117
      %s119 = sshll.u32 [#allocation10], 4
      %s120 = int_to_ptr.vmem [resolvable:$true] %s119
      %125 = dma.hbm_to_vmem [thread:$0]  %s13, 256, %s120, [#allocation11], 128, 128, 8
    $region57: #{vae_forward.1} parent=1 // pred_fallthru
      _
    // Predicated region
    $region58: #{vae_forward.1} parent=1 // pred_check
      _
    $region59: #{vae_forward.1} parent=1 // pred_check_branch
      %127 = sbr.rel (0) target = $region61
    $region60: #{vae_forward.1} parent=1 // pred_region
      _
    $region61: #{vae_forward.1} parent=1 // pred_fallthru
      _
    // Predicated region
    $region62: #{vae_forward.1} parent=1 // pred_check
      _
    $region63: #{vae_forward.1} parent=1 // pred_check_branch
      %129 = sbr.rel (0) target = $region65
    $region64: #{vae_forward.1} parent=1 // pred_region
      _
    $region65: #{vae_forward.1} parent=1 // pred_fallthru
      _
    // Predicated region
    $region66: #{vae_forward.1} parent=1 // pred_check
      _
    $region67: #{vae_forward.1} parent=1 // pred_check_branch
      %131 = sbr.rel (0) target = $region69
    $region68: #{vae_forward.1} parent=1 // pred_region
      _
    $region69: #{vae_forward.1} parent=1 // pred_fallthru
      _
    // Predicated region
    $region70: #{vae_forward.1} parent=1 // pred_check
      _
    $region71: #{vae_forward.1} parent=1 // pred_check_branch
      %133 = sbr.rel (0) target = $region73
    $region72: #{vae_forward.1} parent=1 // pred_region
      _
    $region73: #{vae_forward.1} parent=1 // pred_fallthru
      _
    // Predicated region
    $region74: #{vae_forward.1} parent=1 // pred_check
      _
    $region75: #{vae_forward.1} parent=1 // pred_check_branch
      %135 = sbr.rel (0) target = $region77
    $region76: #{vae_forward.1} parent=1 // pred_region
      _
    $region77: #{vae_forward.1} parent=1 // pred_fallthru
      _
    // Predicated region
    $region78: #{vae_forward.1} parent=1 // pred_check
      _
    $region79: #{vae_forward.1} parent=1 // pred_check_branch
      %137 = sbr.rel (0) target = $region81
    $region80: #{vae_forward.1} parent=1 // pred_region
      _
    $region81: #{vae_forward.1} parent=1 // pred_fallthru
      _
    // Predicated region
    $region82: #{vae_forward.1} parent=1 // pred_check
      _
    $region83: #{vae_forward.1} parent=1 // pred_check_branch
      %139 = sbr.rel (0) target = $region85
    $region84: #{vae_forward.1} parent=1 // pred_region
      %s141 = ssub.s32 18432, 18432
      %142 = vsyncadd [#allocation11], %s141
      %s143 = sshll.u32 [#allocation12], 4
      %s144 = int_to_ptr.vmem [resolvable:$true] %s143
      %149 = dma.hbm_to_vmem [thread:$0]  %s20, 18432, %s144, [#allocation11], 1152, 1152, 72
    $region85: #{vae_forward.1} parent=1 // pred_fallthru
      _
    // Predicated region
    $region86: #{vae_forward.1} parent=1 // pred_check
      _
    $region87: #{vae_forward.1} parent=1 // pred_check_branch
      %151 = sbr.rel (0) target = $region89
    $region88: #{vae_forward.1} parent=1 // pred_region
      _
    $region89: #{vae_forward.1} parent=1 // pred_fallthru
      _
    // Predicated region
    $region90: #{vae_forward.1} parent=1 // pred_check
      _
    $region91: #{vae_forward.1} parent=1 // pred_check_branch
      %153 = sbr.rel (0) target = $region93
    $region92: #{vae_forward.1} parent=1 // pred_region
      _
    $region93: #{vae_forward.1} parent=1 // pred_fallthru
      _
    // Predicated region
    $region94: #{vae_forward.1} parent=1 // pred_check
      _
    $region95: #{vae_forward.1} parent=1 // pred_check_branch
      %155 = sbr.rel (0) target = $region97
    $region96: #{vae_forward.1} parent=1 // pred_region
      _
    $region97: #{vae_forward.1} parent=1 // pred_fallthru
      _
    // Predicated region
    $region98: #{vae_forward.1} parent=1 // pred_check
      _
    $region99: #{vae_forward.1} parent=1 // pred_check_branch
      %157 = sbr.rel (0) target = $region101
    $region100: #{vae_forward.1} parent=1 // pred_region
      %s159 = ssub.s32 576, 576
      %160 = vsyncadd [#allocation14], %s159
      %s161 = sshll.u32 [#allocation13], 4
      %s162 = int_to_ptr.vmem [resolvable:$true] %s161
      %167 = dma.hbm_to_vmem [thread:$0]  %s24, 576, %s162, [#allocation14], 64, 64, 4
    $region101: #{vae_forward.1} parent=1 // pred_fallthru
      _
    // Predicated region
    $region102: #{vae_forward.1} parent=1 // pred_check
      _
    $region103: #{vae_forward.1} parent=1 // pred_check_branch
      %169 = sbr.rel (0) target = $region105
    $region104: #{vae_forward.1} parent=1 // pred_region
      _
    $region105: #{vae_forward.1} parent=1 // pred_fallthru
      _
    // Predicated region
    $region106: #{vae_forward.1} parent=1 // pred_check
      _
    $region107: #{vae_forward.1} parent=1 // pred_check_branch
      %171 = sbr.rel (0) target = $region109
    $region108: #{vae_forward.1} parent=1 // pred_region
      %172 = dma.done [#allocation3], 256
    $region109: #{vae_forward.1} parent=1 // pred_fallthru
      _
    // Predicated region
    $region110: #{vae_forward.1} parent=1 // pred_check
      _
    $region111: #{vae_forward.1} parent=1 // pred_check_branch
      %174 = sbr.rel (0) target = $region113
    $region112: #{vae_forward.1} parent=1 // pred_region
      %175 = dma.done [#allocation5], 18432
    $region113: #{vae_forward.1} parent=1 // pred_fallthru
      _
    // Predicated region
    $region114: #{vae_forward.1} parent=1 // pred_check
      _
    $region115: #{vae_forward.1} parent=1 // pred_check_branch
      %177 = sbr.rel (0) target = $region117
    $region116: #{vae_forward.1} parent=1 // pred_region
      %178 = dma.done [#allocation5], 9216
    $region117: #{vae_forward.1} parent=1 // pred_fallthru
      _
    // Predicated region
    $region118: #{vae_forward.1} parent=1 // pred_check
      _
    $region119: #{vae_forward.1} parent=1 // pred_check_branch
      %180 = sbr.rel (0) target = $region121
    $region120: #{vae_forward.1} parent=1 // pred_region
      %181 = dma.done [#allocation8], 256
    $region121: #{vae_forward.1} parent=1 // pred_fallthru
      _
    // Predicated region
    $region122: #{vae_forward.1} parent=1 // pred_check
      _
    $region123: #{vae_forward.1} parent=1 // pred_check_branch
      %183 = sbr.rel (0) target = $region125
    $region124: #{vae_forward.1} parent=1 // pred_region
      %184 = dma.done [#allocation8], 256
    $region125: #{vae_forward.1} parent=1 // pred_fallthru
      _
    // Predicated region
    $region126: #{vae_forward.1} parent=1 // pred_check
      _
    $region127: #{vae_forward.1} parent=1 // pred_check_branch
      %186 = sbr.rel (0) target = $region129
    $region128: #{vae_forward.1} parent=1 // pred_region
      %187 = dma.done [#allocation11], 256
    $region129: #{vae_forward.1} parent=1 // pred_fallthru
      _
    // Predicated region
    $region130: #{vae_forward.1} parent=1 // pred_check
      _
    $region131: #{vae_forward.1} parent=1 // pred_check_branch
      %189 = sbr.rel (0) target = $region133
    $region132: #{vae_forward.1} parent=1 // pred_region
      %190 = dma.done [#allocation11], 18432
    $region133: #{vae_forward.1} parent=1 // pred_fallthru
      _
    // Predicated region
    $region134: #{vae_forward.1} parent=1 // pred_check
      _
    $region135: #{vae_forward.1} parent=1 // pred_check_branch
      %192 = sbr.rel (0) target = $region137
    $region136: #{vae_forward.1} parent=1 // pred_region
      %193 = dma.done [#allocation14], 576
    $region137: #{vae_forward.1} parent=1 // pred_fallthru
      _
    %v195 = vld [vmem:[#allocation2] sm:$0xff]
    %v196 = vld [vmem:[#allocation2 + $0x8] sm:$0xff]
    %v197 = vld [vmem:[%s0] sm:$0xff]
    %v198 = vld [vmem:[%s0 + $0x8] sm:$0xff]
    %v199 = vpack.c.bf16 %v197, %v197
    %v200 = vpack.c.bf16 %v198, %v198
    %v201 = vld [vmem:[#allocation4] sm:$0xff]
    %v202 = vld [vmem:[#allocation4 + $0x8] sm:$0xff]
    %v203 = vld [vmem:[#allocation4 + $0x10] sm:$0xff]
    %v204 = vld [vmem:[#allocation4 + $0x18] sm:$0xff]
    %v205 = vld [vmem:[#allocation4 + $0x20] sm:$0xf]
    %v206 = vld [vmem:[#allocation4 + $0x24] sm:$0xff]
    %v207 = vld [vmem:[#allocation4 + $0x2c] sm:$0xff]
    %v208 = vld [vmem:[#allocation4 + $0x34] sm:$0xff]
    %v209 = vld [vmem:[#allocation4 + $0x3c] sm:$0xff]
    %v210 = vld [vmem:[#allocation4 + $0x44] sm:$0xf]
    %v211 = vld [vmem:[#allocation4 + $0x48] sm:$0xff]
    %v212 = vld [vmem:[#allocation4 + $0x50] sm:$0xff]
    %v213 = vld [vmem:[#allocation4 + $0x58] sm:$0xff]
    %v214 = vld [vmem:[#allocation4 + $0x60] sm:$0xff]
    %v215 = vld [vmem:[#allocation4 + $0x68] sm:$0xf]
    %v216 = vld [vmem:[#allocation4 + $0x6c] sm:$0xff]
    %v217 = vld [vmem:[#allocation4 + $0x74] sm:$0xff]
    %v218 = vld [vmem:[#allocation4 + $0x7c] sm:$0xff]
    %v219 = vld [vmem:[#allocation4 + $0x84] sm:$0xff]
    %v220 = vld [vmem:[#allocation4 + $0x8c] sm:$0xf]
    %v221 = vld [vmem:[#allocation4 + $0x90] sm:$0xff]
    %v222 = vld [vmem:[#allocation4 + $0x98] sm:$0xff]
    %v223 = vld [vmem:[#allocation4 + $0xa0] sm:$0xff]
    %v224 = vld [vmem:[#allocation4 + $0xa8] sm:$0xff]
    %v225 = vld [vmem:[#allocation4 + $0xb0] sm:$0xf]
    %v226 = vld [vmem:[#allocation4 + $0xb4] sm:$0xff]
    %v227 = vld [vmem:[#allocation4 + $0xbc] sm:$0xff]
    %v228 = vld [vmem:[#allocation4 + $0xc4] sm:$0xff]
    %v229 = vld [vmem:[#allocation4 + $0xcc] sm:$0xff]
    %v230 = vld [vmem:[#allocation4 + $0xd4] sm:$0xf]
    %v231 = vld [vmem:[#allocation4 + $0xd8] sm:$0xff]
    %v232 = vld [vmem:[#allocation4 + $0xe0] sm:$0xff]
    %v233 = vld [vmem:[#allocation4 + $0xe8] sm:$0xff]
    %v234 = vld [vmem:[#allocation4 + $0xf0] sm:$0xff]
    %v235 = vld [vmem:[#allocation4 + $0xf8] sm:$0xf]
    %v236 = vld [vmem:[#allocation4 + $0xfc] sm:$0xff]
    %v237 = vld [vmem:[#allocation4 + $0x104] sm:$0xff]
    %v238 = vld [vmem:[#allocation4 + $0x10c] sm:$0xff]
    %v239 = vld [vmem:[#allocation4 + $0x114] sm:$0xff]
    %v240 = vld [vmem:[#allocation4 + $0x11c] sm:$0xf]
    %v241 = vld [vmem:[#allocation4 + $0x120] sm:$0xff]
    %v242 = vld [vmem:[#allocation4 + $0x128] sm:$0xff]
    %v243 = vld [vmem:[#allocation4 + $0x130] sm:$0xff]
    %v244 = vld [vmem:[#allocation4 + $0x138] sm:$0xff]
    %v245 = vld [vmem:[#allocation4 + $0x140] sm:$0xf]
    %v246 = vld [vmem:[#allocation4 + $0x144] sm:$0xff]
    %v247 = vld [vmem:[#allocation4 + $0x14c] sm:$0xff]
    %v248 = vld [vmem:[#allocation4 + $0x154] sm:$0xff]
    %v249 = vld [vmem:[#allocation4 + $0x15c] sm:$0xff]
    %v250 = vld [vmem:[#allocation4 + $0x164] sm:$0xf]
    %v251 = vld [vmem:[#allocation4 + $0x168] sm:$0xff]
    %v252 = vld [vmem:[#allocation4 + $0x170] sm:$0xff]
    %v253 = vld [vmem:[#allocation4 + $0x178] sm:$0xff]
    %v254 = vld [vmem:[#allocation4 + $0x180] sm:$0xff]
    %v255 = vld [vmem:[#allocation4 + $0x188] sm:$0xf]
    %v256 = vld [vmem:[#allocation4 + $0x18c] sm:$0xff]
    %v257 = vld [vmem:[#allocation4 + $0x194] sm:$0xff]
    %v258 = vld [vmem:[#allocation4 + $0x19c] sm:$0xff]
    %v259 = vld [vmem:[#allocation4 + $0x1a4] sm:$0xff]
    %v260 = vld [vmem:[#allocation4 + $0x1ac] sm:$0xf]
    %v261 = vld [vmem:[#allocation4 + $0x1b0] sm:$0xff]
    %v262 = vld [vmem:[#allocation4 + $0x1b8] sm:$0xff]
    %v263 = vld [vmem:[#allocation4 + $0x1c0] sm:$0xff]
    %v264 = vld [vmem:[#allocation4 + $0x1c8] sm:$0xff]
    %v265 = vld [vmem:[#allocation4 + $0x1d0] sm:$0xf]
    %v266 = vld [vmem:[#allocation4 + $0x1d4] sm:$0xff]
    %v267 = vld [vmem:[#allocation4 + $0x1dc] sm:$0xff]
    %v268 = vld [vmem:[#allocation4 + $0x1e4] sm:$0xff]
    %v269 = vld [vmem:[#allocation4 + $0x1ec] sm:$0xff]
    %v270 = vld [vmem:[#allocation4 + $0x1f4] sm:$0xf]
    %v271 = vld [vmem:[#allocation4 + $0x1f8] sm:$0xff]
    %v272 = vld [vmem:[#allocation4 + $0x200] sm:$0xff]
    %v273 = vld [vmem:[#allocation4 + $0x208] sm:$0xff]
    %v274 = vld [vmem:[#allocation4 + $0x210] sm:$0xff]
    %v275 = vld [vmem:[#allocation4 + $0x218] sm:$0xf]
    %v276 = vld [vmem:[#allocation4 + $0x21c] sm:$0xff]
    %v277 = vld [vmem:[#allocation4 + $0x224] sm:$0xff]
    %v278 = vld [vmem:[#allocation4 + $0x22c] sm:$0xff]
    %v279 = vld [vmem:[#allocation4 + $0x234] sm:$0xff]
    %v280 = vld [vmem:[#allocation4 + $0x23c] sm:$0xf]
    %v281 = vld [vmem:[#allocation4 + $0x240] sm:$0xff]
    %v282 = vld [vmem:[#allocation4 + $0x248] sm:$0xff]
    %v283 = vld [vmem:[#allocation4 + $0x250] sm:$0xff]
    %v284 = vld [vmem:[#allocation4 + $0x258] sm:$0xff]
    %v285 = vld [vmem:[#allocation4 + $0x260] sm:$0xf]
    %v286 = vld [vmem:[#allocation4 + $0x264] sm:$0xff]
    %v287 = vld [vmem:[#allocation4 + $0x26c] sm:$0xff]
    %v288 = vld [vmem:[#allocation4 + $0x274] sm:$0xff]
    %v289 = vld [vmem:[#allocation4 + $0x27c] sm:$0xff]
    %v290 = vld [vmem:[#allocation4 + $0x284] sm:$0xf]
    %v291 = vld [vmem:[#allocation4 + $0x288] sm:$0xff]
    %v292 = vld [vmem:[#allocation4 + $0x290] sm:$0xff]
    %v293 = vld [vmem:[#allocation4 + $0x298] sm:$0xff]
    %v294 = vld [vmem:[#allocation4 + $0x2a0] sm:$0xff]
    %v295 = vld [vmem:[#allocation4 + $0x2a8] sm:$0xf]
    %v296 = vld [vmem:[#allocation4 + $0x2ac] sm:$0xff]
    %v297 = vld [vmem:[#allocation4 + $0x2b4] sm:$0xff]
    %v298 = vld [vmem:[#allocation4 + $0x2bc] sm:$0xff]
    %v299 = vld [vmem:[#allocation4 + $0x2c4] sm:$0xff]
    %v300 = vld [vmem:[#allocation4 + $0x2cc] sm:$0xf]
    %v301 = vld [vmem:[#allocation4 + $0x2d0] sm:$0xff]
    %v302 = vld [vmem:[#allocation4 + $0x2d8] sm:$0xff]
    %v303 = vld [vmem:[#allocation4 + $0x2e0] sm:$0xff]
    %v304 = vld [vmem:[#allocation4 + $0x2e8] sm:$0xff]
    %v305 = vld [vmem:[#allocation4 + $0x2f0] sm:$0xf]
    %v306 = vld [vmem:[#allocation4 + $0x2f4] sm:$0xff]
    %v307 = vld [vmem:[#allocation4 + $0x2fc] sm:$0xff]
    %v308 = vld [vmem:[#allocation4 + $0x304] sm:$0xff]
    %v309 = vld [vmem:[#allocation4 + $0x30c] sm:$0xff]
    %v310 = vld [vmem:[#allocation4 + $0x314] sm:$0xf]
    %v311 = vld [vmem:[#allocation4 + $0x318] sm:$0xff]
    %v312 = vld [vmem:[#allocation4 + $0x320] sm:$0xff]
    %v313 = vld [vmem:[#allocation4 + $0x328] sm:$0xff]
    %v314 = vld [vmem:[#allocation4 + $0x330] sm:$0xff]
    %v315 = vld [vmem:[#allocation4 + $0x338] sm:$0xf]
    %v316 = vld [vmem:[#allocation4 + $0x33c] sm:$0xff]
    %v317 = vld [vmem:[#allocation4 + $0x344] sm:$0xff]
    %v318 = vld [vmem:[#allocation4 + $0x34c] sm:$0xff]
    %v319 = vld [vmem:[#allocation4 + $0x354] sm:$0xff]
    %v320 = vld [vmem:[#allocation4 + $0x35c] sm:$0xf]
    %v321 = vld [vmem:[#allocation4 + $0x360] sm:$0xff]
    %v322 = vld [vmem:[#allocation4 + $0x368] sm:$0xff]
    %v323 = vld [vmem:[#allocation4 + $0x370] sm:$0xff]
    %v324 = vld [vmem:[#allocation4 + $0x378] sm:$0xff]
    %v325 = vld [vmem:[#allocation4 + $0x380] sm:$0xf]
    %v326 = vld [vmem:[#allocation4 + $0x384] sm:$0xff]
    %v327 = vld [vmem:[#allocation4 + $0x38c] sm:$0xff]
    %v328 = vld [vmem:[#allocation4 + $0x394] sm:$0xff]
    %v329 = vld [vmem:[#allocation4 + $0x39c] sm:$0xff]
    %v330 = vld [vmem:[#allocation4 + $0x3a4] sm:$0xf]
    %v331 = vld [vmem:[#allocation4 + $0x3a8] sm:$0xff]
    %v332 = vld [vmem:[#allocation4 + $0x3b0] sm:$0xff]
    %v333 = vld [vmem:[#allocation4 + $0x3b8] sm:$0xff]
    %v334 = vld [vmem:[#allocation4 + $0x3c0] sm:$0xff]
    %v335 = vld [vmem:[#allocation4 + $0x3c8] sm:$0xf]
    %v336 = vld [vmem:[#allocation4 + $0x3cc] sm:$0xff]
    %v337 = vld [vmem:[#allocation4 + $0x3d4] sm:$0xff]
    %v338 = vld [vmem:[#allocation4 + $0x3dc] sm:$0xff]
    %v339 = vld [vmem:[#allocation4 + $0x3e4] sm:$0xff]
    %v340 = vld [vmem:[#allocation4 + $0x3ec] sm:$0xf]
    %v341 = vld [vmem:[#allocation4 + $0x3f0] sm:$0xff]
    %v342 = vld [vmem:[#allocation4 + $0x3f8] sm:$0xff]
    %v343 = vld [vmem:[#allocation4 + $0x400] sm:$0xff]
    %v344 = vld [vmem:[#allocation4 + $0x408] sm:$0xff]
    %v345 = vld [vmem:[#allocation4 + $0x410] sm:$0xf]
    %v346 = vld [vmem:[#allocation4 + $0x414] sm:$0xff]
    %v347 = vld [vmem:[#allocation4 + $0x41c] sm:$0xff]
    %v348 = vld [vmem:[#allocation4 + $0x424] sm:$0xff]
    %v349 = vld [vmem:[#allocation4 + $0x42c] sm:$0xff]
    %v350 = vld [vmem:[#allocation4 + $0x434] sm:$0xf]
    %v351 = vld [vmem:[#allocation4 + $0x438] sm:$0xff]
    %v352 = vld [vmem:[#allocation4 + $0x440] sm:$0xff]
    %v353 = vld [vmem:[#allocation4 + $0x448] sm:$0xff]
    %v354 = vld [vmem:[#allocation4 + $0x450] sm:$0xff]
    %v355 = vld [vmem:[#allocation4 + $0x458] sm:$0xf]
    %v356 = vld [vmem:[#allocation4 + $0x45c] sm:$0xff]
    %v357 = vld [vmem:[#allocation4 + $0x464] sm:$0xff]
    %v358 = vld [vmem:[#allocation4 + $0x46c] sm:$0xff]
    %v359 = vld [vmem:[#allocation4 + $0x474] sm:$0xff]
    %v360 = vld [vmem:[#allocation4 + $0x47c] sm:$0xf]
    %v521 = vunpack.c.l.b16 %v201
    %v522 = vunpack.c.h.b16 %v201
    %v523 = vunpack.c.l.b16 %v202
    %v524 = vunpack.c.h.b16 %v202
    %v525 = vunpack.c.l.b16 %v203
    %v526 = vunpack.c.h.b16 %v203
    %v527 = vunpack.c.l.b16 %v204
    %v528 = vunpack.c.h.b16 %v204
    %v529 = vunpack.c.l.b16 %v205
    %v530 = vunpack.c.l.b16 %v206
    %v531 = vunpack.c.h.b16 %v206
    %v532 = vunpack.c.l.b16 %v207
    %v533 = vunpack.c.h.b16 %v207
    %v534 = vunpack.c.l.b16 %v208
    %v535 = vunpack.c.h.b16 %v208
    %v536 = vunpack.c.l.b16 %v209
    %v537 = vunpack.c.h.b16 %v209
    %v538 = vunpack.c.l.b16 %v210
    %v539 = vunpack.c.l.b16 %v211
    %v540 = vunpack.c.h.b16 %v211
    %v541 = vunpack.c.l.b16 %v212
    %v542 = vunpack.c.h.b16 %v212
    %v543 = vunpack.c.l.b16 %v213
    %v544 = vunpack.c.h.b16 %v213
    %v545 = vunpack.c.l.b16 %v214
    %v546 = vunpack.c.h.b16 %v214
    %v547 = vunpack.c.l.b16 %v215
    %v548 = vunpack.c.l.b16 %v216
    %v549 = vunpack.c.h.b16 %v216
    %v550 = vunpack.c.l.b16 %v217
    %v551 = vunpack.c.h.b16 %v217
    %v552 = vunpack.c.l.b16 %v218
    %v553 = vunpack.c.h.b16 %v218
    %v554 = vunpack.c.l.b16 %v219
    %v555 = vunpack.c.h.b16 %v219
    %v556 = vunpack.c.l.b16 %v220
    %v557 = vunpack.c.l.b16 %v221
    %v558 = vunpack.c.h.b16 %v221
    %v559 = vunpack.c.l.b16 %v222
    %v560 = vunpack.c.h.b16 %v222
    %v561 = vunpack.c.l.b16 %v223
    %v562 = vunpack.c.h.b16 %v223
    %v563 = vunpack.c.l.b16 %v224
    %v564 = vunpack.c.h.b16 %v224
    %v565 = vunpack.c.l.b16 %v225
    %v566 = vunpack.c.l.b16 %v226
    %v567 = vunpack.c.h.b16 %v226
    %v568 = vunpack.c.l.b16 %v227
    %v569 = vunpack.c.h.b16 %v227
    %v570 = vunpack.c.l.b16 %v228
    %v571 = vunpack.c.h.b16 %v228
    %v572 = vunpack.c.l.b16 %v229
    %v573 = vunpack.c.h.b16 %v229
    %v574 = vunpack.c.l.b16 %v230
    %v575 = vunpack.c.l.b16 %v231
    %v576 = vunpack.c.h.b16 %v231
    %v577 = vunpack.c.l.b16 %v232
    %v578 = vunpack.c.h.b16 %v232
    %v579 = vunpack.c.l.b16 %v233
    %v580 = vunpack.c.h.b16 %v233
    %v581 = vunpack.c.l.b16 %v234
    %v582 = vunpack.c.h.b16 %v234
    %v583 = vunpack.c.l.b16 %v235
    %v584 = vunpack.c.l.b16 %v236
    %v585 = vunpack.c.h.b16 %v236
    %v586 = vunpack.c.l.b16 %v237
    %v587 = vunpack.c.h.b16 %v237
    %v588 = vunpack.c.l.b16 %v238
    %v589 = vunpack.c.h.b16 %v238
    %v590 = vunpack.c.l.b16 %v239
    %v591 = vunpack.c.h.b16 %v239
    %v592 = vunpack.c.l.b16 %v240
    %v593 = vunpack.c.l.b16 %v241
    %v594 = vunpack.c.h.b16 %v241
    %v595 = vunpack.c.l.b16 %v242
    %v596 = vunpack.c.h.b16 %v242
    %v597 = vunpack.c.l.b16 %v243
    %v598 = vunpack.c.h.b16 %v243
    %v599 = vunpack.c.l.b16 %v244
    %v600 = vunpack.c.h.b16 %v244
    %v601 = vunpack.c.l.b16 %v245
    %v602 = vunpack.c.l.b16 %v246
    %v603 = vunpack.c.h.b16 %v246
    %v604 = vunpack.c.l.b16 %v247
    %v605 = vunpack.c.h.b16 %v247
    %v606 = vunpack.c.l.b16 %v248
    %v607 = vunpack.c.h.b16 %v248
    %v608 = vunpack.c.l.b16 %v249
    %v609 = vunpack.c.h.b16 %v249
    %v610 = vunpack.c.l.b16 %v250
    %v611 = vunpack.c.l.b16 %v251
    %v612 = vunpack.c.h.b16 %v251
    %v613 = vunpack.c.l.b16 %v252
    %v614 = vunpack.c.h.b16 %v252
    %v615 = vunpack.c.l.b16 %v253
    %v616 = vunpack.c.h.b16 %v253
    %v617 = vunpack.c.l.b16 %v254
    %v618 = vunpack.c.h.b16 %v254
    %v619 = vunpack.c.l.b16 %v255
    %v620 = vunpack.c.l.b16 %v256
    %v621 = vunpack.c.h.b16 %v256
    %v622 = vunpack.c.l.b16 %v257
    %v623 = vunpack.c.h.b16 %v257
    %v624 = vunpack.c.l.b16 %v258
    %v625 = vunpack.c.h.b16 %v258
    %v626 = vunpack.c.l.b16 %v259
    %v627 = vunpack.c.h.b16 %v259
    %v628 = vunpack.c.l.b16 %v260
    %v629 = vunpack.c.l.b16 %v261
    %v630 = vunpack.c.h.b16 %v261
    %v631 = vunpack.c.l.b16 %v262
    %v632 = vunpack.c.h.b16 %v262
    %v633 = vunpack.c.l.b16 %v263
    %v634 = vunpack.c.h.b16 %v263
    %v635 = vunpack.c.l.b16 %v264
    %v636 = vunpack.c.h.b16 %v264
    %v637 = vunpack.c.l.b16 %v265
    %v638 = vunpack.c.l.b16 %v266
    %v639 = vunpack.c.h.b16 %v266
    %v640 = vunpack.c.l.b16 %v267
    %v641 = vunpack.c.h.b16 %v267
    %v642 = vunpack.c.l.b16 %v268
    %v643 = vunpack.c.h.b16 %v268
    %v644 = vunpack.c.l.b16 %v269
    %v645 = vunpack.c.h.b16 %v269
    %v646 = vunpack.c.l.b16 %v270
    %v647 = vunpack.c.l.b16 %v271
    %v648 = vunpack.c.h.b16 %v271
    %v649 = vunpack.c.l.b16 %v272
    %v650 = vunpack.c.h.b16 %v272
    %v651 = vunpack.c.l.b16 %v273
    %v652 = vunpack.c.h.b16 %v273
    %v653 = vunpack.c.l.b16 %v274
    %v654 = vunpack.c.h.b16 %v274
    %v655 = vunpack.c.l.b16 %v275
    %v656 = vunpack.c.l.b16 %v276
    %v657 = vunpack.c.h.b16 %v276
    %v658 = vunpack.c.l.b16 %v277
    %v659 = vunpack.c.h.b16 %v277
    %v660 = vunpack.c.l.b16 %v278
    %v661 = vunpack.c.h.b16 %v278
    %v662 = vunpack.c.l.b16 %v279
    %v663 = vunpack.c.h.b16 %v279
    %v664 = vunpack.c.l.b16 %v280
    %v665 = vunpack.c.l.b16 %v281
    %v666 = vunpack.c.h.b16 %v281
    %v667 = vunpack.c.l.b16 %v282
    %v668 = vunpack.c.h.b16 %v282
    %v669 = vunpack.c.l.b16 %v283
    %v670 = vunpack.c.h.b16 %v283
    %v671 = vunpack.c.l.b16 %v284
    %v672 = vunpack.c.h.b16 %v284
    %v673 = vunpack.c.l.b16 %v285
    %v674 = vunpack.c.l.b16 %v286
    %v675 = vunpack.c.h.b16 %v286
    %v676 = vunpack.c.l.b16 %v287
    %v677 = vunpack.c.h.b16 %v287
    %v678 = vunpack.c.l.b16 %v288
    %v679 = vunpack.c.h.b16 %v288
    %v680 = vunpack.c.l.b16 %v289
    %v681 = vunpack.c.h.b16 %v289
    %v682 = vunpack.c.l.b16 %v290
    %v683 = vunpack.c.l.b16 %v291
    %v684 = vunpack.c.h.b16 %v291
    %v685 = vunpack.c.l.b16 %v292
    %v686 = vunpack.c.h.b16 %v292
    %v687 = vunpack.c.l.b16 %v293
    %v688 = vunpack.c.h.b16 %v293
    %v689 = vunpack.c.l.b16 %v294
    %v690 = vunpack.c.h.b16 %v294
    %v691 = vunpack.c.l.b16 %v295
    %v692 = vunpack.c.l.b16 %v296
    %v693 = vunpack.c.h.b16 %v296
    %v694 = vunpack.c.l.b16 %v297
    %v695 = vunpack.c.h.b16 %v297
    %v696 = vunpack.c.l.b16 %v298
    %v697 = vunpack.c.h.b16 %v298
    %v698 = vunpack.c.l.b16 %v299
    %v699 = vunpack.c.h.b16 %v299
    %v700 = vunpack.c.l.b16 %v300
    %v701 = vunpack.c.l.b16 %v301
    %v702 = vunpack.c.h.b16 %v301
    %v703 = vunpack.c.l.b16 %v302
    %v704 = vunpack.c.h.b16 %v302
    %v705 = vunpack.c.l.b16 %v303
    %v706 = vunpack.c.h.b16 %v303
    %v707 = vunpack.c.l.b16 %v304
    %v708 = vunpack.c.h.b16 %v304
    %v709 = vunpack.c.l.b16 %v305
    %v710 = vunpack.c.l.b16 %v306
    %v711 = vunpack.c.h.b16 %v306
    %v712 = vunpack.c.l.b16 %v307
    %v713 = vunpack.c.h.b16 %v307
    %v714 = vunpack.c.l.b16 %v308
    %v715 = vunpack.c.h.b16 %v308
    %v716 = vunpack.c.l.b16 %v309
    %v717 = vunpack.c.h.b16 %v309
    %v718 = vunpack.c.l.b16 %v310
    %v719 = vunpack.c.l.b16 %v311
    %v720 = vunpack.c.h.b16 %v311
    %v721 = vunpack.c.l.b16 %v312
    %v722 = vunpack.c.h.b16 %v312
    %v723 = vunpack.c.l.b16 %v313
    %v724 = vunpack.c.h.b16 %v313
    %v725 = vunpack.c.l.b16 %v314
    %v726 = vunpack.c.h.b16 %v314
    %v727 = vunpack.c.l.b16 %v315
    %v728 = vunpack.c.l.b16 %v316
    %v729 = vunpack.c.h.b16 %v316
    %v730 = vunpack.c.l.b16 %v317
    %v731 = vunpack.c.h.b16 %v317
    %v732 = vunpack.c.l.b16 %v318
    %v733 = vunpack.c.h.b16 %v318
    %v734 = vunpack.c.l.b16 %v319
    %v735 = vunpack.c.h.b16 %v319
    %v736 = vunpack.c.l.b16 %v320
    %v737 = vunpack.c.l.b16 %v321
    %v738 = vunpack.c.h.b16 %v321
    %v739 = vunpack.c.l.b16 %v322
    %v740 = vunpack.c.h.b16 %v322
    %v741 = vunpack.c.l.b16 %v323
    %v742 = vunpack.c.h.b16 %v323
    %v743 = vunpack.c.l.b16 %v324
    %v744 = vunpack.c.h.b16 %v324
    %v745 = vunpack.c.l.b16 %v325
    %v746 = vunpack.c.l.b16 %v326
    %v747 = vunpack.c.h.b16 %v326
    %v748 = vunpack.c.l.b16 %v327
    %v749 = vunpack.c.h.b16 %v327
    %v750 = vunpack.c.l.b16 %v328
    %v751 = vunpack.c.h.b16 %v328
    %v752 = vunpack.c.l.b16 %v329
    %v753 = vunpack.c.h.b16 %v329
    %v754 = vunpack.c.l.b16 %v330
    %v755 = vunpack.c.l.b16 %v331
    %v756 = vunpack.c.h.b16 %v331
    %v757 = vunpack.c.l.b16 %v332
    %v758 = vunpack.c.h.b16 %v332
    %v759 = vunpack.c.l.b16 %v333
    %v760 = vunpack.c.h.b16 %v333
    %v761 = vunpack.c.l.b16 %v334
    %v762 = vunpack.c.h.b16 %v334
    %v763 = vunpack.c.l.b16 %v335
    %v764 = vunpack.c.l.b16 %v336
    %v765 = vunpack.c.h.b16 %v336
    %v766 = vunpack.c.l.b16 %v337
    %v767 = vunpack.c.h.b16 %v337
    %v768 = vunpack.c.l.b16 %v338
    %v769 = vunpack.c.h.b16 %v338
    %v770 = vunpack.c.l.b16 %v339
    %v771 = vunpack.c.h.b16 %v339
    %v772 = vunpack.c.l.b16 %v340
    %v773 = vunpack.c.l.b16 %v341
    %v774 = vunpack.c.h.b16 %v341
    %v775 = vunpack.c.l.b16 %v342
    %v776 = vunpack.c.h.b16 %v342
    %v777 = vunpack.c.l.b16 %v343
    %v778 = vunpack.c.h.b16 %v343
    %v779 = vunpack.c.l.b16 %v344
    %v780 = vunpack.c.h.b16 %v344
    %v781 = vunpack.c.l.b16 %v345
    %v782 = vunpack.c.l.b16 %v346
    %v783 = vunpack.c.h.b16 %v346
    %v784 = vunpack.c.l.b16 %v347
    %v785 = vunpack.c.h.b16 %v347
    %v786 = vunpack.c.l.b16 %v348
    %v787 = vunpack.c.h.b16 %v348
    %v788 = vunpack.c.l.b16 %v349
    %v789 = vunpack.c.h.b16 %v349
    %v790 = vunpack.c.l.b16 %v350
    %v791 = vunpack.c.l.b16 %v351
    %v792 = vunpack.c.h.b16 %v351
    %v793 = vunpack.c.l.b16 %v352
    %v794 = vunpack.c.h.b16 %v352
    %v795 = vunpack.c.l.b16 %v353
    %v796 = vunpack.c.h.b16 %v353
    %v797 = vunpack.c.l.b16 %v354
    %v798 = vunpack.c.h.b16 %v354
    %v799 = vunpack.c.l.b16 %v355
    %v800 = vunpack.c.l.b16 %v356
    %v801 = vunpack.c.h.b16 %v356
    %v802 = vunpack.c.l.b16 %v357
    %v803 = vunpack.c.h.b16 %v357
    %v804 = vunpack.c.l.b16 %v358
    %v805 = vunpack.c.h.b16 %v358
    %v806 = vunpack.c.l.b16 %v359
    %v807 = vunpack.c.h.b16 %v359
    %v808 = vunpack.c.l.b16 %v360
    %v809 = vpack.c.b16 %v530, %v521
    %v810 = vpack.c.b16 %v531, %v522
    %v811 = vpack.c.b16 %v532, %v523
    %v812 = vpack.c.b16 %v533, %v524
    %v813 = vpack.c.b16 %v534, %v525
    %v814 = vpack.c.b16 %v535, %v526
    %v815 = vpack.c.b16 %v536, %v527
    %v816 = vpack.c.b16 %v537, %v528
    %v817 = vpack.c.b16 %v538, %v529
    %v818 = vpack.c.b16 %v548, %v539
    %v819 = vpack.c.b16 %v549, %v540
    %v820 = vpack.c.b16 %v550, %v541
    %v821 = vpack.c.b16 %v551, %v542
    %v822 = vpack.c.b16 %v552, %v543
    %v823 = vpack.c.b16 %v553, %v544
    %v824 = vpack.c.b16 %v554, %v545
    %v825 = vpack.c.b16 %v555, %v546
    %v826 = vpack.c.b16 %v556, %v547
    %v827 = vpack.c.b16 %v566, %v557
    %v828 = vpack.c.b16 %v567, %v558
    %v829 = vpack.c.b16 %v568, %v559
    %v830 = vpack.c.b16 %v569, %v560
    %v831 = vpack.c.b16 %v570, %v561
    %v832 = vpack.c.b16 %v571, %v562
    %v833 = vpack.c.b16 %v572, %v563
    %v834 = vpack.c.b16 %v573, %v564
    %v835 = vpack.c.b16 %v574, %v565
    %v836 = vpack.c.b16 %v584, %v575
    %v837 = vpack.c.b16 %v585, %v576
    %v838 = vpack.c.b16 %v586, %v577
    %v839 = vpack.c.b16 %v587, %v578
    %v840 = vpack.c.b16 %v588, %v579
    %v841 = vpack.c.b16 %v589, %v580
    %v842 = vpack.c.b16 %v590, %v581
    %v843 = vpack.c.b16 %v591, %v582
    %v844 = vpack.c.b16 %v592, %v583
    %v845 = vpack.c.b16 %v602, %v593
    %v846 = vpack.c.b16 %v603, %v594
    %v847 = vpack.c.b16 %v604, %v595
    %v848 = vpack.c.b16 %v605, %v596
    %v849 = vpack.c.b16 %v606, %v597
    %v850 = vpack.c.b16 %v607, %v598
    %v851 = vpack.c.b16 %v608, %v599
    %v852 = vpack.c.b16 %v609, %v600
    %v853 = vpack.c.b16 %v610, %v601
    %v854 = vpack.c.b16 %v620, %v611
    %v855 = vpack.c.b16 %v621, %v612
    %v856 = vpack.c.b16 %v622, %v613
    %v857 = vpack.c.b16 %v623, %v614
    %v858 = vpack.c.b16 %v624, %v615
    %v859 = vpack.c.b16 %v625, %v616
    %v860 = vpack.c.b16 %v626, %v617
    %v861 = vpack.c.b16 %v627, %v618
    %v862 = vpack.c.b16 %v628, %v619
    %v863 = vpack.c.b16 %v638, %v629
    %v864 = vpack.c.b16 %v639, %v630
    %v865 = vpack.c.b16 %v640, %v631
    %v866 = vpack.c.b16 %v641, %v632
    %v867 = vpack.c.b16 %v642, %v633
    %v868 = vpack.c.b16 %v643, %v634
    %v869 = vpack.c.b16 %v644, %v635
    %v870 = vpack.c.b16 %v645, %v636
    %v871 = vpack.c.b16 %v646, %v637
    %v872 = vpack.c.b16 %v656, %v647
    %v873 = vpack.c.b16 %v657, %v648
    %v874 = vpack.c.b16 %v658, %v649
    %v875 = vpack.c.b16 %v659, %v650
    %v876 = vpack.c.b16 %v660, %v651
    %v877 = vpack.c.b16 %v661, %v652
    %v878 = vpack.c.b16 %v662, %v653
    %v879 = vpack.c.b16 %v663, %v654
    %v880 = vpack.c.b16 %v664, %v655
    %v881 = vpack.c.b16 %v674, %v665
    %v882 = vpack.c.b16 %v675, %v666
    %v883 = vpack.c.b16 %v676, %v667
    %v884 = vpack.c.b16 %v677, %v668
    %v885 = vpack.c.b16 %v678, %v669
    %v886 = vpack.c.b16 %v679, %v670
    %v887 = vpack.c.b16 %v680, %v671
    %v888 = vpack.c.b16 %v681, %v672
    %v889 = vpack.c.b16 %v682, %v673
    %v890 = vpack.c.b16 %v692, %v683
    %v891 = vpack.c.b16 %v693, %v684
    %v892 = vpack.c.b16 %v694, %v685
    %v893 = vpack.c.b16 %v695, %v686
    %v894 = vpack.c.b16 %v696, %v687
    %v895 = vpack.c.b16 %v697, %v688
    %v896 = vpack.c.b16 %v698, %v689
    %v897 = vpack.c.b16 %v699, %v690
    %v898 = vpack.c.b16 %v700, %v691
    %v899 = vpack.c.b16 %v710, %v701
    %v900 = vpack.c.b16 %v711, %v702
    %v901 = vpack.c.b16 %v712, %v703
    %v902 = vpack.c.b16 %v713, %v704
    %v903 = vpack.c.b16 %v714, %v705
    %v904 = vpack.c.b16 %v715, %v706
    %v905 = vpack.c.b16 %v716, %v707
    %v906 = vpack.c.b16 %v717, %v708
    %v907 = vpack.c.b16 %v718, %v709
    %v908 = vpack.c.b16 %v728, %v719
    %v909 = vpack.c.b16 %v729, %v720
    %v910 = vpack.c.b16 %v730, %v721
    %v911 = vpack.c.b16 %v731, %v722
    %v912 = vpack.c.b16 %v732, %v723
    %v913 = vpack.c.b16 %v733, %v724
    %v914 = vpack.c.b16 %v734, %v725
    %v915 = vpack.c.b16 %v735, %v726
    %v916 = vpack.c.b16 %v736, %v727
    %v917 = vpack.c.b16 %v746, %v737
    %v918 = vpack.c.b16 %v747, %v738
    %v919 = vpack.c.b16 %v748, %v739
    %v920 = vpack.c.b16 %v749, %v740
    %v921 = vpack.c.b16 %v750, %v741
    %v922 = vpack.c.b16 %v751, %v742
    %v923 = vpack.c.b16 %v752, %v743
    %v924 = vpack.c.b16 %v753, %v744
    %v925 = vpack.c.b16 %v754, %v745
    %v926 = vpack.c.b16 %v764, %v755
    %v927 = vpack.c.b16 %v765, %v756
    %v928 = vpack.c.b16 %v766, %v757
    %v929 = vpack.c.b16 %v767, %v758
    %v930 = vpack.c.b16 %v768, %v759
    %v931 = vpack.c.b16 %v769, %v760
    %v932 = vpack.c.b16 %v770, %v761
    %v933 = vpack.c.b16 %v771, %v762
    %v934 = vpack.c.b16 %v772, %v763
    %v935 = vpack.c.b16 %v782, %v773
    %v936 = vpack.c.b16 %v783, %v774
    %v937 = vpack.c.b16 %v784, %v775
    %v938 = vpack.c.b16 %v785, %v776
    %v939 = vpack.c.b16 %v786, %v777
    %v940 = vpack.c.b16 %v787, %v778
    %v941 = vpack.c.b16 %v788, %v779
    %v942 = vpack.c.b16 %v789, %v780
    %v943 = vpack.c.b16 %v790, %v781
    %v944 = vpack.c.b16 %v800, %v791
    %v945 = vpack.c.b16 %v801, %v792
    %v946 = vpack.c.b16 %v802, %v793
    %v947 = vpack.c.b16 %v803, %v794
    %v948 = vpack.c.b16 %v804, %v795
    %v949 = vpack.c.b16 %v805, %v796
    %v950 = vpack.c.b16 %v806, %v797
    %v951 = vpack.c.b16 %v807, %v798
    %v952 = vpack.c.b16 %v808, %v799
    %1097 = vmatprep.subr.bf16.mxu0 %v810
    %1098 = vmatpush1.bf16.msra.mxu0 %v809
    %1099 = vmatprep.subr.bf16.mxu0 %v819
    %1100 = vmatpush1.bf16.msra.mxu0 %v818
    %1101 = vmatprep.subr.bf16.mxu0 %v828
    %1102 = vmatpush1.bf16.msra.mxu0 %v827
    %1103 = vmatprep.subr.bf16.mxu0 %v837
    %1104 = vmatpush1.bf16.msra.mxu0 %v836
    %1105 = vmatprep.subr.bf16.mxu0 %v846
    %1106 = vmatpush1.bf16.msra.mxu0 %v845
    %1107 = vmatprep.subr.bf16.mxu0 %v855
    %1108 = vmatpush1.bf16.msra.mxu0 %v854
    %1109 = vmatprep.subr.bf16.mxu0 %v864
    %1110 = vmatpush1.bf16.msra.mxu0 %v863
    %1111 = vmatprep.subr.bf16.mxu0 %v873
    %1112 = vmatpush1.bf16.msra.mxu0 %v872
    %1113 = vmatprep.subr.bf16.mxu0 %v882
    %1114 = vmatpush1.bf16.msra.mxu0 %v881
    %1115 = vmatprep.subr.bf16.mxu0 %v891
    %1116 = vmatpush1.bf16.msra.mxu0 %v890
    %1117 = vmatprep.subr.bf16.mxu0 %v900
    %1118 = vmatpush1.bf16.msra.mxu0 %v899
    %1119 = vmatprep.subr.bf16.mxu0 %v909
    %1120 = vmatpush1.bf16.msra.mxu0 %v908
    %1121 = vmatprep.subr.bf16.mxu0 %v918
    %1122 = vmatpush1.bf16.msra.mxu0 %v917
    %1123 = vmatprep.subr.bf16.mxu0 %v927
    %1124 = vmatpush1.bf16.msra.mxu0 %v926
    %1125 = vmatprep.subr.bf16.mxu0 %v936
    %1126 = vmatpush1.bf16.msra.mxu0 %v935
    %1127 = vmatprep.subr.bf16.mxu0 %v945
    %1128 = vmatpush1.bf16.msra.mxu0 %v944
    %1129 = vmatprep.mubr.bf16.mxu0 %v200
    %1130 = vmatmul.mubr.bf16.gmra.mrb[0].mxu0 %v199
    %v1131 = vpop.f32.mrb[0].mxu0
    %v1132 = vadd.f32 0.0, %v1131
    %v1133 = vpop.f32.mrb[0].mxu0
    %v1134 = vadd.f32 0.0, %v1133
    %v1135 = vpop.f32.mrb[0].mxu0
    %v1136 = vpop.f32.mrb[0].mxu0
    %1137 = vdwg.mxu0
    %1138 = vmatprep.subr.bf16.mxu0 %v812
    %1139 = vmatpush1.bf16.msra.mxu0 %v811
    %1140 = vmatprep.subr.bf16.mxu0 %v821
    %1141 = vmatpush1.bf16.msra.mxu0 %v820
    %1142 = vmatprep.subr.bf16.mxu0 %v830
    %1143 = vmatpush1.bf16.msra.mxu0 %v829
    %1144 = vmatprep.subr.bf16.mxu0 %v839
    %1145 = vmatpush1.bf16.msra.mxu0 %v838
    %1146 = vmatprep.subr.bf16.mxu0 %v848
    %1147 = vmatpush1.bf16.msra.mxu0 %v847
    %1148 = vmatprep.subr.bf16.mxu0 %v857
    %1149 = vmatpush1.bf16.msra.mxu0 %v856
    %1150 = vmatprep.subr.bf16.mxu0 %v866
    %1151 = vmatpush1.bf16.msra.mxu0 %v865
    %1152 = vmatprep.subr.bf16.mxu0 %v875
    %1153 = vmatpush1.bf16.msra.mxu0 %v874
    %1154 = vmatprep.subr.bf16.mxu0 %v884
    %1155 = vmatpush1.bf16.msra.mxu0 %v883
    %1156 = vmatprep.subr.bf16.mxu0 %v893
    %1157 = vmatpush1.bf16.msra.mxu0 %v892
    %1158 = vmatprep.subr.bf16.mxu0 %v902
    %1159 = vmatpush1.bf16.msra.mxu0 %v901
    %1160 = vmatprep.subr.bf16.mxu0 %v911
    %1161 = vmatpush1.bf16.msra.mxu0 %v910
    %1162 = vmatprep.subr.bf16.mxu0 %v920
    %1163 = vmatpush1.bf16.msra.mxu0 %v919
    %1164 = vmatprep.subr.bf16.mxu0 %v929
    %1165 = vmatpush1.bf16.msra.mxu0 %v928
    %1166 = vmatprep.subr.bf16.mxu0 %v938
    %1167 = vmatpush1.bf16.msra.mxu0 %v937
    %1168 = vmatprep.subr.bf16.mxu0 %v947
    %1169 = vmatpush1.bf16.msra.mxu0 %v946
    %1170 = vmatprep.mubr.bf16.mxu0 %v200
    %1171 = vmatmul.mubr.bf16.gmra.mrb[0].mxu0 %v199
    %v1172 = vpop.f32.mrb[0].mxu0
    %v1173 = vadd.f32 0.0, %v1172
    %v1174 = vpop.f32.mrb[0].mxu0
    %v1175 = vadd.f32 0.0, %v1174
    %v1176 = vpop.f32.mrb[0].mxu0
    %v1177 = vpop.f32.mrb[0].mxu0
    %1178 = vdwg.mxu0
    %1179 = vmatprep.subr.bf16.mxu0 %v814
    %1180 = vmatpush1.bf16.msra.mxu0 %v813
    %1181 = vmatprep.subr.bf16.mxu0 %v823
    %1182 = vmatpush1.bf16.msra.mxu0 %v822
    %1183 = vmatprep.subr.bf16.mxu0 %v832
    %1184 = vmatpush1.bf16.msra.mxu0 %v831
    %1185 = vmatprep.subr.bf16.mxu0 %v841
    %1186 = vmatpush1.bf16.msra.mxu0 %v840
    %1187 = vmatprep.subr.bf16.mxu0 %v850
    %1188 = vmatpush1.bf16.msra.mxu0 %v849
    %1189 = vmatprep.subr.bf16.mxu0 %v859
    %1190 = vmatpush1.bf16.msra.mxu0 %v858
    %1191 = vmatprep.subr.bf16.mxu0 %v868
    %1192 = vmatpush1.bf16.msra.mxu0 %v867
    %1193 = vmatprep.subr.bf16.mxu0 %v877
    %1194 = vmatpush1.bf16.msra.mxu0 %v876
    %1195 = vmatprep.subr.bf16.mxu0 %v886
    %1196 = vmatpush1.bf16.msra.mxu0 %v885
    %1197 = vmatprep.subr.bf16.mxu0 %v895
    %1198 = vmatpush1.bf16.msra.mxu0 %v894
    %1199 = vmatprep.subr.bf16.mxu0 %v904
    %1200 = vmatpush1.bf16.msra.mxu0 %v903
    %1201 = vmatprep.subr.bf16.mxu0 %v913
    %1202 = vmatpush1.bf16.msra.mxu0 %v912
    %1203 = vmatprep.subr.bf16.mxu0 %v922
    %1204 = vmatpush1.bf16.msra.mxu0 %v921
    %1205 = vmatprep.subr.bf16.mxu0 %v931
    %1206 = vmatpush1.bf16.msra.mxu0 %v930
    %1207 = vmatprep.subr.bf16.mxu0 %v940
    %1208 = vmatpush1.bf16.msra.mxu0 %v939
    %1209 = vmatprep.subr.bf16.mxu0 %v949
    %1210 = vmatpush1.bf16.msra.mxu0 %v948
    %1211 = vmatprep.mubr.bf16.mxu0 %v200
    %1212 = vmatmul.mubr.bf16.gmra.mrb[0].mxu0 %v199
    %v1213 = vpop.f32.mrb[0].mxu0
    %v1214 = vadd.f32 0.0, %v1213
    %v1215 = vpop.f32.mrb[0].mxu0
    %v1216 = vadd.f32 0.0, %v1215
    %v1217 = vpop.f32.mrb[0].mxu0
    %v1218 = vpop.f32.mrb[0].mxu0
    %1219 = vdwg.mxu0
    %1220 = vmatprep.subr.bf16.mxu0 %v816
    %1221 = vmatpush1.bf16.msra.mxu0 %v815
    %1222 = vmatprep.subr.bf16.mxu0 %v825
    %1223 = vmatpush1.bf16.msra.mxu0 %v824
    %1224 = vmatprep.subr.bf16.mxu0 %v834
    %1225 = vmatpush1.bf16.msra.mxu0 %v833
    %1226 = vmatprep.subr.bf16.mxu0 %v843
    %1227 = vmatpush1.bf16.msra.mxu0 %v842
    %1228 = vmatprep.subr.bf16.mxu0 %v852
    %1229 = vmatpush1.bf16.msra.mxu0 %v851
    %1230 = vmatprep.subr.bf16.mxu0 %v861
    %1231 = vmatpush1.bf16.msra.mxu0 %v860
    %1232 = vmatprep.subr.bf16.mxu0 %v870
    %1233 = vmatpush1.bf16.msra.mxu0 %v869
    %1234 = vmatprep.subr.bf16.mxu0 %v879
    %1235 = vmatpush1.bf16.msra.mxu0 %v878
    %1236 = vmatprep.subr.bf16.mxu0 %v888
    %1237 = vmatpush1.bf16.msra.mxu0 %v887
    %1238 = vmatprep.subr.bf16.mxu0 %v897
    %1239 = vmatpush1.bf16.msra.mxu0 %v896
    %1240 = vmatprep.subr.bf16.mxu0 %v906
    %1241 = vmatpush1.bf16.msra.mxu0 %v905
    %1242 = vmatprep.subr.bf16.mxu0 %v915
    %1243 = vmatpush1.bf16.msra.mxu0 %v914
    %1244 = vmatprep.subr.bf16.mxu0 %v924
    %1245 = vmatpush1.bf16.msra.mxu0 %v923
    %1246 = vmatprep.subr.bf16.mxu0 %v933
    %1247 = vmatpush1.bf16.msra.mxu0 %v932
    %1248 = vmatprep.subr.bf16.mxu0 %v942
    %1249 = vmatpush1.bf16.msra.mxu0 %v941
    %1250 = vmatprep.subr.bf16.mxu0 %v951
    %1251 = vmatpush1.bf16.msra.mxu0 %v950
    %1252 = vmatprep.mubr.bf16.mxu0 %v200
    %1253 = vmatmul.mubr.bf16.gmra.mrb[0].mxu0 %v199
    %v1254 = vpop.f32.mrb[0].mxu0
    %v1255 = vadd.f32 0.0, %v1254
    %v1256 = vpop.f32.mrb[0].mxu0
    %v1257 = vadd.f32 0.0, %v1256
    %v1258 = vpop.f32.mrb[0].mxu0
    %v1259 = vpop.f32.mrb[0].mxu0
    %1260 = vdwg.mxu0
    %1261 = vmatprep.subr.bf16.mxu0 0
    %1262 = vmatpush1.bf16.msra.mxu0 %v817
    %1263 = vmatprep.subr.bf16.mxu0 0
    %1264 = vmatpush1.bf16.msra.mxu0 %v826
    %1265 = vmatprep.subr.bf16.mxu0 0
    %1266 = vmatpush1.bf16.msra.mxu0 %v835
    %1267 = vmatprep.subr.bf16.mxu0 0
    %1268 = vmatpush1.bf16.msra.mxu0 %v844
    %1269 = vmatprep.subr.bf16.mxu0 0
    %1270 = vmatpush1.bf16.msra.mxu0 %v853
    %1271 = vmatprep.subr.bf16.mxu0 0
    %1272 = vmatpush1.bf16.msra.mxu0 %v862
    %1273 = vmatprep.subr.bf16.mxu0 0
    %1274 = vmatpush1.bf16.msra.mxu0 %v871
    %1275 = vmatprep.subr.bf16.mxu0 0
    %1276 = vmatpush1.bf16.msra.mxu0 %v880
    %1277 = vmatprep.subr.bf16.mxu0 0
    %1278 = vmatpush1.bf16.msra.mxu0 %v889
    %1279 = vmatprep.subr.bf16.mxu0 0
    %1280 = vmatpush1.bf16.msra.mxu0 %v898
    %1281 = vmatprep.subr.bf16.mxu0 0
    %1282 = vmatpush1.bf16.msra.mxu0 %v907
    %1283 = vmatprep.subr.bf16.mxu0 0
    %1284 = vmatpush1.bf16.msra.mxu0 %v916
    %1285 = vmatprep.subr.bf16.mxu0 0
    %1286 = vmatpush1.bf16.msra.mxu0 %v925
    %1287 = vmatprep.subr.bf16.mxu0 0
    %1288 = vmatpush1.bf16.msra.mxu0 %v934
    %1289 = vmatprep.subr.bf16.mxu0 0
    %1290 = vmatpush1.bf16.msra.mxu0 %v943
    %1291 = vmatprep.subr.bf16.mxu0 0
    %1292 = vmatpush1.bf16.msra.mxu0 %v952
    %1293 = vmatprep.mubr.bf16.mxu0 %v200
    %1294 = vmatmul.mubr.bf16.gmra.mrb[0].mxu0 %v199
    %v1295 = vpop.f32.mrb[0].mxu0
    %v1296 = vadd.f32 0.0, %v1295
    %v1297 = vpop.f32.mrb[0].mxu0
    %v1298 = vpop.f32.mrb[0].mxu0
    %v1299 = vpop.f32.mrb[0].mxu0
    %1300 = vdwg.mxu0
    %v1301 = vpack.c.bf16 %v1132, %v1132
    %v1302 = vpack.c.bf16 %v1134, %v1134
    %v1303 = vpack.c.bf16 %v1173, %v1173
    %v1304 = vpack.c.bf16 %v1175, %v1175
    %v1305 = vpack.c.bf16 %v1214, %v1214
    %v1306 = vpack.c.bf16 %v1216, %v1216
    %v1307 = vpack.c.bf16 %v1255, %v1255
    %v1308 = vpack.c.bf16 %v1257, %v1257
    %v1309 = vpack.c.bf16 %v1296, %v1296
    %v1310 = vld [vmem:[%s4] sm:$0xf]
    %v1311 = vld [vmem:[%s4 + $0x4] sm:$0xf]
    %s1312 = scalar_lea.vmem %s4, 8
    %v1313 = vld [vmem:[%s1312] sm:$0xf]
    %v1314 = vld [vmem:[%s1312 + $0x4] sm:$0xf]
    %v1317 = vunpack.c.l.b16 %v1313
    %v1318 = vunpack.c.l.b16 %v1314
    %v1319 = vpack.c.b16 %v1318, %v1317
    %vm1320 = vcmask 64512
    %v1322 = vsel %vm1320, %v1319, 0
    %vm1324 = vcmask 1043456
    %v1326 = vsel %vm1324, %v1302, 0
    %1328 = vmatprep.subr.bf16.mxu0 0
    %1329 = vmatpush1.bf16.msra.mxu0 %v1326
    %1330 = vmatprep.subr.bf16.mxu0 0
    %1331 = vmatpush1.bf16.msra.mxu0 0
    %1332 = vmatprep.subr.bf16.mxu0 0
    %1333 = vmatpush1.bf16.msra.mxu0 0
    %1334 = vmatprep.subr.bf16.mxu0 0
    %1335 = vmatpush1.bf16.msra.mxu0 0
    %1336 = vmatprep.subr.bf16.mxu0 0
    %1337 = vmatpush1.bf16.msra.mxu0 0
    %1338 = vmatprep.subr.bf16.mxu0 0
    %1339 = vmatpush1.bf16.msra.mxu0 0
    %1340 = vmatprep.subr.bf16.mxu0 0
    %1341 = vmatpush1.bf16.msra.mxu0 0
    %1342 = vmatprep.subr.bf16.mxu0 0
    %1343 = vmatpush1.bf16.msra.mxu0 0
    %1344 = vmatprep.subr.bf16.mxu0 0
    %1345 = vmatpush1.bf16.msra.mxu0 0
    %1346 = vmatprep.subr.bf16.mxu0 0
    %1347 = vmatpush1.bf16.msra.mxu0 0
    %1348 = vmatprep.subr.bf16.mxu0 0
    %1349 = vmatpush1.bf16.msra.mxu0 0
    %1350 = vmatprep.subr.bf16.mxu0 0
    %1351 = vmatpush1.bf16.msra.mxu0 0
    %1352 = vmatprep.subr.bf16.mxu0 0
    %1353 = vmatpush1.bf16.msra.mxu0 0
    %1354 = vmatprep.subr.bf16.mxu0 0
    %1355 = vmatpush1.bf16.msra.mxu0 0
    %1356 = vmatprep.subr.bf16.mxu0 0
    %1357 = vmatpush1.bf16.msra.mxu0 0
    %1358 = vmatprep.subr.bf16.mxu0 0
    %1359 = vmatpush1.bf16.msra.mxu0 0
    %1360 = vmatprep.mubr.bf16.mxu0 0
    %1361 = vmatmul.mubr.bf16.gmra.mrb[0].mxu0 %v1322
    %v1362 = vpop.f32.mrb[0].mxu0
    %v1363 = vadd.f32 0.0, %v1362
    %v1364 = vpop.f32.mrb[0].mxu0
    %v1365 = vpop.f32.mrb[0].mxu0
    %v1366 = vadd.f32 0.0, %v1365
    %v1367 = vpop.f32.mrb[0].mxu0
    %1368 = vdwg.mxu0
    %v1371 = vunpack.c.l.b16 %v1310
    %v1372 = vunpack.c.l.b16 %v1311
    %v1373 = vpack.c.b16 %v1372, %v1371
    %v1375 = vsel %vm1320, %v1373, 0
    %v1378 = vsel %vm1324, %v1301, 0
    %1380 = vmatprep.subr.bf16.mxu0 0
    %1381 = vmatpush1.bf16.msra.mxu0 %v1378
    %1382 = vmatprep.subr.bf16.mxu0 0
    %1383 = vmatpush1.bf16.msra.mxu0 0
    %1384 = vmatprep.subr.bf16.mxu0 0
    %1385 = vmatpush1.bf16.msra.mxu0 0
    %1386 = vmatprep.subr.bf16.mxu0 0
    %1387 = vmatpush1.bf16.msra.mxu0 0
    %1388 = vmatprep.subr.bf16.mxu0 0
    %1389 = vmatpush1.bf16.msra.mxu0 0
    %1390 = vmatprep.subr.bf16.mxu0 0
    %1391 = vmatpush1.bf16.msra.mxu0 0
    %1392 = vmatprep.subr.bf16.mxu0 0
    %1393 = vmatpush1.bf16.msra.mxu0 0
    %1394 = vmatprep.subr.bf16.mxu0 0
    %1395 = vmatpush1.bf16.msra.mxu0 0
    %1396 = vmatprep.subr.bf16.mxu0 0
    %1397 = vmatpush1.bf16.msra.mxu0 0
    %1398 = vmatprep.subr.bf16.mxu0 0
    %1399 = vmatpush1.bf16.msra.mxu0 0
    %1400 = vmatprep.subr.bf16.mxu0 0
    %1401 = vmatpush1.bf16.msra.mxu0 0
    %1402 = vmatprep.subr.bf16.mxu0 0
    %1403 = vmatpush1.bf16.msra.mxu0 0
    %1404 = vmatprep.subr.bf16.mxu0 0
    %1405 = vmatpush1.bf16.msra.mxu0 0
    %1406 = vmatprep.subr.bf16.mxu0 0
    %1407 = vmatpush1.bf16.msra.mxu0 0
    %1408 = vmatprep.subr.bf16.mxu0 0
    %1409 = vmatpush1.bf16.msra.mxu0 0
    %1410 = vmatprep.subr.bf16.mxu0 0
    %1411 = vmatpush1.bf16.msra.mxu0 0
    %1412 = vmatprep.mubr.bf16.mxu0 0
    %1413 = vmatmul.mubr.bf16.gmra.mrb[0].mxu0 %v1375
    %v1414 = vpop.f32.mrb[0].mxu0
    %v1415 = vadd.f32 %v1363, %v1414
    %v1416 = vpop.f32.mrb[0].mxu0
    %v1417 = vpop.f32.mrb[0].mxu0
    %v1418 = vadd.f32 %v1366, %v1417
    %v1419 = vpop.f32.mrb[0].mxu0
    %1420 = vdwg.mxu0
    %s1421 = scalar_lea.vmem %s4, 16
    %v1422 = vld [vmem:[%s1421] sm:$0xf]
    %v1423 = vld [vmem:[%s1421 + $0x4] sm:$0xf]
    %v1426 = vunpack.c.l.b16 %v1422
    %v1427 = vunpack.c.l.b16 %v1423
    %v1428 = vpack.c.b16 %v1427, %v1426
    %v1430 = vsel %vm1320, %v1428, 0
    %v1433 = vsel %vm1324, %v1303, 0
    %1435 = vmatprep.subr.bf16.mxu0 0
    %1436 = vmatpush1.bf16.msra.mxu0 %v1433
    %1437 = vmatprep.subr.bf16.mxu0 0
    %1438 = vmatpush1.bf16.msra.mxu0 0
    %1439 = vmatprep.subr.bf16.mxu0 0
    %1440 = vmatpush1.bf16.msra.mxu0 0
    %1441 = vmatprep.subr.bf16.mxu0 0
    %1442 = vmatpush1.bf16.msra.mxu0 0
    %1443 = vmatprep.subr.bf16.mxu0 0
    %1444 = vmatpush1.bf16.msra.mxu0 0
    %1445 = vmatprep.subr.bf16.mxu0 0
    %1446 = vmatpush1.bf16.msra.mxu0 0
    %1447 = vmatprep.subr.bf16.mxu0 0
    %1448 = vmatpush1.bf16.msra.mxu0 0
    %1449 = vmatprep.subr.bf16.mxu0 0
    %1450 = vmatpush1.bf16.msra.mxu0 0
    %1451 = vmatprep.subr.bf16.mxu0 0
    %1452 = vmatpush1.bf16.msra.mxu0 0
    %1453 = vmatprep.subr.bf16.mxu0 0
    %1454 = vmatpush1.bf16.msra.mxu0 0
    %1455 = vmatprep.subr.bf16.mxu0 0
    %1456 = vmatpush1.bf16.msra.mxu0 0
    %1457 = vmatprep.subr.bf16.mxu0 0
    %1458 = vmatpush1.bf16.msra.mxu0 0
    %1459 = vmatprep.subr.bf16.mxu0 0
    %1460 = vmatpush1.bf16.msra.mxu0 0
    %1461 = vmatprep.subr.bf16.mxu0 0
    %1462 = vmatpush1.bf16.msra.mxu0 0
    %1463 = vmatprep.subr.bf16.mxu0 0
    %1464 = vmatpush1.bf16.msra.mxu0 0
    %1465 = vmatprep.subr.bf16.mxu0 0
    %1466 = vmatpush1.bf16.msra.mxu0 0
    %1467 = vmatprep.mubr.bf16.mxu0 0
    %1468 = vmatmul.mubr.bf16.gmra.mrb[0].mxu0 %v1430
    %v1469 = vpop.f32.mrb[0].mxu0
    %v1470 = vadd.f32 0.0, %v1469
    %v1471 = vpop.f32.mrb[0].mxu0
    %v1472 = vpop.f32.mrb[0].mxu0
    %v1473 = vadd.f32 0.0, %v1472
    %v1474 = vpop.f32.mrb[0].mxu0
    %1475 = vdwg.mxu0
    %v1476 = vadd.f32 %v1415, %v1470
    %v1477 = vadd.f32 %v1418, %v1473
    %s1478 = scalar_lea.vmem %s4, 24
    %v1479 = vld [vmem:[%s1478] sm:$0xf]
    %v1480 = vld [vmem:[%s1478 + $0x4] sm:$0xf]
    %v1483 = vunpack.c.l.b16 %v1479
    %v1484 = vunpack.c.l.b16 %v1480
    %v1485 = vpack.c.b16 %v1484, %v1483
    %v1487 = vsel %vm1320, %v1485, 0
    %v1490 = vsel %vm1324, %v1304, 0
    %1492 = vmatprep.subr.bf16.mxu0 0
    %1493 = vmatpush1.bf16.msra.mxu0 %v1490
    %1494 = vmatprep.subr.bf16.mxu0 0
    %1495 = vmatpush1.bf16.msra.mxu0 0
    %1496 = vmatprep.subr.bf16.mxu0 0
    %1497 = vmatpush1.bf16.msra.mxu0 0
    %1498 = vmatprep.subr.bf16.mxu0 0
    %1499 = vmatpush1.bf16.msra.mxu0 0
    %1500 = vmatprep.subr.bf16.mxu0 0
    %1501 = vmatpush1.bf16.msra.mxu0 0
    %1502 = vmatprep.subr.bf16.mxu0 0
    %1503 = vmatpush1.bf16.msra.mxu0 0
    %1504 = vmatprep.subr.bf16.mxu0 0
    %1505 = vmatpush1.bf16.msra.mxu0 0
    %1506 = vmatprep.subr.bf16.mxu0 0
    %1507 = vmatpush1.bf16.msra.mxu0 0
    %1508 = vmatprep.subr.bf16.mxu0 0
    %1509 = vmatpush1.bf16.msra.mxu0 0
    %1510 = vmatprep.subr.bf16.mxu0 0
    %1511 = vmatpush1.bf16.msra.mxu0 0
    %1512 = vmatprep.subr.bf16.mxu0 0
    %1513 = vmatpush1.bf16.msra.mxu0 0
    %1514 = vmatprep.subr.bf16.mxu0 0
    %1515 = vmatpush1.bf16.msra.mxu0 0
    %1516 = vmatprep.subr.bf16.mxu0 0
    %1517 = vmatpush1.bf16.msra.mxu0 0
    %1518 = vmatprep.subr.bf16.mxu0 0
    %1519 = vmatpush1.bf16.msra.mxu0 0
    %1520 = vmatprep.subr.bf16.mxu0 0
    %1521 = vmatpush1.bf16.msra.mxu0 0
    %1522 = vmatprep.subr.bf16.mxu0 0
    %1523 = vmatpush1.bf16.msra.mxu0 0
    %1524 = vmatprep.mubr.bf16.mxu0 0
    %1525 = vmatmul.mubr.bf16.gmra.mrb[0].mxu0 %v1487
    %v1526 = vpop.f32.mrb[0].mxu0
    %v1527 = vadd.f32 0.0, %v1526
    %v1528 = vpop.f32.mrb[0].mxu0
    %v1529 = vpop.f32.mrb[0].mxu0
    %v1530 = vadd.f32 0.0, %v1529
    %v1531 = vpop.f32.mrb[0].mxu0
    %1532 = vdwg.mxu0
    %v1533 = vadd.f32 %v1476, %v1527
    %v1534 = vadd.f32 %v1477, %v1530
    %s1535 = scalar_lea.vmem %s4, 32
    %v1536 = vld [vmem:[%s1535] sm:$0xf]
    %v1537 = vld [vmem:[%s1535 + $0x4] sm:$0xf]
    %v1540 = vunpack.c.l.b16 %v1536
    %v1541 = vunpack.c.l.b16 %v1537
    %v1542 = vpack.c.b16 %v1541, %v1540
    %v1544 = vsel %vm1320, %v1542, 0
    %v1547 = vsel %vm1324, %v1305, 0
    %1549 = vmatprep.subr.bf16.mxu0 0
    %1550 = vmatpush1.bf16.msra.mxu0 %v1547
    %1551 = vmatprep.subr.bf16.mxu0 0
    %1552 = vmatpush1.bf16.msra.mxu0 0
    %1553 = vmatprep.subr.bf16.mxu0 0
    %1554 = vmatpush1.bf16.msra.mxu0 0
    %1555 = vmatprep.subr.bf16.mxu0 0
    %1556 = vmatpush1.bf16.msra.mxu0 0
    %1557 = vmatprep.subr.bf16.mxu0 0
    %1558 = vmatpush1.bf16.msra.mxu0 0
    %1559 = vmatprep.subr.bf16.mxu0 0
    %1560 = vmatpush1.bf16.msra.mxu0 0
    %1561 = vmatprep.subr.bf16.mxu0 0
    %1562 = vmatpush1.bf16.msra.mxu0 0
    %1563 = vmatprep.subr.bf16.mxu0 0
    %1564 = vmatpush1.bf16.msra.mxu0 0
    %1565 = vmatprep.subr.bf16.mxu0 0
    %1566 = vmatpush1.bf16.msra.mxu0 0
    %1567 = vmatprep.subr.bf16.mxu0 0
    %1568 = vmatpush1.bf16.msra.mxu0 0
    %1569 = vmatprep.subr.bf16.mxu0 0
    %1570 = vmatpush1.bf16.msra.mxu0 0
    %1571 = vmatprep.subr.bf16.mxu0 0
    %1572 = vmatpush1.bf16.msra.mxu0 0
    %1573 = vmatprep.subr.bf16.mxu0 0
    %1574 = vmatpush1.bf16.msra.mxu0 0
    %1575 = vmatprep.subr.bf16.mxu0 0
    %1576 = vmatpush1.bf16.msra.mxu0 0
    %1577 = vmatprep.subr.bf16.mxu0 0
    %1578 = vmatpush1.bf16.msra.mxu0 0
    %1579 = vmatprep.subr.bf16.mxu0 0
    %1580 = vmatpush1.bf16.msra.mxu0 0
    %1581 = vmatprep.mubr.bf16.mxu0 0
    %1582 = vmatmul.mubr.bf16.gmra.mrb[0].mxu0 %v1544
    %v1583 = vpop.f32.mrb[0].mxu0
    %v1584 = vadd.f32 0.0, %v1583
    %v1585 = vpop.f32.mrb[0].mxu0
    %v1586 = vpop.f32.mrb[0].mxu0
    %v1587 = vadd.f32 0.0, %v1586
    %v1588 = vpop.f32.mrb[0].mxu0
    %1589 = vdwg.mxu0
    %v1590 = vadd.f32 %v1533, %v1584
    %v1591 = vadd.f32 %v1534, %v1587
    %s1592 = scalar_lea.vmem %s4, 40
    %v1593 = vld [vmem:[%s1592] sm:$0xf]
    %v1594 = vld [vmem:[%s1592 + $0x4] sm:$0xf]
    %v1597 = vunpack.c.l.b16 %v1593
    %v1598 = vunpack.c.l.b16 %v1594
    %v1599 = vpack.c.b16 %v1598, %v1597
    %v1601 = vsel %vm1320, %v1599, 0
    %v1604 = vsel %vm1324, %v1306, 0
    %1606 = vmatprep.subr.bf16.mxu0 0
    %1607 = vmatpush1.bf16.msra.mxu0 %v1604
    %1608 = vmatprep.subr.bf16.mxu0 0
    %1609 = vmatpush1.bf16.msra.mxu0 0
    %1610 = vmatprep.subr.bf16.mxu0 0
    %1611 = vmatpush1.bf16.msra.mxu0 0
    %1612 = vmatprep.subr.bf16.mxu0 0
    %1613 = vmatpush1.bf16.msra.mxu0 0
    %1614 = vmatprep.subr.bf16.mxu0 0
    %1615 = vmatpush1.bf16.msra.mxu0 0
    %1616 = vmatprep.subr.bf16.mxu0 0
    %1617 = vmatpush1.bf16.msra.mxu0 0
    %1618 = vmatprep.subr.bf16.mxu0 0
    %1619 = vmatpush1.bf16.msra.mxu0 0
    %1620 = vmatprep.subr.bf16.mxu0 0
    %1621 = vmatpush1.bf16.msra.mxu0 0
    %1622 = vmatprep.subr.bf16.mxu0 0
    %1623 = vmatpush1.bf16.msra.mxu0 0
    %1624 = vmatprep.subr.bf16.mxu0 0
    %1625 = vmatpush1.bf16.msra.mxu0 0
    %1626 = vmatprep.subr.bf16.mxu0 0
    %1627 = vmatpush1.bf16.msra.mxu0 0
    %1628 = vmatprep.subr.bf16.mxu0 0
    %1629 = vmatpush1.bf16.msra.mxu0 0
    %1630 = vmatprep.subr.bf16.mxu0 0
    %1631 = vmatpush1.bf16.msra.mxu0 0
    %1632 = vmatprep.subr.bf16.mxu0 0
    %1633 = vmatpush1.bf16.msra.mxu0 0
    %1634 = vmatprep.subr.bf16.mxu0 0
    %1635 = vmatpush1.bf16.msra.mxu0 0
    %1636 = vmatprep.subr.bf16.mxu0 0
    %1637 = vmatpush1.bf16.msra.mxu0 0
    %1638 = vmatprep.mubr.bf16.mxu0 0
    %1639 = vmatmul.mubr.bf16.gmra.mrb[0].mxu0 %v1601
    %v1640 = vpop.f32.mrb[0].mxu0
    %v1641 = vadd.f32 0.0, %v1640
    %v1642 = vpop.f32.mrb[0].mxu0
    %v1643 = vpop.f32.mrb[0].mxu0
    %v1644 = vadd.f32 0.0, %v1643
    %v1645 = vpop.f32.mrb[0].mxu0
    %1646 = vdwg.mxu0
    %v1647 = vadd.f32 %v1590, %v1641
    %v1648 = vadd.f32 %v1591, %v1644
    %s1649 = scalar_lea.vmem %s4, 48
    %v1650 = vld [vmem:[%s1649] sm:$0xf]
    %v1651 = vld [vmem:[%s1649 + $0x4] sm:$0xf]
    %v1654 = vunpack.c.l.b16 %v1650
    %v1655 = vunpack.c.l.b16 %v1651
    %v1656 = vpack.c.b16 %v1655, %v1654
    %v1658 = vsel %vm1320, %v1656, 0
    %v1661 = vsel %vm1324, %v1307, 0
    %1663 = vmatprep.subr.bf16.mxu0 0
    %1664 = vmatpush1.bf16.msra.mxu0 %v1661
    %1665 = vmatprep.subr.bf16.mxu0 0
    %1666 = vmatpush1.bf16.msra.mxu0 0
    %1667 = vmatprep.subr.bf16.mxu0 0
    %1668 = vmatpush1.bf16.msra.mxu0 0
    %1669 = vmatprep.subr.bf16.mxu0 0
    %1670 = vmatpush1.bf16.msra.mxu0 0
    %1671 = vmatprep.subr.bf16.mxu0 0
    %1672 = vmatpush1.bf16.msra.mxu0 0
    %1673 = vmatprep.subr.bf16.mxu0 0
    %1674 = vmatpush1.bf16.msra.mxu0 0
    %1675 = vmatprep.subr.bf16.mxu0 0
    %1676 = vmatpush1.bf16.msra.mxu0 0
    %1677 = vmatprep.subr.bf16.mxu0 0
    %1678 = vmatpush1.bf16.msra.mxu0 0
    %1679 = vmatprep.subr.bf16.mxu0 0
    %1680 = vmatpush1.bf16.msra.mxu0 0
    %1681 = vmatprep.subr.bf16.mxu0 0
    %1682 = vmatpush1.bf16.msra.mxu0 0
    %1683 = vmatprep.subr.bf16.mxu0 0
    %1684 = vmatpush1.bf16.msra.mxu0 0
    %1685 = vmatprep.subr.bf16.mxu0 0
    %1686 = vmatpush1.bf16.msra.mxu0 0
    %1687 = vmatprep.subr.bf16.mxu0 0
    %1688 = vmatpush1.bf16.msra.mxu0 0
    %1689 = vmatprep.subr.bf16.mxu0 0
    %1690 = vmatpush1.bf16.msra.mxu0 0
    %1691 = vmatprep.subr.bf16.mxu0 0
    %1692 = vmatpush1.bf16.msra.mxu0 0
    %1693 = vmatprep.subr.bf16.mxu0 0
    %1694 = vmatpush1.bf16.msra.mxu0 0
    %1695 = vmatprep.mubr.bf16.mxu0 0
    %1696 = vmatmul.mubr.bf16.gmra.mrb[0].mxu0 %v1658
    %v1697 = vpop.f32.mrb[0].mxu0
    %v1698 = vadd.f32 0.0, %v1697
    %v1699 = vpop.f32.mrb[0].mxu0
    %v1700 = vpop.f32.mrb[0].mxu0
    %v1701 = vadd.f32 0.0, %v1700
    %v1702 = vpop.f32.mrb[0].mxu0
    %1703 = vdwg.mxu0
    %v1704 = vadd.f32 %v1647, %v1698
    %v1705 = vadd.f32 %v1648, %v1701
    %s1706 = scalar_lea.vmem %s4, 56
    %v1707 = vld [vmem:[%s1706] sm:$0xf]
    %v1708 = vld [vmem:[%s1706 + $0x4] sm:$0xf]
    %v1711 = vunpack.c.l.b16 %v1707
    %v1712 = vunpack.c.l.b16 %v1708
    %v1713 = vpack.c.b16 %v1712, %v1711
    %v1715 = vsel %vm1320, %v1713, 0
    %v1718 = vsel %vm1324, %v1308, 0
    %1720 = vmatprep.subr.bf16.mxu0 0
    %1721 = vmatpush1.bf16.msra.mxu0 %v1718
    %1722 = vmatprep.subr.bf16.mxu0 0
    %1723 = vmatpush1.bf16.msra.mxu0 0
    %1724 = vmatprep.subr.bf16.mxu0 0
    %1725 = vmatpush1.bf16.msra.mxu0 0
    %1726 = vmatprep.subr.bf16.mxu0 0
    %1727 = vmatpush1.bf16.msra.mxu0 0
    %1728 = vmatprep.subr.bf16.mxu0 0
    %1729 = vmatpush1.bf16.msra.mxu0 0
    %1730 = vmatprep.subr.bf16.mxu0 0
    %1731 = vmatpush1.bf16.msra.mxu0 0
    %1732 = vmatprep.subr.bf16.mxu0 0
    %1733 = vmatpush1.bf16.msra.mxu0 0
    %1734 = vmatprep.subr.bf16.mxu0 0
    %1735 = vmatpush1.bf16.msra.mxu0 0
    %1736 = vmatprep.subr.bf16.mxu0 0
    %1737 = vmatpush1.bf16.msra.mxu0 0
    %1738 = vmatprep.subr.bf16.mxu0 0
    %1739 = vmatpush1.bf16.msra.mxu0 0
    %1740 = vmatprep.subr.bf16.mxu0 0
    %1741 = vmatpush1.bf16.msra.mxu0 0
    %1742 = vmatprep.subr.bf16.mxu0 0
    %1743 = vmatpush1.bf16.msra.mxu0 0
    %1744 = vmatprep.subr.bf16.mxu0 0
    %1745 = vmatpush1.bf16.msra.mxu0 0
    %1746 = vmatprep.subr.bf16.mxu0 0
    %1747 = vmatpush1.bf16.msra.mxu0 0
    %1748 = vmatprep.subr.bf16.mxu0 0
    %1749 = vmatpush1.bf16.msra.mxu0 0
    %1750 = vmatprep.subr.bf16.mxu0 0
    %1751 = vmatpush1.bf16.msra.mxu0 0
    %1752 = vmatprep.mubr.bf16.mxu0 0
    %1753 = vmatmul.mubr.bf16.gmra.mrb[0].mxu0 %v1715
    %v1754 = vpop.f32.mrb[0].mxu0
    %v1755 = vadd.f32 0.0, %v1754
    %v1756 = vpop.f32.mrb[0].mxu0
    %v1757 = vpop.f32.mrb[0].mxu0
    %v1758 = vadd.f32 0.0, %v1757
    %v1759 = vpop.f32.mrb[0].mxu0
    %1760 = vdwg.mxu0
    %v1761 = vadd.f32 %v1704, %v1755
    %v1762 = vadd.f32 %v1705, %v1758
    %s1763 = scalar_lea.vmem %s4, 64
    %v1764 = vld [vmem:[%s1763] sm:$0xf]
    %v1765 = vld [vmem:[%s1763 + $0x4] sm:$0xf]
    %v1768 = vunpack.c.l.b16 %v1764
    %v1769 = vunpack.c.l.b16 %v1765
    %v1770 = vpack.c.b16 %v1769, %v1768
    %v1772 = vsel %vm1320, %v1770, 0
    %v1775 = vsel %vm1324, %v1309, 0
    %1777 = vmatprep.subr.bf16.mxu0 0
    %1778 = vmatpush1.bf16.msra.mxu0 %v1775
    %1779 = vmatprep.subr.bf16.mxu0 0
    %1780 = vmatpush1.bf16.msra.mxu0 0
    %1781 = vmatprep.subr.bf16.mxu0 0
    %1782 = vmatpush1.bf16.msra.mxu0 0
    %1783 = vmatprep.subr.bf16.mxu0 0
    %1784 = vmatpush1.bf16.msra.mxu0 0
    %1785 = vmatprep.subr.bf16.mxu0 0
    %1786 = vmatpush1.bf16.msra.mxu0 0
    %1787 = vmatprep.subr.bf16.mxu0 0
    %1788 = vmatpush1.bf16.msra.mxu0 0
    %1789 = vmatprep.subr.bf16.mxu0 0
    %1790 = vmatpush1.bf16.msra.mxu0 0
    %1791 = vmatprep.subr.bf16.mxu0 0
    %1792 = vmatpush1.bf16.msra.mxu0 0
    %1793 = vmatprep.subr.bf16.mxu0 0
    %1794 = vmatpush1.bf16.msra.mxu0 0
    %1795 = vmatprep.subr.bf16.mxu0 0
    %1796 = vmatpush1.bf16.msra.mxu0 0
    %1797 = vmatprep.subr.bf16.mxu0 0
    %1798 = vmatpush1.bf16.msra.mxu0 0
    %1799 = vmatprep.subr.bf16.mxu0 0
    %1800 = vmatpush1.bf16.msra.mxu0 0
    %1801 = vmatprep.subr.bf16.mxu0 0
    %1802 = vmatpush1.bf16.msra.mxu0 0
    %1803 = vmatprep.subr.bf16.mxu0 0
    %1804 = vmatpush1.bf16.msra.mxu0 0
    %1805 = vmatprep.subr.bf16.mxu0 0
    %1806 = vmatpush1.bf16.msra.mxu0 0
    %1807 = vmatprep.subr.bf16.mxu0 0
    %1808 = vmatpush1.bf16.msra.mxu0 0
    %1809 = vmatprep.mubr.bf16.mxu0 0
    %1810 = vmatmul.mubr.bf16.gmra.mrb[0].mxu0 %v1772
    %v1811 = vpop.f32.mrb[0].mxu0
    %v1812 = vadd.f32 0.0, %v1811
    %v1813 = vpop.f32.mrb[0].mxu0
    %v1814 = vpop.f32.mrb[0].mxu0
    %v1815 = vadd.f32 0.0, %v1814
    %v1816 = vpop.f32.mrb[0].mxu0
    %1817 = vdwg.mxu0
    %v1818 = vadd.f32 %v1761, %v1812
    %v1819 = vadd.f32 %v1762, %v1815
    %1820 = vadd.xlane.f32.xlu0 %v1818
    %v1821 = vpop.xlane.xlu0 %1820
    %1822 = vadd.xlane.f32.xlu0 %v1819
    %v1823 = vpop.xlane.xlu0 %1822
    %v1824 = vmul.f32 %v1818, %v1818
    %v1825 = vmul.f32 %v1819, %v1819
    %1826 = vadd.xlane.f32.xlu0 %v1824
    %v1827 = vpop.xlane.xlu0 %1826
    %1828 = vadd.xlane.f32.xlu0 %v1825
    %v1829 = vpop.xlane.xlu0 %1828
    %vm1830 = vcmask 130048
    %v1832 = vsel %vm1830, %v195, 0
    %v1835 = vsel %vm1830, %v196, 0
    %1837 = vmatprep.subr.mxu0 0.0
    %1838 = vmatpush1.msra.mxu0 %v1821
    %1839 = vmatprep.subr.mxu0 0.0
    %1840 = vmatpush1.msra.mxu0 %v1823
    %1841 = vmatprep.subr.mxu0 0.0
    %1842 = vmatpush1.msra.mxu0 0.0
    %1843 = vmatprep.subr.mxu0 0.0
    %1844 = vmatpush1.msra.mxu0 0.0
    %1845 = vmatprep.subr.mxu0 0.0
    %1846 = vmatpush1.msra.mxu0 0.0
    %1847 = vmatprep.subr.mxu0 0.0
    %1848 = vmatpush1.msra.mxu0 0.0
    %1849 = vmatprep.subr.mxu0 0.0
    %1850 = vmatpush1.msra.mxu0 0.0
    %1851 = vmatprep.subr.mxu0 0.0
    %1852 = vmatpush1.msra.mxu0 0.0
    %1853 = vmatprep.subr.mxu0 0.0
    %1854 = vmatpush1.msra.mxu0 0.0
    %1855 = vmatprep.subr.mxu0 0.0
    %1856 = vmatpush1.msra.mxu0 0.0
    %1857 = vmatprep.subr.mxu0 0.0
    %1858 = vmatpush1.msra.mxu0 0.0
    %1859 = vmatprep.subr.mxu0 0.0
    %1860 = vmatpush1.msra.mxu0 0.0
    %1861 = vmatprep.subr.mxu0 0.0
    %1862 = vmatpush1.msra.mxu0 0.0
    %1863 = vmatprep.subr.mxu0 0.0
    %1864 = vmatpush1.msra.mxu0 0.0
    %1865 = vmatprep.subr.mxu0 0.0
    %1866 = vmatpush1.msra.mxu0 0.0
    %1867 = vmatprep.subr.mxu0 0.0
    %1868 = vmatpush1.msra.mxu0 0.0
    %1869 = vmatprep.subr.mxu0 0.0
    %1870 = vmatpush1.msra.mxu0 0.0
    %1871 = vmatprep.subr.mxu0 0.0
    %1872 = vmatpush1.msra.mxu0 0.0
    %1873 = vmatprep.subr.mxu0 0.0
    %1874 = vmatpush1.msra.mxu0 0.0
    %1875 = vmatprep.subr.mxu0 0.0
    %1876 = vmatpush1.msra.mxu0 0.0
    %1877 = vmatprep.subr.mxu0 0.0
    %1878 = vmatpush1.msra.mxu0 0.0
    %1879 = vmatprep.subr.mxu0 0.0
    %1880 = vmatpush1.msra.mxu0 0.0
    %1881 = vmatprep.subr.mxu0 0.0
    %1882 = vmatpush1.msra.mxu0 0.0
    %1883 = vmatprep.subr.mxu0 0.0
    %1884 = vmatpush1.msra.mxu0 0.0
    %1885 = vmatprep.subr.mxu0 0.0
    %1886 = vmatpush1.msra.mxu0 0.0
    %1887 = vmatprep.subr.mxu0 0.0
    %1888 = vmatpush1.msra.mxu0 0.0
    %1889 = vmatprep.subr.mxu0 0.0
    %1890 = vmatpush1.msra.mxu0 0.0
    %1891 = vmatprep.subr.mxu0 0.0
    %1892 = vmatpush1.msra.mxu0 0.0
    %1893 = vmatprep.subr.mxu0 0.0
    %1894 = vmatpush1.msra.mxu0 0.0
    %1895 = vmatprep.subr.mxu0 0.0
    %1896 = vmatpush1.msra.mxu0 0.0
    %1897 = vmatprep.subr.mxu0 0.0
    %1898 = vmatpush1.msra.mxu0 0.0
    %1899 = vmatprep.subr.mxu0 0.0
    %1900 = vmatpush1.msra.mxu0 0.0
    %1901 = vmatprep.mubr.f32.mxu0 0.0
    %1902 = vmatmul.mubr.f32.gmra.mrb[0].mxu0 %v1832
    %v1903 = vpop.f32.mrb[0].mxu0
    %v1904 = vadd.f32 0.0, %v1903
    %v1905 = vpop.f32.mrb[0].mxu0
    %1906 = vmatprep.mubr.f32.mxu0 0.0
    %1907 = vmatmul.mubr.f32.gmra.mrb[0].mxu0 %v1835
    %v1908 = vpop.f32.mrb[0].mxu0
    %v1909 = vadd.f32 0.0, %v1908
    %v1910 = vpop.f32.mrb[0].mxu0
    %1911 = vdwg.mxu0
    %1912 = vmatprep.subr.mxu0 0.0
    %1913 = vmatpush1.msra.mxu0 %v1827
    %1914 = vmatprep.subr.mxu0 0.0
    %1915 = vmatpush1.msra.mxu0 %v1829
    %1916 = vmatprep.subr.mxu0 0.0
    %1917 = vmatpush1.msra.mxu0 0.0
    %1918 = vmatprep.subr.mxu0 0.0
    %1919 = vmatpush1.msra.mxu0 0.0
    %1920 = vmatprep.subr.mxu0 0.0
    %1921 = vmatpush1.msra.mxu0 0.0
    %1922 = vmatprep.subr.mxu0 0.0
    %1923 = vmatpush1.msra.mxu0 0.0
    %1924 = vmatprep.subr.mxu0 0.0
    %1925 = vmatpush1.msra.mxu0 0.0
    %1926 = vmatprep.subr.mxu0 0.0
    %1927 = vmatpush1.msra.mxu0 0.0
    %1928 = vmatprep.subr.mxu0 0.0
    %1929 = vmatpush1.msra.mxu0 0.0
    %1930 = vmatprep.subr.mxu0 0.0
    %1931 = vmatpush1.msra.mxu0 0.0
    %1932 = vmatprep.subr.mxu0 0.0
    %1933 = vmatpush1.msra.mxu0 0.0
    %1934 = vmatprep.subr.mxu0 0.0
    %1935 = vmatpush1.msra.mxu0 0.0
    %1936 = vmatprep.subr.mxu0 0.0
    %1937 = vmatpush1.msra.mxu0 0.0
    %1938 = vmatprep.subr.mxu0 0.0
    %1939 = vmatpush1.msra.mxu0 0.0
    %1940 = vmatprep.subr.mxu0 0.0
    %1941 = vmatpush1.msra.mxu0 0.0
    %1942 = vmatprep.subr.mxu0 0.0
    %1943 = vmatpush1.msra.mxu0 0.0
    %1944 = vmatprep.subr.mxu0 0.0
    %1945 = vmatpush1.msra.mxu0 0.0
    %1946 = vmatprep.subr.mxu0 0.0
    %1947 = vmatpush1.msra.mxu0 0.0
    %1948 = vmatprep.subr.mxu0 0.0
    %1949 = vmatpush1.msra.mxu0 0.0
    %1950 = vmatprep.subr.mxu0 0.0
    %1951 = vmatpush1.msra.mxu0 0.0
    %1952 = vmatprep.subr.mxu0 0.0
    %1953 = vmatpush1.msra.mxu0 0.0
    %1954 = vmatprep.subr.mxu0 0.0
    %1955 = vmatpush1.msra.mxu0 0.0
    %1956 = vmatprep.subr.mxu0 0.0
    %1957 = vmatpush1.msra.mxu0 0.0
    %1958 = vmatprep.subr.mxu0 0.0
    %1959 = vmatpush1.msra.mxu0 0.0
    %1960 = vmatprep.subr.mxu0 0.0
    %1961 = vmatpush1.msra.mxu0 0.0
    %1962 = vmatprep.subr.mxu0 0.0
    %1963 = vmatpush1.msra.mxu0 0.0
    %1964 = vmatprep.subr.mxu0 0.0
    %1965 = vmatpush1.msra.mxu0 0.0
    %1966 = vmatprep.subr.mxu0 0.0
    %1967 = vmatpush1.msra.mxu0 0.0
    %1968 = vmatprep.subr.mxu0 0.0
    %1969 = vmatpush1.msra.mxu0 0.0
    %1970 = vmatprep.subr.mxu0 0.0
    %1971 = vmatpush1.msra.mxu0 0.0
    %1972 = vmatprep.subr.mxu0 0.0
    %1973 = vmatpush1.msra.mxu0 0.0
    %1974 = vmatprep.subr.mxu0 0.0
    %1975 = vmatpush1.msra.mxu0 0.0
    %1976 = vmatprep.mubr.f32.mxu0 0.0
    %1977 = vmatmul.mubr.f32.gmra.mrb[0].mxu0 %v1832
    %v1978 = vpop.f32.mrb[0].mxu0
    %v1979 = vadd.f32 0.0, %v1978
    %v1980 = vpop.f32.mrb[0].mxu0
    %1981 = vmatprep.mubr.f32.mxu0 0.0
    %1982 = vmatmul.mubr.f32.gmra.mrb[0].mxu0 %v1835
    %v1983 = vpop.f32.mrb[0].mxu0
    %v1984 = vadd.f32 0.0, %v1983
    %v1985 = vpop.f32.mrb[0].mxu0
    %1986 = vdwg.mxu0
    %v1987 = vmul.f32 %v1904, 0.0078125
    %v1988 = vmul.f32 %v1909, 0.0078125
    %v1989 = vmul.f32 %v1979, 0.0078125
    %v1990 = vmul.f32 %v1984, 0.0078125
    %v1991 = vmul.f32 %v1987, %v1987
    %v1992 = vmul.f32 %v1988, %v1988
    %v1993 = vsub.f32 %v1989, %v1991
    %v1994 = vsub.f32 %v1990, %v1992
    %v1995 = vmax.f32 %v1993, 0.0
    %v1996 = vmax.f32 %v1994, 0.0
    %1998 = vset.pattern.permute.xlu0 0
    %1999 = vperm.xlu0 %1998, %v1987
    %v2000 = vpop.permute.xlu0 %1999
    %2003 = vset.pattern.permute.xlu0 0
    %2004 = vperm.xlu0 %2003, %v1988
    %v2005 = vpop.permute.xlu0 %2004
    %v2007 = vsub.f32 %v1818, %v2000
    %v2008 = vsub.f32 %v1819, %v2005
    %v2009 = vadd.f32 %v1995, 1e-05
    %v2010 = vadd.f32 %v1996, 1e-05
    %v2011 = vrsqrt.pop %v2009
    %v2012 = vrsqrt.pop %v2010
    %2014 = vset.pattern.permute.xlu0 0
    %2015 = vperm.xlu0 %2014, %v2011
    %v2016 = vpop.permute.xlu0 %2015
    %2019 = vset.pattern.permute.xlu0 0
    %2020 = vperm.xlu0 %2019, %v2012
    %v2021 = vpop.permute.xlu0 %2020
    %v2023 = vmul.f32 %v2007, %v2016
    %v2024 = vmul.f32 %v2008, %v2021
    %v2025 = vld [vmem:[%s5] sm:$0xff]
    %v2026 = vld [vmem:[%s5 + $0x8] sm:$0xff]
    %2028 = vset.pattern.permute.xlu0 0
    %2029 = vperm.xlu0 %2028, %v2025
    %v2030 = vpop.permute.xlu0 %2029
    %2033 = vset.pattern.permute.xlu0 0
    %2034 = vperm.xlu0 %2033, %v2026
    %v2035 = vpop.permute.xlu0 %2034
    %v2037 = vmul.f32 %v2023, %v2030
    %v2038 = vmul.f32 %v2024, %v2035
    %2039 = vset.pattern.permute.xlu0 1
    %2040 = vperm.xlu0 %2039, %v2025
    %v2041 = vpop.permute.xlu0 %2040
    %2043 = vset.pattern.permute.xlu0 1
    %2044 = vperm.xlu0 %2043, %v2026
    %v2045 = vpop.permute.xlu0 %2044
    %v2047 = vadd.f32 %v2037, %v2041
    %v2048 = vadd.f32 %v2038, %v2045
    %vm2049 = vcmp.ge.f32.partialorder %v2047, 0.0
    %vm2050 = vcmp.ge.f32.partialorder %v2048, 0.0
    %v2051 = vmul.f32 %v2047, 0.2
    %v2052 = vmul.f32 %v2048, 0.2
    %v2053 = vsel %vm2049, %v2047, %v2051
    %v2054 = vsel %vm2050, %v2048, %v2052
    %v2055 = vpack.c.bf16 %v2054, %v2053
    %v2056 = vld [vmem:[#allocation6] sm:$0xff]
    %v2057 = vld [vmem:[#allocation6 + $0x8] sm:$0xff]
    %v2058 = vld [vmem:[#allocation6 + $0x10] sm:$0xff]
    %v2059 = vld [vmem:[#allocation6 + $0x18] sm:$0xff]
    %v2060 = vld [vmem:[#allocation6 + $0x20] sm:$0xf]
    %v2061 = vld [vmem:[#allocation6 + $0x24] sm:$0xff]
    %v2062 = vld [vmem:[#allocation6 + $0x2c] sm:$0xff]
    %v2063 = vld [vmem:[#allocation6 + $0x34] sm:$0xff]
    %v2064 = vld [vmem:[#allocation6 + $0x3c] sm:$0xff]
    %v2065 = vld [vmem:[#allocation6 + $0x44] sm:$0xf]
    %v2066 = vld [vmem:[#allocation6 + $0x48] sm:$0xff]
    %v2067 = vld [vmem:[#allocation6 + $0x50] sm:$0xff]
    %v2068 = vld [vmem:[#allocation6 + $0x58] sm:$0xff]
    %v2069 = vld [vmem:[#allocation6 + $0x60] sm:$0xff]
    %v2070 = vld [vmem:[#allocation6 + $0x68] sm:$0xf]
    %v2071 = vld [vmem:[#allocation6 + $0x6c] sm:$0xff]
    %v2072 = vld [vmem:[#allocation6 + $0x74] sm:$0xff]
    %v2073 = vld [vmem:[#allocation6 + $0x7c] sm:$0xff]
    %v2074 = vld [vmem:[#allocation6 + $0x84] sm:$0xff]
    %v2075 = vld [vmem:[#allocation6 + $0x8c] sm:$0xf]
    %v2076 = vld [vmem:[#allocation6 + $0x90] sm:$0xff]
    %v2077 = vld [vmem:[#allocation6 + $0x98] sm:$0xff]
    %v2078 = vld [vmem:[#allocation6 + $0xa0] sm:$0xff]
    %v2079 = vld [vmem:[#allocation6 + $0xa8] sm:$0xff]
    %v2080 = vld [vmem:[#allocation6 + $0xb0] sm:$0xf]
    %v2081 = vld [vmem:[#allocation6 + $0xb4] sm:$0xff]
    %v2082 = vld [vmem:[#allocation6 + $0xbc] sm:$0xff]
    %v2083 = vld [vmem:[#allocation6 + $0xc4] sm:$0xff]
    %v2084 = vld [vmem:[#allocation6 + $0xcc] sm:$0xff]
    %v2085 = vld [vmem:[#allocation6 + $0xd4] sm:$0xf]
    %v2086 = vld [vmem:[#allocation6 + $0xd8] sm:$0xff]
    %v2087 = vld [vmem:[#allocation6 + $0xe0] sm:$0xff]
    %v2088 = vld [vmem:[#allocation6 + $0xe8] sm:$0xff]
    %v2089 = vld [vmem:[#allocation6 + $0xf0] sm:$0xff]
    %v2090 = vld [vmem:[#allocation6 + $0xf8] sm:$0xf]
    %v2091 = vld [vmem:[#allocation6 + $0xfc] sm:$0xff]
    %v2092 = vld [vmem:[#allocation6 + $0x104] sm:$0xff]
    %v2093 = vld [vmem:[#allocation6 + $0x10c] sm:$0xff]
    %v2094 = vld [vmem:[#allocation6 + $0x114] sm:$0xff]
    %v2095 = vld [vmem:[#allocation6 + $0x11c] sm:$0xf]
    %v2096 = vld [vmem:[#allocation6 + $0x120] sm:$0xff]
    %v2097 = vld [vmem:[#allocation6 + $0x128] sm:$0xff]
    %v2098 = vld [vmem:[#allocation6 + $0x130] sm:$0xff]
    %v2099 = vld [vmem:[#allocation6 + $0x138] sm:$0xff]
    %v2100 = vld [vmem:[#allocation6 + $0x140] sm:$0xf]
    %v2101 = vld [vmem:[#allocation6 + $0x144] sm:$0xff]
    %v2102 = vld [vmem:[#allocation6 + $0x14c] sm:$0xff]
    %v2103 = vld [vmem:[#allocation6 + $0x154] sm:$0xff]
    %v2104 = vld [vmem:[#allocation6 + $0x15c] sm:$0xff]
    %v2105 = vld [vmem:[#allocation6 + $0x164] sm:$0xf]
    %v2106 = vld [vmem:[#allocation6 + $0x168] sm:$0xff]
    %v2107 = vld [vmem:[#allocation6 + $0x170] sm:$0xff]
    %v2108 = vld [vmem:[#allocation6 + $0x178] sm:$0xff]
    %v2109 = vld [vmem:[#allocation6 + $0x180] sm:$0xff]
    %v2110 = vld [vmem:[#allocation6 + $0x188] sm:$0xf]
    %v2111 = vld [vmem:[#allocation6 + $0x18c] sm:$0xff]
    %v2112 = vld [vmem:[#allocation6 + $0x194] sm:$0xff]
    %v2113 = vld [vmem:[#allocation6 + $0x19c] sm:$0xff]
    %v2114 = vld [vmem:[#allocation6 + $0x1a4] sm:$0xff]
    %v2115 = vld [vmem:[#allocation6 + $0x1ac] sm:$0xf]
    %v2116 = vld [vmem:[#allocation6 + $0x1b0] sm:$0xff]
    %v2117 = vld [vmem:[#allocation6 + $0x1b8] sm:$0xff]
    %v2118 = vld [vmem:[#allocation6 + $0x1c0] sm:$0xff]
    %v2119 = vld [vmem:[#allocation6 + $0x1c8] sm:$0xff]
    %v2120 = vld [vmem:[#allocation6 + $0x1d0] sm:$0xf]
    %v2121 = vld [vmem:[#allocation6 + $0x1d4] sm:$0xff]
    %v2122 = vld [vmem:[#allocation6 + $0x1dc] sm:$0xff]
    %v2123 = vld [vmem:[#allocation6 + $0x1e4] sm:$0xff]
    %v2124 = vld [vmem:[#allocation6 + $0x1ec] sm:$0xff]
    %v2125 = vld [vmem:[#allocation6 + $0x1f4] sm:$0xf]
    %v2126 = vld [vmem:[#allocation6 + $0x1f8] sm:$0xff]
    %v2127 = vld [vmem:[#allocation6 + $0x200] sm:$0xff]
    %v2128 = vld [vmem:[#allocation6 + $0x208] sm:$0xff]
    %v2129 = vld [vmem:[#allocation6 + $0x210] sm:$0xff]
    %v2130 = vld [vmem:[#allocation6 + $0x218] sm:$0xf]
    %v2131 = vld [vmem:[#allocation6 + $0x21c] sm:$0xff]
    %v2132 = vld [vmem:[#allocation6 + $0x224] sm:$0xff]
    %v2133 = vld [vmem:[#allocation6 + $0x22c] sm:$0xff]
    %v2134 = vld [vmem:[#allocation6 + $0x234] sm:$0xff]
    %v2135 = vld [vmem:[#allocation6 + $0x23c] sm:$0xf]
    %v2216 = vunpack.c.l.b16 %v2056
    %v2217 = vunpack.c.h.b16 %v2056
    %v2218 = vunpack.c.l.b16 %v2057
    %v2219 = vunpack.c.h.b16 %v2057
    %v2220 = vunpack.c.l.b16 %v2058
    %v2221 = vunpack.c.h.b16 %v2058
    %v2222 = vunpack.c.l.b16 %v2059
    %v2223 = vunpack.c.h.b16 %v2059
    %v2224 = vunpack.c.l.b16 %v2060
    %v2225 = vunpack.c.l.b16 %v2061
    %v2226 = vunpack.c.h.b16 %v2061
    %v2227 = vunpack.c.l.b16 %v2062
    %v2228 = vunpack.c.h.b16 %v2062
    %v2229 = vunpack.c.l.b16 %v2063
    %v2230 = vunpack.c.h.b16 %v2063
    %v2231 = vunpack.c.l.b16 %v2064
    %v2232 = vunpack.c.h.b16 %v2064
    %v2233 = vunpack.c.l.b16 %v2065
    %v2234 = vunpack.c.l.b16 %v2066
    %v2235 = vunpack.c.h.b16 %v2066
    %v2236 = vunpack.c.l.b16 %v2067
    %v2237 = vunpack.c.h.b16 %v2067
    %v2238 = vunpack.c.l.b16 %v2068
    %v2239 = vunpack.c.h.b16 %v2068
    %v2240 = vunpack.c.l.b16 %v2069
    %v2241 = vunpack.c.h.b16 %v2069
    %v2242 = vunpack.c.l.b16 %v2070
    %v2243 = vunpack.c.l.b16 %v2071
    %v2244 = vunpack.c.h.b16 %v2071
    %v2245 = vunpack.c.l.b16 %v2072
    %v2246 = vunpack.c.h.b16 %v2072
    %v2247 = vunpack.c.l.b16 %v2073
    %v2248 = vunpack.c.h.b16 %v2073
    %v2249 = vunpack.c.l.b16 %v2074
    %v2250 = vunpack.c.h.b16 %v2074
    %v2251 = vunpack.c.l.b16 %v2075
    %v2252 = vunpack.c.l.b16 %v2076
    %v2253 = vunpack.c.h.b16 %v2076
    %v2254 = vunpack.c.l.b16 %v2077
    %v2255 = vunpack.c.h.b16 %v2077
    %v2256 = vunpack.c.l.b16 %v2078
    %v2257 = vunpack.c.h.b16 %v2078
    %v2258 = vunpack.c.l.b16 %v2079
    %v2259 = vunpack.c.h.b16 %v2079
    %v2260 = vunpack.c.l.b16 %v2080
    %v2261 = vunpack.c.l.b16 %v2081
    %v2262 = vunpack.c.h.b16 %v2081
    %v2263 = vunpack.c.l.b16 %v2082
    %v2264 = vunpack.c.h.b16 %v2082
    %v2265 = vunpack.c.l.b16 %v2083
    %v2266 = vunpack.c.h.b16 %v2083
    %v2267 = vunpack.c.l.b16 %v2084
    %v2268 = vunpack.c.h.b16 %v2084
    %v2269 = vunpack.c.l.b16 %v2085
    %v2270 = vunpack.c.l.b16 %v2086
    %v2271 = vunpack.c.h.b16 %v2086
    %v2272 = vunpack.c.l.b16 %v2087
    %v2273 = vunpack.c.h.b16 %v2087
    %v2274 = vunpack.c.l.b16 %v2088
    %v2275 = vunpack.c.h.b16 %v2088
    %v2276 = vunpack.c.l.b16 %v2089
    %v2277 = vunpack.c.h.b16 %v2089
    %v2278 = vunpack.c.l.b16 %v2090
    %v2279 = vunpack.c.l.b16 %v2091
    %v2280 = vunpack.c.h.b16 %v2091
    %v2281 = vunpack.c.l.b16 %v2092
    %v2282 = vunpack.c.h.b16 %v2092
    %v2283 = vunpack.c.l.b16 %v2093
    %v2284 = vunpack.c.h.b16 %v2093
    %v2285 = vunpack.c.l.b16 %v2094
    %v2286 = vunpack.c.h.b16 %v2094
    %v2287 = vunpack.c.l.b16 %v2095
    %v2288 = vunpack.c.l.b16 %v2096
    %v2289 = vunpack.c.h.b16 %v2096
    %v2290 = vunpack.c.l.b16 %v2097
    %v2291 = vunpack.c.h.b16 %v2097
    %v2292 = vunpack.c.l.b16 %v2098
    %v2293 = vunpack.c.h.b16 %v2098
    %v2294 = vunpack.c.l.b16 %v2099
    %v2295 = vunpack.c.h.b16 %v2099
    %v2296 = vunpack.c.l.b16 %v2100
    %v2297 = vunpack.c.l.b16 %v2101
    %v2298 = vunpack.c.h.b16 %v2101
    %v2299 = vunpack.c.l.b16 %v2102
    %v2300 = vunpack.c.h.b16 %v2102
    %v2301 = vunpack.c.l.b16 %v2103
    %v2302 = vunpack.c.h.b16 %v2103
    %v2303 = vunpack.c.l.b16 %v2104
    %v2304 = vunpack.c.h.b16 %v2104
    %v2305 = vunpack.c.l.b16 %v2105
    %v2306 = vunpack.c.l.b16 %v2106
    %v2307 = vunpack.c.h.b16 %v2106
    %v2308 = vunpack.c.l.b16 %v2107
    %v2309 = vunpack.c.h.b16 %v2107
    %v2310 = vunpack.c.l.b16 %v2108
    %v2311 = vunpack.c.h.b16 %v2108
    %v2312 = vunpack.c.l.b16 %v2109
    %v2313 = vunpack.c.h.b16 %v2109
    %v2314 = vunpack.c.l.b16 %v2110
    %v2315 = vunpack.c.l.b16 %v2111
    %v2316 = vunpack.c.h.b16 %v2111
    %v2317 = vunpack.c.l.b16 %v2112
    %v2318 = vunpack.c.h.b16 %v2112
    %v2319 = vunpack.c.l.b16 %v2113
    %v2320 = vunpack.c.h.b16 %v2113
    %v2321 = vunpack.c.l.b16 %v2114
    %v2322 = vunpack.c.h.b16 %v2114
    %v2323 = vunpack.c.l.b16 %v2115
    %v2324 = vunpack.c.l.b16 %v2116
    %v2325 = vunpack.c.h.b16 %v2116
    %v2326 = vunpack.c.l.b16 %v2117
    %v2327 = vunpack.c.h.b16 %v2117
    %v2328 = vunpack.c.l.b16 %v2118
    %v2329 = vunpack.c.h.b16 %v2118
    %v2330 = vunpack.c.l.b16 %v2119
    %v2331 = vunpack.c.h.b16 %v2119
    %v2332 = vunpack.c.l.b16 %v2120
    %v2333 = vunpack.c.l.b16 %v2121
    %v2334 = vunpack.c.h.b16 %v2121
    %v2335 = vunpack.c.l.b16 %v2122
    %v2336 = vunpack.c.h.b16 %v2122
    %v2337 = vunpack.c.l.b16 %v2123
    %v2338 = vunpack.c.h.b16 %v2123
    %v2339 = vunpack.c.l.b16 %v2124
    %v2340 = vunpack.c.h.b16 %v2124
    %v2341 = vunpack.c.l.b16 %v2125
    %v2342 = vunpack.c.l.b16 %v2126
    %v2343 = vunpack.c.h.b16 %v2126
    %v2344 = vunpack.c.l.b16 %v2127
    %v2345 = vunpack.c.h.b16 %v2127
    %v2346 = vunpack.c.l.b16 %v2128
    %v2347 = vunpack.c.h.b16 %v2128
    %v2348 = vunpack.c.l.b16 %v2129
    %v2349 = vunpack.c.h.b16 %v2129
    %v2350 = vunpack.c.l.b16 %v2130
    %v2351 = vunpack.c.l.b16 %v2131
    %v2352 = vunpack.c.h.b16 %v2131
    %v2353 = vunpack.c.l.b16 %v2132
    %v2354 = vunpack.c.h.b16 %v2132
    %v2355 = vunpack.c.l.b16 %v2133
    %v2356 = vunpack.c.h.b16 %v2133
    %v2357 = vunpack.c.l.b16 %v2134
    %v2358 = vunpack.c.h.b16 %v2134
    %v2359 = vunpack.c.l.b16 %v2135
    %v2360 = vpack.c.b16 %v2225, %v2216
    %v2361 = vpack.c.b16 %v2226, %v2217
    %v2362 = vpack.c.b16 %v2227, %v2218
    %v2363 = vpack.c.b16 %v2228, %v2219
    %v2364 = vpack.c.b16 %v2229, %v2220
    %v2365 = vpack.c.b16 %v2230, %v2221
    %v2366 = vpack.c.b16 %v2231, %v2222
    %v2367 = vpack.c.b16 %v2232, %v2223
    %v2368 = vpack.c.b16 %v2233, %v2224
    %v2369 = vpack.c.b16 %v2243, %v2234
    %v2370 = vpack.c.b16 %v2244, %v2235
    %v2371 = vpack.c.b16 %v2245, %v2236
    %v2372 = vpack.c.b16 %v2246, %v2237
    %v2373 = vpack.c.b16 %v2247, %v2238
    %v2374 = vpack.c.b16 %v2248, %v2239
    %v2375 = vpack.c.b16 %v2249, %v2240
    %v2376 = vpack.c.b16 %v2250, %v2241
    %v2377 = vpack.c.b16 %v2251, %v2242
    %v2378 = vpack.c.b16 %v2261, %v2252
    %v2379 = vpack.c.b16 %v2262, %v2253
    %v2380 = vpack.c.b16 %v2263, %v2254
    %v2381 = vpack.c.b16 %v2264, %v2255
    %v2382 = vpack.c.b16 %v2265, %v2256
    %v2383 = vpack.c.b16 %v2266, %v2257
    %v2384 = vpack.c.b16 %v2267, %v2258
    %v2385 = vpack.c.b16 %v2268, %v2259
    %v2386 = vpack.c.b16 %v2269, %v2260
    %v2387 = vpack.c.b16 %v2279, %v2270
    %v2388 = vpack.c.b16 %v2280, %v2271
    %v2389 = vpack.c.b16 %v2281, %v2272
    %v2390 = vpack.c.b16 %v2282, %v2273
    %v2391 = vpack.c.b16 %v2283, %v2274
    %v2392 = vpack.c.b16 %v2284, %v2275
    %v2393 = vpack.c.b16 %v2285, %v2276
    %v2394 = vpack.c.b16 %v2286, %v2277
    %v2395 = vpack.c.b16 %v2287, %v2278
    %v2396 = vpack.c.b16 %v2297, %v2288
    %v2397 = vpack.c.b16 %v2298, %v2289
    %v2398 = vpack.c.b16 %v2299, %v2290
    %v2399 = vpack.c.b16 %v2300, %v2291
    %v2400 = vpack.c.b16 %v2301, %v2292
    %v2401 = vpack.c.b16 %v2302, %v2293
    %v2402 = vpack.c.b16 %v2303, %v2294
    %v2403 = vpack.c.b16 %v2304, %v2295
    %v2404 = vpack.c.b16 %v2305, %v2296
    %v2405 = vpack.c.b16 %v2315, %v2306
    %v2406 = vpack.c.b16 %v2316, %v2307
    %v2407 = vpack.c.b16 %v2317, %v2308
    %v2408 = vpack.c.b16 %v2318, %v2309
    %v2409 = vpack.c.b16 %v2319, %v2310
    %v2410 = vpack.c.b16 %v2320, %v2311
    %v2411 = vpack.c.b16 %v2321, %v2312
    %v2412 = vpack.c.b16 %v2322, %v2313
    %v2413 = vpack.c.b16 %v2323, %v2314
    %v2414 = vpack.c.b16 %v2333, %v2324
    %v2415 = vpack.c.b16 %v2334, %v2325
    %v2416 = vpack.c.b16 %v2335, %v2326
    %v2417 = vpack.c.b16 %v2336, %v2327
    %v2418 = vpack.c.b16 %v2337, %v2328
    %v2419 = vpack.c.b16 %v2338, %v2329
    %v2420 = vpack.c.b16 %v2339, %v2330
    %v2421 = vpack.c.b16 %v2340, %v2331
    %v2422 = vpack.c.b16 %v2341, %v2332
    %v2423 = vpack.c.b16 %v2351, %v2342
    %v2424 = vpack.c.b16 %v2352, %v2343
    %v2425 = vpack.c.b16 %v2353, %v2344
    %v2426 = vpack.c.b16 %v2354, %v2345
    %v2427 = vpack.c.b16 %v2355, %v2346
    %v2428 = vpack.c.b16 %v2356, %v2347
    %v2429 = vpack.c.b16 %v2357, %v2348
    %v2430 = vpack.c.b16 %v2358, %v2349
    %v2431 = vpack.c.b16 %v2359, %v2350
    %2504 = vmatprep.subr.bf16.mxu0 %v2361
    %2505 = vmatpush1.bf16.msra.mxu0 %v2360
    %2506 = vmatprep.subr.bf16.mxu0 %v2370
    %2507 = vmatpush1.bf16.msra.mxu0 %v2369
    %2508 = vmatprep.subr.bf16.mxu0 %v2379
    %2509 = vmatpush1.bf16.msra.mxu0 %v2378
    %2510 = vmatprep.subr.bf16.mxu0 %v2388
    %2511 = vmatpush1.bf16.msra.mxu0 %v2387
    %2512 = vmatprep.subr.bf16.mxu0 %v2397
    %2513 = vmatpush1.bf16.msra.mxu0 %v2396
    %2514 = vmatprep.subr.bf16.mxu0 %v2406
    %2515 = vmatpush1.bf16.msra.mxu0 %v2405
    %2516 = vmatprep.subr.bf16.mxu0 %v2415
    %2517 = vmatpush1.bf16.msra.mxu0 %v2414
    %2518 = vmatprep.subr.bf16.mxu0 %v2424
    %2519 = vmatpush1.bf16.msra.mxu0 %v2423
    %2520 = vmatprep.subr.bf16.mxu0 0
    %2521 = vmatpush1.bf16.msra.mxu0 0
    %2522 = vmatprep.subr.bf16.mxu0 0
    %2523 = vmatpush1.bf16.msra.mxu0 0
    %2524 = vmatprep.subr.bf16.mxu0 0
    %2525 = vmatpush1.bf16.msra.mxu0 0
    %2526 = vmatprep.subr.bf16.mxu0 0
    %2527 = vmatpush1.bf16.msra.mxu0 0
    %2528 = vmatprep.subr.bf16.mxu0 0
    %2529 = vmatpush1.bf16.msra.mxu0 0
    %2530 = vmatprep.subr.bf16.mxu0 0
    %2531 = vmatpush1.bf16.msra.mxu0 0
    %2532 = vmatprep.subr.bf16.mxu0 0
    %2533 = vmatpush1.bf16.msra.mxu0 0
    %2534 = vmatprep.subr.bf16.mxu0 0
    %2535 = vmatpush1.bf16.msra.mxu0 0
    %2536 = vmatprep.mubr.bf16.mxu0 0
    %2537 = vmatmul.mubr.bf16.gmra.mrb[0].mxu0 %v2055
    %v2538 = vpop.f32.mrb[0].mxu0
    %v2539 = vadd.f32 0.0, %v2538
    %v2540 = vpop.f32.mrb[0].mxu0
    %v2541 = vadd.f32 0.0, %v2540
    %v2542 = vpop.f32.mrb[0].mxu0
    %v2543 = vadd.f32 0.0, %v2542
    %v2544 = vpop.f32.mrb[0].mxu0
    %v2545 = vadd.f32 0.0, %v2544
    %2546 = vdwg.mxu0
    %2547 = vmatprep.subr.bf16.mxu0 %v2363
    %2548 = vmatpush1.bf16.msra.mxu0 %v2362
    %2549 = vmatprep.subr.bf16.mxu0 %v2372
    %2550 = vmatpush1.bf16.msra.mxu0 %v2371
    %2551 = vmatprep.subr.bf16.mxu0 %v2381
    %2552 = vmatpush1.bf16.msra.mxu0 %v2380
    %2553 = vmatprep.subr.bf16.mxu0 %v2390
    %2554 = vmatpush1.bf16.msra.mxu0 %v2389
    %2555 = vmatprep.subr.bf16.mxu0 %v2399
    %2556 = vmatpush1.bf16.msra.mxu0 %v2398
    %2557 = vmatprep.subr.bf16.mxu0 %v2408
    %2558 = vmatpush1.bf16.msra.mxu0 %v2407
    %2559 = vmatprep.subr.bf16.mxu0 %v2417
    %2560 = vmatpush1.bf16.msra.mxu0 %v2416
    %2561 = vmatprep.subr.bf16.mxu0 %v2426
    %2562 = vmatpush1.bf16.msra.mxu0 %v2425
    %2563 = vmatprep.subr.bf16.mxu0 0
    %2564 = vmatpush1.bf16.msra.mxu0 0
    %2565 = vmatprep.subr.bf16.mxu0 0
    %2566 = vmatpush1.bf16.msra.mxu0 0
    %2567 = vmatprep.subr.bf16.mxu0 0
    %2568 = vmatpush1.bf16.msra.mxu0 0
    %2569 = vmatprep.subr.bf16.mxu0 0
    %2570 = vmatpush1.bf16.msra.mxu0 0
    %2571 = vmatprep.subr.bf16.mxu0 0
    %2572 = vmatpush1.bf16.msra.mxu0 0
    %2573 = vmatprep.subr.bf16.mxu0 0
    %2574 = vmatpush1.bf16.msra.mxu0 0
    %2575 = vmatprep.subr.bf16.mxu0 0
    %2576 = vmatpush1.bf16.msra.mxu0 0
    %2577 = vmatprep.subr.bf16.mxu0 0
    %2578 = vmatpush1.bf16.msra.mxu0 0
    %2579 = vmatprep.mubr.bf16.mxu0 0
    %2580 = vmatmul.mubr.bf16.gmra.mrb[0].mxu0 %v2055
    %v2581 = vpop.f32.mrb[0].mxu0
    %v2582 = vadd.f32 0.0, %v2581
    %v2583 = vpop.f32.mrb[0].mxu0
    %v2584 = vadd.f32 0.0, %v2583
    %v2585 = vpop.f32.mrb[0].mxu0
    %v2586 = vadd.f32 0.0, %v2585
    %v2587 = vpop.f32.mrb[0].mxu0
    %v2588 = vadd.f32 0.0, %v2587
    %2589 = vdwg.mxu0
    %2590 = vmatprep.subr.bf16.mxu0 %v2365
    %2591 = vmatpush1.bf16.msra.mxu0 %v2364
    %2592 = vmatprep.subr.bf16.mxu0 %v2374
    %2593 = vmatpush1.bf16.msra.mxu0 %v2373
    %2594 = vmatprep.subr.bf16.mxu0 %v2383
    %2595 = vmatpush1.bf16.msra.mxu0 %v2382
    %2596 = vmatprep.subr.bf16.mxu0 %v2392
    %2597 = vmatpush1.bf16.msra.mxu0 %v2391
    %2598 = vmatprep.subr.bf16.mxu0 %v2401
    %2599 = vmatpush1.bf16.msra.mxu0 %v2400
    %2600 = vmatprep.subr.bf16.mxu0 %v2410
    %2601 = vmatpush1.bf16.msra.mxu0 %v2409
    %2602 = vmatprep.subr.bf16.mxu0 %v2419
    %2603 = vmatpush1.bf16.msra.mxu0 %v2418
    %2604 = vmatprep.subr.bf16.mxu0 %v2428
    %2605 = vmatpush1.bf16.msra.mxu0 %v2427
    %2606 = vmatprep.subr.bf16.mxu0 0
    %2607 = vmatpush1.bf16.msra.mxu0 0
    %2608 = vmatprep.subr.bf16.mxu0 0
    %2609 = vmatpush1.bf16.msra.mxu0 0
    %2610 = vmatprep.subr.bf16.mxu0 0
    %2611 = vmatpush1.bf16.msra.mxu0 0
    %2612 = vmatprep.subr.bf16.mxu0 0
    %2613 = vmatpush1.bf16.msra.mxu0 0
    %2614 = vmatprep.subr.bf16.mxu0 0
    %2615 = vmatpush1.bf16.msra.mxu0 0
    %2616 = vmatprep.subr.bf16.mxu0 0
    %2617 = vmatpush1.bf16.msra.mxu0 0
    %2618 = vmatprep.subr.bf16.mxu0 0
    %2619 = vmatpush1.bf16.msra.mxu0 0
    %2620 = vmatprep.subr.bf16.mxu0 0
    %2621 = vmatpush1.bf16.msra.mxu0 0
    %2622 = vmatprep.mubr.bf16.mxu0 0
    %2623 = vmatmul.mubr.bf16.gmra.mrb[0].mxu0 %v2055
    %v2624 = vpop.f32.mrb[0].mxu0
    %v2625 = vadd.f32 0.0, %v2624
    %v2626 = vpop.f32.mrb[0].mxu0
    %v2627 = vadd.f32 0.0, %v2626
    %v2628 = vpop.f32.mrb[0].mxu0
    %v2629 = vadd.f32 0.0, %v2628
    %v2630 = vpop.f32.mrb[0].mxu0
    %v2631 = vadd.f32 0.0, %v2630
    %2632 = vdwg.mxu0
    %2633 = vmatprep.subr.bf16.mxu0 %v2367
    %2634 = vmatpush1.bf16.msra.mxu0 %v2366
    %2635 = vmatprep.subr.bf16.mxu0 %v2376
    %2636 = vmatpush1.bf16.msra.mxu0 %v2375
    %2637 = vmatprep.subr.bf16.mxu0 %v2385
    %2638 = vmatpush1.bf16.msra.mxu0 %v2384
    %2639 = vmatprep.subr.bf16.mxu0 %v2394
    %2640 = vmatpush1.bf16.msra.mxu0 %v2393
    %2641 = vmatprep.subr.bf16.mxu0 %v2403
    %2642 = vmatpush1.bf16.msra.mxu0 %v2402
    %2643 = vmatprep.subr.bf16.mxu0 %v2412
    %2644 = vmatpush1.bf16.msra.mxu0 %v2411
    %2645 = vmatprep.subr.bf16.mxu0 %v2421
    %2646 = vmatpush1.bf16.msra.mxu0 %v2420
    %2647 = vmatprep.subr.bf16.mxu0 %v2430
    %2648 = vmatpush1.bf16.msra.mxu0 %v2429
    %2649 = vmatprep.subr.bf16.mxu0 0
    %2650 = vmatpush1.bf16.msra.mxu0 0
    %2651 = vmatprep.subr.bf16.mxu0 0
    %2652 = vmatpush1.bf16.msra.mxu0 0
    %2653 = vmatprep.subr.bf16.mxu0 0
    %2654 = vmatpush1.bf16.msra.mxu0 0
    %2655 = vmatprep.subr.bf16.mxu0 0
    %2656 = vmatpush1.bf16.msra.mxu0 0
    %2657 = vmatprep.subr.bf16.mxu0 0
    %2658 = vmatpush1.bf16.msra.mxu0 0
    %2659 = vmatprep.subr.bf16.mxu0 0
    %2660 = vmatpush1.bf16.msra.mxu0 0
    %2661 = vmatprep.subr.bf16.mxu0 0
    %2662 = vmatpush1.bf16.msra.mxu0 0
    %2663 = vmatprep.subr.bf16.mxu0 0
    %2664 = vmatpush1.bf16.msra.mxu0 0
    %2665 = vmatprep.mubr.bf16.mxu0 0
    %2666 = vmatmul.mubr.bf16.gmra.mrb[0].mxu0 %v2055
    %v2667 = vpop.f32.mrb[0].mxu0
    %v2668 = vadd.f32 0.0, %v2667
    %v2669 = vpop.f32.mrb[0].mxu0
    %v2670 = vadd.f32 0.0, %v2669
    %v2671 = vpop.f32.mrb[0].mxu0
    %v2672 = vadd.f32 0.0, %v2671
    %v2673 = vpop.f32.mrb[0].mxu0
    %v2674 = vadd.f32 0.0, %v2673
    %2675 = vdwg.mxu0
    %2676 = vmatprep.subr.bf16.mxu0 0
    %2677 = vmatpush1.bf16.msra.mxu0 %v2368
    %2678 = vmatprep.subr.bf16.mxu0 0
    %2679 = vmatpush1.bf16.msra.mxu0 %v2377
    %2680 = vmatprep.subr.bf16.mxu0 0
    %2681 = vmatpush1.bf16.msra.mxu0 %v2386
    %2682 = vmatprep.subr.bf16.mxu0 0
    %2683 = vmatpush1.bf16.msra.mxu0 %v2395
    %2684 = vmatprep.subr.bf16.mxu0 0
    %2685 = vmatpush1.bf16.msra.mxu0 %v2404
    %2686 = vmatprep.subr.bf16.mxu0 0
    %2687 = vmatpush1.bf16.msra.mxu0 %v2413
    %2688 = vmatprep.subr.bf16.mxu0 0
    %2689 = vmatpush1.bf16.msra.mxu0 %v2422
    %2690 = vmatprep.subr.bf16.mxu0 0
    %2691 = vmatpush1.bf16.msra.mxu0 %v2431
    %2692 = vmatprep.subr.bf16.mxu0 0
    %2693 = vmatpush1.bf16.msra.mxu0 0
    %2694 = vmatprep.subr.bf16.mxu0 0
    %2695 = vmatpush1.bf16.msra.mxu0 0
    %2696 = vmatprep.subr.bf16.mxu0 0
    %2697 = vmatpush1.bf16.msra.mxu0 0
    %2698 = vmatprep.subr.bf16.mxu0 0
    %2699 = vmatpush1.bf16.msra.mxu0 0
    %2700 = vmatprep.subr.bf16.mxu0 0
    %2701 = vmatpush1.bf16.msra.mxu0 0
    %2702 = vmatprep.subr.bf16.mxu0 0
    %2703 = vmatpush1.bf16.msra.mxu0 0
    %2704 = vmatprep.subr.bf16.mxu0 0
    %2705 = vmatpush1.bf16.msra.mxu0 0
    %2706 = vmatprep.subr.bf16.mxu0 0
    %2707 = vmatpush1.bf16.msra.mxu0 0
    %2708 = vmatprep.mubr.bf16.mxu0 0
    %2709 = vmatmul.mubr.bf16.gmra.mrb[0].mxu0 %v2055
    %v2710 = vpop.f32.mrb[0].mxu0
    %v2711 = vadd.f32 0.0, %v2710
    %v2712 = vpop.f32.mrb[0].mxu0
    %v2713 = vpop.f32.mrb[0].mxu0
    %v2714 = vadd.f32 0.0, %v2713
    %v2715 = vpop.f32.mrb[0].mxu0
    %2716 = vdwg.mxu0
    %v2717 = vpack.c.bf16 %v2543, %v2539
    %v2718 = vpack.c.bf16 %v2545, %v2541
    %v2719 = vpack.c.bf16 %v2586, %v2582
    %v2720 = vpack.c.bf16 %v2588, %v2584
    %v2721 = vpack.c.bf16 %v2629, %v2625
    %v2722 = vpack.c.bf16 %v2631, %v2627
    %v2723 = vpack.c.bf16 %v2672, %v2668
    %v2724 = vpack.c.bf16 %v2674, %v2670
    %v2725 = vpack.c.bf16 %v2714, %v2711
    %v2726 = vld [vmem:[%s7] sm:$0xf]
    %v2727 = vld [vmem:[%s7 + $0x4] sm:$0xf]
    %s2728 = scalar_lea.vmem %s7, 8
    %v2729 = vld [vmem:[%s2728] sm:$0xf]
    %v2730 = vld [vmem:[%s2728 + $0x4] sm:$0xf]
    %v2733 = vunpack.c.l.b16 %v2729
    %v2734 = vunpack.c.l.b16 %v2730
    %v2735 = vpack.c.b16 %v2734, %v2733
    %v2737 = vsel %vm1830, %v2735, 0
    %2739 = vmatprep.subr.bf16.mxu0 0
    %2740 = vmatpush1.bf16.msra.mxu0 %v2718
    %2741 = vmatprep.subr.bf16.mxu0 0
    %2742 = vmatpush1.bf16.msra.mxu0 0
    %2743 = vmatprep.subr.bf16.mxu0 0
    %2744 = vmatpush1.bf16.msra.mxu0 0
    %2745 = vmatprep.subr.bf16.mxu0 0
    %2746 = vmatpush1.bf16.msra.mxu0 0
    %2747 = vmatprep.subr.bf16.mxu0 0
    %2748 = vmatpush1.bf16.msra.mxu0 0
    %2749 = vmatprep.subr.bf16.mxu0 0
    %2750 = vmatpush1.bf16.msra.mxu0 0
    %2751 = vmatprep.subr.bf16.mxu0 0
    %2752 = vmatpush1.bf16.msra.mxu0 0
    %2753 = vmatprep.subr.bf16.mxu0 0
    %2754 = vmatpush1.bf16.msra.mxu0 0
    %2755 = vmatprep.subr.bf16.mxu0 0
    %2756 = vmatpush1.bf16.msra.mxu0 0
    %2757 = vmatprep.subr.bf16.mxu0 0
    %2758 = vmatpush1.bf16.msra.mxu0 0
    %2759 = vmatprep.subr.bf16.mxu0 0
    %2760 = vmatpush1.bf16.msra.mxu0 0
    %2761 = vmatprep.subr.bf16.mxu0 0
    %2762 = vmatpush1.bf16.msra.mxu0 0
    %2763 = vmatprep.subr.bf16.mxu0 0
    %2764 = vmatpush1.bf16.msra.mxu0 0
    %2765 = vmatprep.subr.bf16.mxu0 0
    %2766 = vmatpush1.bf16.msra.mxu0 0
    %2767 = vmatprep.subr.bf16.mxu0 0
    %2768 = vmatpush1.bf16.msra.mxu0 0
    %2769 = vmatprep.subr.bf16.mxu0 0
    %2770 = vmatpush1.bf16.msra.mxu0 0
    %2771 = vmatprep.mubr.bf16.mxu0 0
    %2772 = vmatmul.mubr.bf16.gmra.mrb[0].mxu0 %v2737
    %v2773 = vpop.f32.mrb[0].mxu0
    %v2774 = vadd.f32 0.0, %v2773
    %v2775 = vpop.f32.mrb[0].mxu0
    %v2776 = vpop.f32.mrb[0].mxu0
    %v2777 = vadd.f32 0.0, %v2776
    %v2778 = vpop.f32.mrb[0].mxu0
    %2779 = vdwg.mxu0
    %v2782 = vunpack.c.l.b16 %v2726
    %v2783 = vunpack.c.l.b16 %v2727
    %v2784 = vpack.c.b16 %v2783, %v2782
    %v2786 = vsel %vm1830, %v2784, 0
    %2788 = vmatprep.subr.bf16.mxu0 0
    %2789 = vmatpush1.bf16.msra.mxu0 %v2717
    %2790 = vmatprep.subr.bf16.mxu0 0
    %2791 = vmatpush1.bf16.msra.mxu0 0
    %2792 = vmatprep.subr.bf16.mxu0 0
    %2793 = vmatpush1.bf16.msra.mxu0 0
    %2794 = vmatprep.subr.bf16.mxu0 0
    %2795 = vmatpush1.bf16.msra.mxu0 0
    %2796 = vmatprep.subr.bf16.mxu0 0
    %2797 = vmatpush1.bf16.msra.mxu0 0
    %2798 = vmatprep.subr.bf16.mxu0 0
    %2799 = vmatpush1.bf16.msra.mxu0 0
    %2800 = vmatprep.subr.bf16.mxu0 0
    %2801 = vmatpush1.bf16.msra.mxu0 0
    %2802 = vmatprep.subr.bf16.mxu0 0
    %2803 = vmatpush1.bf16.msra.mxu0 0
    %2804 = vmatprep.subr.bf16.mxu0 0
    %2805 = vmatpush1.bf16.msra.mxu0 0
    %2806 = vmatprep.subr.bf16.mxu0 0
    %2807 = vmatpush1.bf16.msra.mxu0 0
    %2808 = vmatprep.subr.bf16.mxu0 0
    %2809 = vmatpush1.bf16.msra.mxu0 0
    %2810 = vmatprep.subr.bf16.mxu0 0
    %2811 = vmatpush1.bf16.msra.mxu0 0
    %2812 = vmatprep.subr.bf16.mxu0 0
    %2813 = vmatpush1.bf16.msra.mxu0 0
    %2814 = vmatprep.subr.bf16.mxu0 0
    %2815 = vmatpush1.bf16.msra.mxu0 0
    %2816 = vmatprep.subr.bf16.mxu0 0
    %2817 = vmatpush1.bf16.msra.mxu0 0
    %2818 = vmatprep.subr.bf16.mxu0 0
    %2819 = vmatpush1.bf16.msra.mxu0 0
    %2820 = vmatprep.mubr.bf16.mxu0 0
    %2821 = vmatmul.mubr.bf16.gmra.mrb[0].mxu0 %v2786
    %v2822 = vpop.f32.mrb[0].mxu0
    %v2823 = vadd.f32 %v2774, %v2822
    %v2824 = vpop.f32.mrb[0].mxu0
    %v2825 = vpop.f32.mrb[0].mxu0
    %v2826 = vadd.f32 %v2777, %v2825
    %v2827 = vpop.f32.mrb[0].mxu0
    %2828 = vdwg.mxu0
    %s2829 = scalar_lea.vmem %s7, 16
    %v2830 = vld [vmem:[%s2829] sm:$0xf]
    %v2831 = vld [vmem:[%s2829 + $0x4] sm:$0xf]
    %v2834 = vunpack.c.l.b16 %v2830
    %v2835 = vunpack.c.l.b16 %v2831
    %v2836 = vpack.c.b16 %v2835, %v2834
    %v2838 = vsel %vm1830, %v2836, 0
    %2840 = vmatprep.subr.bf16.mxu0 0
    %2841 = vmatpush1.bf16.msra.mxu0 %v2719
    %2842 = vmatprep.subr.bf16.mxu0 0
    %2843 = vmatpush1.bf16.msra.mxu0 0
    %2844 = vmatprep.subr.bf16.mxu0 0
    %2845 = vmatpush1.bf16.msra.mxu0 0
    %2846 = vmatprep.subr.bf16.mxu0 0
    %2847 = vmatpush1.bf16.msra.mxu0 0
    %2848 = vmatprep.subr.bf16.mxu0 0
    %2849 = vmatpush1.bf16.msra.mxu0 0
    %2850 = vmatprep.subr.bf16.mxu0 0
    %2851 = vmatpush1.bf16.msra.mxu0 0
    %2852 = vmatprep.subr.bf16.mxu0 0
    %2853 = vmatpush1.bf16.msra.mxu0 0
    %2854 = vmatprep.subr.bf16.mxu0 0
    %2855 = vmatpush1.bf16.msra.mxu0 0
    %2856 = vmatprep.subr.bf16.mxu0 0
    %2857 = vmatpush1.bf16.msra.mxu0 0
    %2858 = vmatprep.subr.bf16.mxu0 0
    %2859 = vmatpush1.bf16.msra.mxu0 0
    %2860 = vmatprep.subr.bf16.mxu0 0
    %2861 = vmatpush1.bf16.msra.mxu0 0
    %2862 = vmatprep.subr.bf16.mxu0 0
    %2863 = vmatpush1.bf16.msra.mxu0 0
    %2864 = vmatprep.subr.bf16.mxu0 0
    %2865 = vmatpush1.bf16.msra.mxu0 0
    %2866 = vmatprep.subr.bf16.mxu0 0
    %2867 = vmatpush1.bf16.msra.mxu0 0
    %2868 = vmatprep.subr.bf16.mxu0 0
    %2869 = vmatpush1.bf16.msra.mxu0 0
    %2870 = vmatprep.subr.bf16.mxu0 0
    %2871 = vmatpush1.bf16.msra.mxu0 0
    %2872 = vmatprep.mubr.bf16.mxu0 0
    %2873 = vmatmul.mubr.bf16.gmra.mrb[0].mxu0 %v2838
    %v2874 = vpop.f32.mrb[0].mxu0
    %v2875 = vadd.f32 0.0, %v2874
    %v2876 = vpop.f32.mrb[0].mxu0
    %v2877 = vpop.f32.mrb[0].mxu0
    %v2878 = vadd.f32 0.0, %v2877
    %v2879 = vpop.f32.mrb[0].mxu0
    %2880 = vdwg.mxu0
    %v2881 = vadd.f32 %v2823, %v2875
    %v2882 = vadd.f32 %v2826, %v2878
    %s2883 = scalar_lea.vmem %s7, 24
    %v2884 = vld [vmem:[%s2883] sm:$0xf]
    %v2885 = vld [vmem:[%s2883 + $0x4] sm:$0xf]
    %v2888 = vunpack.c.l.b16 %v2884
    %v2889 = vunpack.c.l.b16 %v2885
    %v2890 = vpack.c.b16 %v2889, %v2888
    %v2892 = vsel %vm1830, %v2890, 0
    %2894 = vmatprep.subr.bf16.mxu0 0
    %2895 = vmatpush1.bf16.msra.mxu0 %v2720
    %2896 = vmatprep.subr.bf16.mxu0 0
    %2897 = vmatpush1.bf16.msra.mxu0 0
    %2898 = vmatprep.subr.bf16.mxu0 0
    %2899 = vmatpush1.bf16.msra.mxu0 0
    %2900 = vmatprep.subr.bf16.mxu0 0
    %2901 = vmatpush1.bf16.msra.mxu0 0
    %2902 = vmatprep.subr.bf16.mxu0 0
    %2903 = vmatpush1.bf16.msra.mxu0 0
    %2904 = vmatprep.subr.bf16.mxu0 0
    %2905 = vmatpush1.bf16.msra.mxu0 0
    %2906 = vmatprep.subr.bf16.mxu0 0
    %2907 = vmatpush1.bf16.msra.mxu0 0
    %2908 = vmatprep.subr.bf16.mxu0 0
    %2909 = vmatpush1.bf16.msra.mxu0 0
    %2910 = vmatprep.subr.bf16.mxu0 0
    %2911 = vmatpush1.bf16.msra.mxu0 0
    %2912 = vmatprep.subr.bf16.mxu0 0
    %2913 = vmatpush1.bf16.msra.mxu0 0
    %2914 = vmatprep.subr.bf16.mxu0 0
    %2915 = vmatpush1.bf16.msra.mxu0 0
    %2916 = vmatprep.subr.bf16.mxu0 0
    %2917 = vmatpush1.bf16.msra.mxu0 0
    %2918 = vmatprep.subr.bf16.mxu0 0
    %2919 = vmatpush1.bf16.msra.mxu0 0
    %2920 = vmatprep.subr.bf16.mxu0 0
    %2921 = vmatpush1.bf16.msra.mxu0 0
    %2922 = vmatprep.subr.bf16.mxu0 0
    %2923 = vmatpush1.bf16.msra.mxu0 0
    %2924 = vmatprep.subr.bf16.mxu0 0
    %2925 = vmatpush1.bf16.msra.mxu0 0
    %2926 = vmatprep.mubr.bf16.mxu0 0
    %2927 = vmatmul.mubr.bf16.gmra.mrb[0].mxu0 %v2892
    %v2928 = vpop.f32.mrb[0].mxu0
    %v2929 = vadd.f32 0.0, %v2928
    %v2930 = vpop.f32.mrb[0].mxu0
    %v2931 = vpop.f32.mrb[0].mxu0
    %v2932 = vadd.f32 0.0, %v2931
    %v2933 = vpop.f32.mrb[0].mxu0
    %2934 = vdwg.mxu0
    %v2935 = vadd.f32 %v2881, %v2929
    %v2936 = vadd.f32 %v2882, %v2932
    %s2937 = scalar_lea.vmem %s7, 32
    %v2938 = vld [vmem:[%s2937] sm:$0xf]
    %v2939 = vld [vmem:[%s2937 + $0x4] sm:$0xf]
    %v2942 = vunpack.c.l.b16 %v2938
    %v2943 = vunpack.c.l.b16 %v2939
    %v2944 = vpack.c.b16 %v2943, %v2942
    %v2946 = vsel %vm1830, %v2944, 0
    %2948 = vmatprep.subr.bf16.mxu0 0
    %2949 = vmatpush1.bf16.msra.mxu0 %v2721
    %2950 = vmatprep.subr.bf16.mxu0 0
    %2951 = vmatpush1.bf16.msra.mxu0 0
    %2952 = vmatprep.subr.bf16.mxu0 0
    %2953 = vmatpush1.bf16.msra.mxu0 0
    %2954 = vmatprep.subr.bf16.mxu0 0
    %2955 = vmatpush1.bf16.msra.mxu0 0
    %2956 = vmatprep.subr.bf16.mxu0 0
    %2957 = vmatpush1.bf16.msra.mxu0 0
    %2958 = vmatprep.subr.bf16.mxu0 0
    %2959 = vmatpush1.bf16.msra.mxu0 0
    %2960 = vmatprep.subr.bf16.mxu0 0
    %2961 = vmatpush1.bf16.msra.mxu0 0
    %2962 = vmatprep.subr.bf16.mxu0 0
    %2963 = vmatpush1.bf16.msra.mxu0 0
    %2964 = vmatprep.subr.bf16.mxu0 0
    %2965 = vmatpush1.bf16.msra.mxu0 0
    %2966 = vmatprep.subr.bf16.mxu0 0
    %2967 = vmatpush1.bf16.msra.mxu0 0
    %2968 = vmatprep.subr.bf16.mxu0 0
    %2969 = vmatpush1.bf16.msra.mxu0 0
    %2970 = vmatprep.subr.bf16.mxu0 0
    %2971 = vmatpush1.bf16.msra.mxu0 0
    %2972 = vmatprep.subr.bf16.mxu0 0
    %2973 = vmatpush1.bf16.msra.mxu0 0
    %2974 = vmatprep.subr.bf16.mxu0 0
    %2975 = vmatpush1.bf16.msra.mxu0 0
    %2976 = vmatprep.subr.bf16.mxu0 0
    %2977 = vmatpush1.bf16.msra.mxu0 0
    %2978 = vmatprep.subr.bf16.mxu0 0
    %2979 = vmatpush1.bf16.msra.mxu0 0
    %2980 = vmatprep.mubr.bf16.mxu0 0
    %2981 = vmatmul.mubr.bf16.gmra.mrb[0].mxu0 %v2946
    %v2982 = vpop.f32.mrb[0].mxu0
    %v2983 = vadd.f32 0.0, %v2982
    %v2984 = vpop.f32.mrb[0].mxu0
    %v2985 = vpop.f32.mrb[0].mxu0
    %v2986 = vadd.f32 0.0, %v2985
    %v2987 = vpop.f32.mrb[0].mxu0
    %2988 = vdwg.mxu0
    %v2989 = vadd.f32 %v2935, %v2983
    %v2990 = vadd.f32 %v2936, %v2986
    %s2991 = scalar_lea.vmem %s7, 40
    %v2992 = vld [vmem:[%s2991] sm:$0xf]
    %v2993 = vld [vmem:[%s2991 + $0x4] sm:$0xf]
    %v2996 = vunpack.c.l.b16 %v2992
    %v2997 = vunpack.c.l.b16 %v2993
    %v2998 = vpack.c.b16 %v2997, %v2996
    %v3000 = vsel %vm1830, %v2998, 0
    %3002 = vmatprep.subr.bf16.mxu0 0
    %3003 = vmatpush1.bf16.msra.mxu0 %v2722
    %3004 = vmatprep.subr.bf16.mxu0 0
    %3005 = vmatpush1.bf16.msra.mxu0 0
    %3006 = vmatprep.subr.bf16.mxu0 0
    %3007 = vmatpush1.bf16.msra.mxu0 0
    %3008 = vmatprep.subr.bf16.mxu0 0
    %3009 = vmatpush1.bf16.msra.mxu0 0
    %3010 = vmatprep.subr.bf16.mxu0 0
    %3011 = vmatpush1.bf16.msra.mxu0 0
    %3012 = vmatprep.subr.bf16.mxu0 0
    %3013 = vmatpush1.bf16.msra.mxu0 0
    %3014 = vmatprep.subr.bf16.mxu0 0
    %3015 = vmatpush1.bf16.msra.mxu0 0
    %3016 = vmatprep.subr.bf16.mxu0 0
    %3017 = vmatpush1.bf16.msra.mxu0 0
    %3018 = vmatprep.subr.bf16.mxu0 0
    %3019 = vmatpush1.bf16.msra.mxu0 0
    %3020 = vmatprep.subr.bf16.mxu0 0
    %3021 = vmatpush1.bf16.msra.mxu0 0
    %3022 = vmatprep.subr.bf16.mxu0 0
    %3023 = vmatpush1.bf16.msra.mxu0 0
    %3024 = vmatprep.subr.bf16.mxu0 0
    %3025 = vmatpush1.bf16.msra.mxu0 0
    %3026 = vmatprep.subr.bf16.mxu0 0
    %3027 = vmatpush1.bf16.msra.mxu0 0
    %3028 = vmatprep.subr.bf16.mxu0 0
    %3029 = vmatpush1.bf16.msra.mxu0 0
    %3030 = vmatprep.subr.bf16.mxu0 0
    %3031 = vmatpush1.bf16.msra.mxu0 0
    %3032 = vmatprep.subr.bf16.mxu0 0
    %3033 = vmatpush1.bf16.msra.mxu0 0
    %3034 = vmatprep.mubr.bf16.mxu0 0
    %3035 = vmatmul.mubr.bf16.gmra.mrb[0].mxu0 %v3000
    %v3036 = vpop.f32.mrb[0].mxu0
    %v3037 = vadd.f32 0.0, %v3036
    %v3038 = vpop.f32.mrb[0].mxu0
    %v3039 = vpop.f32.mrb[0].mxu0
    %v3040 = vadd.f32 0.0, %v3039
    %v3041 = vpop.f32.mrb[0].mxu0
    %3042 = vdwg.mxu0
    %v3043 = vadd.f32 %v2989, %v3037
    %v3044 = vadd.f32 %v2990, %v3040
    %s3045 = scalar_lea.vmem %s7, 48
    %v3046 = vld [vmem:[%s3045] sm:$0xf]
    %v3047 = vld [vmem:[%s3045 + $0x4] sm:$0xf]
    %v3050 = vunpack.c.l.b16 %v3046
    %v3051 = vunpack.c.l.b16 %v3047
    %v3052 = vpack.c.b16 %v3051, %v3050
    %v3054 = vsel %vm1830, %v3052, 0
    %3056 = vmatprep.subr.bf16.mxu0 0
    %3057 = vmatpush1.bf16.msra.mxu0 %v2723
    %3058 = vmatprep.subr.bf16.mxu0 0
    %3059 = vmatpush1.bf16.msra.mxu0 0
    %3060 = vmatprep.subr.bf16.mxu0 0
    %3061 = vmatpush1.bf16.msra.mxu0 0
    %3062 = vmatprep.subr.bf16.mxu0 0
    %3063 = vmatpush1.bf16.msra.mxu0 0
    %3064 = vmatprep.subr.bf16.mxu0 0
    %3065 = vmatpush1.bf16.msra.mxu0 0
    %3066 = vmatprep.subr.bf16.mxu0 0
    %3067 = vmatpush1.bf16.msra.mxu0 0
    %3068 = vmatprep.subr.bf16.mxu0 0
    %3069 = vmatpush1.bf16.msra.mxu0 0
    %3070 = vmatprep.subr.bf16.mxu0 0
    %3071 = vmatpush1.bf16.msra.mxu0 0
    %3072 = vmatprep.subr.bf16.mxu0 0
    %3073 = vmatpush1.bf16.msra.mxu0 0
    %3074 = vmatprep.subr.bf16.mxu0 0
    %3075 = vmatpush1.bf16.msra.mxu0 0
    %3076 = vmatprep.subr.bf16.mxu0 0
    %3077 = vmatpush1.bf16.msra.mxu0 0
    %3078 = vmatprep.subr.bf16.mxu0 0
    %3079 = vmatpush1.bf16.msra.mxu0 0
    %3080 = vmatprep.subr.bf16.mxu0 0
    %3081 = vmatpush1.bf16.msra.mxu0 0
    %3082 = vmatprep.subr.bf16.mxu0 0
    %3083 = vmatpush1.bf16.msra.mxu0 0
    %3084 = vmatprep.subr.bf16.mxu0 0
    %3085 = vmatpush1.bf16.msra.mxu0 0
    %3086 = vmatprep.subr.bf16.mxu0 0
    %3087 = vmatpush1.bf16.msra.mxu0 0
    %3088 = vmatprep.mubr.bf16.mxu0 0
    %3089 = vmatmul.mubr.bf16.gmra.mrb[0].mxu0 %v3054
    %v3090 = vpop.f32.mrb[0].mxu0
    %v3091 = vadd.f32 0.0, %v3090
    %v3092 = vpop.f32.mrb[0].mxu0
    %v3093 = vpop.f32.mrb[0].mxu0
    %v3094 = vadd.f32 0.0, %v3093
    %v3095 = vpop.f32.mrb[0].mxu0
    %3096 = vdwg.mxu0
    %v3097 = vadd.f32 %v3043, %v3091
    %v3098 = vadd.f32 %v3044, %v3094
    %s3099 = scalar_lea.vmem %s7, 56
    %v3100 = vld [vmem:[%s3099] sm:$0xf]
    %v3101 = vld [vmem:[%s3099 + $0x4] sm:$0xf]
    %v3104 = vunpack.c.l.b16 %v3100
    %v3105 = vunpack.c.l.b16 %v3101
    %v3106 = vpack.c.b16 %v3105, %v3104
    %v3108 = vsel %vm1830, %v3106, 0
    %3110 = vmatprep.subr.bf16.mxu0 0
    %3111 = vmatpush1.bf16.msra.mxu0 %v2724
    %3112 = vmatprep.subr.bf16.mxu0 0
    %3113 = vmatpush1.bf16.msra.mxu0 0
    %3114 = vmatprep.subr.bf16.mxu0 0
    %3115 = vmatpush1.bf16.msra.mxu0 0
    %3116 = vmatprep.subr.bf16.mxu0 0
    %3117 = vmatpush1.bf16.msra.mxu0 0
    %3118 = vmatprep.subr.bf16.mxu0 0
    %3119 = vmatpush1.bf16.msra.mxu0 0
    %3120 = vmatprep.subr.bf16.mxu0 0
    %3121 = vmatpush1.bf16.msra.mxu0 0
    %3122 = vmatprep.subr.bf16.mxu0 0
    %3123 = vmatpush1.bf16.msra.mxu0 0
    %3124 = vmatprep.subr.bf16.mxu0 0
    %3125 = vmatpush1.bf16.msra.mxu0 0
    %3126 = vmatprep.subr.bf16.mxu0 0
    %3127 = vmatpush1.bf16.msra.mxu0 0
    %3128 = vmatprep.subr.bf16.mxu0 0
    %3129 = vmatpush1.bf16.msra.mxu0 0
    %3130 = vmatprep.subr.bf16.mxu0 0
    %3131 = vmatpush1.bf16.msra.mxu0 0
    %3132 = vmatprep.subr.bf16.mxu0 0
    %3133 = vmatpush1.bf16.msra.mxu0 0
    %3134 = vmatprep.subr.bf16.mxu0 0
    %3135 = vmatpush1.bf16.msra.mxu0 0
    %3136 = vmatprep.subr.bf16.mxu0 0
    %3137 = vmatpush1.bf16.msra.mxu0 0
    %3138 = vmatprep.subr.bf16.mxu0 0
    %3139 = vmatpush1.bf16.msra.mxu0 0
    %3140 = vmatprep.subr.bf16.mxu0 0
    %3141 = vmatpush1.bf16.msra.mxu0 0
    %3142 = vmatprep.mubr.bf16.mxu0 0
    %3143 = vmatmul.mubr.bf16.gmra.mrb[0].mxu0 %v3108
    %v3144 = vpop.f32.mrb[0].mxu0
    %v3145 = vadd.f32 0.0, %v3144
    %v3146 = vpop.f32.mrb[0].mxu0
    %v3147 = vpop.f32.mrb[0].mxu0
    %v3148 = vadd.f32 0.0, %v3147
    %v3149 = vpop.f32.mrb[0].mxu0
    %3150 = vdwg.mxu0
    %v3151 = vadd.f32 %v3097, %v3145
    %v3152 = vadd.f32 %v3098, %v3148
    %s3153 = scalar_lea.vmem %s7, 64
    %v3154 = vld [vmem:[%s3153] sm:$0xf]
    %v3155 = vld [vmem:[%s3153 + $0x4] sm:$0xf]
    %v3158 = vunpack.c.l.b16 %v3154
    %v3159 = vunpack.c.l.b16 %v3155
    %v3160 = vpack.c.b16 %v3159, %v3158
    %v3162 = vsel %vm1830, %v3160, 0
    %3164 = vmatprep.subr.bf16.mxu0 0
    %3165 = vmatpush1.bf16.msra.mxu0 %v2725
    %3166 = vmatprep.subr.bf16.mxu0 0
    %3167 = vmatpush1.bf16.msra.mxu0 0
    %3168 = vmatprep.subr.bf16.mxu0 0
    %3169 = vmatpush1.bf16.msra.mxu0 0
    %3170 = vmatprep.subr.bf16.mxu0 0
    %3171 = vmatpush1.bf16.msra.mxu0 0
    %3172 = vmatprep.subr.bf16.mxu0 0
    %3173 = vmatpush1.bf16.msra.mxu0 0
    %3174 = vmatprep.subr.bf16.mxu0 0
    %3175 = vmatpush1.bf16.msra.mxu0 0
    %3176 = vmatprep.subr.bf16.mxu0 0
    %3177 = vmatpush1.bf16.msra.mxu0 0
    %3178 = vmatprep.subr.bf16.mxu0 0
    %3179 = vmatpush1.bf16.msra.mxu0 0
    %3180 = vmatprep.subr.bf16.mxu0 0
    %3181 = vmatpush1.bf16.msra.mxu0 0
    %3182 = vmatprep.subr.bf16.mxu0 0
    %3183 = vmatpush1.bf16.msra.mxu0 0
    %3184 = vmatprep.subr.bf16.mxu0 0
    %3185 = vmatpush1.bf16.msra.mxu0 0
    %3186 = vmatprep.subr.bf16.mxu0 0
    %3187 = vmatpush1.bf16.msra.mxu0 0
    %3188 = vmatprep.subr.bf16.mxu0 0
    %3189 = vmatpush1.bf16.msra.mxu0 0
    %3190 = vmatprep.subr.bf16.mxu0 0
    %3191 = vmatpush1.bf16.msra.mxu0 0
    %3192 = vmatprep.subr.bf16.mxu0 0
    %3193 = vmatpush1.bf16.msra.mxu0 0
    %3194 = vmatprep.subr.bf16.mxu0 0
    %3195 = vmatpush1.bf16.msra.mxu0 0
    %3196 = vmatprep.mubr.bf16.mxu0 0
    %3197 = vmatmul.mubr.bf16.gmra.mrb[0].mxu0 %v3162
    %v3198 = vpop.f32.mrb[0].mxu0
    %v3199 = vadd.f32 0.0, %v3198
    %v3200 = vpop.f32.mrb[0].mxu0
    %v3201 = vpop.f32.mrb[0].mxu0
    %v3202 = vadd.f32 0.0, %v3201
    %v3203 = vpop.f32.mrb[0].mxu0
    %3204 = vdwg.mxu0
    %v3205 = vadd.f32 %v3151, %v3199
    %v3206 = vadd.f32 %v3152, %v3202
    %3207 = vadd.xlane.f32.xlu0 %v3205
    %v3208 = vpop.xlane.xlu0 %3207
    %3209 = vadd.xlane.f32.xlu0 %v3206
    %v3210 = vpop.xlane.xlu0 %3209
    %v3211 = vmul.f32 %v3205, %v3205
    %v3212 = vmul.f32 %v3206, %v3206
    %3213 = vadd.xlane.f32.xlu0 %v3211
    %v3214 = vpop.xlane.xlu0 %3213
    %3215 = vadd.xlane.f32.xlu0 %v3212
    %v3216 = vpop.xlane.xlu0 %3215
    %3217 = vmatprep.subr.mxu0 0.0
    %3218 = vmatpush1.msra.mxu0 %v3208
    %3219 = vmatprep.subr.mxu0 0.0
    %3220 = vmatpush1.msra.mxu0 %v3210
    %3221 = vmatprep.subr.mxu0 0.0
    %3222 = vmatpush1.msra.mxu0 0.0
    %3223 = vmatprep.subr.mxu0 0.0
    %3224 = vmatpush1.msra.mxu0 0.0
    %3225 = vmatprep.subr.mxu0 0.0
    %3226 = vmatpush1.msra.mxu0 0.0
    %3227 = vmatprep.subr.mxu0 0.0
    %3228 = vmatpush1.msra.mxu0 0.0
    %3229 = vmatprep.subr.mxu0 0.0
    %3230 = vmatpush1.msra.mxu0 0.0
    %3231 = vmatprep.subr.mxu0 0.0
    %3232 = vmatpush1.msra.mxu0 0.0
    %3233 = vmatprep.subr.mxu0 0.0
    %3234 = vmatpush1.msra.mxu0 0.0
    %3235 = vmatprep.subr.mxu0 0.0
    %3236 = vmatpush1.msra.mxu0 0.0
    %3237 = vmatprep.subr.mxu0 0.0
    %3238 = vmatpush1.msra.mxu0 0.0
    %3239 = vmatprep.subr.mxu0 0.0
    %3240 = vmatpush1.msra.mxu0 0.0
    %3241 = vmatprep.subr.mxu0 0.0
    %3242 = vmatpush1.msra.mxu0 0.0
    %3243 = vmatprep.subr.mxu0 0.0
    %3244 = vmatpush1.msra.mxu0 0.0
    %3245 = vmatprep.subr.mxu0 0.0
    %3246 = vmatpush1.msra.mxu0 0.0
    %3247 = vmatprep.subr.mxu0 0.0
    %3248 = vmatpush1.msra.mxu0 0.0
    %3249 = vmatprep.subr.mxu0 0.0
    %3250 = vmatpush1.msra.mxu0 0.0
    %3251 = vmatprep.subr.mxu0 0.0
    %3252 = vmatpush1.msra.mxu0 0.0
    %3253 = vmatprep.subr.mxu0 0.0
    %3254 = vmatpush1.msra.mxu0 0.0
    %3255 = vmatprep.subr.mxu0 0.0
    %3256 = vmatpush1.msra.mxu0 0.0
    %3257 = vmatprep.subr.mxu0 0.0
    %3258 = vmatpush1.msra.mxu0 0.0
    %3259 = vmatprep.subr.mxu0 0.0
    %3260 = vmatpush1.msra.mxu0 0.0
    %3261 = vmatprep.subr.mxu0 0.0
    %3262 = vmatpush1.msra.mxu0 0.0
    %3263 = vmatprep.subr.mxu0 0.0
    %3264 = vmatpush1.msra.mxu0 0.0
    %3265 = vmatprep.subr.mxu0 0.0
    %3266 = vmatpush1.msra.mxu0 0.0
    %3267 = vmatprep.subr.mxu0 0.0
    %3268 = vmatpush1.msra.mxu0 0.0
    %3269 = vmatprep.subr.mxu0 0.0
    %3270 = vmatpush1.msra.mxu0 0.0
    %3271 = vmatprep.subr.mxu0 0.0
    %3272 = vmatpush1.msra.mxu0 0.0
    %3273 = vmatprep.subr.mxu0 0.0
    %3274 = vmatpush1.msra.mxu0 0.0
    %3275 = vmatprep.subr.mxu0 0.0
    %3276 = vmatpush1.msra.mxu0 0.0
    %3277 = vmatprep.subr.mxu0 0.0
    %3278 = vmatpush1.msra.mxu0 0.0
    %3279 = vmatprep.subr.mxu0 0.0
    %3280 = vmatpush1.msra.mxu0 0.0
    %3281 = vmatprep.mubr.f32.mxu0 0.0
    %3282 = vmatmul.mubr.f32.gmra.mrb[0].mxu0 %v1832
    %v3283 = vpop.f32.mrb[0].mxu0
    %v3284 = vadd.f32 0.0, %v3283
    %v3285 = vpop.f32.mrb[0].mxu0
    %3286 = vmatprep.mubr.f32.mxu0 0.0
    %3287 = vmatmul.mubr.f32.gmra.mrb[0].mxu0 %v1835
    %v3288 = vpop.f32.mrb[0].mxu0
    %v3289 = vadd.f32 0.0, %v3288
    %v3290 = vpop.f32.mrb[0].mxu0
    %3291 = vdwg.mxu0
    %3292 = vmatprep.subr.mxu0 0.0
    %3293 = vmatpush1.msra.mxu0 %v3214
    %3294 = vmatprep.subr.mxu0 0.0
    %3295 = vmatpush1.msra.mxu0 %v3216
    %3296 = vmatprep.subr.mxu0 0.0
    %3297 = vmatpush1.msra.mxu0 0.0
    %3298 = vmatprep.subr.mxu0 0.0
    %3299 = vmatpush1.msra.mxu0 0.0
    %3300 = vmatprep.subr.mxu0 0.0
    %3301 = vmatpush1.msra.mxu0 0.0
    %3302 = vmatprep.subr.mxu0 0.0
    %3303 = vmatpush1.msra.mxu0 0.0
    %3304 = vmatprep.subr.mxu0 0.0
    %3305 = vmatpush1.msra.mxu0 0.0
    %3306 = vmatprep.subr.mxu0 0.0
    %3307 = vmatpush1.msra.mxu0 0.0
    %3308 = vmatprep.subr.mxu0 0.0
    %3309 = vmatpush1.msra.mxu0 0.0
    %3310 = vmatprep.subr.mxu0 0.0
    %3311 = vmatpush1.msra.mxu0 0.0
    %3312 = vmatprep.subr.mxu0 0.0
    %3313 = vmatpush1.msra.mxu0 0.0
    %3314 = vmatprep.subr.mxu0 0.0
    %3315 = vmatpush1.msra.mxu0 0.0
    %3316 = vmatprep.subr.mxu0 0.0
    %3317 = vmatpush1.msra.mxu0 0.0
    %3318 = vmatprep.subr.mxu0 0.0
    %3319 = vmatpush1.msra.mxu0 0.0
    %3320 = vmatprep.subr.mxu0 0.0
    %3321 = vmatpush1.msra.mxu0 0.0
    %3322 = vmatprep.subr.mxu0 0.0
    %3323 = vmatpush1.msra.mxu0 0.0
    %3324 = vmatprep.subr.mxu0 0.0
    %3325 = vmatpush1.msra.mxu0 0.0
    %3326 = vmatprep.subr.mxu0 0.0
    %3327 = vmatpush1.msra.mxu0 0.0
    %3328 = vmatprep.subr.mxu0 0.0
    %3329 = vmatpush1.msra.mxu0 0.0
    %3330 = vmatprep.subr.mxu0 0.0
    %3331 = vmatpush1.msra.mxu0 0.0
    %3332 = vmatprep.subr.mxu0 0.0
    %3333 = vmatpush1.msra.mxu0 0.0
    %3334 = vmatprep.subr.mxu0 0.0
    %3335 = vmatpush1.msra.mxu0 0.0
    %3336 = vmatprep.subr.mxu0 0.0
    %3337 = vmatpush1.msra.mxu0 0.0
    %3338 = vmatprep.subr.mxu0 0.0
    %3339 = vmatpush1.msra.mxu0 0.0
    %3340 = vmatprep.subr.mxu0 0.0
    %3341 = vmatpush1.msra.mxu0 0.0
    %3342 = vmatprep.subr.mxu0 0.0
    %3343 = vmatpush1.msra.mxu0 0.0
    %3344 = vmatprep.subr.mxu0 0.0
    %3345 = vmatpush1.msra.mxu0 0.0
    %3346 = vmatprep.subr.mxu0 0.0
    %3347 = vmatpush1.msra.mxu0 0.0
    %3348 = vmatprep.subr.mxu0 0.0
    %3349 = vmatpush1.msra.mxu0 0.0
    %3350 = vmatprep.subr.mxu0 0.0
    %3351 = vmatpush1.msra.mxu0 0.0
    %3352 = vmatprep.subr.mxu0 0.0
    %3353 = vmatpush1.msra.mxu0 0.0
    %3354 = vmatprep.subr.mxu0 0.0
    %3355 = vmatpush1.msra.mxu0 0.0
    %3356 = vmatprep.mubr.f32.mxu0 0.0
    %3357 = vmatmul.mubr.f32.gmra.mrb[0].mxu0 %v1832
    %v3358 = vpop.f32.mrb[0].mxu0
    %v3359 = vadd.f32 0.0, %v3358
    %v3360 = vpop.f32.mrb[0].mxu0
    %3361 = vmatprep.mubr.f32.mxu0 0.0
    %3362 = vmatmul.mubr.f32.gmra.mrb[0].mxu0 %v1835
    %v3363 = vpop.f32.mrb[0].mxu0
    %v3364 = vadd.f32 0.0, %v3363
    %v3365 = vpop.f32.mrb[0].mxu0
    %3366 = vdwg.mxu0
    %v3367 = vmul.f32 %v3284, 0.03125
    %v3368 = vmul.f32 %v3289, 0.03125
    %v3369 = vmul.f32 %v3359, 0.03125
    %v3370 = vmul.f32 %v3364, 0.03125
    %v3371 = vmul.f32 %v3367, %v3367
    %v3372 = vmul.f32 %v3368, %v3368
    %v3373 = vsub.f32 %v3369, %v3371
    %v3374 = vsub.f32 %v3370, %v3372
    %v3375 = vmax.f32 %v3373, 0.0
    %v3376 = vmax.f32 %v3374, 0.0
    %3378 = vset.pattern.permute.xlu0 0
    %3379 = vperm.xlu0 %3378, %v3367
    %v3380 = vpop.permute.xlu0 %3379
    %3383 = vset.pattern.permute.xlu0 0
    %3384 = vperm.xlu0 %3383, %v3368
    %v3385 = vpop.permute.xlu0 %3384
    %v3387 = vsub.f32 %v3205, %v3380
    %v3388 = vsub.f32 %v3206, %v3385
    %v3389 = vadd.f32 %v3375, 1e-05
    %v3390 = vadd.f32 %v3376, 1e-05
    %v3391 = vrsqrt.pop %v3389
    %v3392 = vrsqrt.pop %v3390
    %3394 = vset.pattern.permute.xlu0 0
    %3395 = vperm.xlu0 %3394, %v3391
    %v3396 = vpop.permute.xlu0 %3395
    %3399 = vset.pattern.permute.xlu0 0
    %3400 = vperm.xlu0 %3399, %v3392
    %v3401 = vpop.permute.xlu0 %3400
    %v3403 = vmul.f32 %v3387, %v3396
    %v3404 = vmul.f32 %v3388, %v3401
    %v3405 = vld [vmem:[%s8] sm:$0xff]
    %v3406 = vld [vmem:[%s8 + $0x8] sm:$0xff]
    %3408 = vset.pattern.permute.xlu0 0
    %3409 = vperm.xlu0 %3408, %v3405
    %v3410 = vpop.permute.xlu0 %3409
    %3413 = vset.pattern.permute.xlu0 0
    %3414 = vperm.xlu0 %3413, %v3406
    %v3415 = vpop.permute.xlu0 %3414
    %v3417 = vmul.f32 %v3403, %v3410
    %v3418 = vmul.f32 %v3404, %v3415
    %3419 = vset.pattern.permute.xlu0 1
    %3420 = vperm.xlu0 %3419, %v3405
    %v3421 = vpop.permute.xlu0 %3420
    %3423 = vset.pattern.permute.xlu0 1
    %3424 = vperm.xlu0 %3423, %v3406
    %v3425 = vpop.permute.xlu0 %3424
    %v3427 = vadd.f32 %v3417, %v3421
    %v3428 = vadd.f32 %v3418, %v3425
    %vm3429 = vcmp.ge.f32.partialorder %v3427, 0.0
    %vm3430 = vcmp.ge.f32.partialorder %v3428, 0.0
    %v3431 = vmul.f32 %v3427, 0.2
    %v3432 = vmul.f32 %v3428, 0.2
    %v3433 = vsel %vm3429, %v3427, %v3431
    %v3434 = vsel %vm3430, %v3428, %v3432
    %v3435 = vld [vmem:[%s9] sm:$0xff]
    %v3436 = vld [vmem:[%s9 + $0x8] sm:$0xff]
    %v3437 = vld [vmem:[%s9 + $0x10] sm:$0xff]
    %v3438 = vld [vmem:[%s9 + $0x18] sm:$0xff]
    %v3439 = vld [vmem:[%s9 + $0x20] sm:$0xff]
    %v3440 = vld [vmem:[%s9 + $0x28] sm:$0xff]
    %v3441 = vld [vmem:[%s9 + $0x30] sm:$0xff]
    %v3442 = vld [vmem:[%s9 + $0x38] sm:$0xff]
    %v3443 = vld [vmem:[%s9 + $0x40] sm:$0xff]
    %v3444 = vld [vmem:[%s9 + $0x48] sm:$0xff]
    %v3445 = vld [vmem:[%s9 + $0x50] sm:$0xff]
    %v3446 = vld [vmem:[%s9 + $0x58] sm:$0xff]
    %v3447 = vld [vmem:[%s9 + $0x60] sm:$0xff]
    %v3448 = vld [vmem:[%s9 + $0x68] sm:$0xff]
    %v3449 = vld [vmem:[%s9 + $0x70] sm:$0xff]
    %v3450 = vld [vmem:[%s9 + $0x78] sm:$0xff]
    %3451 = vmatprep.subr.mxu0 0.0
    %3452 = vmatpush1.msra.mxu0 %v3435
    %3453 = vmatprep.subr.mxu0 0.0
    %3454 = vmatpush1.msra.mxu0 %v3436
    %3455 = vmatprep.subr.mxu0 0.0
    %3456 = vmatpush1.msra.mxu0 %v3437
    %3457 = vmatprep.subr.mxu0 0.0
    %3458 = vmatpush1.msra.mxu0 %v3438
    %3459 = vmatprep.subr.mxu0 0.0
    %3460 = vmatpush1.msra.mxu0 %v3439
    %3461 = vmatprep.subr.mxu0 0.0
    %3462 = vmatpush1.msra.mxu0 %v3440
    %3463 = vmatprep.subr.mxu0 0.0
    %3464 = vmatpush1.msra.mxu0 %v3441
    %3465 = vmatprep.subr.mxu0 0.0
    %3466 = vmatpush1.msra.mxu0 %v3442
    %3467 = vmatprep.subr.mxu0 0.0
    %3468 = vmatpush1.msra.mxu0 %v3443
    %3469 = vmatprep.subr.mxu0 0.0
    %3470 = vmatpush1.msra.mxu0 %v3444
    %3471 = vmatprep.subr.mxu0 0.0
    %3472 = vmatpush1.msra.mxu0 %v3445
    %3473 = vmatprep.subr.mxu0 0.0
    %3474 = vmatpush1.msra.mxu0 %v3446
    %3475 = vmatprep.subr.mxu0 0.0
    %3476 = vmatpush1.msra.mxu0 %v3447
    %3477 = vmatprep.subr.mxu0 0.0
    %3478 = vmatpush1.msra.mxu0 %v3448
    %3479 = vmatprep.subr.mxu0 0.0
    %3480 = vmatpush1.msra.mxu0 %v3449
    %3481 = vmatprep.subr.mxu0 0.0
    %3482 = vmatpush1.msra.mxu0 %v3450
    %3483 = vmatprep.subr.mxu0 0.0
    %3484 = vmatpush1.msra.mxu0 0.0
    %3485 = vmatprep.subr.mxu0 0.0
    %3486 = vmatpush1.msra.mxu0 0.0
    %3487 = vmatprep.subr.mxu0 0.0
    %3488 = vmatpush1.msra.mxu0 0.0
    %3489 = vmatprep.subr.mxu0 0.0
    %3490 = vmatpush1.msra.mxu0 0.0
    %3491 = vmatprep.subr.mxu0 0.0
    %3492 = vmatpush1.msra.mxu0 0.0
    %3493 = vmatprep.subr.mxu0 0.0
    %3494 = vmatpush1.msra.mxu0 0.0
    %3495 = vmatprep.subr.mxu0 0.0
    %3496 = vmatpush1.msra.mxu0 0.0
    %3497 = vmatprep.subr.mxu0 0.0
    %3498 = vmatpush1.msra.mxu0 0.0
    %3499 = vmatprep.subr.mxu0 0.0
    %3500 = vmatpush1.msra.mxu0 0.0
    %3501 = vmatprep.subr.mxu0 0.0
    %3502 = vmatpush1.msra.mxu0 0.0
    %3503 = vmatprep.subr.mxu0 0.0
    %3504 = vmatpush1.msra.mxu0 0.0
    %3505 = vmatprep.subr.mxu0 0.0
    %3506 = vmatpush1.msra.mxu0 0.0
    %3507 = vmatprep.subr.mxu0 0.0
    %3508 = vmatpush1.msra.mxu0 0.0
    %3509 = vmatprep.subr.mxu0 0.0
    %3510 = vmatpush1.msra.mxu0 0.0
    %3511 = vmatprep.subr.mxu0 0.0
    %3512 = vmatpush1.msra.mxu0 0.0
    %3513 = vmatprep.subr.mxu0 0.0
    %3514 = vmatpush1.msra.mxu0 0.0
    %3515 = vmatprep.mubr.f32.mxu0 0.0
    %3516 = vmatmul.mubr.f32.gmra.mrb[0].mxu0 %v3433
    %v3517 = vpop.f32.mrb[0].mxu0
    %v3518 = vadd.f32 0.0, %v3517
    %v3519 = vpop.f32.mrb[0].mxu0
    %3520 = vmatprep.mubr.f32.mxu0 0.0
    %3521 = vmatmul.mubr.f32.gmra.mrb[0].mxu0 %v3434
    %v3522 = vpop.f32.mrb[0].mxu0
    %v3523 = vadd.f32 0.0, %v3522
    %v3524 = vpop.f32.mrb[0].mxu0
    %3525 = vdwg.mxu0
    %v3526 = vld [vmem:[#allocation10] sm:$0xff]
    %v3527 = vld [vmem:[#allocation10 + $0x8] sm:$0xff]
    %v3528 = vmul.f32 %v3518, %v3526
    %v3529 = vmul.f32 %v3523, %v3527
    %v3530 = vld [vmem:[%s14] sm:$0x3]
    %v3532 = vsel %vm1830, %v3530, 0
    %3534 = vmatprep.subr.mxu0 0.0
    %3535 = vmatpush1.msra.mxu0 %v3528
    %3536 = vmatprep.subr.mxu0 0.0
    %3537 = vmatpush1.msra.mxu0 %v3529
    %3538 = vmatprep.subr.mxu0 0.0
    %3539 = vmatpush1.msra.mxu0 0.0
    %3540 = vmatprep.subr.mxu0 0.0
    %3541 = vmatpush1.msra.mxu0 0.0
    %3542 = vmatprep.subr.mxu0 0.0
    %3543 = vmatpush1.msra.mxu0 0.0
    %3544 = vmatprep.subr.mxu0 0.0
    %3545 = vmatpush1.msra.mxu0 0.0
    %3546 = vmatprep.subr.mxu0 0.0
    %3547 = vmatpush1.msra.mxu0 0.0
    %3548 = vmatprep.subr.mxu0 0.0
    %3549 = vmatpush1.msra.mxu0 0.0
    %3550 = vmatprep.subr.mxu0 0.0
    %3551 = vmatpush1.msra.mxu0 0.0
    %3552 = vmatprep.subr.mxu0 0.0
    %3553 = vmatpush1.msra.mxu0 0.0
    %3554 = vmatprep.subr.mxu0 0.0
    %3555 = vmatpush1.msra.mxu0 0.0
    %3556 = vmatprep.subr.mxu0 0.0
    %3557 = vmatpush1.msra.mxu0 0.0
    %3558 = vmatprep.subr.mxu0 0.0
    %3559 = vmatpush1.msra.mxu0 0.0
    %3560 = vmatprep.subr.mxu0 0.0
    %3561 = vmatpush1.msra.mxu0 0.0
    %3562 = vmatprep.subr.mxu0 0.0
    %3563 = vmatpush1.msra.mxu0 0.0
    %3564 = vmatprep.subr.mxu0 0.0
    %3565 = vmatpush1.msra.mxu0 0.0
    %3566 = vmatprep.subr.mxu0 0.0
    %3567 = vmatpush1.msra.mxu0 0.0
    %3568 = vmatprep.subr.mxu0 0.0
    %3569 = vmatpush1.msra.mxu0 0.0
    %3570 = vmatprep.subr.mxu0 0.0
    %3571 = vmatpush1.msra.mxu0 0.0
    %3572 = vmatprep.subr.mxu0 0.0
    %3573 = vmatpush1.msra.mxu0 0.0
    %3574 = vmatprep.subr.mxu0 0.0
    %3575 = vmatpush1.msra.mxu0 0.0
    %3576 = vmatprep.subr.mxu0 0.0
    %3577 = vmatpush1.msra.mxu0 0.0
    %3578 = vmatprep.subr.mxu0 0.0
    %3579 = vmatpush1.msra.mxu0 0.0
    %3580 = vmatprep.subr.mxu0 0.0
    %3581 = vmatpush1.msra.mxu0 0.0
    %3582 = vmatprep.subr.mxu0 0.0
    %3583 = vmatpush1.msra.mxu0 0.0
    %3584 = vmatprep.subr.mxu0 0.0
    %3585 = vmatpush1.msra.mxu0 0.0
    %3586 = vmatprep.subr.mxu0 0.0
    %3587 = vmatpush1.msra.mxu0 0.0
    %3588 = vmatprep.subr.mxu0 0.0
    %3589 = vmatpush1.msra.mxu0 0.0
    %3590 = vmatprep.subr.mxu0 0.0
    %3591 = vmatpush1.msra.mxu0 0.0
    %3592 = vmatprep.subr.mxu0 0.0
    %3593 = vmatpush1.msra.mxu0 0.0
    %3594 = vmatprep.subr.mxu0 0.0
    %3595 = vmatpush1.msra.mxu0 0.0
    %3596 = vmatprep.subr.mxu0 0.0
    %3597 = vmatpush1.msra.mxu0 0.0
    %3598 = vmatprep.mubr.f32.mxu0 0.0
    %3599 = vmatmul.mubr.f32.gmra.mrb[0].mxu0 %v3532
    %v3600 = vpop.f32.mrb[0].mxu0
    %v3601 = vadd.f32 0.0, %v3600
    %v3602 = vpop.f32.mrb[0].mxu0
    %3603 = vdwg.mxu0
    %v3604 = vld [vmem:[%s16] sm:$0xff]
    %v3605 = vld [vmem:[%s16 + $0x8] sm:$0xff]
    %v3606 = vld [vmem:[%s16 + $0x10] sm:$0xff]
    %v3607 = vld [vmem:[%s16 + $0x18] sm:$0xff]
    %v3608 = vld [vmem:[%s16 + $0x20] sm:$0xff]
    %v3609 = vld [vmem:[%s16 + $0x28] sm:$0xff]
    %v3610 = vld [vmem:[%s16 + $0x30] sm:$0xff]
    %v3611 = vld [vmem:[%s16 + $0x38] sm:$0xff]
    %v3612 = vld [vmem:[%s16 + $0x40] sm:$0xff]
    %v3613 = vld [vmem:[%s16 + $0x48] sm:$0xff]
    %v3614 = vld [vmem:[%s16 + $0x50] sm:$0xff]
    %v3615 = vld [vmem:[%s16 + $0x58] sm:$0xff]
    %v3616 = vld [vmem:[%s16 + $0x60] sm:$0xff]
    %v3617 = vld [vmem:[%s16 + $0x68] sm:$0xff]
    %v3618 = vld [vmem:[%s16 + $0x70] sm:$0xff]
    %v3619 = vld [vmem:[%s16 + $0x78] sm:$0xff]
    %v3620 = vld [vmem:[%s10] sm:$0x1]
    %v3622 = vlaneseq
    %v3623 = vshrl.u32 %v3622, 7
    %v3624 = vsub.s32 0, %v3623
    %v3625 = vrot.slane %v3620, %v3624
    %3627 = vmatprep.subr.mxu0 0.0
    %3628 = vmatpush1.msra.mxu0 %v3604
    %3629 = vmatprep.subr.mxu0 0.0
    %3630 = vmatpush1.msra.mxu0 %v3605
    %3631 = vmatprep.subr.mxu0 0.0
    %3632 = vmatpush1.msra.mxu0 %v3606
    %3633 = vmatprep.subr.mxu0 0.0
    %3634 = vmatpush1.msra.mxu0 %v3607
    %3635 = vmatprep.subr.mxu0 0.0
    %3636 = vmatpush1.msra.mxu0 %v3608
    %3637 = vmatprep.subr.mxu0 0.0
    %3638 = vmatpush1.msra.mxu0 %v3609
    %3639 = vmatprep.subr.mxu0 0.0
    %3640 = vmatpush1.msra.mxu0 %v3610
    %3641 = vmatprep.subr.mxu0 0.0
    %3642 = vmatpush1.msra.mxu0 %v3611
    %3643 = vmatprep.subr.mxu0 0.0
    %3644 = vmatpush1.msra.mxu0 %v3612
    %3645 = vmatprep.subr.mxu0 0.0
    %3646 = vmatpush1.msra.mxu0 %v3613
    %3647 = vmatprep.subr.mxu0 0.0
    %3648 = vmatpush1.msra.mxu0 %v3614
    %3649 = vmatprep.subr.mxu0 0.0
    %3650 = vmatpush1.msra.mxu0 %v3615
    %3651 = vmatprep.subr.mxu0 0.0
    %3652 = vmatpush1.msra.mxu0 %v3616
    %3653 = vmatprep.subr.mxu0 0.0
    %3654 = vmatpush1.msra.mxu0 %v3617
    %3655 = vmatprep.subr.mxu0 0.0
    %3656 = vmatpush1.msra.mxu0 %v3618
    %3657 = vmatprep.subr.mxu0 0.0
    %3658 = vmatpush1.msra.mxu0 %v3619
    %3659 = vmatprep.subr.mxu0 0.0
    %3660 = vmatpush1.msra.mxu0 0.0
    %3661 = vmatprep.subr.mxu0 0.0
    %3662 = vmatpush1.msra.mxu0 0.0
    %3663 = vmatprep.subr.mxu0 0.0
    %3664 = vmatpush1.msra.mxu0 0.0
    %3665 = vmatprep.subr.mxu0 0.0
    %3666 = vmatpush1.msra.mxu0 0.0
    %3667 = vmatprep.subr.mxu0 0.0
    %3668 = vmatpush1.msra.mxu0 0.0
    %3669 = vmatprep.subr.mxu0 0.0
    %3670 = vmatpush1.msra.mxu0 0.0
    %3671 = vmatprep.subr.mxu0 0.0
    %3672 = vmatpush1.msra.mxu0 0.0
    %3673 = vmatprep.subr.mxu0 0.0
    %3674 = vmatpush1.msra.mxu0 0.0
    %3675 = vmatprep.subr.mxu0 0.0
    %3676 = vmatpush1.msra.mxu0 0.0
    %3677 = vmatprep.subr.mxu0 0.0
    %3678 = vmatpush1.msra.mxu0 0.0
    %3679 = vmatprep.subr.mxu0 0.0
    %3680 = vmatpush1.msra.mxu0 0.0
    %3681 = vmatprep.subr.mxu0 0.0
    %3682 = vmatpush1.msra.mxu0 0.0
    %3683 = vmatprep.subr.mxu0 0.0
    %3684 = vmatpush1.msra.mxu0 0.0
    %3685 = vmatprep.subr.mxu0 0.0
    %3686 = vmatpush1.msra.mxu0 0.0
    %3687 = vmatprep.subr.mxu0 0.0
    %3688 = vmatpush1.msra.mxu0 0.0
    %3689 = vmatprep.subr.mxu0 0.0
    %3690 = vmatpush1.msra.mxu0 0.0
    %3691 = vmatprep.mubr.f32.mxu0 0.0
    %3692 = vmatmul.mubr.f32.gmra.mrb[0].mxu0 %v3601
    %v3693 = vpop.f32.mrb[0].mxu0
    %v3694 = vadd.f32 %v3625, %v3693
    %v3695 = vpop.f32.mrb[0].mxu0
    %3696 = vdwg.mxu0
    %vm3697 = vcmask 123904
    %3698 = vst.msk [vmem:[%s27] sm:$0x3] %vm3697, %v3694
    %v3699 = vld [vmem:[%s1] sm:$0x3]
    %v3700 = vmul.f32 %v3694, 0.5
    %v3701 = vmul.f32 %v3700, 1.442695
    %v3702 = vpow.pop %v3701
    %v3703 = vmul.f32 %v3699, %v3702
    %v3704 = vadd.f32 %v3694, %v3703
    %v3705 = vld [vmem:[#allocation7] sm:$0xff]
    %v3706 = vld [vmem:[#allocation7 + $0x8] sm:$0xff]
    %v3708 = vsel %vm1830, %v3704, 0
    %3710 = vmatprep.subr.mxu0 0.0
    %3711 = vmatpush1.msra.mxu0 %v3705
    %3712 = vmatprep.subr.mxu0 0.0
    %3713 = vmatpush1.msra.mxu0 %v3706
    %3714 = vmatprep.subr.mxu0 0.0
    %3715 = vmatpush1.msra.mxu0 0.0
    %3716 = vmatprep.subr.mxu0 0.0
    %3717 = vmatpush1.msra.mxu0 0.0
    %3718 = vmatprep.subr.mxu0 0.0
    %3719 = vmatpush1.msra.mxu0 0.0
    %3720 = vmatprep.subr.mxu0 0.0
    %3721 = vmatpush1.msra.mxu0 0.0
    %3722 = vmatprep.subr.mxu0 0.0
    %3723 = vmatpush1.msra.mxu0 0.0
    %3724 = vmatprep.subr.mxu0 0.0
    %3725 = vmatpush1.msra.mxu0 0.0
    %3726 = vmatprep.subr.mxu0 0.0
    %3727 = vmatpush1.msra.mxu0 0.0
    %3728 = vmatprep.subr.mxu0 0.0
    %3729 = vmatpush1.msra.mxu0 0.0
    %3730 = vmatprep.subr.mxu0 0.0
    %3731 = vmatpush1.msra.mxu0 0.0
    %3732 = vmatprep.subr.mxu0 0.0
    %3733 = vmatpush1.msra.mxu0 0.0
    %3734 = vmatprep.subr.mxu0 0.0
    %3735 = vmatpush1.msra.mxu0 0.0
    %3736 = vmatprep.subr.mxu0 0.0
    %3737 = vmatpush1.msra.mxu0 0.0
    %3738 = vmatprep.subr.mxu0 0.0
    %3739 = vmatpush1.msra.mxu0 0.0
    %3740 = vmatprep.subr.mxu0 0.0
    %3741 = vmatpush1.msra.mxu0 0.0
    %3742 = vmatprep.subr.mxu0 0.0
    %3743 = vmatpush1.msra.mxu0 0.0
    %3744 = vmatprep.subr.mxu0 0.0
    %3745 = vmatpush1.msra.mxu0 0.0
    %3746 = vmatprep.subr.mxu0 0.0
    %3747 = vmatpush1.msra.mxu0 0.0
    %3748 = vmatprep.subr.mxu0 0.0
    %3749 = vmatpush1.msra.mxu0 0.0
    %3750 = vmatprep.subr.mxu0 0.0
    %3751 = vmatpush1.msra.mxu0 0.0
    %3752 = vmatprep.subr.mxu0 0.0
    %3753 = vmatpush1.msra.mxu0 0.0
    %3754 = vmatprep.subr.mxu0 0.0
    %3755 = vmatpush1.msra.mxu0 0.0
    %3756 = vmatprep.subr.mxu0 0.0
    %3757 = vmatpush1.msra.mxu0 0.0
    %3758 = vmatprep.subr.mxu0 0.0
    %3759 = vmatpush1.msra.mxu0 0.0
    %3760 = vmatprep.subr.mxu0 0.0
    %3761 = vmatpush1.msra.mxu0 0.0
    %3762 = vmatprep.subr.mxu0 0.0
    %3763 = vmatpush1.msra.mxu0 0.0
    %3764 = vmatprep.subr.mxu0 0.0
    %3765 = vmatpush1.msra.mxu0 0.0
    %3766 = vmatprep.subr.mxu0 0.0
    %3767 = vmatpush1.msra.mxu0 0.0
    %3768 = vmatprep.subr.mxu0 0.0
    %3769 = vmatpush1.msra.mxu0 0.0
    %3770 = vmatprep.subr.mxu0 0.0
    %3771 = vmatpush1.msra.mxu0 0.0
    %3772 = vmatprep.subr.mxu0 0.0
    %3773 = vmatpush1.msra.mxu0 0.0
    %3774 = vmatprep.mubr.f32.mxu0 0.0
    %3775 = vmatmul.mubr.f32.gmra.mrb[0].mxu0 %v3708
    %v3776 = vpop.f32.mrb[0].mxu0
    %v3777 = vadd.f32 0.0, %v3776
    %v3778 = vpop.f32.mrb[0].mxu0
    %3779 = vdwg.mxu0
    %v3780 = vld [vmem:[%s15] sm:$0xff]
    %v3781 = vld [vmem:[%s15 + $0x8] sm:$0xff]
    %vm3782 = vcmask 15360
    %v3784 = vsel %vm3782, %v3780, 0
    %v3787 = vsel %vm3782, %v3781, 0
    %vm3789 = vcmask 1041408
    %v3791 = vsel %vm3789, %v3777, 0
    %3793 = vmatprep.subr.mxu0 0.0
    %3794 = vmatpush1.msra.mxu0 %v3791
    %3795 = vmatprep.subr.mxu0 0.0
    %3796 = vmatpush1.msra.mxu0 0.0
    %3797 = vmatprep.subr.mxu0 0.0
    %3798 = vmatpush1.msra.mxu0 0.0
    %3799 = vmatprep.subr.mxu0 0.0
    %3800 = vmatpush1.msra.mxu0 0.0
    %3801 = vmatprep.subr.mxu0 0.0
    %3802 = vmatpush1.msra.mxu0 0.0
    %3803 = vmatprep.subr.mxu0 0.0
    %3804 = vmatpush1.msra.mxu0 0.0
    %3805 = vmatprep.subr.mxu0 0.0
    %3806 = vmatpush1.msra.mxu0 0.0
    %3807 = vmatprep.subr.mxu0 0.0
    %3808 = vmatpush1.msra.mxu0 0.0
    %3809 = vmatprep.subr.mxu0 0.0
    %3810 = vmatpush1.msra.mxu0 0.0
    %3811 = vmatprep.subr.mxu0 0.0
    %3812 = vmatpush1.msra.mxu0 0.0
    %3813 = vmatprep.subr.mxu0 0.0
    %3814 = vmatpush1.msra.mxu0 0.0
    %3815 = vmatprep.subr.mxu0 0.0
    %3816 = vmatpush1.msra.mxu0 0.0
    %3817 = vmatprep.subr.mxu0 0.0
    %3818 = vmatpush1.msra.mxu0 0.0
    %3819 = vmatprep.subr.mxu0 0.0
    %3820 = vmatpush1.msra.mxu0 0.0
    %3821 = vmatprep.subr.mxu0 0.0
    %3822 = vmatpush1.msra.mxu0 0.0
    %3823 = vmatprep.subr.mxu0 0.0
    %3824 = vmatpush1.msra.mxu0 0.0
    %3825 = vmatprep.subr.mxu0 0.0
    %3826 = vmatpush1.msra.mxu0 0.0
    %3827 = vmatprep.subr.mxu0 0.0
    %3828 = vmatpush1.msra.mxu0 0.0
    %3829 = vmatprep.subr.mxu0 0.0
    %3830 = vmatpush1.msra.mxu0 0.0
    %3831 = vmatprep.subr.mxu0 0.0
    %3832 = vmatpush1.msra.mxu0 0.0
    %3833 = vmatprep.subr.mxu0 0.0
    %3834 = vmatpush1.msra.mxu0 0.0
    %3835 = vmatprep.subr.mxu0 0.0
    %3836 = vmatpush1.msra.mxu0 0.0
    %3837 = vmatprep.subr.mxu0 0.0
    %3838 = vmatpush1.msra.mxu0 0.0
    %3839 = vmatprep.subr.mxu0 0.0
    %3840 = vmatpush1.msra.mxu0 0.0
    %3841 = vmatprep.subr.mxu0 0.0
    %3842 = vmatpush1.msra.mxu0 0.0
    %3843 = vmatprep.subr.mxu0 0.0
    %3844 = vmatpush1.msra.mxu0 0.0
    %3845 = vmatprep.subr.mxu0 0.0
    %3846 = vmatpush1.msra.mxu0 0.0
    %3847 = vmatprep.subr.mxu0 0.0
    %3848 = vmatpush1.msra.mxu0 0.0
    %3849 = vmatprep.subr.mxu0 0.0
    %3850 = vmatpush1.msra.mxu0 0.0
    %3851 = vmatprep.subr.mxu0 0.0
    %3852 = vmatpush1.msra.mxu0 0.0
    %3853 = vmatprep.subr.mxu0 0.0
    %3854 = vmatpush1.msra.mxu0 0.0
    %3855 = vmatprep.subr.mxu0 0.0
    %3856 = vmatpush1.msra.mxu0 0.0
    %3857 = vmatprep.mubr.f32.mxu0 0.0
    %3858 = vmatmul.mubr.f32.gmra.mrb[0].mxu0 %v3784
    %v3859 = vpop.f32.mrb[0].mxu0
    %v3860 = vadd.f32 0.0, %v3859
    %v3861 = vpop.f32.mrb[0].mxu0
    %3862 = vmatprep.mubr.f32.mxu0 0.0
    %3863 = vmatmul.mubr.f32.gmra.mrb[0].mxu0 %v3787
    %v3864 = vpop.f32.mrb[0].mxu0
    %v3865 = vadd.f32 0.0, %v3864
    %v3866 = vpop.f32.mrb[0].mxu0
    %3867 = vdwg.mxu0
    %v3868 = vld [vmem:[#allocation10] sm:$0xff]
    %v3869 = vld [vmem:[#allocation10 + $0x8] sm:$0xff]
    %v3870 = vmul.f32 %v3860, %v3868
    %v3871 = vmul.f32 %v3865, %v3869
    %v3872 = vld [vmem:[%s16] sm:$0xff]
    %v3873 = vld [vmem:[%s16 + $0x8] sm:$0xff]
    %v3874 = vld [vmem:[%s16 + $0x10] sm:$0xff]
    %v3875 = vld [vmem:[%s16 + $0x18] sm:$0xff]
    %v3876 = vld [vmem:[%s16 + $0x20] sm:$0xff]
    %v3877 = vld [vmem:[%s16 + $0x28] sm:$0xff]
    %v3878 = vld [vmem:[%s16 + $0x30] sm:$0xff]
    %v3879 = vld [vmem:[%s16 + $0x38] sm:$0xff]
    %v3880 = vld [vmem:[%s16 + $0x40] sm:$0xff]
    %v3881 = vld [vmem:[%s16 + $0x48] sm:$0xff]
    %v3882 = vld [vmem:[%s16 + $0x50] sm:$0xff]
    %v3883 = vld [vmem:[%s16 + $0x58] sm:$0xff]
    %v3884 = vld [vmem:[%s16 + $0x60] sm:$0xff]
    %v3885 = vld [vmem:[%s16 + $0x68] sm:$0xff]
    %v3886 = vld [vmem:[%s16 + $0x70] sm:$0xff]
    %v3887 = vld [vmem:[%s16 + $0x78] sm:$0xff]
    %v3888 = vld [vmem:[#allocation9] sm:$0xff]
    %v3889 = vld [vmem:[#allocation9 + $0x8] sm:$0xff]
    %3890 = vmatprep.subr.mxu0 0.0
    %3891 = vmatpush1.msra.mxu0 %v3872
    %3892 = vmatprep.subr.mxu0 0.0
    %3893 = vmatpush1.msra.mxu0 %v3873
    %3894 = vmatprep.subr.mxu0 0.0
    %3895 = vmatpush1.msra.mxu0 %v3874
    %3896 = vmatprep.subr.mxu0 0.0
    %3897 = vmatpush1.msra.mxu0 %v3875
    %3898 = vmatprep.subr.mxu0 0.0
    %3899 = vmatpush1.msra.mxu0 %v3876
    %3900 = vmatprep.subr.mxu0 0.0
    %3901 = vmatpush1.msra.mxu0 %v3877
    %3902 = vmatprep.subr.mxu0 0.0
    %3903 = vmatpush1.msra.mxu0 %v3878
    %3904 = vmatprep.subr.mxu0 0.0
    %3905 = vmatpush1.msra.mxu0 %v3879
    %3906 = vmatprep.subr.mxu0 0.0
    %3907 = vmatpush1.msra.mxu0 %v3880
    %3908 = vmatprep.subr.mxu0 0.0
    %3909 = vmatpush1.msra.mxu0 %v3881
    %3910 = vmatprep.subr.mxu0 0.0
    %3911 = vmatpush1.msra.mxu0 %v3882
    %3912 = vmatprep.subr.mxu0 0.0
    %3913 = vmatpush1.msra.mxu0 %v3883
    %3914 = vmatprep.subr.mxu0 0.0
    %3915 = vmatpush1.msra.mxu0 %v3884
    %3916 = vmatprep.subr.mxu0 0.0
    %3917 = vmatpush1.msra.mxu0 %v3885
    %3918 = vmatprep.subr.mxu0 0.0
    %3919 = vmatpush1.msra.mxu0 %v3886
    %3920 = vmatprep.subr.mxu0 0.0
    %3921 = vmatpush1.msra.mxu0 %v3887
    %3922 = vmatprep.subr.mxu0 0.0
    %3923 = vmatpush1.msra.mxu0 0.0
    %3924 = vmatprep.subr.mxu0 0.0
    %3925 = vmatpush1.msra.mxu0 0.0
    %3926 = vmatprep.subr.mxu0 0.0
    %3927 = vmatpush1.msra.mxu0 0.0
    %3928 = vmatprep.subr.mxu0 0.0
    %3929 = vmatpush1.msra.mxu0 0.0
    %3930 = vmatprep.subr.mxu0 0.0
    %3931 = vmatpush1.msra.mxu0 0.0
    %3932 = vmatprep.subr.mxu0 0.0
    %3933 = vmatpush1.msra.mxu0 0.0
    %3934 = vmatprep.subr.mxu0 0.0
    %3935 = vmatpush1.msra.mxu0 0.0
    %3936 = vmatprep.subr.mxu0 0.0
    %3937 = vmatpush1.msra.mxu0 0.0
    %3938 = vmatprep.subr.mxu0 0.0
    %3939 = vmatpush1.msra.mxu0 0.0
    %3940 = vmatprep.subr.mxu0 0.0
    %3941 = vmatpush1.msra.mxu0 0.0
    %3942 = vmatprep.subr.mxu0 0.0
    %3943 = vmatpush1.msra.mxu0 0.0
    %3944 = vmatprep.subr.mxu0 0.0
    %3945 = vmatpush1.msra.mxu0 0.0
    %3946 = vmatprep.subr.mxu0 0.0
    %3947 = vmatpush1.msra.mxu0 0.0
    %3948 = vmatprep.subr.mxu0 0.0
    %3949 = vmatpush1.msra.mxu0 0.0
    %3950 = vmatprep.subr.mxu0 0.0
    %3951 = vmatpush1.msra.mxu0 0.0
    %3952 = vmatprep.subr.mxu0 0.0
    %3953 = vmatpush1.msra.mxu0 0.0
    %3954 = vmatprep.mubr.f32.mxu0 0.0
    %3955 = vmatmul.mubr.f32.gmra.mrb[0].mxu0 %v3870
    %v3956 = vpop.f32.mrb[0].mxu0
    %v3957 = vadd.f32 %v3888, %v3956
    %v3958 = vpop.f32.mrb[0].mxu0
    %3959 = vmatprep.mubr.f32.mxu0 0.0
    %3960 = vmatmul.mubr.f32.gmra.mrb[0].mxu0 %v3871
    %v3961 = vpop.f32.mrb[0].mxu0
    %v3962 = vadd.f32 %v3889, %v3961
    %v3963 = vpop.f32.mrb[0].mxu0
    %3964 = vdwg.mxu0
    %v3965 = vpack.c.bf16 %v3962, %v3957
    %v3966 = vld [vmem:[%s17] sm:$0xff]
    %v3967 = vld [vmem:[%s17 + $0x8] sm:$0xff]
    %v3968 = vld [vmem:[%s17 + $0x10] sm:$0xff]
    %v3969 = vld [vmem:[%s17 + $0x18] sm:$0xff]
    %v3970 = vld [vmem:[%s17 + $0x20] sm:$0xf]
    %v3971 = vld [vmem:[%s17 + $0x24] sm:$0xff]
    %v3972 = vld [vmem:[%s17 + $0x2c] sm:$0xff]
    %v3973 = vld [vmem:[%s17 + $0x34] sm:$0xff]
    %v3974 = vld [vmem:[%s17 + $0x3c] sm:$0xff]
    %v3975 = vld [vmem:[%s17 + $0x44] sm:$0xf]
    %v3986 = vunpack.c.l.b16 %v3966
    %v3987 = vunpack.c.h.b16 %v3966
    %v3988 = vunpack.c.l.b16 %v3967
    %v3989 = vunpack.c.h.b16 %v3967
    %v3990 = vunpack.c.l.b16 %v3968
    %v3991 = vunpack.c.h.b16 %v3968
    %v3992 = vunpack.c.l.b16 %v3969
    %v3993 = vunpack.c.h.b16 %v3969
    %v3994 = vunpack.c.l.b16 %v3970
    %v3995 = vunpack.c.l.b16 %v3971
    %v3996 = vunpack.c.h.b16 %v3971
    %v3997 = vunpack.c.l.b16 %v3972
    %v3998 = vunpack.c.h.b16 %v3972
    %v3999 = vunpack.c.l.b16 %v3973
    %v4000 = vunpack.c.h.b16 %v3973
    %v4001 = vunpack.c.l.b16 %v3974
    %v4002 = vunpack.c.h.b16 %v3974
    %v4003 = vunpack.c.l.b16 %v3975
    %v4004 = vpack.c.b16 %v3995, %v3986
    %v4005 = vpack.c.b16 %v3996, %v3987
    %v4006 = vpack.c.b16 %v3997, %v3988
    %v4007 = vpack.c.b16 %v3998, %v3989
    %v4008 = vpack.c.b16 %v3999, %v3990
    %v4009 = vpack.c.b16 %v4000, %v3991
    %v4010 = vpack.c.b16 %v4001, %v3992
    %v4011 = vpack.c.b16 %v4002, %v3993
    %v4012 = vpack.c.b16 %v4003, %v3994
    %v4023 = vsel %vm1830, %v3965, 0
    %4025 = vmatprep.subr.bf16.mxu0 %v4005
    %4026 = vmatpush1.bf16.msra.mxu0 %v4004
    %4027 = vmatprep.subr.bf16.mxu0 0
    %4028 = vmatpush1.bf16.msra.mxu0 0
    %4029 = vmatprep.subr.bf16.mxu0 0
    %4030 = vmatpush1.bf16.msra.mxu0 0
    %4031 = vmatprep.subr.bf16.mxu0 0
    %4032 = vmatpush1.bf16.msra.mxu0 0
    %4033 = vmatprep.subr.bf16.mxu0 0
    %4034 = vmatpush1.bf16.msra.mxu0 0
    %4035 = vmatprep.subr.bf16.mxu0 0
    %4036 = vmatpush1.bf16.msra.mxu0 0
    %4037 = vmatprep.subr.bf16.mxu0 0
    %4038 = vmatpush1.bf16.msra.mxu0 0
    %4039 = vmatprep.subr.bf16.mxu0 0
    %4040 = vmatpush1.bf16.msra.mxu0 0
    %4041 = vmatprep.subr.bf16.mxu0 0
    %4042 = vmatpush1.bf16.msra.mxu0 0
    %4043 = vmatprep.subr.bf16.mxu0 0
    %4044 = vmatpush1.bf16.msra.mxu0 0
    %4045 = vmatprep.subr.bf16.mxu0 0
    %4046 = vmatpush1.bf16.msra.mxu0 0
    %4047 = vmatprep.subr.bf16.mxu0 0
    %4048 = vmatpush1.bf16.msra.mxu0 0
    %4049 = vmatprep.subr.bf16.mxu0 0
    %4050 = vmatpush1.bf16.msra.mxu0 0
    %4051 = vmatprep.subr.bf16.mxu0 0
    %4052 = vmatpush1.bf16.msra.mxu0 0
    %4053 = vmatprep.subr.bf16.mxu0 0
    %4054 = vmatpush1.bf16.msra.mxu0 0
    %4055 = vmatprep.subr.bf16.mxu0 0
    %4056 = vmatpush1.bf16.msra.mxu0 0
    %4057 = vmatprep.mubr.bf16.mxu0 0
    %4058 = vmatmul.mubr.bf16.gmra.mrb[0].mxu0 %v4023
    %v4059 = vpop.f32.mrb[0].mxu0
    %v4060 = vadd.f32 0.0, %v4059
    %v4061 = vpop.f32.mrb[0].mxu0
    %v4062 = vadd.f32 0.0, %v4061
    %v4063 = vpop.f32.mrb[0].mxu0
    %v4064 = vadd.f32 0.0, %v4063
    %v4065 = vpop.f32.mrb[0].mxu0
    %v4066 = vadd.f32 0.0, %v4065
    %4067 = vdwg.mxu0
    %4068 = vmatprep.subr.bf16.mxu0 %v4007
    %4069 = vmatpush1.bf16.msra.mxu0 %v4006
    %4070 = vmatprep.subr.bf16.mxu0 0
    %4071 = vmatpush1.bf16.msra.mxu0 0
    %4072 = vmatprep.subr.bf16.mxu0 0
    %4073 = vmatpush1.bf16.msra.mxu0 0
    %4074 = vmatprep.subr.bf16.mxu0 0
    %4075 = vmatpush1.bf16.msra.mxu0 0
    %4076 = vmatprep.subr.bf16.mxu0 0
    %4077 = vmatpush1.bf16.msra.mxu0 0
    %4078 = vmatprep.subr.bf16.mxu0 0
    %4079 = vmatpush1.bf16.msra.mxu0 0
    %4080 = vmatprep.subr.bf16.mxu0 0
    %4081 = vmatpush1.bf16.msra.mxu0 0
    %4082 = vmatprep.subr.bf16.mxu0 0
    %4083 = vmatpush1.bf16.msra.mxu0 0
    %4084 = vmatprep.subr.bf16.mxu0 0
    %4085 = vmatpush1.bf16.msra.mxu0 0
    %4086 = vmatprep.subr.bf16.mxu0 0
    %4087 = vmatpush1.bf16.msra.mxu0 0
    %4088 = vmatprep.subr.bf16.mxu0 0
    %4089 = vmatpush1.bf16.msra.mxu0 0
    %4090 = vmatprep.subr.bf16.mxu0 0
    %4091 = vmatpush1.bf16.msra.mxu0 0
    %4092 = vmatprep.subr.bf16.mxu0 0
    %4093 = vmatpush1.bf16.msra.mxu0 0
    %4094 = vmatprep.subr.bf16.mxu0 0
    %4095 = vmatpush1.bf16.msra.mxu0 0
    %4096 = vmatprep.subr.bf16.mxu0 0
    %4097 = vmatpush1.bf16.msra.mxu0 0
    %4098 = vmatprep.subr.bf16.mxu0 0
    %4099 = vmatpush1.bf16.msra.mxu0 0
    %4100 = vmatprep.mubr.bf16.mxu0 0
    %4101 = vmatmul.mubr.bf16.gmra.mrb[0].mxu0 %v4023
    %v4102 = vpop.f32.mrb[0].mxu0
    %v4103 = vadd.f32 0.0, %v4102
    %v4104 = vpop.f32.mrb[0].mxu0
    %v4105 = vadd.f32 0.0, %v4104
    %v4106 = vpop.f32.mrb[0].mxu0
    %v4107 = vadd.f32 0.0, %v4106
    %v4108 = vpop.f32.mrb[0].mxu0
    %v4109 = vadd.f32 0.0, %v4108
    %4110 = vdwg.mxu0
    %4111 = vmatprep.subr.bf16.mxu0 %v4009
    %4112 = vmatpush1.bf16.msra.mxu0 %v4008
    %4113 = vmatprep.subr.bf16.mxu0 0
    %4114 = vmatpush1.bf16.msra.mxu0 0
    %4115 = vmatprep.subr.bf16.mxu0 0
    %4116 = vmatpush1.bf16.msra.mxu0 0
    %4117 = vmatprep.subr.bf16.mxu0 0
    %4118 = vmatpush1.bf16.msra.mxu0 0
    %4119 = vmatprep.subr.bf16.mxu0 0
    %4120 = vmatpush1.bf16.msra.mxu0 0
    %4121 = vmatprep.subr.bf16.mxu0 0
    %4122 = vmatpush1.bf16.msra.mxu0 0
    %4123 = vmatprep.subr.bf16.mxu0 0
    %4124 = vmatpush1.bf16.msra.mxu0 0
    %4125 = vmatprep.subr.bf16.mxu0 0
    %4126 = vmatpush1.bf16.msra.mxu0 0
    %4127 = vmatprep.subr.bf16.mxu0 0
    %4128 = vmatpush1.bf16.msra.mxu0 0
    %4129 = vmatprep.subr.bf16.mxu0 0
    %4130 = vmatpush1.bf16.msra.mxu0 0
    %4131 = vmatprep.subr.bf16.mxu0 0
    %4132 = vmatpush1.bf16.msra.mxu0 0
    %4133 = vmatprep.subr.bf16.mxu0 0
    %4134 = vmatpush1.bf16.msra.mxu0 0
    %4135 = vmatprep.subr.bf16.mxu0 0
    %4136 = vmatpush1.bf16.msra.mxu0 0
    %4137 = vmatprep.subr.bf16.mxu0 0
    %4138 = vmatpush1.bf16.msra.mxu0 0
    %4139 = vmatprep.subr.bf16.mxu0 0
    %4140 = vmatpush1.bf16.msra.mxu0 0
    %4141 = vmatprep.subr.bf16.mxu0 0
    %4142 = vmatpush1.bf16.msra.mxu0 0
    %4143 = vmatprep.mubr.bf16.mxu0 0
    %4144 = vmatmul.mubr.bf16.gmra.mrb[0].mxu0 %v4023
    %v4145 = vpop.f32.mrb[0].mxu0
    %v4146 = vadd.f32 0.0, %v4145
    %v4147 = vpop.f32.mrb[0].mxu0
    %v4148 = vadd.f32 0.0, %v4147
    %v4149 = vpop.f32.mrb[0].mxu0
    %v4150 = vadd.f32 0.0, %v4149
    %v4151 = vpop.f32.mrb[0].mxu0
    %v4152 = vadd.f32 0.0, %v4151
    %4153 = vdwg.mxu0
    %4154 = vmatprep.subr.bf16.mxu0 %v4011
    %4155 = vmatpush1.bf16.msra.mxu0 %v4010
    %4156 = vmatprep.subr.bf16.mxu0 0
    %4157 = vmatpush1.bf16.msra.mxu0 0
    %4158 = vmatprep.subr.bf16.mxu0 0
    %4159 = vmatpush1.bf16.msra.mxu0 0
    %4160 = vmatprep.subr.bf16.mxu0 0
    %4161 = vmatpush1.bf16.msra.mxu0 0
    %4162 = vmatprep.subr.bf16.mxu0 0
    %4163 = vmatpush1.bf16.msra.mxu0 0
    %4164 = vmatprep.subr.bf16.mxu0 0
    %4165 = vmatpush1.bf16.msra.mxu0 0
    %4166 = vmatprep.subr.bf16.mxu0 0
    %4167 = vmatpush1.bf16.msra.mxu0 0
    %4168 = vmatprep.subr.bf16.mxu0 0
    %4169 = vmatpush1.bf16.msra.mxu0 0
    %4170 = vmatprep.subr.bf16.mxu0 0
    %4171 = vmatpush1.bf16.msra.mxu0 0
    %4172 = vmatprep.subr.bf16.mxu0 0
    %4173 = vmatpush1.bf16.msra.mxu0 0
    %4174 = vmatprep.subr.bf16.mxu0 0
    %4175 = vmatpush1.bf16.msra.mxu0 0
    %4176 = vmatprep.subr.bf16.mxu0 0
    %4177 = vmatpush1.bf16.msra.mxu0 0
    %4178 = vmatprep.subr.bf16.mxu0 0
    %4179 = vmatpush1.bf16.msra.mxu0 0
    %4180 = vmatprep.subr.bf16.mxu0 0
    %4181 = vmatpush1.bf16.msra.mxu0 0
    %4182 = vmatprep.subr.bf16.mxu0 0
    %4183 = vmatpush1.bf16.msra.mxu0 0
    %4184 = vmatprep.subr.bf16.mxu0 0
    %4185 = vmatpush1.bf16.msra.mxu0 0
    %4186 = vmatprep.mubr.bf16.mxu0 0
    %4187 = vmatmul.mubr.bf16.gmra.mrb[0].mxu0 %v4023
    %v4188 = vpop.f32.mrb[0].mxu0
    %v4189 = vadd.f32 0.0, %v4188
    %v4190 = vpop.f32.mrb[0].mxu0
    %v4191 = vadd.f32 0.0, %v4190
    %v4192 = vpop.f32.mrb[0].mxu0
    %v4193 = vadd.f32 0.0, %v4192
    %v4194 = vpop.f32.mrb[0].mxu0
    %v4195 = vadd.f32 0.0, %v4194
    %4196 = vdwg.mxu0
    %4197 = vmatprep.subr.bf16.mxu0 0
    %4198 = vmatpush1.bf16.msra.mxu0 %v4012
    %4199 = vmatprep.subr.bf16.mxu0 0
    %4200 = vmatpush1.bf16.msra.mxu0 0
    %4201 = vmatprep.subr.bf16.mxu0 0
    %4202 = vmatpush1.bf16.msra.mxu0 0
    %4203 = vmatprep.subr.bf16.mxu0 0
    %4204 = vmatpush1.bf16.msra.mxu0 0
    %4205 = vmatprep.subr.bf16.mxu0 0
    %4206 = vmatpush1.bf16.msra.mxu0 0
    %4207 = vmatprep.subr.bf16.mxu0 0
    %4208 = vmatpush1.bf16.msra.mxu0 0
    %4209 = vmatprep.subr.bf16.mxu0 0
    %4210 = vmatpush1.bf16.msra.mxu0 0
    %4211 = vmatprep.subr.bf16.mxu0 0
    %4212 = vmatpush1.bf16.msra.mxu0 0
    %4213 = vmatprep.subr.bf16.mxu0 0
    %4214 = vmatpush1.bf16.msra.mxu0 0
    %4215 = vmatprep.subr.bf16.mxu0 0
    %4216 = vmatpush1.bf16.msra.mxu0 0
    %4217 = vmatprep.subr.bf16.mxu0 0
    %4218 = vmatpush1.bf16.msra.mxu0 0
    %4219 = vmatprep.subr.bf16.mxu0 0
    %4220 = vmatpush1.bf16.msra.mxu0 0
    %4221 = vmatprep.subr.bf16.mxu0 0
    %4222 = vmatpush1.bf16.msra.mxu0 0
    %4223 = vmatprep.subr.bf16.mxu0 0
    %4224 = vmatpush1.bf16.msra.mxu0 0
    %4225 = vmatprep.subr.bf16.mxu0 0
    %4226 = vmatpush1.bf16.msra.mxu0 0
    %4227 = vmatprep.subr.bf16.mxu0 0
    %4228 = vmatpush1.bf16.msra.mxu0 0
    %4229 = vmatprep.mubr.bf16.mxu0 0
    %4230 = vmatmul.mubr.bf16.gmra.mrb[0].mxu0 %v4023
    %v4231 = vpop.f32.mrb[0].mxu0
    %v4232 = vadd.f32 0.0, %v4231
    %v4233 = vpop.f32.mrb[0].mxu0
    %v4234 = vpop.f32.mrb[0].mxu0
    %v4235 = vadd.f32 0.0, %v4234
    %v4236 = vpop.f32.mrb[0].mxu0
    %4237 = vdwg.mxu0
    %v4238 = vpack.c.bf16 %v4064, %v4060
    %v4239 = vpack.c.bf16 %v4066, %v4062
    %v4240 = vpack.c.bf16 %v4107, %v4103
    %v4241 = vpack.c.bf16 %v4109, %v4105
    %v4242 = vpack.c.bf16 %v4150, %v4146
    %v4243 = vpack.c.bf16 %v4152, %v4148
    %v4244 = vpack.c.bf16 %v4193, %v4189
    %v4245 = vpack.c.bf16 %v4195, %v4191
    %v4246 = vpack.c.bf16 %v4235, %v4232
    %v4247 = vld [vmem:[%s18] sm:$0xf]
    %v4248 = vld [vmem:[%s18 + $0x4] sm:$0xf]
    %s4249 = scalar_lea.vmem %s18, 8
    %v4250 = vld [vmem:[%s4249] sm:$0xf]
    %v4251 = vld [vmem:[%s4249 + $0x4] sm:$0xf]
    %v4254 = vunpack.c.l.b16 %v4250
    %v4255 = vunpack.c.l.b16 %v4251
    %v4256 = vpack.c.b16 %v4255, %v4254
    %v4258 = vsel %vm1830, %v4256, 0
    %4260 = vmatprep.subr.bf16.mxu0 0
    %4261 = vmatpush1.bf16.msra.mxu0 %v4239
    %4262 = vmatprep.subr.bf16.mxu0 0
    %4263 = vmatpush1.bf16.msra.mxu0 0
    %4264 = vmatprep.subr.bf16.mxu0 0
    %4265 = vmatpush1.bf16.msra.mxu0 0
    %4266 = vmatprep.subr.bf16.mxu0 0
    %4267 = vmatpush1.bf16.msra.mxu0 0
    %4268 = vmatprep.subr.bf16.mxu0 0
    %4269 = vmatpush1.bf16.msra.mxu0 0
    %4270 = vmatprep.subr.bf16.mxu0 0
    %4271 = vmatpush1.bf16.msra.mxu0 0
    %4272 = vmatprep.subr.bf16.mxu0 0
    %4273 = vmatpush1.bf16.msra.mxu0 0
    %4274 = vmatprep.subr.bf16.mxu0 0
    %4275 = vmatpush1.bf16.msra.mxu0 0
    %4276 = vmatprep.subr.bf16.mxu0 0
    %4277 = vmatpush1.bf16.msra.mxu0 0
    %4278 = vmatprep.subr.bf16.mxu0 0
    %4279 = vmatpush1.bf16.msra.mxu0 0
    %4280 = vmatprep.subr.bf16.mxu0 0
    %4281 = vmatpush1.bf16.msra.mxu0 0
    %4282 = vmatprep.subr.bf16.mxu0 0
    %4283 = vmatpush1.bf16.msra.mxu0 0
    %4284 = vmatprep.subr.bf16.mxu0 0
    %4285 = vmatpush1.bf16.msra.mxu0 0
    %4286 = vmatprep.subr.bf16.mxu0 0
    %4287 = vmatpush1.bf16.msra.mxu0 0
    %4288 = vmatprep.subr.bf16.mxu0 0
    %4289 = vmatpush1.bf16.msra.mxu0 0
    %4290 = vmatprep.subr.bf16.mxu0 0
    %4291 = vmatpush1.bf16.msra.mxu0 0
    %4292 = vmatprep.mubr.bf16.mxu0 0
    %4293 = vmatmul.mubr.bf16.gmra.mrb[0].mxu0 %v4258
    %v4294 = vpop.f32.mrb[0].mxu0
    %v4295 = vadd.f32 0.0, %v4294
    %v4296 = vpop.f32.mrb[0].mxu0
    %v4297 = vpop.f32.mrb[0].mxu0
    %v4298 = vadd.f32 0.0, %v4297
    %v4299 = vpop.f32.mrb[0].mxu0
    %4300 = vdwg.mxu0
    %v4303 = vunpack.c.l.b16 %v4247
    %v4304 = vunpack.c.l.b16 %v4248
    %v4305 = vpack.c.b16 %v4304, %v4303
    %v4307 = vsel %vm1830, %v4305, 0
    %4309 = vmatprep.subr.bf16.mxu0 0
    %4310 = vmatpush1.bf16.msra.mxu0 %v4238
    %4311 = vmatprep.subr.bf16.mxu0 0
    %4312 = vmatpush1.bf16.msra.mxu0 0
    %4313 = vmatprep.subr.bf16.mxu0 0
    %4314 = vmatpush1.bf16.msra.mxu0 0
    %4315 = vmatprep.subr.bf16.mxu0 0
    %4316 = vmatpush1.bf16.msra.mxu0 0
    %4317 = vmatprep.subr.bf16.mxu0 0
    %4318 = vmatpush1.bf16.msra.mxu0 0
    %4319 = vmatprep.subr.bf16.mxu0 0
    %4320 = vmatpush1.bf16.msra.mxu0 0
    %4321 = vmatprep.subr.bf16.mxu0 0
    %4322 = vmatpush1.bf16.msra.mxu0 0
    %4323 = vmatprep.subr.bf16.mxu0 0
    %4324 = vmatpush1.bf16.msra.mxu0 0
    %4325 = vmatprep.subr.bf16.mxu0 0
    %4326 = vmatpush1.bf16.msra.mxu0 0
    %4327 = vmatprep.subr.bf16.mxu0 0
    %4328 = vmatpush1.bf16.msra.mxu0 0
    %4329 = vmatprep.subr.bf16.mxu0 0
    %4330 = vmatpush1.bf16.msra.mxu0 0
    %4331 = vmatprep.subr.bf16.mxu0 0
    %4332 = vmatpush1.bf16.msra.mxu0 0
    %4333 = vmatprep.subr.bf16.mxu0 0
    %4334 = vmatpush1.bf16.msra.mxu0 0
    %4335 = vmatprep.subr.bf16.mxu0 0
    %4336 = vmatpush1.bf16.msra.mxu0 0
    %4337 = vmatprep.subr.bf16.mxu0 0
    %4338 = vmatpush1.bf16.msra.mxu0 0
    %4339 = vmatprep.subr.bf16.mxu0 0
    %4340 = vmatpush1.bf16.msra.mxu0 0
    %4341 = vmatprep.mubr.bf16.mxu0 0
    %4342 = vmatmul.mubr.bf16.gmra.mrb[0].mxu0 %v4307
    %v4343 = vpop.f32.mrb[0].mxu0
    %v4344 = vadd.f32 %v4295, %v4343
    %v4345 = vpop.f32.mrb[0].mxu0
    %v4346 = vpop.f32.mrb[0].mxu0
    %v4347 = vadd.f32 %v4298, %v4346
    %v4348 = vpop.f32.mrb[0].mxu0
    %4349 = vdwg.mxu0
    %s4350 = scalar_lea.vmem %s18, 16
    %v4351 = vld [vmem:[%s4350] sm:$0xf]
    %v4352 = vld [vmem:[%s4350 + $0x4] sm:$0xf]
    %v4355 = vunpack.c.l.b16 %v4351
    %v4356 = vunpack.c.l.b16 %v4352
    %v4357 = vpack.c.b16 %v4356, %v4355
    %v4359 = vsel %vm1830, %v4357, 0
    %4361 = vmatprep.subr.bf16.mxu0 0
    %4362 = vmatpush1.bf16.msra.mxu0 %v4240
    %4363 = vmatprep.subr.bf16.mxu0 0
    %4364 = vmatpush1.bf16.msra.mxu0 0
    %4365 = vmatprep.subr.bf16.mxu0 0
    %4366 = vmatpush1.bf16.msra.mxu0 0
    %4367 = vmatprep.subr.bf16.mxu0 0
    %4368 = vmatpush1.bf16.msra.mxu0 0
    %4369 = vmatprep.subr.bf16.mxu0 0
    %4370 = vmatpush1.bf16.msra.mxu0 0
    %4371 = vmatprep.subr.bf16.mxu0 0
    %4372 = vmatpush1.bf16.msra.mxu0 0
    %4373 = vmatprep.subr.bf16.mxu0 0
    %4374 = vmatpush1.bf16.msra.mxu0 0
    %4375 = vmatprep.subr.bf16.mxu0 0
    %4376 = vmatpush1.bf16.msra.mxu0 0
    %4377 = vmatprep.subr.bf16.mxu0 0
    %4378 = vmatpush1.bf16.msra.mxu0 0
    %4379 = vmatprep.subr.bf16.mxu0 0
    %4380 = vmatpush1.bf16.msra.mxu0 0
    %4381 = vmatprep.subr.bf16.mxu0 0
    %4382 = vmatpush1.bf16.msra.mxu0 0
    %4383 = vmatprep.subr.bf16.mxu0 0
    %4384 = vmatpush1.bf16.msra.mxu0 0
    %4385 = vmatprep.subr.bf16.mxu0 0
    %4386 = vmatpush1.bf16.msra.mxu0 0
    %4387 = vmatprep.subr.bf16.mxu0 0
    %4388 = vmatpush1.bf16.msra.mxu0 0
    %4389 = vmatprep.subr.bf16.mxu0 0
    %4390 = vmatpush1.bf16.msra.mxu0 0
    %4391 = vmatprep.subr.bf16.mxu0 0
    %4392 = vmatpush1.bf16.msra.mxu0 0
    %4393 = vmatprep.mubr.bf16.mxu0 0
    %4394 = vmatmul.mubr.bf16.gmra.mrb[0].mxu0 %v4359
    %v4395 = vpop.f32.mrb[0].mxu0
    %v4396 = vadd.f32 0.0, %v4395
    %v4397 = vpop.f32.mrb[0].mxu0
    %v4398 = vpop.f32.mrb[0].mxu0
    %v4399 = vadd.f32 0.0, %v4398
    %v4400 = vpop.f32.mrb[0].mxu0
    %4401 = vdwg.mxu0
    %v4402 = vadd.f32 %v4344, %v4396
    %v4403 = vadd.f32 %v4347, %v4399
    %s4404 = scalar_lea.vmem %s18, 24
    %v4405 = vld [vmem:[%s4404] sm:$0xf]
    %v4406 = vld [vmem:[%s4404 + $0x4] sm:$0xf]
    %v4409 = vunpack.c.l.b16 %v4405
    %v4410 = vunpack.c.l.b16 %v4406
    %v4411 = vpack.c.b16 %v4410, %v4409
    %v4413 = vsel %vm1830, %v4411, 0
    %4415 = vmatprep.subr.bf16.mxu0 0
    %4416 = vmatpush1.bf16.msra.mxu0 %v4241
    %4417 = vmatprep.subr.bf16.mxu0 0
    %4418 = vmatpush1.bf16.msra.mxu0 0
    %4419 = vmatprep.subr.bf16.mxu0 0
    %4420 = vmatpush1.bf16.msra.mxu0 0
    %4421 = vmatprep.subr.bf16.mxu0 0
    %4422 = vmatpush1.bf16.msra.mxu0 0
    %4423 = vmatprep.subr.bf16.mxu0 0
    %4424 = vmatpush1.bf16.msra.mxu0 0
    %4425 = vmatprep.subr.bf16.mxu0 0
    %4426 = vmatpush1.bf16.msra.mxu0 0
    %4427 = vmatprep.subr.bf16.mxu0 0
    %4428 = vmatpush1.bf16.msra.mxu0 0
    %4429 = vmatprep.subr.bf16.mxu0 0
    %4430 = vmatpush1.bf16.msra.mxu0 0
    %4431 = vmatprep.subr.bf16.mxu0 0
    %4432 = vmatpush1.bf16.msra.mxu0 0
    %4433 = vmatprep.subr.bf16.mxu0 0
    %4434 = vmatpush1.bf16.msra.mxu0 0
    %4435 = vmatprep.subr.bf16.mxu0 0
    %4436 = vmatpush1.bf16.msra.mxu0 0
    %4437 = vmatprep.subr.bf16.mxu0 0
    %4438 = vmatpush1.bf16.msra.mxu0 0
    %4439 = vmatprep.subr.bf16.mxu0 0
    %4440 = vmatpush1.bf16.msra.mxu0 0
    %4441 = vmatprep.subr.bf16.mxu0 0
    %4442 = vmatpush1.bf16.msra.mxu0 0
    %4443 = vmatprep.subr.bf16.mxu0 0
    %4444 = vmatpush1.bf16.msra.mxu0 0
    %4445 = vmatprep.subr.bf16.mxu0 0
    %4446 = vmatpush1.bf16.msra.mxu0 0
    %4447 = vmatprep.mubr.bf16.mxu0 0
    %4448 = vmatmul.mubr.bf16.gmra.mrb[0].mxu0 %v4413
    %v4449 = vpop.f32.mrb[0].mxu0
    %v4450 = vadd.f32 0.0, %v4449
    %v4451 = vpop.f32.mrb[0].mxu0
    %v4452 = vpop.f32.mrb[0].mxu0
    %v4453 = vadd.f32 0.0, %v4452
    %v4454 = vpop.f32.mrb[0].mxu0
    %4455 = vdwg.mxu0
    %v4456 = vadd.f32 %v4402, %v4450
    %v4457 = vadd.f32 %v4403, %v4453
    %s4458 = scalar_lea.vmem %s18, 32
    %v4459 = vld [vmem:[%s4458] sm:$0xf]
    %v4460 = vld [vmem:[%s4458 + $0x4] sm:$0xf]
    %v4463 = vunpack.c.l.b16 %v4459
    %v4464 = vunpack.c.l.b16 %v4460
    %v4465 = vpack.c.b16 %v4464, %v4463
    %v4467 = vsel %vm1830, %v4465, 0
    %4469 = vmatprep.subr.bf16.mxu0 0
    %4470 = vmatpush1.bf16.msra.mxu0 %v4242
    %4471 = vmatprep.subr.bf16.mxu0 0
    %4472 = vmatpush1.bf16.msra.mxu0 0
    %4473 = vmatprep.subr.bf16.mxu0 0
    %4474 = vmatpush1.bf16.msra.mxu0 0
    %4475 = vmatprep.subr.bf16.mxu0 0
    %4476 = vmatpush1.bf16.msra.mxu0 0
    %4477 = vmatprep.subr.bf16.mxu0 0
    %4478 = vmatpush1.bf16.msra.mxu0 0
    %4479 = vmatprep.subr.bf16.mxu0 0
    %4480 = vmatpush1.bf16.msra.mxu0 0
    %4481 = vmatprep.subr.bf16.mxu0 0
    %4482 = vmatpush1.bf16.msra.mxu0 0
    %4483 = vmatprep.subr.bf16.mxu0 0
    %4484 = vmatpush1.bf16.msra.mxu0 0
    %4485 = vmatprep.subr.bf16.mxu0 0
    %4486 = vmatpush1.bf16.msra.mxu0 0
    %4487 = vmatprep.subr.bf16.mxu0 0
    %4488 = vmatpush1.bf16.msra.mxu0 0
    %4489 = vmatprep.subr.bf16.mxu0 0
    %4490 = vmatpush1.bf16.msra.mxu0 0
    %4491 = vmatprep.subr.bf16.mxu0 0
    %4492 = vmatpush1.bf16.msra.mxu0 0
    %4493 = vmatprep.subr.bf16.mxu0 0
    %4494 = vmatpush1.bf16.msra.mxu0 0
    %4495 = vmatprep.subr.bf16.mxu0 0
    %4496 = vmatpush1.bf16.msra.mxu0 0
    %4497 = vmatprep.subr.bf16.mxu0 0
    %4498 = vmatpush1.bf16.msra.mxu0 0
    %4499 = vmatprep.subr.bf16.mxu0 0
    %4500 = vmatpush1.bf16.msra.mxu0 0
    %4501 = vmatprep.mubr.bf16.mxu0 0
    %4502 = vmatmul.mubr.bf16.gmra.mrb[0].mxu0 %v4467
    %v4503 = vpop.f32.mrb[0].mxu0
    %v4504 = vadd.f32 0.0, %v4503
    %v4505 = vpop.f32.mrb[0].mxu0
    %v4506 = vpop.f32.mrb[0].mxu0
    %v4507 = vadd.f32 0.0, %v4506
    %v4508 = vpop.f32.mrb[0].mxu0
    %4509 = vdwg.mxu0
    %v4510 = vadd.f32 %v4456, %v4504
    %v4511 = vadd.f32 %v4457, %v4507
    %s4512 = scalar_lea.vmem %s18, 40
    %v4513 = vld [vmem:[%s4512] sm:$0xf]
    %v4514 = vld [vmem:[%s4512 + $0x4] sm:$0xf]
    %v4517 = vunpack.c.l.b16 %v4513
    %v4518 = vunpack.c.l.b16 %v4514
    %v4519 = vpack.c.b16 %v4518, %v4517
    %v4521 = vsel %vm1830, %v4519, 0
    %4523 = vmatprep.subr.bf16.mxu0 0
    %4524 = vmatpush1.bf16.msra.mxu0 %v4243
    %4525 = vmatprep.subr.bf16.mxu0 0
    %4526 = vmatpush1.bf16.msra.mxu0 0
    %4527 = vmatprep.subr.bf16.mxu0 0
    %4528 = vmatpush1.bf16.msra.mxu0 0
    %4529 = vmatprep.subr.bf16.mxu0 0
    %4530 = vmatpush1.bf16.msra.mxu0 0
    %4531 = vmatprep.subr.bf16.mxu0 0
    %4532 = vmatpush1.bf16.msra.mxu0 0
    %4533 = vmatprep.subr.bf16.mxu0 0
    %4534 = vmatpush1.bf16.msra.mxu0 0
    %4535 = vmatprep.subr.bf16.mxu0 0
    %4536 = vmatpush1.bf16.msra.mxu0 0
    %4537 = vmatprep.subr.bf16.mxu0 0
    %4538 = vmatpush1.bf16.msra.mxu0 0
    %4539 = vmatprep.subr.bf16.mxu0 0
    %4540 = vmatpush1.bf16.msra.mxu0 0
    %4541 = vmatprep.subr.bf16.mxu0 0
    %4542 = vmatpush1.bf16.msra.mxu0 0
    %4543 = vmatprep.subr.bf16.mxu0 0
    %4544 = vmatpush1.bf16.msra.mxu0 0
    %4545 = vmatprep.subr.bf16.mxu0 0
    %4546 = vmatpush1.bf16.msra.mxu0 0
    %4547 = vmatprep.subr.bf16.mxu0 0
    %4548 = vmatpush1.bf16.msra.mxu0 0
    %4549 = vmatprep.subr.bf16.mxu0 0
    %4550 = vmatpush1.bf16.msra.mxu0 0
    %4551 = vmatprep.subr.bf16.mxu0 0
    %4552 = vmatpush1.bf16.msra.mxu0 0
    %4553 = vmatprep.subr.bf16.mxu0 0
    %4554 = vmatpush1.bf16.msra.mxu0 0
    %4555 = vmatprep.mubr.bf16.mxu0 0
    %4556 = vmatmul.mubr.bf16.gmra.mrb[0].mxu0 %v4521
    %v4557 = vpop.f32.mrb[0].mxu0
    %v4558 = vadd.f32 0.0, %v4557
    %v4559 = vpop.f32.mrb[0].mxu0
    %v4560 = vpop.f32.mrb[0].mxu0
    %v4561 = vadd.f32 0.0, %v4560
    %v4562 = vpop.f32.mrb[0].mxu0
    %4563 = vdwg.mxu0
    %v4564 = vadd.f32 %v4510, %v4558
    %v4565 = vadd.f32 %v4511, %v4561
    %s4566 = scalar_lea.vmem %s18, 48
    %v4567 = vld [vmem:[%s4566] sm:$0xf]
    %v4568 = vld [vmem:[%s4566 + $0x4] sm:$0xf]
    %v4571 = vunpack.c.l.b16 %v4567
    %v4572 = vunpack.c.l.b16 %v4568
    %v4573 = vpack.c.b16 %v4572, %v4571
    %v4575 = vsel %vm1830, %v4573, 0
    %4577 = vmatprep.subr.bf16.mxu0 0
    %4578 = vmatpush1.bf16.msra.mxu0 %v4244
    %4579 = vmatprep.subr.bf16.mxu0 0
    %4580 = vmatpush1.bf16.msra.mxu0 0
    %4581 = vmatprep.subr.bf16.mxu0 0
    %4582 = vmatpush1.bf16.msra.mxu0 0
    %4583 = vmatprep.subr.bf16.mxu0 0
    %4584 = vmatpush1.bf16.msra.mxu0 0
    %4585 = vmatprep.subr.bf16.mxu0 0
    %4586 = vmatpush1.bf16.msra.mxu0 0
    %4587 = vmatprep.subr.bf16.mxu0 0
    %4588 = vmatpush1.bf16.msra.mxu0 0
    %4589 = vmatprep.subr.bf16.mxu0 0
    %4590 = vmatpush1.bf16.msra.mxu0 0
    %4591 = vmatprep.subr.bf16.mxu0 0
    %4592 = vmatpush1.bf16.msra.mxu0 0
    %4593 = vmatprep.subr.bf16.mxu0 0
    %4594 = vmatpush1.bf16.msra.mxu0 0
    %4595 = vmatprep.subr.bf16.mxu0 0
    %4596 = vmatpush1.bf16.msra.mxu0 0
    %4597 = vmatprep.subr.bf16.mxu0 0
    %4598 = vmatpush1.bf16.msra.mxu0 0
    %4599 = vmatprep.subr.bf16.mxu0 0
    %4600 = vmatpush1.bf16.msra.mxu0 0
    %4601 = vmatprep.subr.bf16.mxu0 0
    %4602 = vmatpush1.bf16.msra.mxu0 0
    %4603 = vmatprep.subr.bf16.mxu0 0
    %4604 = vmatpush1.bf16.msra.mxu0 0
    %4605 = vmatprep.subr.bf16.mxu0 0
    %4606 = vmatpush1.bf16.msra.mxu0 0
    %4607 = vmatprep.subr.bf16.mxu0 0
    %4608 = vmatpush1.bf16.msra.mxu0 0
    %4609 = vmatprep.mubr.bf16.mxu0 0
    %4610 = vmatmul.mubr.bf16.gmra.mrb[0].mxu0 %v4575
    %v4611 = vpop.f32.mrb[0].mxu0
    %v4612 = vadd.f32 0.0, %v4611
    %v4613 = vpop.f32.mrb[0].mxu0
    %v4614 = vpop.f32.mrb[0].mxu0
    %v4615 = vadd.f32 0.0, %v4614
    %v4616 = vpop.f32.mrb[0].mxu0
    %4617 = vdwg.mxu0
    %v4618 = vadd.f32 %v4564, %v4612
    %v4619 = vadd.f32 %v4565, %v4615
    %s4620 = scalar_lea.vmem %s18, 56
    %v4621 = vld [vmem:[%s4620] sm:$0xf]
    %v4622 = vld [vmem:[%s4620 + $0x4] sm:$0xf]
    %v4625 = vunpack.c.l.b16 %v4621
    %v4626 = vunpack.c.l.b16 %v4622
    %v4627 = vpack.c.b16 %v4626, %v4625
    %v4629 = vsel %vm1830, %v4627, 0
    %4631 = vmatprep.subr.bf16.mxu0 0
    %4632 = vmatpush1.bf16.msra.mxu0 %v4245
    %4633 = vmatprep.subr.bf16.mxu0 0
    %4634 = vmatpush1.bf16.msra.mxu0 0
    %4635 = vmatprep.subr.bf16.mxu0 0
    %4636 = vmatpush1.bf16.msra.mxu0 0
    %4637 = vmatprep.subr.bf16.mxu0 0
    %4638 = vmatpush1.bf16.msra.mxu0 0
    %4639 = vmatprep.subr.bf16.mxu0 0
    %4640 = vmatpush1.bf16.msra.mxu0 0
    %4641 = vmatprep.subr.bf16.mxu0 0
    %4642 = vmatpush1.bf16.msra.mxu0 0
    %4643 = vmatprep.subr.bf16.mxu0 0
    %4644 = vmatpush1.bf16.msra.mxu0 0
    %4645 = vmatprep.subr.bf16.mxu0 0
    %4646 = vmatpush1.bf16.msra.mxu0 0
    %4647 = vmatprep.subr.bf16.mxu0 0
    %4648 = vmatpush1.bf16.msra.mxu0 0
    %4649 = vmatprep.subr.bf16.mxu0 0
    %4650 = vmatpush1.bf16.msra.mxu0 0
    %4651 = vmatprep.subr.bf16.mxu0 0
    %4652 = vmatpush1.bf16.msra.mxu0 0
    %4653 = vmatprep.subr.bf16.mxu0 0
    %4654 = vmatpush1.bf16.msra.mxu0 0
    %4655 = vmatprep.subr.bf16.mxu0 0
    %4656 = vmatpush1.bf16.msra.mxu0 0
    %4657 = vmatprep.subr.bf16.mxu0 0
    %4658 = vmatpush1.bf16.msra.mxu0 0
    %4659 = vmatprep.subr.bf16.mxu0 0
    %4660 = vmatpush1.bf16.msra.mxu0 0
    %4661 = vmatprep.subr.bf16.mxu0 0
    %4662 = vmatpush1.bf16.msra.mxu0 0
    %4663 = vmatprep.mubr.bf16.mxu0 0
    %4664 = vmatmul.mubr.bf16.gmra.mrb[0].mxu0 %v4629
    %v4665 = vpop.f32.mrb[0].mxu0
    %v4666 = vadd.f32 0.0, %v4665
    %v4667 = vpop.f32.mrb[0].mxu0
    %v4668 = vpop.f32.mrb[0].mxu0
    %v4669 = vadd.f32 0.0, %v4668
    %v4670 = vpop.f32.mrb[0].mxu0
    %4671 = vdwg.mxu0
    %v4672 = vadd.f32 %v4618, %v4666
    %v4673 = vadd.f32 %v4619, %v4669
    %s4674 = scalar_lea.vmem %s18, 64
    %v4675 = vld [vmem:[%s4674] sm:$0xf]
    %v4676 = vld [vmem:[%s4674 + $0x4] sm:$0xf]
    %v4679 = vunpack.c.l.b16 %v4675
    %v4680 = vunpack.c.l.b16 %v4676
    %v4681 = vpack.c.b16 %v4680, %v4679
    %v4683 = vsel %vm1830, %v4681, 0
    %4685 = vmatprep.subr.bf16.mxu0 0
    %4686 = vmatpush1.bf16.msra.mxu0 %v4246
    %4687 = vmatprep.subr.bf16.mxu0 0
    %4688 = vmatpush1.bf16.msra.mxu0 0
    %4689 = vmatprep.subr.bf16.mxu0 0
    %4690 = vmatpush1.bf16.msra.mxu0 0
    %4691 = vmatprep.subr.bf16.mxu0 0
    %4692 = vmatpush1.bf16.msra.mxu0 0
    %4693 = vmatprep.subr.bf16.mxu0 0
    %4694 = vmatpush1.bf16.msra.mxu0 0
    %4695 = vmatprep.subr.bf16.mxu0 0
    %4696 = vmatpush1.bf16.msra.mxu0 0
    %4697 = vmatprep.subr.bf16.mxu0 0
    %4698 = vmatpush1.bf16.msra.mxu0 0
    %4699 = vmatprep.subr.bf16.mxu0 0
    %4700 = vmatpush1.bf16.msra.mxu0 0
    %4701 = vmatprep.subr.bf16.mxu0 0
    %4702 = vmatpush1.bf16.msra.mxu0 0
    %4703 = vmatprep.subr.bf16.mxu0 0
    %4704 = vmatpush1.bf16.msra.mxu0 0
    %4705 = vmatprep.subr.bf16.mxu0 0
    %4706 = vmatpush1.bf16.msra.mxu0 0
    %4707 = vmatprep.subr.bf16.mxu0 0
    %4708 = vmatpush1.bf16.msra.mxu0 0
    %4709 = vmatprep.subr.bf16.mxu0 0
    %4710 = vmatpush1.bf16.msra.mxu0 0
    %4711 = vmatprep.subr.bf16.mxu0 0
    %4712 = vmatpush1.bf16.msra.mxu0 0
    %4713 = vmatprep.subr.bf16.mxu0 0
    %4714 = vmatpush1.bf16.msra.mxu0 0
    %4715 = vmatprep.subr.bf16.mxu0 0
    %4716 = vmatpush1.bf16.msra.mxu0 0
    %4717 = vmatprep.mubr.bf16.mxu0 0
    %4718 = vmatmul.mubr.bf16.gmra.mrb[0].mxu0 %v4683
    %v4719 = vpop.f32.mrb[0].mxu0
    %v4720 = vadd.f32 0.0, %v4719
    %v4721 = vpop.f32.mrb[0].mxu0
    %v4722 = vpop.f32.mrb[0].mxu0
    %v4723 = vadd.f32 0.0, %v4722
    %v4724 = vpop.f32.mrb[0].mxu0
    %4725 = vdwg.mxu0
    %v4726 = vadd.f32 %v4672, %v4720
    %v4727 = vadd.f32 %v4673, %v4723
    %4728 = vadd.xlane.f32.xlu0 %v4726
    %v4729 = vpop.xlane.xlu0 %4728
    %4730 = vadd.xlane.f32.xlu0 %v4727
    %v4731 = vpop.xlane.xlu0 %4730
    %v4732 = vmul.f32 %v4726, %v4726
    %v4733 = vmul.f32 %v4727, %v4727
    %4734 = vadd.xlane.f32.xlu0 %v4732
    %v4735 = vpop.xlane.xlu0 %4734
    %4736 = vadd.xlane.f32.xlu0 %v4733
    %v4737 = vpop.xlane.xlu0 %4736
    %4738 = vmatprep.subr.mxu0 0.0
    %4739 = vmatpush1.msra.mxu0 %v4729
    %4740 = vmatprep.subr.mxu0 0.0
    %4741 = vmatpush1.msra.mxu0 %v4731
    %4742 = vmatprep.subr.mxu0 0.0
    %4743 = vmatpush1.msra.mxu0 0.0
    %4744 = vmatprep.subr.mxu0 0.0
    %4745 = vmatpush1.msra.mxu0 0.0
    %4746 = vmatprep.subr.mxu0 0.0
    %4747 = vmatpush1.msra.mxu0 0.0
    %4748 = vmatprep.subr.mxu0 0.0
    %4749 = vmatpush1.msra.mxu0 0.0
    %4750 = vmatprep.subr.mxu0 0.0
    %4751 = vmatpush1.msra.mxu0 0.0
    %4752 = vmatprep.subr.mxu0 0.0
    %4753 = vmatpush1.msra.mxu0 0.0
    %4754 = vmatprep.subr.mxu0 0.0
    %4755 = vmatpush1.msra.mxu0 0.0
    %4756 = vmatprep.subr.mxu0 0.0
    %4757 = vmatpush1.msra.mxu0 0.0
    %4758 = vmatprep.subr.mxu0 0.0
    %4759 = vmatpush1.msra.mxu0 0.0
    %4760 = vmatprep.subr.mxu0 0.0
    %4761 = vmatpush1.msra.mxu0 0.0
    %4762 = vmatprep.subr.mxu0 0.0
    %4763 = vmatpush1.msra.mxu0 0.0
    %4764 = vmatprep.subr.mxu0 0.0
    %4765 = vmatpush1.msra.mxu0 0.0
    %4766 = vmatprep.subr.mxu0 0.0
    %4767 = vmatpush1.msra.mxu0 0.0
    %4768 = vmatprep.subr.mxu0 0.0
    %4769 = vmatpush1.msra.mxu0 0.0
    %4770 = vmatprep.subr.mxu0 0.0
    %4771 = vmatpush1.msra.mxu0 0.0
    %4772 = vmatprep.subr.mxu0 0.0
    %4773 = vmatpush1.msra.mxu0 0.0
    %4774 = vmatprep.subr.mxu0 0.0
    %4775 = vmatpush1.msra.mxu0 0.0
    %4776 = vmatprep.subr.mxu0 0.0
    %4777 = vmatpush1.msra.mxu0 0.0
    %4778 = vmatprep.subr.mxu0 0.0
    %4779 = vmatpush1.msra.mxu0 0.0
    %4780 = vmatprep.subr.mxu0 0.0
    %4781 = vmatpush1.msra.mxu0 0.0
    %4782 = vmatprep.subr.mxu0 0.0
    %4783 = vmatpush1.msra.mxu0 0.0
    %4784 = vmatprep.subr.mxu0 0.0
    %4785 = vmatpush1.msra.mxu0 0.0
    %4786 = vmatprep.subr.mxu0 0.0
    %4787 = vmatpush1.msra.mxu0 0.0
    %4788 = vmatprep.subr.mxu0 0.0
    %4789 = vmatpush1.msra.mxu0 0.0
    %4790 = vmatprep.subr.mxu0 0.0
    %4791 = vmatpush1.msra.mxu0 0.0
    %4792 = vmatprep.subr.mxu0 0.0
    %4793 = vmatpush1.msra.mxu0 0.0
    %4794 = vmatprep.subr.mxu0 0.0
    %4795 = vmatpush1.msra.mxu0 0.0
    %4796 = vmatprep.subr.mxu0 0.0
    %4797 = vmatpush1.msra.mxu0 0.0
    %4798 = vmatprep.subr.mxu0 0.0
    %4799 = vmatpush1.msra.mxu0 0.0
    %4800 = vmatprep.subr.mxu0 0.0
    %4801 = vmatpush1.msra.mxu0 0.0
    %4802 = vmatprep.mubr.f32.mxu0 0.0
    %4803 = vmatmul.mubr.f32.gmra.mrb[0].mxu0 %v1832
    %v4804 = vpop.f32.mrb[0].mxu0
    %v4805 = vadd.f32 0.0, %v4804
    %v4806 = vpop.f32.mrb[0].mxu0
    %4807 = vmatprep.mubr.f32.mxu0 0.0
    %4808 = vmatmul.mubr.f32.gmra.mrb[0].mxu0 %v1835
    %v4809 = vpop.f32.mrb[0].mxu0
    %v4810 = vadd.f32 0.0, %v4809
    %v4811 = vpop.f32.mrb[0].mxu0
    %4812 = vdwg.mxu0
    %4813 = vmatprep.subr.mxu0 0.0
    %4814 = vmatpush1.msra.mxu0 %v4735
    %4815 = vmatprep.subr.mxu0 0.0
    %4816 = vmatpush1.msra.mxu0 %v4737
    %4817 = vmatprep.subr.mxu0 0.0
    %4818 = vmatpush1.msra.mxu0 0.0
    %4819 = vmatprep.subr.mxu0 0.0
    %4820 = vmatpush1.msra.mxu0 0.0
    %4821 = vmatprep.subr.mxu0 0.0
    %4822 = vmatpush1.msra.mxu0 0.0
    %4823 = vmatprep.subr.mxu0 0.0
    %4824 = vmatpush1.msra.mxu0 0.0
    %4825 = vmatprep.subr.mxu0 0.0
    %4826 = vmatpush1.msra.mxu0 0.0
    %4827 = vmatprep.subr.mxu0 0.0
    %4828 = vmatpush1.msra.mxu0 0.0
    %4829 = vmatprep.subr.mxu0 0.0
    %4830 = vmatpush1.msra.mxu0 0.0
    %4831 = vmatprep.subr.mxu0 0.0
    %4832 = vmatpush1.msra.mxu0 0.0
    %4833 = vmatprep.subr.mxu0 0.0
    %4834 = vmatpush1.msra.mxu0 0.0
    %4835 = vmatprep.subr.mxu0 0.0
    %4836 = vmatpush1.msra.mxu0 0.0
    %4837 = vmatprep.subr.mxu0 0.0
    %4838 = vmatpush1.msra.mxu0 0.0
    %4839 = vmatprep.subr.mxu0 0.0
    %4840 = vmatpush1.msra.mxu0 0.0
    %4841 = vmatprep.subr.mxu0 0.0
    %4842 = vmatpush1.msra.mxu0 0.0
    %4843 = vmatprep.subr.mxu0 0.0
    %4844 = vmatpush1.msra.mxu0 0.0
    %4845 = vmatprep.subr.mxu0 0.0
    %4846 = vmatpush1.msra.mxu0 0.0
    %4847 = vmatprep.subr.mxu0 0.0
    %4848 = vmatpush1.msra.mxu0 0.0
    %4849 = vmatprep.subr.mxu0 0.0
    %4850 = vmatpush1.msra.mxu0 0.0
    %4851 = vmatprep.subr.mxu0 0.0
    %4852 = vmatpush1.msra.mxu0 0.0
    %4853 = vmatprep.subr.mxu0 0.0
    %4854 = vmatpush1.msra.mxu0 0.0
    %4855 = vmatprep.subr.mxu0 0.0
    %4856 = vmatpush1.msra.mxu0 0.0
    %4857 = vmatprep.subr.mxu0 0.0
    %4858 = vmatpush1.msra.mxu0 0.0
    %4859 = vmatprep.subr.mxu0 0.0
    %4860 = vmatpush1.msra.mxu0 0.0
    %4861 = vmatprep.subr.mxu0 0.0
    %4862 = vmatpush1.msra.mxu0 0.0
    %4863 = vmatprep.subr.mxu0 0.0
    %4864 = vmatpush1.msra.mxu0 0.0
    %4865 = vmatprep.subr.mxu0 0.0
    %4866 = vmatpush1.msra.mxu0 0.0
    %4867 = vmatprep.subr.mxu0 0.0
    %4868 = vmatpush1.msra.mxu0 0.0
    %4869 = vmatprep.subr.mxu0 0.0
    %4870 = vmatpush1.msra.mxu0 0.0
    %4871 = vmatprep.subr.mxu0 0.0
    %4872 = vmatpush1.msra.mxu0 0.0
    %4873 = vmatprep.subr.mxu0 0.0
    %4874 = vmatpush1.msra.mxu0 0.0
    %4875 = vmatprep.subr.mxu0 0.0
    %4876 = vmatpush1.msra.mxu0 0.0
    %4877 = vmatprep.mubr.f32.mxu0 0.0
    %4878 = vmatmul.mubr.f32.gmra.mrb[0].mxu0 %v1832
    %v4879 = vpop.f32.mrb[0].mxu0
    %v4880 = vadd.f32 0.0, %v4879
    %v4881 = vpop.f32.mrb[0].mxu0
    %4882 = vmatprep.mubr.f32.mxu0 0.0
    %4883 = vmatmul.mubr.f32.gmra.mrb[0].mxu0 %v1835
    %v4884 = vpop.f32.mrb[0].mxu0
    %v4885 = vadd.f32 0.0, %v4884
    %v4886 = vpop.f32.mrb[0].mxu0
    %4887 = vdwg.mxu0
    %v4888 = vmul.f32 %v4805, 0.010204081
    %v4889 = vmul.f32 %v4810, 0.010204081
    %v4890 = vmul.f32 %v4880, 0.010204081
    %v4891 = vmul.f32 %v4885, 0.010204081
    %v4892 = vmul.f32 %v4888, %v4888
    %v4893 = vmul.f32 %v4889, %v4889
    %v4894 = vsub.f32 %v4890, %v4892
    %v4895 = vsub.f32 %v4891, %v4893
    %v4896 = vmax.f32 %v4894, 0.0
    %v4897 = vmax.f32 %v4895, 0.0
    %4899 = vset.pattern.permute.xlu0 0
    %4900 = vperm.xlu0 %4899, %v4888
    %v4901 = vpop.permute.xlu0 %4900
    %4904 = vset.pattern.permute.xlu0 0
    %4905 = vperm.xlu0 %4904, %v4889
    %v4906 = vpop.permute.xlu0 %4905
    %v4908 = vsub.f32 %v4726, %v4901
    %v4909 = vsub.f32 %v4727, %v4906
    %v4910 = vadd.f32 %v4896, 1e-05
    %v4911 = vadd.f32 %v4897, 1e-05
    %v4912 = vrsqrt.pop %v4910
    %v4913 = vrsqrt.pop %v4911
    %4915 = vset.pattern.permute.xlu0 0
    %4916 = vperm.xlu0 %4915, %v4912
    %v4917 = vpop.permute.xlu0 %4916
    %4920 = vset.pattern.permute.xlu0 0
    %4921 = vperm.xlu0 %4920, %v4913
    %v4922 = vpop.permute.xlu0 %4921
    %v4924 = vmul.f32 %v4908, %v4917
    %v4925 = vmul.f32 %v4909, %v4922
    %v4926 = vld [vmem:[%s19] sm:$0xff]
    %v4927 = vld [vmem:[%s19 + $0x8] sm:$0xff]
    %4929 = vset.pattern.permute.xlu0 0
    %4930 = vperm.xlu0 %4929, %v4926
    %v4931 = vpop.permute.xlu0 %4930
    %4934 = vset.pattern.permute.xlu0 0
    %4935 = vperm.xlu0 %4934, %v4927
    %v4936 = vpop.permute.xlu0 %4935
    %v4938 = vmul.f32 %v4924, %v4931
    %v4939 = vmul.f32 %v4925, %v4936
    %4940 = vset.pattern.permute.xlu0 1
    %4941 = vperm.xlu0 %4940, %v4926
    %v4942 = vpop.permute.xlu0 %4941
    %4944 = vset.pattern.permute.xlu0 1
    %4945 = vperm.xlu0 %4944, %v4927
    %v4946 = vpop.permute.xlu0 %4945
    %v4948 = vadd.f32 %v4938, %v4942
    %v4949 = vadd.f32 %v4939, %v4946
    %vm4950 = vcmp.ge.f32.partialorder %v4948, 0.0
    %vm4951 = vcmp.ge.f32.partialorder %v4949, 0.0
    %v4952 = vmul.f32 %v4948, 0.2
    %v4953 = vmul.f32 %v4949, 0.2
    %v4954 = vsel %vm4950, %v4948, %v4952
    %v4955 = vsel %vm4951, %v4949, %v4953
    %v4956 = vpack.c.bf16 %v4955, %v4954
    %v4957 = vld [vmem:[#allocation12] sm:$0xff]
    %v4958 = vld [vmem:[#allocation12 + $0x8] sm:$0xff]
    %v4959 = vld [vmem:[#allocation12 + $0x10] sm:$0xff]
    %v4960 = vld [vmem:[#allocation12 + $0x18] sm:$0xff]
    %v4961 = vld [vmem:[#allocation12 + $0x20] sm:$0xff]
    %v4962 = vld [vmem:[#allocation12 + $0x28] sm:$0xff]
    %v4963 = vld [vmem:[#allocation12 + $0x30] sm:$0xff]
    %v4964 = vld [vmem:[#allocation12 + $0x38] sm:$0xff]
    %v4965 = vld [vmem:[#allocation12 + $0x40] sm:$0xff]
    %v4966 = vld [vmem:[#allocation12 + $0x48] sm:$0xff]
    %v4967 = vld [vmem:[#allocation12 + $0x50] sm:$0xff]
    %v4968 = vld [vmem:[#allocation12 + $0x58] sm:$0xff]
    %v4969 = vld [vmem:[#allocation12 + $0x60] sm:$0xff]
    %v4970 = vld [vmem:[#allocation12 + $0x68] sm:$0xff]
    %v4971 = vld [vmem:[#allocation12 + $0x70] sm:$0xff]
    %v4972 = vld [vmem:[#allocation12 + $0x78] sm:$0xff]
    %v4973 = vld [vmem:[#allocation12 + $0x80] sm:$0xff]
    %v4974 = vld [vmem:[#allocation12 + $0x88] sm:$0xff]
    %v4975 = vld [vmem:[#allocation12 + $0x90] sm:$0xff]
    %v4976 = vld [vmem:[#allocation12 + $0x98] sm:$0xff]
    %v4977 = vld [vmem:[#allocation12 + $0xa0] sm:$0xff]
    %v4978 = vld [vmem:[#allocation12 + $0xa8] sm:$0xff]
    %v4979 = vld [vmem:[#allocation12 + $0xb0] sm:$0xff]
    %v4980 = vld [vmem:[#allocation12 + $0xb8] sm:$0xff]
    %v4981 = vld [vmem:[#allocation12 + $0xc0] sm:$0xff]
    %v4982 = vld [vmem:[#allocation12 + $0xc8] sm:$0xff]
    %v4983 = vld [vmem:[#allocation12 + $0xd0] sm:$0xff]
    %v4984 = vld [vmem:[#allocation12 + $0xd8] sm:$0xff]
    %v4985 = vld [vmem:[#allocation12 + $0xe0] sm:$0xff]
    %v4986 = vld [vmem:[#allocation12 + $0xe8] sm:$0xff]
    %v4987 = vld [vmem:[#allocation12 + $0xf0] sm:$0xff]
    %v4988 = vld [vmem:[#allocation12 + $0xf8] sm:$0xff]
    %v4989 = vld [vmem:[#allocation12 + $0x100] sm:$0xff]
    %v4990 = vld [vmem:[#allocation12 + $0x108] sm:$0xff]
    %v4991 = vld [vmem:[#allocation12 + $0x110] sm:$0xff]
    %v4992 = vld [vmem:[#allocation12 + $0x118] sm:$0xff]
    %v4993 = vld [vmem:[#allocation12 + $0x120] sm:$0xff]
    %v4994 = vld [vmem:[#allocation12 + $0x128] sm:$0xff]
    %v4995 = vld [vmem:[#allocation12 + $0x130] sm:$0xff]
    %v4996 = vld [vmem:[#allocation12 + $0x138] sm:$0xff]
    %v4997 = vld [vmem:[#allocation12 + $0x140] sm:$0xff]
    %v4998 = vld [vmem:[#allocation12 + $0x148] sm:$0xff]
    %v4999 = vld [vmem:[#allocation12 + $0x150] sm:$0xff]
    %v5000 = vld [vmem:[#allocation12 + $0x158] sm:$0xff]
    %v5001 = vld [vmem:[#allocation12 + $0x160] sm:$0xff]
    %v5002 = vld [vmem:[#allocation12 + $0x168] sm:$0xff]
    %v5003 = vld [vmem:[#allocation12 + $0x170] sm:$0xff]
    %v5004 = vld [vmem:[#allocation12 + $0x178] sm:$0xff]
    %v5005 = vld [vmem:[#allocation12 + $0x180] sm:$0xff]
    %v5006 = vld [vmem:[#allocation12 + $0x188] sm:$0xff]
    %v5007 = vld [vmem:[#allocation12 + $0x190] sm:$0xff]
    %v5008 = vld [vmem:[#allocation12 + $0x198] sm:$0xff]
    %v5009 = vld [vmem:[#allocation12 + $0x1a0] sm:$0xff]
    %v5010 = vld [vmem:[#allocation12 + $0x1a8] sm:$0xff]
    %v5011 = vld [vmem:[#allocation12 + $0x1b0] sm:$0xff]
    %v5012 = vld [vmem:[#allocation12 + $0x1b8] sm:$0xff]
    %v5013 = vld [vmem:[#allocation12 + $0x1c0] sm:$0xff]
    %v5014 = vld [vmem:[#allocation12 + $0x1c8] sm:$0xff]
    %v5015 = vld [vmem:[#allocation12 + $0x1d0] sm:$0xff]
    %v5016 = vld [vmem:[#allocation12 + $0x1d8] sm:$0xff]
    %v5017 = vld [vmem:[#allocation12 + $0x1e0] sm:$0xff]
    %v5018 = vld [vmem:[#allocation12 + $0x1e8] sm:$0xff]
    %v5019 = vld [vmem:[#allocation12 + $0x1f0] sm:$0xff]
    %v5020 = vld [vmem:[#allocation12 + $0x1f8] sm:$0xff]
    %v5021 = vld [vmem:[#allocation12 + $0x200] sm:$0xff]
    %v5022 = vld [vmem:[#allocation12 + $0x208] sm:$0xff]
    %v5023 = vld [vmem:[#allocation12 + $0x210] sm:$0xff]
    %v5024 = vld [vmem:[#allocation12 + $0x218] sm:$0xff]
    %v5025 = vld [vmem:[#allocation12 + $0x220] sm:$0xff]
    %v5026 = vld [vmem:[#allocation12 + $0x228] sm:$0xff]
    %v5027 = vld [vmem:[#allocation12 + $0x230] sm:$0xff]
    %v5028 = vld [vmem:[#allocation12 + $0x238] sm:$0xff]
    %v5029 = vld [vmem:[#allocation12 + $0x240] sm:$0xff]
    %v5030 = vld [vmem:[#allocation12 + $0x248] sm:$0xff]
    %v5031 = vld [vmem:[#allocation12 + $0x250] sm:$0xff]
    %v5032 = vld [vmem:[#allocation12 + $0x258] sm:$0xff]
    %v5033 = vld [vmem:[#allocation12 + $0x260] sm:$0xff]
    %v5034 = vld [vmem:[#allocation12 + $0x268] sm:$0xff]
    %v5035 = vld [vmem:[#allocation12 + $0x270] sm:$0xff]
    %v5036 = vld [vmem:[#allocation12 + $0x278] sm:$0xff]
    %v5037 = vld [vmem:[#allocation12 + $0x280] sm:$0xff]
    %v5038 = vld [vmem:[#allocation12 + $0x288] sm:$0xff]
    %v5039 = vld [vmem:[#allocation12 + $0x290] sm:$0xff]
    %v5040 = vld [vmem:[#allocation12 + $0x298] sm:$0xff]
    %v5041 = vld [vmem:[#allocation12 + $0x2a0] sm:$0xff]
    %v5042 = vld [vmem:[#allocation12 + $0x2a8] sm:$0xff]
    %v5043 = vld [vmem:[#allocation12 + $0x2b0] sm:$0xff]
    %v5044 = vld [vmem:[#allocation12 + $0x2b8] sm:$0xff]
    %v5045 = vld [vmem:[#allocation12 + $0x2c0] sm:$0xff]
    %v5046 = vld [vmem:[#allocation12 + $0x2c8] sm:$0xff]
    %v5047 = vld [vmem:[#allocation12 + $0x2d0] sm:$0xff]
    %v5048 = vld [vmem:[#allocation12 + $0x2d8] sm:$0xff]
    %v5049 = vld [vmem:[#allocation12 + $0x2e0] sm:$0xff]
    %v5050 = vld [vmem:[#allocation12 + $0x2e8] sm:$0xff]
    %v5051 = vld [vmem:[#allocation12 + $0x2f0] sm:$0xff]
    %v5052 = vld [vmem:[#allocation12 + $0x2f8] sm:$0xff]
    %v5053 = vld [vmem:[#allocation12 + $0x300] sm:$0xff]
    %v5054 = vld [vmem:[#allocation12 + $0x308] sm:$0xff]
    %v5055 = vld [vmem:[#allocation12 + $0x310] sm:$0xff]
    %v5056 = vld [vmem:[#allocation12 + $0x318] sm:$0xff]
    %v5057 = vld [vmem:[#allocation12 + $0x320] sm:$0xff]
    %v5058 = vld [vmem:[#allocation12 + $0x328] sm:$0xff]
    %v5059 = vld [vmem:[#allocation12 + $0x330] sm:$0xff]
    %v5060 = vld [vmem:[#allocation12 + $0x338] sm:$0xff]
    %v5061 = vld [vmem:[#allocation12 + $0x340] sm:$0xff]
    %v5062 = vld [vmem:[#allocation12 + $0x348] sm:$0xff]
    %v5063 = vld [vmem:[#allocation12 + $0x350] sm:$0xff]
    %v5064 = vld [vmem:[#allocation12 + $0x358] sm:$0xff]
    %v5065 = vld [vmem:[#allocation12 + $0x360] sm:$0xff]
    %v5066 = vld [vmem:[#allocation12 + $0x368] sm:$0xff]
    %v5067 = vld [vmem:[#allocation12 + $0x370] sm:$0xff]
    %v5068 = vld [vmem:[#allocation12 + $0x378] sm:$0xff]
    %v5069 = vld [vmem:[#allocation12 + $0x380] sm:$0xff]
    %v5070 = vld [vmem:[#allocation12 + $0x388] sm:$0xff]
    %v5071 = vld [vmem:[#allocation12 + $0x390] sm:$0xff]
    %v5072 = vld [vmem:[#allocation12 + $0x398] sm:$0xff]
    %v5073 = vld [vmem:[#allocation12 + $0x3a0] sm:$0xff]
    %v5074 = vld [vmem:[#allocation12 + $0x3a8] sm:$0xff]
    %v5075 = vld [vmem:[#allocation12 + $0x3b0] sm:$0xff]
    %v5076 = vld [vmem:[#allocation12 + $0x3b8] sm:$0xff]
    %v5077 = vld [vmem:[#allocation12 + $0x3c0] sm:$0xff]
    %v5078 = vld [vmem:[#allocation12 + $0x3c8] sm:$0xff]
    %v5079 = vld [vmem:[#allocation12 + $0x3d0] sm:$0xff]
    %v5080 = vld [vmem:[#allocation12 + $0x3d8] sm:$0xff]
    %v5081 = vld [vmem:[#allocation12 + $0x3e0] sm:$0xff]
    %v5082 = vld [vmem:[#allocation12 + $0x3e8] sm:$0xff]
    %v5083 = vld [vmem:[#allocation12 + $0x3f0] sm:$0xff]
    %v5084 = vld [vmem:[#allocation12 + $0x3f8] sm:$0xff]
    %v5085 = vld [vmem:[#allocation12 + $0x400] sm:$0xff]
    %v5086 = vld [vmem:[#allocation12 + $0x408] sm:$0xff]
    %v5087 = vld [vmem:[#allocation12 + $0x410] sm:$0xff]
    %v5088 = vld [vmem:[#allocation12 + $0x418] sm:$0xff]
    %v5089 = vld [vmem:[#allocation12 + $0x420] sm:$0xff]
    %v5090 = vld [vmem:[#allocation12 + $0x428] sm:$0xff]
    %v5091 = vld [vmem:[#allocation12 + $0x430] sm:$0xff]
    %v5092 = vld [vmem:[#allocation12 + $0x438] sm:$0xff]
    %v5093 = vld [vmem:[#allocation12 + $0x440] sm:$0xff]
    %v5094 = vld [vmem:[#allocation12 + $0x448] sm:$0xff]
    %v5095 = vld [vmem:[#allocation12 + $0x450] sm:$0xff]
    %v5096 = vld [vmem:[#allocation12 + $0x458] sm:$0xff]
    %v5097 = vld [vmem:[#allocation12 + $0x460] sm:$0xff]
    %v5098 = vld [vmem:[#allocation12 + $0x468] sm:$0xff]
    %v5099 = vld [vmem:[#allocation12 + $0x470] sm:$0xff]
    %v5100 = vld [vmem:[#allocation12 + $0x478] sm:$0xff]
    %v5245 = vunpack.c.l.b16 %v4957
    %v5246 = vunpack.c.h.b16 %v4957
    %v5247 = vunpack.c.l.b16 %v4958
    %v5248 = vunpack.c.h.b16 %v4958
    %v5249 = vunpack.c.l.b16 %v4959
    %v5250 = vunpack.c.h.b16 %v4959
    %v5251 = vunpack.c.l.b16 %v4960
    %v5252 = vunpack.c.h.b16 %v4960
    %v5253 = vunpack.c.l.b16 %v4961
    %v5254 = vunpack.c.h.b16 %v4961
    %v5255 = vunpack.c.l.b16 %v4962
    %v5256 = vunpack.c.h.b16 %v4962
    %v5257 = vunpack.c.l.b16 %v4963
    %v5258 = vunpack.c.h.b16 %v4963
    %v5259 = vunpack.c.l.b16 %v4964
    %v5260 = vunpack.c.h.b16 %v4964
    %v5261 = vunpack.c.l.b16 %v4965
    %v5262 = vunpack.c.h.b16 %v4965
    %v5263 = vunpack.c.l.b16 %v4966
    %v5264 = vunpack.c.h.b16 %v4966
    %v5265 = vunpack.c.l.b16 %v4967
    %v5266 = vunpack.c.h.b16 %v4967
    %v5267 = vunpack.c.l.b16 %v4968
    %v5268 = vunpack.c.h.b16 %v4968
    %v5269 = vunpack.c.l.b16 %v4969
    %v5270 = vunpack.c.h.b16 %v4969
    %v5271 = vunpack.c.l.b16 %v4970
    %v5272 = vunpack.c.h.b16 %v4970
    %v5273 = vunpack.c.l.b16 %v4971
    %v5274 = vunpack.c.h.b16 %v4971
    %v5275 = vunpack.c.l.b16 %v4972
    %v5276 = vunpack.c.h.b16 %v4972
    %v5277 = vunpack.c.l.b16 %v4973
    %v5278 = vunpack.c.h.b16 %v4973
    %v5279 = vunpack.c.l.b16 %v4974
    %v5280 = vunpack.c.h.b16 %v4974
    %v5281 = vunpack.c.l.b16 %v4975
    %v5282 = vunpack.c.h.b16 %v4975
    %v5283 = vunpack.c.l.b16 %v4976
    %v5284 = vunpack.c.h.b16 %v4976
    %v5285 = vunpack.c.l.b16 %v4977
    %v5286 = vunpack.c.h.b16 %v4977
    %v5287 = vunpack.c.l.b16 %v4978
    %v5288 = vunpack.c.h.b16 %v4978
    %v5289 = vunpack.c.l.b16 %v4979
    %v5290 = vunpack.c.h.b16 %v4979
    %v5291 = vunpack.c.l.b16 %v4980
    %v5292 = vunpack.c.h.b16 %v4980
    %v5293 = vunpack.c.l.b16 %v4981
    %v5294 = vunpack.c.h.b16 %v4981
    %v5295 = vunpack.c.l.b16 %v4982
    %v5296 = vunpack.c.h.b16 %v4982
    %v5297 = vunpack.c.l.b16 %v4983
    %v5298 = vunpack.c.h.b16 %v4983
    %v5299 = vunpack.c.l.b16 %v4984
    %v5300 = vunpack.c.h.b16 %v4984
    %v5301 = vunpack.c.l.b16 %v4985
    %v5302 = vunpack.c.h.b16 %v4985
    %v5303 = vunpack.c.l.b16 %v4986
    %v5304 = vunpack.c.h.b16 %v4986
    %v5305 = vunpack.c.l.b16 %v4987
    %v5306 = vunpack.c.h.b16 %v4987
    %v5307 = vunpack.c.l.b16 %v4988
    %v5308 = vunpack.c.h.b16 %v4988
    %v5309 = vunpack.c.l.b16 %v4989
    %v5310 = vunpack.c.h.b16 %v4989
    %v5311 = vunpack.c.l.b16 %v4990
    %v5312 = vunpack.c.h.b16 %v4990
    %v5313 = vunpack.c.l.b16 %v4991
    %v5314 = vunpack.c.h.b16 %v4991
    %v5315 = vunpack.c.l.b16 %v4992
    %v5316 = vunpack.c.h.b16 %v4992
    %v5317 = vunpack.c.l.b16 %v4993
    %v5318 = vunpack.c.h.b16 %v4993
    %v5319 = vunpack.c.l.b16 %v4994
    %v5320 = vunpack.c.h.b16 %v4994
    %v5321 = vunpack.c.l.b16 %v4995
    %v5322 = vunpack.c.h.b16 %v4995
    %v5323 = vunpack.c.l.b16 %v4996
    %v5324 = vunpack.c.h.b16 %v4996
    %v5325 = vunpack.c.l.b16 %v4997
    %v5326 = vunpack.c.h.b16 %v4997
    %v5327 = vunpack.c.l.b16 %v4998
    %v5328 = vunpack.c.h.b16 %v4998
    %v5329 = vunpack.c.l.b16 %v4999
    %v5330 = vunpack.c.h.b16 %v4999
    %v5331 = vunpack.c.l.b16 %v5000
    %v5332 = vunpack.c.h.b16 %v5000
    %v5333 = vunpack.c.l.b16 %v5001
    %v5334 = vunpack.c.h.b16 %v5001
    %v5335 = vunpack.c.l.b16 %v5002
    %v5336 = vunpack.c.h.b16 %v5002
    %v5337 = vunpack.c.l.b16 %v5003
    %v5338 = vunpack.c.h.b16 %v5003
    %v5339 = vunpack.c.l.b16 %v5004
    %v5340 = vunpack.c.h.b16 %v5004
    %v5341 = vunpack.c.l.b16 %v5005
    %v5342 = vunpack.c.h.b16 %v5005
    %v5343 = vunpack.c.l.b16 %v5006
    %v5344 = vunpack.c.h.b16 %v5006
    %v5345 = vunpack.c.l.b16 %v5007
    %v5346 = vunpack.c.h.b16 %v5007
    %v5347 = vunpack.c.l.b16 %v5008
    %v5348 = vunpack.c.h.b16 %v5008
    %v5349 = vunpack.c.l.b16 %v5009
    %v5350 = vunpack.c.h.b16 %v5009
    %v5351 = vunpack.c.l.b16 %v5010
    %v5352 = vunpack.c.h.b16 %v5010
    %v5353 = vunpack.c.l.b16 %v5011
    %v5354 = vunpack.c.h.b16 %v5011
    %v5355 = vunpack.c.l.b16 %v5012
    %v5356 = vunpack.c.h.b16 %v5012
    %v5357 = vunpack.c.l.b16 %v5013
    %v5358 = vunpack.c.h.b16 %v5013
    %v5359 = vunpack.c.l.b16 %v5014
    %v5360 = vunpack.c.h.b16 %v5014
    %v5361 = vunpack.c.l.b16 %v5015
    %v5362 = vunpack.c.h.b16 %v5015
    %v5363 = vunpack.c.l.b16 %v5016
    %v5364 = vunpack.c.h.b16 %v5016
    %v5365 = vunpack.c.l.b16 %v5017
    %v5366 = vunpack.c.h.b16 %v5017
    %v5367 = vunpack.c.l.b16 %v5018
    %v5368 = vunpack.c.h.b16 %v5018
    %v5369 = vunpack.c.l.b16 %v5019
    %v5370 = vunpack.c.h.b16 %v5019
    %v5371 = vunpack.c.l.b16 %v5020
    %v5372 = vunpack.c.h.b16 %v5020
    %v5373 = vunpack.c.l.b16 %v5021
    %v5374 = vunpack.c.h.b16 %v5021
    %v5375 = vunpack.c.l.b16 %v5022
    %v5376 = vunpack.c.h.b16 %v5022
    %v5377 = vunpack.c.l.b16 %v5023
    %v5378 = vunpack.c.h.b16 %v5023
    %v5379 = vunpack.c.l.b16 %v5024
    %v5380 = vunpack.c.h.b16 %v5024
    %v5381 = vunpack.c.l.b16 %v5025
    %v5382 = vunpack.c.h.b16 %v5025
    %v5383 = vunpack.c.l.b16 %v5026
    %v5384 = vunpack.c.h.b16 %v5026
    %v5385 = vunpack.c.l.b16 %v5027
    %v5386 = vunpack.c.h.b16 %v5027
    %v5387 = vunpack.c.l.b16 %v5028
    %v5388 = vunpack.c.h.b16 %v5028
    %v5389 = vunpack.c.l.b16 %v5029
    %v5390 = vunpack.c.h.b16 %v5029
    %v5391 = vunpack.c.l.b16 %v5030
    %v5392 = vunpack.c.h.b16 %v5030
    %v5393 = vunpack.c.l.b16 %v5031
    %v5394 = vunpack.c.h.b16 %v5031
    %v5395 = vunpack.c.l.b16 %v5032
    %v5396 = vunpack.c.h.b16 %v5032
    %v5397 = vunpack.c.l.b16 %v5033
    %v5398 = vunpack.c.h.b16 %v5033
    %v5399 = vunpack.c.l.b16 %v5034
    %v5400 = vunpack.c.h.b16 %v5034
    %v5401 = vunpack.c.l.b16 %v5035
    %v5402 = vunpack.c.h.b16 %v5035
    %v5403 = vunpack.c.l.b16 %v5036
    %v5404 = vunpack.c.h.b16 %v5036
    %v5405 = vunpack.c.l.b16 %v5037
    %v5406 = vunpack.c.h.b16 %v5037
    %v5407 = vunpack.c.l.b16 %v5038
    %v5408 = vunpack.c.h.b16 %v5038
    %v5409 = vunpack.c.l.b16 %v5039
    %v5410 = vunpack.c.h.b16 %v5039
    %v5411 = vunpack.c.l.b16 %v5040
    %v5412 = vunpack.c.h.b16 %v5040
    %v5413 = vunpack.c.l.b16 %v5041
    %v5414 = vunpack.c.h.b16 %v5041
    %v5415 = vunpack.c.l.b16 %v5042
    %v5416 = vunpack.c.h.b16 %v5042
    %v5417 = vunpack.c.l.b16 %v5043
    %v5418 = vunpack.c.h.b16 %v5043
    %v5419 = vunpack.c.l.b16 %v5044
    %v5420 = vunpack.c.h.b16 %v5044
    %v5421 = vunpack.c.l.b16 %v5045
    %v5422 = vunpack.c.h.b16 %v5045
    %v5423 = vunpack.c.l.b16 %v5046
    %v5424 = vunpack.c.h.b16 %v5046
    %v5425 = vunpack.c.l.b16 %v5047
    %v5426 = vunpack.c.h.b16 %v5047
    %v5427 = vunpack.c.l.b16 %v5048
    %v5428 = vunpack.c.h.b16 %v5048
    %v5429 = vunpack.c.l.b16 %v5049
    %v5430 = vunpack.c.h.b16 %v5049
    %v5431 = vunpack.c.l.b16 %v5050
    %v5432 = vunpack.c.h.b16 %v5050
    %v5433 = vunpack.c.l.b16 %v5051
    %v5434 = vunpack.c.h.b16 %v5051
    %v5435 = vunpack.c.l.b16 %v5052
    %v5436 = vunpack.c.h.b16 %v5052
    %v5437 = vunpack.c.l.b16 %v5053
    %v5438 = vunpack.c.h.b16 %v5053
    %v5439 = vunpack.c.l.b16 %v5054
    %v5440 = vunpack.c.h.b16 %v5054
    %v5441 = vunpack.c.l.b16 %v5055
    %v5442 = vunpack.c.h.b16 %v5055
    %v5443 = vunpack.c.l.b16 %v5056
    %v5444 = vunpack.c.h.b16 %v5056
    %v5445 = vunpack.c.l.b16 %v5057
    %v5446 = vunpack.c.h.b16 %v5057
    %v5447 = vunpack.c.l.b16 %v5058
    %v5448 = vunpack.c.h.b16 %v5058
    %v5449 = vunpack.c.l.b16 %v5059
    %v5450 = vunpack.c.h.b16 %v5059
    %v5451 = vunpack.c.l.b16 %v5060
    %v5452 = vunpack.c.h.b16 %v5060
    %v5453 = vunpack.c.l.b16 %v5061
    %v5454 = vunpack.c.h.b16 %v5061
    %v5455 = vunpack.c.l.b16 %v5062
    %v5456 = vunpack.c.h.b16 %v5062
    %v5457 = vunpack.c.l.b16 %v5063
    %v5458 = vunpack.c.h.b16 %v5063
    %v5459 = vunpack.c.l.b16 %v5064
    %v5460 = vunpack.c.h.b16 %v5064
    %v5461 = vunpack.c.l.b16 %v5065
    %v5462 = vunpack.c.h.b16 %v5065
    %v5463 = vunpack.c.l.b16 %v5066
    %v5464 = vunpack.c.h.b16 %v5066
    %v5465 = vunpack.c.l.b16 %v5067
    %v5466 = vunpack.c.h.b16 %v5067
    %v5467 = vunpack.c.l.b16 %v5068
    %v5468 = vunpack.c.h.b16 %v5068
    %v5469 = vunpack.c.l.b16 %v5069
    %v5470 = vunpack.c.h.b16 %v5069
    %v5471 = vunpack.c.l.b16 %v5070
    %v5472 = vunpack.c.h.b16 %v5070
    %v5473 = vunpack.c.l.b16 %v5071
    %v5474 = vunpack.c.h.b16 %v5071
    %v5475 = vunpack.c.l.b16 %v5072
    %v5476 = vunpack.c.h.b16 %v5072
    %v5477 = vunpack.c.l.b16 %v5073
    %v5478 = vunpack.c.h.b16 %v5073
    %v5479 = vunpack.c.l.b16 %v5074
    %v5480 = vunpack.c.h.b16 %v5074
    %v5481 = vunpack.c.l.b16 %v5075
    %v5482 = vunpack.c.h.b16 %v5075
    %v5483 = vunpack.c.l.b16 %v5076
    %v5484 = vunpack.c.h.b16 %v5076
    %v5485 = vunpack.c.l.b16 %v5077
    %v5486 = vunpack.c.h.b16 %v5077
    %v5487 = vunpack.c.l.b16 %v5078
    %v5488 = vunpack.c.h.b16 %v5078
    %v5489 = vunpack.c.l.b16 %v5079
    %v5490 = vunpack.c.h.b16 %v5079
    %v5491 = vunpack.c.l.b16 %v5080
    %v5492 = vunpack.c.h.b16 %v5080
    %v5493 = vunpack.c.l.b16 %v5081
    %v5494 = vunpack.c.h.b16 %v5081
    %v5495 = vunpack.c.l.b16 %v5082
    %v5496 = vunpack.c.h.b16 %v5082
    %v5497 = vunpack.c.l.b16 %v5083
    %v5498 = vunpack.c.h.b16 %v5083
    %v5499 = vunpack.c.l.b16 %v5084
    %v5500 = vunpack.c.h.b16 %v5084
    %v5501 = vunpack.c.l.b16 %v5085
    %v5502 = vunpack.c.h.b16 %v5085
    %v5503 = vunpack.c.l.b16 %v5086
    %v5504 = vunpack.c.h.b16 %v5086
    %v5505 = vunpack.c.l.b16 %v5087
    %v5506 = vunpack.c.h.b16 %v5087
    %v5507 = vunpack.c.l.b16 %v5088
    %v5508 = vunpack.c.h.b16 %v5088
    %v5509 = vunpack.c.l.b16 %v5089
    %v5510 = vunpack.c.h.b16 %v5089
    %v5511 = vunpack.c.l.b16 %v5090
    %v5512 = vunpack.c.h.b16 %v5090
    %v5513 = vunpack.c.l.b16 %v5091
    %v5514 = vunpack.c.h.b16 %v5091
    %v5515 = vunpack.c.l.b16 %v5092
    %v5516 = vunpack.c.h.b16 %v5092
    %v5517 = vunpack.c.l.b16 %v5093
    %v5518 = vunpack.c.h.b16 %v5093
    %v5519 = vunpack.c.l.b16 %v5094
    %v5520 = vunpack.c.h.b16 %v5094
    %v5521 = vunpack.c.l.b16 %v5095
    %v5522 = vunpack.c.h.b16 %v5095
    %v5523 = vunpack.c.l.b16 %v5096
    %v5524 = vunpack.c.h.b16 %v5096
    %v5525 = vunpack.c.l.b16 %v5097
    %v5526 = vunpack.c.h.b16 %v5097
    %v5527 = vunpack.c.l.b16 %v5098
    %v5528 = vunpack.c.h.b16 %v5098
    %v5529 = vunpack.c.l.b16 %v5099
    %v5530 = vunpack.c.h.b16 %v5099
    %v5531 = vunpack.c.l.b16 %v5100
    %v5532 = vunpack.c.h.b16 %v5100
    %v5533 = vpack.c.b16 %v5263, %v5245
    %v5534 = vpack.c.b16 %v5264, %v5246
    %v5535 = vpack.c.b16 %v5265, %v5247
    %v5536 = vpack.c.b16 %v5266, %v5248
    %v5537 = vpack.c.b16 %v5267, %v5249
    %v5538 = vpack.c.b16 %v5268, %v5250
    %v5539 = vpack.c.b16 %v5269, %v5251
    %v5540 = vpack.c.b16 %v5270, %v5252
    %v5541 = vpack.c.b16 %v5271, %v5253
    %v5542 = vpack.c.b16 %v5272, %v5254
    %v5543 = vpack.c.b16 %v5273, %v5255
    %v5544 = vpack.c.b16 %v5274, %v5256
    %v5545 = vpack.c.b16 %v5275, %v5257
    %v5546 = vpack.c.b16 %v5276, %v5258
    %v5547 = vpack.c.b16 %v5277, %v5259
    %v5548 = vpack.c.b16 %v5278, %v5260
    %v5549 = vpack.c.b16 %v5279, %v5261
    %v5550 = vpack.c.b16 %v5280, %v5262
    %v5551 = vpack.c.b16 %v5299, %v5281
    %v5552 = vpack.c.b16 %v5300, %v5282
    %v5553 = vpack.c.b16 %v5301, %v5283
    %v5554 = vpack.c.b16 %v5302, %v5284
    %v5555 = vpack.c.b16 %v5303, %v5285
    %v5556 = vpack.c.b16 %v5304, %v5286
    %v5557 = vpack.c.b16 %v5305, %v5287
    %v5558 = vpack.c.b16 %v5306, %v5288
    %v5559 = vpack.c.b16 %v5307, %v5289
    %v5560 = vpack.c.b16 %v5308, %v5290
    %v5561 = vpack.c.b16 %v5309, %v5291
    %v5562 = vpack.c.b16 %v5310, %v5292
    %v5563 = vpack.c.b16 %v5311, %v5293
    %v5564 = vpack.c.b16 %v5312, %v5294
    %v5565 = vpack.c.b16 %v5313, %v5295
    %v5566 = vpack.c.b16 %v5314, %v5296
    %v5567 = vpack.c.b16 %v5315, %v5297
    %v5568 = vpack.c.b16 %v5316, %v5298
    %v5569 = vpack.c.b16 %v5335, %v5317
    %v5570 = vpack.c.b16 %v5336, %v5318
    %v5571 = vpack.c.b16 %v5337, %v5319
    %v5572 = vpack.c.b16 %v5338, %v5320
    %v5573 = vpack.c.b16 %v5339, %v5321
    %v5574 = vpack.c.b16 %v5340, %v5322
    %v5575 = vpack.c.b16 %v5341, %v5323
    %v5576 = vpack.c.b16 %v5342, %v5324
    %v5577 = vpack.c.b16 %v5343, %v5325
    %v5578 = vpack.c.b16 %v5344, %v5326
    %v5579 = vpack.c.b16 %v5345, %v5327
    %v5580 = vpack.c.b16 %v5346, %v5328
    %v5581 = vpack.c.b16 %v5347, %v5329
    %v5582 = vpack.c.b16 %v5348, %v5330
    %v5583 = vpack.c.b16 %v5349, %v5331
    %v5584 = vpack.c.b16 %v5350, %v5332
    %v5585 = vpack.c.b16 %v5351, %v5333
    %v5586 = vpack.c.b16 %v5352, %v5334
    %v5587 = vpack.c.b16 %v5371, %v5353
    %v5588 = vpack.c.b16 %v5372, %v5354
    %v5589 = vpack.c.b16 %v5373, %v5355
    %v5590 = vpack.c.b16 %v5374, %v5356
    %v5591 = vpack.c.b16 %v5375, %v5357
    %v5592 = vpack.c.b16 %v5376, %v5358
    %v5593 = vpack.c.b16 %v5377, %v5359
    %v5594 = vpack.c.b16 %v5378, %v5360
    %v5595 = vpack.c.b16 %v5379, %v5361
    %v5596 = vpack.c.b16 %v5380, %v5362
    %v5597 = vpack.c.b16 %v5381, %v5363
    %v5598 = vpack.c.b16 %v5382, %v5364
    %v5599 = vpack.c.b16 %v5383, %v5365
    %v5600 = vpack.c.b16 %v5384, %v5366
    %v5601 = vpack.c.b16 %v5385, %v5367
    %v5602 = vpack.c.b16 %v5386, %v5368
    %v5603 = vpack.c.b16 %v5387, %v5369
    %v5604 = vpack.c.b16 %v5388, %v5370
    %v5605 = vpack.c.b16 %v5407, %v5389
    %v5606 = vpack.c.b16 %v5408, %v5390
    %v5607 = vpack.c.b16 %v5409, %v5391
    %v5608 = vpack.c.b16 %v5410, %v5392
    %v5609 = vpack.c.b16 %v5411, %v5393
    %v5610 = vpack.c.b16 %v5412, %v5394
    %v5611 = vpack.c.b16 %v5413, %v5395
    %v5612 = vpack.c.b16 %v5414, %v5396
    %v5613 = vpack.c.b16 %v5415, %v5397
    %v5614 = vpack.c.b16 %v5416, %v5398
    %v5615 = vpack.c.b16 %v5417, %v5399
    %v5616 = vpack.c.b16 %v5418, %v5400
    %v5617 = vpack.c.b16 %v5419, %v5401
    %v5618 = vpack.c.b16 %v5420, %v5402
    %v5619 = vpack.c.b16 %v5421, %v5403
    %v5620 = vpack.c.b16 %v5422, %v5404
    %v5621 = vpack.c.b16 %v5423, %v5405
    %v5622 = vpack.c.b16 %v5424, %v5406
    %v5623 = vpack.c.b16 %v5443, %v5425
    %v5624 = vpack.c.b16 %v5444, %v5426
    %v5625 = vpack.c.b16 %v5445, %v5427
    %v5626 = vpack.c.b16 %v5446, %v5428
    %v5627 = vpack.c.b16 %v5447, %v5429
    %v5628 = vpack.c.b16 %v5448, %v5430
    %v5629 = vpack.c.b16 %v5449, %v5431
    %v5630 = vpack.c.b16 %v5450, %v5432
    %v5631 = vpack.c.b16 %v5451, %v5433
    %v5632 = vpack.c.b16 %v5452, %v5434
    %v5633 = vpack.c.b16 %v5453, %v5435
    %v5634 = vpack.c.b16 %v5454, %v5436
    %v5635 = vpack.c.b16 %v5455, %v5437
    %v5636 = vpack.c.b16 %v5456, %v5438
    %v5637 = vpack.c.b16 %v5457, %v5439
    %v5638 = vpack.c.b16 %v5458, %v5440
    %v5639 = vpack.c.b16 %v5459, %v5441
    %v5640 = vpack.c.b16 %v5460, %v5442
    %v5641 = vpack.c.b16 %v5479, %v5461
    %v5642 = vpack.c.b16 %v5480, %v5462
    %v5643 = vpack.c.b16 %v5481, %v5463
    %v5644 = vpack.c.b16 %v5482, %v5464
    %v5645 = vpack.c.b16 %v5483, %v5465
    %v5646 = vpack.c.b16 %v5484, %v5466
    %v5647 = vpack.c.b16 %v5485, %v5467
    %v5648 = vpack.c.b16 %v5486, %v5468
    %v5649 = vpack.c.b16 %v5487, %v5469
    %v5650 = vpack.c.b16 %v5488, %v5470
    %v5651 = vpack.c.b16 %v5489, %v5471
    %v5652 = vpack.c.b16 %v5490, %v5472
    %v5653 = vpack.c.b16 %v5491, %v5473
    %v5654 = vpack.c.b16 %v5492, %v5474
    %v5655 = vpack.c.b16 %v5493, %v5475
    %v5656 = vpack.c.b16 %v5494, %v5476
    %v5657 = vpack.c.b16 %v5495, %v5477
    %v5658 = vpack.c.b16 %v5496, %v5478
    %v5659 = vpack.c.b16 %v5515, %v5497
    %v5660 = vpack.c.b16 %v5516, %v5498
    %v5661 = vpack.c.b16 %v5517, %v5499
    %v5662 = vpack.c.b16 %v5518, %v5500
    %v5663 = vpack.c.b16 %v5519, %v5501
    %v5664 = vpack.c.b16 %v5520, %v5502
    %v5665 = vpack.c.b16 %v5521, %v5503
    %v5666 = vpack.c.b16 %v5522, %v5504
    %v5667 = vpack.c.b16 %v5523, %v5505
    %v5668 = vpack.c.b16 %v5524, %v5506
    %v5669 = vpack.c.b16 %v5525, %v5507
    %v5670 = vpack.c.b16 %v5526, %v5508
    %v5671 = vpack.c.b16 %v5527, %v5509
    %v5672 = vpack.c.b16 %v5528, %v5510
    %v5673 = vpack.c.b16 %v5529, %v5511
    %v5674 = vpack.c.b16 %v5530, %v5512
    %v5675 = vpack.c.b16 %v5531, %v5513
    %v5676 = vpack.c.b16 %v5532, %v5514
    %5821 = vmatprep.subr.bf16.mxu0 %v5534
    %5822 = vmatpush1.bf16.msra.mxu0 %v5533
    %5823 = vmatprep.subr.bf16.mxu0 %v5552
    %5824 = vmatpush1.bf16.msra.mxu0 %v5551
    %5825 = vmatprep.subr.bf16.mxu0 %v5570
    %5826 = vmatpush1.bf16.msra.mxu0 %v5569
    %5827 = vmatprep.subr.bf16.mxu0 %v5588
    %5828 = vmatpush1.bf16.msra.mxu0 %v5587
    %5829 = vmatprep.subr.bf16.mxu0 %v5606
    %5830 = vmatpush1.bf16.msra.mxu0 %v5605
    %5831 = vmatprep.subr.bf16.mxu0 %v5624
    %5832 = vmatpush1.bf16.msra.mxu0 %v5623
    %5833 = vmatprep.subr.bf16.mxu0 %v5642
    %5834 = vmatpush1.bf16.msra.mxu0 %v5641
    %5835 = vmatprep.subr.bf16.mxu0 %v5660
    %5836 = vmatpush1.bf16.msra.mxu0 %v5659
    %5837 = vmatprep.subr.bf16.mxu0 0
    %5838 = vmatpush1.bf16.msra.mxu0 0
    %5839 = vmatprep.subr.bf16.mxu0 0
    %5840 = vmatpush1.bf16.msra.mxu0 0
    %5841 = vmatprep.subr.bf16.mxu0 0
    %5842 = vmatpush1.bf16.msra.mxu0 0
    %5843 = vmatprep.subr.bf16.mxu0 0
    %5844 = vmatpush1.bf16.msra.mxu0 0
    %5845 = vmatprep.subr.bf16.mxu0 0
    %5846 = vmatpush1.bf16.msra.mxu0 0
    %5847 = vmatprep.subr.bf16.mxu0 0
    %5848 = vmatpush1.bf16.msra.mxu0 0
    %5849 = vmatprep.subr.bf16.mxu0 0
    %5850 = vmatpush1.bf16.msra.mxu0 0
    %5851 = vmatprep.subr.bf16.mxu0 0
    %5852 = vmatpush1.bf16.msra.mxu0 0
    %5853 = vmatprep.mubr.bf16.mxu0 0
    %5854 = vmatmul.mubr.bf16.gmra.mrb[0].mxu0 %v4956
    %v5855 = vpop.f32.mrb[0].mxu0
    %v5856 = vadd.f32 0.0, %v5855
    %v5857 = vpop.f32.mrb[0].mxu0
    %v5858 = vadd.f32 0.0, %v5857
    %v5859 = vpop.f32.mrb[0].mxu0
    %v5860 = vadd.f32 0.0, %v5859
    %v5861 = vpop.f32.mrb[0].mxu0
    %v5862 = vadd.f32 0.0, %v5861
    %5863 = vdwg.mxu0
    %5864 = vmatprep.subr.bf16.mxu0 %v5536
    %5865 = vmatpush1.bf16.msra.mxu0 %v5535
    %5866 = vmatprep.subr.bf16.mxu0 %v5554
    %5867 = vmatpush1.bf16.msra.mxu0 %v5553
    %5868 = vmatprep.subr.bf16.mxu0 %v5572
    %5869 = vmatpush1.bf16.msra.mxu0 %v5571
    %5870 = vmatprep.subr.bf16.mxu0 %v5590
    %5871 = vmatpush1.bf16.msra.mxu0 %v5589
    %5872 = vmatprep.subr.bf16.mxu0 %v5608
    %5873 = vmatpush1.bf16.msra.mxu0 %v5607
    %5874 = vmatprep.subr.bf16.mxu0 %v5626
    %5875 = vmatpush1.bf16.msra.mxu0 %v5625
    %5876 = vmatprep.subr.bf16.mxu0 %v5644
    %5877 = vmatpush1.bf16.msra.mxu0 %v5643
    %5878 = vmatprep.subr.bf16.mxu0 %v5662
    %5879 = vmatpush1.bf16.msra.mxu0 %v5661
    %5880 = vmatprep.subr.bf16.mxu0 0
    %5881 = vmatpush1.bf16.msra.mxu0 0
    %5882 = vmatprep.subr.bf16.mxu0 0
    %5883 = vmatpush1.bf16.msra.mxu0 0
    %5884 = vmatprep.subr.bf16.mxu0 0
    %5885 = vmatpush1.bf16.msra.mxu0 0
    %5886 = vmatprep.subr.bf16.mxu0 0
    %5887 = vmatpush1.bf16.msra.mxu0 0
    %5888 = vmatprep.subr.bf16.mxu0 0
    %5889 = vmatpush1.bf16.msra.mxu0 0
    %5890 = vmatprep.subr.bf16.mxu0 0
    %5891 = vmatpush1.bf16.msra.mxu0 0
    %5892 = vmatprep.subr.bf16.mxu0 0
    %5893 = vmatpush1.bf16.msra.mxu0 0
    %5894 = vmatprep.subr.bf16.mxu0 0
    %5895 = vmatpush1.bf16.msra.mxu0 0
    %5896 = vmatprep.mubr.bf16.mxu0 0
    %5897 = vmatmul.mubr.bf16.gmra.mrb[0].mxu0 %v4956
    %v5898 = vpop.f32.mrb[0].mxu0
    %v5899 = vadd.f32 0.0, %v5898
    %v5900 = vpop.f32.mrb[0].mxu0
    %v5901 = vadd.f32 0.0, %v5900
    %v5902 = vpop.f32.mrb[0].mxu0
    %v5903 = vadd.f32 0.0, %v5902
    %v5904 = vpop.f32.mrb[0].mxu0
    %v5905 = vadd.f32 0.0, %v5904
    %5906 = vdwg.mxu0
    %5907 = vmatprep.subr.bf16.mxu0 %v5538
    %5908 = vmatpush1.bf16.msra.mxu0 %v5537
    %5909 = vmatprep.subr.bf16.mxu0 %v5556
    %5910 = vmatpush1.bf16.msra.mxu0 %v5555
    %5911 = vmatprep.subr.bf16.mxu0 %v5574
    %5912 = vmatpush1.bf16.msra.mxu0 %v5573
    %5913 = vmatprep.subr.bf16.mxu0 %v5592
    %5914 = vmatpush1.bf16.msra.mxu0 %v5591
    %5915 = vmatprep.subr.bf16.mxu0 %v5610
    %5916 = vmatpush1.bf16.msra.mxu0 %v5609
    %5917 = vmatprep.subr.bf16.mxu0 %v5628
    %5918 = vmatpush1.bf16.msra.mxu0 %v5627
    %5919 = vmatprep.subr.bf16.mxu0 %v5646
    %5920 = vmatpush1.bf16.msra.mxu0 %v5645
    %5921 = vmatprep.subr.bf16.mxu0 %v5664
    %5922 = vmatpush1.bf16.msra.mxu0 %v5663
    %5923 = vmatprep.subr.bf16.mxu0 0
    %5924 = vmatpush1.bf16.msra.mxu0 0
    %5925 = vmatprep.subr.bf16.mxu0 0
    %5926 = vmatpush1.bf16.msra.mxu0 0
    %5927 = vmatprep.subr.bf16.mxu0 0
    %5928 = vmatpush1.bf16.msra.mxu0 0
    %5929 = vmatprep.subr.bf16.mxu0 0
    %5930 = vmatpush1.bf16.msra.mxu0 0
    %5931 = vmatprep.subr.bf16.mxu0 0
    %5932 = vmatpush1.bf16.msra.mxu0 0
    %5933 = vmatprep.subr.bf16.mxu0 0
    %5934 = vmatpush1.bf16.msra.mxu0 0
    %5935 = vmatprep.subr.bf16.mxu0 0
    %5936 = vmatpush1.bf16.msra.mxu0 0
    %5937 = vmatprep.subr.bf16.mxu0 0
    %5938 = vmatpush1.bf16.msra.mxu0 0
    %5939 = vmatprep.mubr.bf16.mxu0 0
    %5940 = vmatmul.mubr.bf16.gmra.mrb[0].mxu0 %v4956
    %v5941 = vpop.f32.mrb[0].mxu0
    %v5942 = vadd.f32 0.0, %v5941
    %v5943 = vpop.f32.mrb[0].mxu0
    %v5944 = vadd.f32 0.0, %v5943
    %v5945 = vpop.f32.mrb[0].mxu0
    %v5946 = vadd.f32 0.0, %v5945
    %v5947 = vpop.f32.mrb[0].mxu0
    %v5948 = vadd.f32 0.0, %v5947
    %5949 = vdwg.mxu0
    %5950 = vmatprep.subr.bf16.mxu0 %v5540
    %5951 = vmatpush1.bf16.msra.mxu0 %v5539
    %5952 = vmatprep.subr.bf16.mxu0 %v5558
    %5953 = vmatpush1.bf16.msra.mxu0 %v5557
    %5954 = vmatprep.subr.bf16.mxu0 %v5576
    %5955 = vmatpush1.bf16.msra.mxu0 %v5575
    %5956 = vmatprep.subr.bf16.mxu0 %v5594
    %5957 = vmatpush1.bf16.msra.mxu0 %v5593
    %5958 = vmatprep.subr.bf16.mxu0 %v5612
    %5959 = vmatpush1.bf16.msra.mxu0 %v5611
    %5960 = vmatprep.subr.bf16.mxu0 %v5630
    %5961 = vmatpush1.bf16.msra.mxu0 %v5629
    %5962 = vmatprep.subr.bf16.mxu0 %v5648
    %5963 = vmatpush1.bf16.msra.mxu0 %v5647
    %5964 = vmatprep.subr.bf16.mxu0 %v5666
    %5965 = vmatpush1.bf16.msra.mxu0 %v5665
    %5966 = vmatprep.subr.bf16.mxu0 0
    %5967 = vmatpush1.bf16.msra.mxu0 0
    %5968 = vmatprep.subr.bf16.mxu0 0
    %5969 = vmatpush1.bf16.msra.mxu0 0
    %5970 = vmatprep.subr.bf16.mxu0 0
    %5971 = vmatpush1.bf16.msra.mxu0 0
    %5972 = vmatprep.subr.bf16.mxu0 0
    %5973 = vmatpush1.bf16.msra.mxu0 0
    %5974 = vmatprep.subr.bf16.mxu0 0
    %5975 = vmatpush1.bf16.msra.mxu0 0
    %5976 = vmatprep.subr.bf16.mxu0 0
    %5977 = vmatpush1.bf16.msra.mxu0 0
    %5978 = vmatprep.subr.bf16.mxu0 0
    %5979 = vmatpush1.bf16.msra.mxu0 0
    %5980 = vmatprep.subr.bf16.mxu0 0
    %5981 = vmatpush1.bf16.msra.mxu0 0
    %5982 = vmatprep.mubr.bf16.mxu0 0
    %5983 = vmatmul.mubr.bf16.gmra.mrb[0].mxu0 %v4956
    %v5984 = vpop.f32.mrb[0].mxu0
    %v5985 = vadd.f32 0.0, %v5984
    %v5986 = vpop.f32.mrb[0].mxu0
    %v5987 = vadd.f32 0.0, %v5986
    %v5988 = vpop.f32.mrb[0].mxu0
    %v5989 = vadd.f32 0.0, %v5988
    %v5990 = vpop.f32.mrb[0].mxu0
    %v5991 = vadd.f32 0.0, %v5990
    %5992 = vdwg.mxu0
    %5993 = vmatprep.subr.bf16.mxu0 %v5542
    %5994 = vmatpush1.bf16.msra.mxu0 %v5541
    %5995 = vmatprep.subr.bf16.mxu0 %v5560
    %5996 = vmatpush1.bf16.msra.mxu0 %v5559
    %5997 = vmatprep.subr.bf16.mxu0 %v5578
    %5998 = vmatpush1.bf16.msra.mxu0 %v5577
    %5999 = vmatprep.subr.bf16.mxu0 %v5596
    %6000 = vmatpush1.bf16.msra.mxu0 %v5595
    %6001 = vmatprep.subr.bf16.mxu0 %v5614
    %6002 = vmatpush1.bf16.msra.mxu0 %v5613
    %6003 = vmatprep.subr.bf16.mxu0 %v5632
    %6004 = vmatpush1.bf16.msra.mxu0 %v5631
    %6005 = vmatprep.subr.bf16.mxu0 %v5650
    %6006 = vmatpush1.bf16.msra.mxu0 %v5649
    %6007 = vmatprep.subr.bf16.mxu0 %v5668
    %6008 = vmatpush1.bf16.msra.mxu0 %v5667
    %6009 = vmatprep.subr.bf16.mxu0 0
    %6010 = vmatpush1.bf16.msra.mxu0 0
    %6011 = vmatprep.subr.bf16.mxu0 0
    %6012 = vmatpush1.bf16.msra.mxu0 0
    %6013 = vmatprep.subr.bf16.mxu0 0
    %6014 = vmatpush1.bf16.msra.mxu0 0
    %6015 = vmatprep.subr.bf16.mxu0 0
    %6016 = vmatpush1.bf16.msra.mxu0 0
    %6017 = vmatprep.subr.bf16.mxu0 0
    %6018 = vmatpush1.bf16.msra.mxu0 0
    %6019 = vmatprep.subr.bf16.mxu0 0
    %6020 = vmatpush1.bf16.msra.mxu0 0
    %6021 = vmatprep.subr.bf16.mxu0 0
    %6022 = vmatpush1.bf16.msra.mxu0 0
    %6023 = vmatprep.subr.bf16.mxu0 0
    %6024 = vmatpush1.bf16.msra.mxu0 0
    %6025 = vmatprep.mubr.bf16.mxu0 0
    %6026 = vmatmul.mubr.bf16.gmra.mrb[0].mxu0 %v4956
    %v6027 = vpop.f32.mrb[0].mxu0
    %v6028 = vadd.f32 0.0, %v6027
    %v6029 = vpop.f32.mrb[0].mxu0
    %v6030 = vadd.f32 0.0, %v6029
    %v6031 = vpop.f32.mrb[0].mxu0
    %v6032 = vadd.f32 0.0, %v6031
    %v6033 = vpop.f32.mrb[0].mxu0
    %v6034 = vadd.f32 0.0, %v6033
    %6035 = vdwg.mxu0
    %6036 = vmatprep.subr.bf16.mxu0 %v5544
    %6037 = vmatpush1.bf16.msra.mxu0 %v5543
    %6038 = vmatprep.subr.bf16.mxu0 %v5562
    %6039 = vmatpush1.bf16.msra.mxu0 %v5561
    %6040 = vmatprep.subr.bf16.mxu0 %v5580
    %6041 = vmatpush1.bf16.msra.mxu0 %v5579
    %6042 = vmatprep.subr.bf16.mxu0 %v5598
    %6043 = vmatpush1.bf16.msra.mxu0 %v5597
    %6044 = vmatprep.subr.bf16.mxu0 %v5616
    %6045 = vmatpush1.bf16.msra.mxu0 %v5615
    %6046 = vmatprep.subr.bf16.mxu0 %v5634
    %6047 = vmatpush1.bf16.msra.mxu0 %v5633
    %6048 = vmatprep.subr.bf16.mxu0 %v5652
    %6049 = vmatpush1.bf16.msra.mxu0 %v5651
    %6050 = vmatprep.subr.bf16.mxu0 %v5670
    %6051 = vmatpush1.bf16.msra.mxu0 %v5669
    %6052 = vmatprep.subr.bf16.mxu0 0
    %6053 = vmatpush1.bf16.msra.mxu0 0
    %6054 = vmatprep.subr.bf16.mxu0 0
    %6055 = vmatpush1.bf16.msra.mxu0 0
    %6056 = vmatprep.subr.bf16.mxu0 0
    %6057 = vmatpush1.bf16.msra.mxu0 0
    %6058 = vmatprep.subr.bf16.mxu0 0
    %6059 = vmatpush1.bf16.msra.mxu0 0
    %6060 = vmatprep.subr.bf16.mxu0 0
    %6061 = vmatpush1.bf16.msra.mxu0 0
    %6062 = vmatprep.subr.bf16.mxu0 0
    %6063 = vmatpush1.bf16.msra.mxu0 0
    %6064 = vmatprep.subr.bf16.mxu0 0
    %6065 = vmatpush1.bf16.msra.mxu0 0
    %6066 = vmatprep.subr.bf16.mxu0 0
    %6067 = vmatpush1.bf16.msra.mxu0 0
    %6068 = vmatprep.mubr.bf16.mxu0 0
    %6069 = vmatmul.mubr.bf16.gmra.mrb[0].mxu0 %v4956
    %v6070 = vpop.f32.mrb[0].mxu0
    %v6071 = vadd.f32 0.0, %v6070
    %v6072 = vpop.f32.mrb[0].mxu0
    %v6073 = vadd.f32 0.0, %v6072
    %v6074 = vpop.f32.mrb[0].mxu0
    %v6075 = vadd.f32 0.0, %v6074
    %v6076 = vpop.f32.mrb[0].mxu0
    %v6077 = vadd.f32 0.0, %v6076
    %6078 = vdwg.mxu0
    %6079 = vmatprep.subr.bf16.mxu0 %v5546
    %6080 = vmatpush1.bf16.msra.mxu0 %v5545
    %6081 = vmatprep.subr.bf16.mxu0 %v5564
    %6082 = vmatpush1.bf16.msra.mxu0 %v5563
    %6083 = vmatprep.subr.bf16.mxu0 %v5582
    %6084 = vmatpush1.bf16.msra.mxu0 %v5581
    %6085 = vmatprep.subr.bf16.mxu0 %v5600
    %6086 = vmatpush1.bf16.msra.mxu0 %v5599
    %6087 = vmatprep.subr.bf16.mxu0 %v5618
    %6088 = vmatpush1.bf16.msra.mxu0 %v5617
    %6089 = vmatprep.subr.bf16.mxu0 %v5636
    %6090 = vmatpush1.bf16.msra.mxu0 %v5635
    %6091 = vmatprep.subr.bf16.mxu0 %v5654
    %6092 = vmatpush1.bf16.msra.mxu0 %v5653
    %6093 = vmatprep.subr.bf16.mxu0 %v5672
    %6094 = vmatpush1.bf16.msra.mxu0 %v5671
    %6095 = vmatprep.subr.bf16.mxu0 0
    %6096 = vmatpush1.bf16.msra.mxu0 0
    %6097 = vmatprep.subr.bf16.mxu0 0
    %6098 = vmatpush1.bf16.msra.mxu0 0
    %6099 = vmatprep.subr.bf16.mxu0 0
    %6100 = vmatpush1.bf16.msra.mxu0 0
    %6101 = vmatprep.subr.bf16.mxu0 0
    %6102 = vmatpush1.bf16.msra.mxu0 0
    %6103 = vmatprep.subr.bf16.mxu0 0
    %6104 = vmatpush1.bf16.msra.mxu0 0
    %6105 = vmatprep.subr.bf16.mxu0 0
    %6106 = vmatpush1.bf16.msra.mxu0 0
    %6107 = vmatprep.subr.bf16.mxu0 0
    %6108 = vmatpush1.bf16.msra.mxu0 0
    %6109 = vmatprep.subr.bf16.mxu0 0
    %6110 = vmatpush1.bf16.msra.mxu0 0
    %6111 = vmatprep.mubr.bf16.mxu0 0
    %6112 = vmatmul.mubr.bf16.gmra.mrb[0].mxu0 %v4956
    %v6113 = vpop.f32.mrb[0].mxu0
    %v6114 = vadd.f32 0.0, %v6113
    %v6115 = vpop.f32.mrb[0].mxu0
    %v6116 = vadd.f32 0.0, %v6115
    %v6117 = vpop.f32.mrb[0].mxu0
    %v6118 = vadd.f32 0.0, %v6117
    %v6119 = vpop.f32.mrb[0].mxu0
    %v6120 = vadd.f32 0.0, %v6119
    %6121 = vdwg.mxu0
    %6122 = vmatprep.subr.bf16.mxu0 %v5548
    %6123 = vmatpush1.bf16.msra.mxu0 %v5547
    %6124 = vmatprep.subr.bf16.mxu0 %v5566
    %6125 = vmatpush1.bf16.msra.mxu0 %v5565
    %6126 = vmatprep.subr.bf16.mxu0 %v5584
    %6127 = vmatpush1.bf16.msra.mxu0 %v5583
    %6128 = vmatprep.subr.bf16.mxu0 %v5602
    %6129 = vmatpush1.bf16.msra.mxu0 %v5601
    %6130 = vmatprep.subr.bf16.mxu0 %v5620
    %6131 = vmatpush1.bf16.msra.mxu0 %v5619
    %6132 = vmatprep.subr.bf16.mxu0 %v5638
    %6133 = vmatpush1.bf16.msra.mxu0 %v5637
    %6134 = vmatprep.subr.bf16.mxu0 %v5656
    %6135 = vmatpush1.bf16.msra.mxu0 %v5655
    %6136 = vmatprep.subr.bf16.mxu0 %v5674
    %6137 = vmatpush1.bf16.msra.mxu0 %v5673
    %6138 = vmatprep.subr.bf16.mxu0 0
    %6139 = vmatpush1.bf16.msra.mxu0 0
    %6140 = vmatprep.subr.bf16.mxu0 0
    %6141 = vmatpush1.bf16.msra.mxu0 0
    %6142 = vmatprep.subr.bf16.mxu0 0
    %6143 = vmatpush1.bf16.msra.mxu0 0
    %6144 = vmatprep.subr.bf16.mxu0 0
    %6145 = vmatpush1.bf16.msra.mxu0 0
    %6146 = vmatprep.subr.bf16.mxu0 0
    %6147 = vmatpush1.bf16.msra.mxu0 0
    %6148 = vmatprep.subr.bf16.mxu0 0
    %6149 = vmatpush1.bf16.msra.mxu0 0
    %6150 = vmatprep.subr.bf16.mxu0 0
    %6151 = vmatpush1.bf16.msra.mxu0 0
    %6152 = vmatprep.subr.bf16.mxu0 0
    %6153 = vmatpush1.bf16.msra.mxu0 0
    %6154 = vmatprep.mubr.bf16.mxu0 0
    %6155 = vmatmul.mubr.bf16.gmra.mrb[0].mxu0 %v4956
    %v6156 = vpop.f32.mrb[0].mxu0
    %v6157 = vadd.f32 0.0, %v6156
    %v6158 = vpop.f32.mrb[0].mxu0
    %v6159 = vadd.f32 0.0, %v6158
    %v6160 = vpop.f32.mrb[0].mxu0
    %v6161 = vadd.f32 0.0, %v6160
    %v6162 = vpop.f32.mrb[0].mxu0
    %v6163 = vadd.f32 0.0, %v6162
    %6164 = vdwg.mxu0
    %6165 = vmatprep.subr.bf16.mxu0 %v5550
    %6166 = vmatpush1.bf16.msra.mxu0 %v5549
    %6167 = vmatprep.subr.bf16.mxu0 %v5568
    %6168 = vmatpush1.bf16.msra.mxu0 %v5567
    %6169 = vmatprep.subr.bf16.mxu0 %v5586
    %6170 = vmatpush1.bf16.msra.mxu0 %v5585
    %6171 = vmatprep.subr.bf16.mxu0 %v5604
    %6172 = vmatpush1.bf16.msra.mxu0 %v5603
    %6173 = vmatprep.subr.bf16.mxu0 %v5622
    %6174 = vmatpush1.bf16.msra.mxu0 %v5621
    %6175 = vmatprep.subr.bf16.mxu0 %v5640
    %6176 = vmatpush1.bf16.msra.mxu0 %v5639
    %6177 = vmatprep.subr.bf16.mxu0 %v5658
    %6178 = vmatpush1.bf16.msra.mxu0 %v5657
    %6179 = vmatprep.subr.bf16.mxu0 %v5676
    %6180 = vmatpush1.bf16.msra.mxu0 %v5675
    %6181 = vmatprep.subr.bf16.mxu0 0
    %6182 = vmatpush1.bf16.msra.mxu0 0
    %6183 = vmatprep.subr.bf16.mxu0 0
    %6184 = vmatpush1.bf16.msra.mxu0 0
    %6185 = vmatprep.subr.bf16.mxu0 0
    %6186 = vmatpush1.bf16.msra.mxu0 0
    %6187 = vmatprep.subr.bf16.mxu0 0
    %6188 = vmatpush1.bf16.msra.mxu0 0
    %6189 = vmatprep.subr.bf16.mxu0 0
    %6190 = vmatpush1.bf16.msra.mxu0 0
    %6191 = vmatprep.subr.bf16.mxu0 0
    %6192 = vmatpush1.bf16.msra.mxu0 0
    %6193 = vmatprep.subr.bf16.mxu0 0
    %6194 = vmatpush1.bf16.msra.mxu0 0
    %6195 = vmatprep.subr.bf16.mxu0 0
    %6196 = vmatpush1.bf16.msra.mxu0 0
    %6197 = vmatprep.mubr.bf16.mxu0 0
    %6198 = vmatmul.mubr.bf16.gmra.mrb[0].mxu0 %v4956
    %v6199 = vpop.f32.mrb[0].mxu0
    %v6200 = vadd.f32 0.0, %v6199
    %v6201 = vpop.f32.mrb[0].mxu0
    %v6202 = vadd.f32 0.0, %v6201
    %v6203 = vpop.f32.mrb[0].mxu0
    %v6204 = vadd.f32 0.0, %v6203
    %v6205 = vpop.f32.mrb[0].mxu0
    %v6206 = vadd.f32 0.0, %v6205
    %6207 = vdwg.mxu0
    %v6208 = vpack.c.bf16 %v5860, %v5856
    %v6209 = vpack.c.bf16 %v5862, %v5858
    %v6210 = vpack.c.bf16 %v5903, %v5899
    %v6211 = vpack.c.bf16 %v5905, %v5901
    %v6212 = vpack.c.bf16 %v5946, %v5942
    %v6213 = vpack.c.bf16 %v5948, %v5944
    %v6214 = vpack.c.bf16 %v5989, %v5985
    %v6215 = vpack.c.bf16 %v5991, %v5987
    %v6216 = vpack.c.bf16 %v6032, %v6028
    %v6217 = vpack.c.bf16 %v6034, %v6030
    %v6218 = vpack.c.bf16 %v6075, %v6071
    %v6219 = vpack.c.bf16 %v6077, %v6073
    %v6220 = vpack.c.bf16 %v6118, %v6114
    %v6221 = vpack.c.bf16 %v6120, %v6116
    %v6222 = vpack.c.bf16 %v6161, %v6157
    %v6223 = vpack.c.bf16 %v6163, %v6159
    %v6224 = vpack.c.bf16 %v6204, %v6200
    %v6225 = vpack.c.bf16 %v6206, %v6202
    %v6226 = vld [vmem:[%s21] sm:$0xf]
    %v6227 = vld [vmem:[%s21 + $0x4] sm:$0xf]
    %s6228 = scalar_lea.vmem %s21, 8
    %v6229 = vld [vmem:[%s6228] sm:$0xf]
    %v6230 = vld [vmem:[%s6228 + $0x4] sm:$0xf]
    %v6233 = vunpack.c.l.b16 %v6229
    %v6234 = vunpack.c.l.b16 %v6230
    %v6235 = vpack.c.b16 %v6234, %v6233
    %v6237 = vsel %vm1830, %v6235, 0
    %6239 = vmatprep.subr.bf16.mxu0 %v6211
    %6240 = vmatpush1.bf16.msra.mxu0 %v6210
    %6241 = vmatprep.subr.bf16.mxu0 0
    %6242 = vmatpush1.bf16.msra.mxu0 0
    %6243 = vmatprep.subr.bf16.mxu0 0
    %6244 = vmatpush1.bf16.msra.mxu0 0
    %6245 = vmatprep.subr.bf16.mxu0 0
    %6246 = vmatpush1.bf16.msra.mxu0 0
    %6247 = vmatprep.subr.bf16.mxu0 0
    %6248 = vmatpush1.bf16.msra.mxu0 0
    %6249 = vmatprep.subr.bf16.mxu0 0
    %6250 = vmatpush1.bf16.msra.mxu0 0
    %6251 = vmatprep.subr.bf16.mxu0 0
    %6252 = vmatpush1.bf16.msra.mxu0 0
    %6253 = vmatprep.subr.bf16.mxu0 0
    %6254 = vmatpush1.bf16.msra.mxu0 0
    %6255 = vmatprep.subr.bf16.mxu0 0
    %6256 = vmatpush1.bf16.msra.mxu0 0
    %6257 = vmatprep.subr.bf16.mxu0 0
    %6258 = vmatpush1.bf16.msra.mxu0 0
    %6259 = vmatprep.subr.bf16.mxu0 0
    %6260 = vmatpush1.bf16.msra.mxu0 0
    %6261 = vmatprep.subr.bf16.mxu0 0
    %6262 = vmatpush1.bf16.msra.mxu0 0
    %6263 = vmatprep.subr.bf16.mxu0 0
    %6264 = vmatpush1.bf16.msra.mxu0 0
    %6265 = vmatprep.subr.bf16.mxu0 0
    %6266 = vmatpush1.bf16.msra.mxu0 0
    %6267 = vmatprep.subr.bf16.mxu0 0
    %6268 = vmatpush1.bf16.msra.mxu0 0
    %6269 = vmatprep.subr.bf16.mxu0 0
    %6270 = vmatpush1.bf16.msra.mxu0 0
    %6271 = vmatprep.mubr.bf16.mxu0 0
    %6272 = vmatmul.mubr.bf16.gmra.mrb[0].mxu0 %v6237
    %v6273 = vpop.f32.mrb[0].mxu0
    %v6274 = vadd.f32 0.0, %v6273
    %v6275 = vpop.f32.mrb[0].mxu0
    %v6276 = vadd.f32 0.0, %v6275
    %v6277 = vpop.f32.mrb[0].mxu0
    %v6278 = vadd.f32 0.0, %v6277
    %v6279 = vpop.f32.mrb[0].mxu0
    %v6280 = vadd.f32 0.0, %v6279
    %6281 = vdwg.mxu0
    %v6284 = vunpack.c.l.b16 %v6226
    %v6285 = vunpack.c.l.b16 %v6227
    %v6286 = vpack.c.b16 %v6285, %v6284
    %v6288 = vsel %vm1830, %v6286, 0
    %6290 = vmatprep.subr.bf16.mxu0 %v6209
    %6291 = vmatpush1.bf16.msra.mxu0 %v6208
    %6292 = vmatprep.subr.bf16.mxu0 0
    %6293 = vmatpush1.bf16.msra.mxu0 0
    %6294 = vmatprep.subr.bf16.mxu0 0
    %6295 = vmatpush1.bf16.msra.mxu0 0
    %6296 = vmatprep.subr.bf16.mxu0 0
    %6297 = vmatpush1.bf16.msra.mxu0 0
    %6298 = vmatprep.subr.bf16.mxu0 0
    %6299 = vmatpush1.bf16.msra.mxu0 0
    %6300 = vmatprep.subr.bf16.mxu0 0
    %6301 = vmatpush1.bf16.msra.mxu0 0
    %6302 = vmatprep.subr.bf16.mxu0 0
    %6303 = vmatpush1.bf16.msra.mxu0 0
    %6304 = vmatprep.subr.bf16.mxu0 0
    %6305 = vmatpush1.bf16.msra.mxu0 0
    %6306 = vmatprep.subr.bf16.mxu0 0
    %6307 = vmatpush1.bf16.msra.mxu0 0
    %6308 = vmatprep.subr.bf16.mxu0 0
    %6309 = vmatpush1.bf16.msra.mxu0 0
    %6310 = vmatprep.subr.bf16.mxu0 0
    %6311 = vmatpush1.bf16.msra.mxu0 0
    %6312 = vmatprep.subr.bf16.mxu0 0
    %6313 = vmatpush1.bf16.msra.mxu0 0
    %6314 = vmatprep.subr.bf16.mxu0 0
    %6315 = vmatpush1.bf16.msra.mxu0 0
    %6316 = vmatprep.subr.bf16.mxu0 0
    %6317 = vmatpush1.bf16.msra.mxu0 0
    %6318 = vmatprep.subr.bf16.mxu0 0
    %6319 = vmatpush1.bf16.msra.mxu0 0
    %6320 = vmatprep.subr.bf16.mxu0 0
    %6321 = vmatpush1.bf16.msra.mxu0 0
    %6322 = vmatprep.mubr.bf16.mxu0 0
    %6323 = vmatmul.mubr.bf16.gmra.mrb[0].mxu0 %v6288
    %v6324 = vpop.f32.mrb[0].mxu0
    %v6325 = vadd.f32 %v6274, %v6324
    %v6326 = vpop.f32.mrb[0].mxu0
    %v6327 = vadd.f32 %v6276, %v6326
    %v6328 = vpop.f32.mrb[0].mxu0
    %v6329 = vadd.f32 %v6278, %v6328
    %v6330 = vpop.f32.mrb[0].mxu0
    %v6331 = vadd.f32 %v6280, %v6330
    %6332 = vdwg.mxu0
    %s6333 = scalar_lea.vmem %s21, 16
    %v6334 = vld [vmem:[%s6333] sm:$0xf]
    %v6335 = vld [vmem:[%s6333 + $0x4] sm:$0xf]
    %v6338 = vunpack.c.l.b16 %v6334
    %v6339 = vunpack.c.l.b16 %v6335
    %v6340 = vpack.c.b16 %v6339, %v6338
    %v6342 = vsel %vm1830, %v6340, 0
    %6344 = vmatprep.subr.bf16.mxu0 %v6213
    %6345 = vmatpush1.bf16.msra.mxu0 %v6212
    %6346 = vmatprep.subr.bf16.mxu0 0
    %6347 = vmatpush1.bf16.msra.mxu0 0
    %6348 = vmatprep.subr.bf16.mxu0 0
    %6349 = vmatpush1.bf16.msra.mxu0 0
    %6350 = vmatprep.subr.bf16.mxu0 0
    %6351 = vmatpush1.bf16.msra.mxu0 0
    %6352 = vmatprep.subr.bf16.mxu0 0
    %6353 = vmatpush1.bf16.msra.mxu0 0
    %6354 = vmatprep.subr.bf16.mxu0 0
    %6355 = vmatpush1.bf16.msra.mxu0 0
    %6356 = vmatprep.subr.bf16.mxu0 0
    %6357 = vmatpush1.bf16.msra.mxu0 0
    %6358 = vmatprep.subr.bf16.mxu0 0
    %6359 = vmatpush1.bf16.msra.mxu0 0
    %6360 = vmatprep.subr.bf16.mxu0 0
    %6361 = vmatpush1.bf16.msra.mxu0 0
    %6362 = vmatprep.subr.bf16.mxu0 0
    %6363 = vmatpush1.bf16.msra.mxu0 0
    %6364 = vmatprep.subr.bf16.mxu0 0
    %6365 = vmatpush1.bf16.msra.mxu0 0
    %6366 = vmatprep.subr.bf16.mxu0 0
    %6367 = vmatpush1.bf16.msra.mxu0 0
    %6368 = vmatprep.subr.bf16.mxu0 0
    %6369 = vmatpush1.bf16.msra.mxu0 0
    %6370 = vmatprep.subr.bf16.mxu0 0
    %6371 = vmatpush1.bf16.msra.mxu0 0
    %6372 = vmatprep.subr.bf16.mxu0 0
    %6373 = vmatpush1.bf16.msra.mxu0 0
    %6374 = vmatprep.subr.bf16.mxu0 0
    %6375 = vmatpush1.bf16.msra.mxu0 0
    %6376 = vmatprep.mubr.bf16.mxu0 0
    %6377 = vmatmul.mubr.bf16.gmra.mrb[0].mxu0 %v6342
    %v6378 = vpop.f32.mrb[0].mxu0
    %v6379 = vadd.f32 0.0, %v6378
    %v6380 = vpop.f32.mrb[0].mxu0
    %v6381 = vadd.f32 0.0, %v6380
    %v6382 = vpop.f32.mrb[0].mxu0
    %v6383 = vadd.f32 0.0, %v6382
    %v6384 = vpop.f32.mrb[0].mxu0
    %v6385 = vadd.f32 0.0, %v6384
    %6386 = vdwg.mxu0
    %v6387 = vadd.f32 %v6325, %v6379
    %v6388 = vadd.f32 %v6327, %v6381
    %v6389 = vadd.f32 %v6329, %v6383
    %v6390 = vadd.f32 %v6331, %v6385
    %s6391 = scalar_lea.vmem %s21, 24
    %v6392 = vld [vmem:[%s6391] sm:$0xf]
    %v6393 = vld [vmem:[%s6391 + $0x4] sm:$0xf]
    %v6396 = vunpack.c.l.b16 %v6392
    %v6397 = vunpack.c.l.b16 %v6393
    %v6398 = vpack.c.b16 %v6397, %v6396
    %v6400 = vsel %vm1830, %v6398, 0
    %6402 = vmatprep.subr.bf16.mxu0 %v6215
    %6403 = vmatpush1.bf16.msra.mxu0 %v6214
    %6404 = vmatprep.subr.bf16.mxu0 0
    %6405 = vmatpush1.bf16.msra.mxu0 0
    %6406 = vmatprep.subr.bf16.mxu0 0
    %6407 = vmatpush1.bf16.msra.mxu0 0
    %6408 = vmatprep.subr.bf16.mxu0 0
    %6409 = vmatpush1.bf16.msra.mxu0 0
    %6410 = vmatprep.subr.bf16.mxu0 0
    %6411 = vmatpush1.bf16.msra.mxu0 0
    %6412 = vmatprep.subr.bf16.mxu0 0
    %6413 = vmatpush1.bf16.msra.mxu0 0
    %6414 = vmatprep.subr.bf16.mxu0 0
    %6415 = vmatpush1.bf16.msra.mxu0 0
    %6416 = vmatprep.subr.bf16.mxu0 0
    %6417 = vmatpush1.bf16.msra.mxu0 0
    %6418 = vmatprep.subr.bf16.mxu0 0
    %6419 = vmatpush1.bf16.msra.mxu0 0
    %6420 = vmatprep.subr.bf16.mxu0 0
    %6421 = vmatpush1.bf16.msra.mxu0 0
    %6422 = vmatprep.subr.bf16.mxu0 0
    %6423 = vmatpush1.bf16.msra.mxu0 0
    %6424 = vmatprep.subr.bf16.mxu0 0
    %6425 = vmatpush1.bf16.msra.mxu0 0
    %6426 = vmatprep.subr.bf16.mxu0 0
    %6427 = vmatpush1.bf16.msra.mxu0 0
    %6428 = vmatprep.subr.bf16.mxu0 0
    %6429 = vmatpush1.bf16.msra.mxu0 0
    %6430 = vmatprep.subr.bf16.mxu0 0
    %6431 = vmatpush1.bf16.msra.mxu0 0
    %6432 = vmatprep.subr.bf16.mxu0 0
    %6433 = vmatpush1.bf16.msra.mxu0 0
    %6434 = vmatprep.mubr.bf16.mxu0 0
    %6435 = vmatmul.mubr.bf16.gmra.mrb[0].mxu0 %v6400
    %v6436 = vpop.f32.mrb[0].mxu0
    %v6437 = vadd.f32 0.0, %v6436
    %v6438 = vpop.f32.mrb[0].mxu0
    %v6439 = vadd.f32 0.0, %v6438
    %v6440 = vpop.f32.mrb[0].mxu0
    %v6441 = vadd.f32 0.0, %v6440
    %v6442 = vpop.f32.mrb[0].mxu0
    %v6443 = vadd.f32 0.0, %v6442
    %6444 = vdwg.mxu0
    %v6445 = vadd.f32 %v6387, %v6437
    %v6446 = vadd.f32 %v6388, %v6439
    %v6447 = vadd.f32 %v6389, %v6441
    %v6448 = vadd.f32 %v6390, %v6443
    %s6449 = scalar_lea.vmem %s21, 32
    %v6450 = vld [vmem:[%s6449] sm:$0xf]
    %v6451 = vld [vmem:[%s6449 + $0x4] sm:$0xf]
    %v6454 = vunpack.c.l.b16 %v6450
    %v6455 = vunpack.c.l.b16 %v6451
    %v6456 = vpack.c.b16 %v6455, %v6454
    %v6458 = vsel %vm1830, %v6456, 0
    %6460 = vmatprep.subr.bf16.mxu0 %v6217
    %6461 = vmatpush1.bf16.msra.mxu0 %v6216
    %6462 = vmatprep.subr.bf16.mxu0 0
    %6463 = vmatpush1.bf16.msra.mxu0 0
    %6464 = vmatprep.subr.bf16.mxu0 0
    %6465 = vmatpush1.bf16.msra.mxu0 0
    %6466 = vmatprep.subr.bf16.mxu0 0
    %6467 = vmatpush1.bf16.msra.mxu0 0
    %6468 = vmatprep.subr.bf16.mxu0 0
    %6469 = vmatpush1.bf16.msra.mxu0 0
    %6470 = vmatprep.subr.bf16.mxu0 0
    %6471 = vmatpush1.bf16.msra.mxu0 0
    %6472 = vmatprep.subr.bf16.mxu0 0
    %6473 = vmatpush1.bf16.msra.mxu0 0
    %6474 = vmatprep.subr.bf16.mxu0 0
    %6475 = vmatpush1.bf16.msra.mxu0 0
    %6476 = vmatprep.subr.bf16.mxu0 0
    %6477 = vmatpush1.bf16.msra.mxu0 0
    %6478 = vmatprep.subr.bf16.mxu0 0
    %6479 = vmatpush1.bf16.msra.mxu0 0
    %6480 = vmatprep.subr.bf16.mxu0 0
    %6481 = vmatpush1.bf16.msra.mxu0 0
    %6482 = vmatprep.subr.bf16.mxu0 0
    %6483 = vmatpush1.bf16.msra.mxu0 0
    %6484 = vmatprep.subr.bf16.mxu0 0
    %6485 = vmatpush1.bf16.msra.mxu0 0
    %6486 = vmatprep.subr.bf16.mxu0 0
    %6487 = vmatpush1.bf16.msra.mxu0 0
    %6488 = vmatprep.subr.bf16.mxu0 0
    %6489 = vmatpush1.bf16.msra.mxu0 0
    %6490 = vmatprep.subr.bf16.mxu0 0
    %6491 = vmatpush1.bf16.msra.mxu0 0
    %6492 = vmatprep.mubr.bf16.mxu0 0
    %6493 = vmatmul.mubr.bf16.gmra.mrb[0].mxu0 %v6458
    %v6494 = vpop.f32.mrb[0].mxu0
    %v6495 = vadd.f32 0.0, %v6494
    %v6496 = vpop.f32.mrb[0].mxu0
    %v6497 = vadd.f32 0.0, %v6496
    %v6498 = vpop.f32.mrb[0].mxu0
    %v6499 = vadd.f32 0.0, %v6498
    %v6500 = vpop.f32.mrb[0].mxu0
    %v6501 = vadd.f32 0.0, %v6500
    %6502 = vdwg.mxu0
    %v6503 = vadd.f32 %v6445, %v6495
    %v6504 = vadd.f32 %v6446, %v6497
    %v6505 = vadd.f32 %v6447, %v6499
    %v6506 = vadd.f32 %v6448, %v6501
    %s6507 = scalar_lea.vmem %s21, 40
    %v6508 = vld [vmem:[%s6507] sm:$0xf]
    %v6509 = vld [vmem:[%s6507 + $0x4] sm:$0xf]
    %v6512 = vunpack.c.l.b16 %v6508
    %v6513 = vunpack.c.l.b16 %v6509
    %v6514 = vpack.c.b16 %v6513, %v6512
    %v6516 = vsel %vm1830, %v6514, 0
    %6518 = vmatprep.subr.bf16.mxu0 %v6219
    %6519 = vmatpush1.bf16.msra.mxu0 %v6218
    %6520 = vmatprep.subr.bf16.mxu0 0
    %6521 = vmatpush1.bf16.msra.mxu0 0
    %6522 = vmatprep.subr.bf16.mxu0 0
    %6523 = vmatpush1.bf16.msra.mxu0 0
    %6524 = vmatprep.subr.bf16.mxu0 0
    %6525 = vmatpush1.bf16.msra.mxu0 0
    %6526 = vmatprep.subr.bf16.mxu0 0
    %6527 = vmatpush1.bf16.msra.mxu0 0
    %6528 = vmatprep.subr.bf16.mxu0 0
    %6529 = vmatpush1.bf16.msra.mxu0 0
    %6530 = vmatprep.subr.bf16.mxu0 0
    %6531 = vmatpush1.bf16.msra.mxu0 0
    %6532 = vmatprep.subr.bf16.mxu0 0
    %6533 = vmatpush1.bf16.msra.mxu0 0
    %6534 = vmatprep.subr.bf16.mxu0 0
    %6535 = vmatpush1.bf16.msra.mxu0 0
    %6536 = vmatprep.subr.bf16.mxu0 0
    %6537 = vmatpush1.bf16.msra.mxu0 0
    %6538 = vmatprep.subr.bf16.mxu0 0
    %6539 = vmatpush1.bf16.msra.mxu0 0
    %6540 = vmatprep.subr.bf16.mxu0 0
    %6541 = vmatpush1.bf16.msra.mxu0 0
    %6542 = vmatprep.subr.bf16.mxu0 0
    %6543 = vmatpush1.bf16.msra.mxu0 0
    %6544 = vmatprep.subr.bf16.mxu0 0
    %6545 = vmatpush1.bf16.msra.mxu0 0
    %6546 = vmatprep.subr.bf16.mxu0 0
    %6547 = vmatpush1.bf16.msra.mxu0 0
    %6548 = vmatprep.subr.bf16.mxu0 0
    %6549 = vmatpush1.bf16.msra.mxu0 0
    %6550 = vmatprep.mubr.bf16.mxu0 0
    %6551 = vmatmul.mubr.bf16.gmra.mrb[0].mxu0 %v6516
    %v6552 = vpop.f32.mrb[0].mxu0
    %v6553 = vadd.f32 0.0, %v6552
    %v6554 = vpop.f32.mrb[0].mxu0
    %v6555 = vadd.f32 0.0, %v6554
    %v6556 = vpop.f32.mrb[0].mxu0
    %v6557 = vadd.f32 0.0, %v6556
    %v6558 = vpop.f32.mrb[0].mxu0
    %v6559 = vadd.f32 0.0, %v6558
    %6560 = vdwg.mxu0
    %v6561 = vadd.f32 %v6503, %v6553
    %v6562 = vadd.f32 %v6504, %v6555
    %v6563 = vadd.f32 %v6505, %v6557
    %v6564 = vadd.f32 %v6506, %v6559
    %s6565 = scalar_lea.vmem %s21, 48
    %v6566 = vld [vmem:[%s6565] sm:$0xf]
    %v6567 = vld [vmem:[%s6565 + $0x4] sm:$0xf]
    %v6570 = vunpack.c.l.b16 %v6566
    %v6571 = vunpack.c.l.b16 %v6567
    %v6572 = vpack.c.b16 %v6571, %v6570
    %v6574 = vsel %vm1830, %v6572, 0
    %6576 = vmatprep.subr.bf16.mxu0 %v6221
    %6577 = vmatpush1.bf16.msra.mxu0 %v6220
    %6578 = vmatprep.subr.bf16.mxu0 0
    %6579 = vmatpush1.bf16.msra.mxu0 0
    %6580 = vmatprep.subr.bf16.mxu0 0
    %6581 = vmatpush1.bf16.msra.mxu0 0
    %6582 = vmatprep.subr.bf16.mxu0 0
    %6583 = vmatpush1.bf16.msra.mxu0 0
    %6584 = vmatprep.subr.bf16.mxu0 0
    %6585 = vmatpush1.bf16.msra.mxu0 0
    %6586 = vmatprep.subr.bf16.mxu0 0
    %6587 = vmatpush1.bf16.msra.mxu0 0
    %6588 = vmatprep.subr.bf16.mxu0 0
    %6589 = vmatpush1.bf16.msra.mxu0 0
    %6590 = vmatprep.subr.bf16.mxu0 0
    %6591 = vmatpush1.bf16.msra.mxu0 0
    %6592 = vmatprep.subr.bf16.mxu0 0
    %6593 = vmatpush1.bf16.msra.mxu0 0
    %6594 = vmatprep.subr.bf16.mxu0 0
    %6595 = vmatpush1.bf16.msra.mxu0 0
    %6596 = vmatprep.subr.bf16.mxu0 0
    %6597 = vmatpush1.bf16.msra.mxu0 0
    %6598 = vmatprep.subr.bf16.mxu0 0
    %6599 = vmatpush1.bf16.msra.mxu0 0
    %6600 = vmatprep.subr.bf16.mxu0 0
    %6601 = vmatpush1.bf16.msra.mxu0 0
    %6602 = vmatprep.subr.bf16.mxu0 0
    %6603 = vmatpush1.bf16.msra.mxu0 0
    %6604 = vmatprep.subr.bf16.mxu0 0
    %6605 = vmatpush1.bf16.msra.mxu0 0
    %6606 = vmatprep.subr.bf16.mxu0 0
    %6607 = vmatpush1.bf16.msra.mxu0 0
    %6608 = vmatprep.mubr.bf16.mxu0 0
    %6609 = vmatmul.mubr.bf16.gmra.mrb[0].mxu0 %v6574
    %v6610 = vpop.f32.mrb[0].mxu0
    %v6611 = vadd.f32 0.0, %v6610
    %v6612 = vpop.f32.mrb[0].mxu0
    %v6613 = vadd.f32 0.0, %v6612
    %v6614 = vpop.f32.mrb[0].mxu0
    %v6615 = vadd.f32 0.0, %v6614
    %v6616 = vpop.f32.mrb[0].mxu0
    %v6617 = vadd.f32 0.0, %v6616
    %6618 = vdwg.mxu0
    %v6619 = vadd.f32 %v6561, %v6611
    %v6620 = vadd.f32 %v6562, %v6613
    %v6621 = vadd.f32 %v6563, %v6615
    %v6622 = vadd.f32 %v6564, %v6617
    %s6623 = scalar_lea.vmem %s21, 56
    %v6624 = vld [vmem:[%s6623] sm:$0xf]
    %v6625 = vld [vmem:[%s6623 + $0x4] sm:$0xf]
    %v6628 = vunpack.c.l.b16 %v6624
    %v6629 = vunpack.c.l.b16 %v6625
    %v6630 = vpack.c.b16 %v6629, %v6628
    %v6632 = vsel %vm1830, %v6630, 0
    %6634 = vmatprep.subr.bf16.mxu0 %v6223
    %6635 = vmatpush1.bf16.msra.mxu0 %v6222
    %6636 = vmatprep.subr.bf16.mxu0 0
    %6637 = vmatpush1.bf16.msra.mxu0 0
    %6638 = vmatprep.subr.bf16.mxu0 0
    %6639 = vmatpush1.bf16.msra.mxu0 0
    %6640 = vmatprep.subr.bf16.mxu0 0
    %6641 = vmatpush1.bf16.msra.mxu0 0
    %6642 = vmatprep.subr.bf16.mxu0 0
    %6643 = vmatpush1.bf16.msra.mxu0 0
    %6644 = vmatprep.subr.bf16.mxu0 0
    %6645 = vmatpush1.bf16.msra.mxu0 0
    %6646 = vmatprep.subr.bf16.mxu0 0
    %6647 = vmatpush1.bf16.msra.mxu0 0
    %6648 = vmatprep.subr.bf16.mxu0 0
    %6649 = vmatpush1.bf16.msra.mxu0 0
    %6650 = vmatprep.subr.bf16.mxu0 0
    %6651 = vmatpush1.bf16.msra.mxu0 0
    %6652 = vmatprep.subr.bf16.mxu0 0
    %6653 = vmatpush1.bf16.msra.mxu0 0
    %6654 = vmatprep.subr.bf16.mxu0 0
    %6655 = vmatpush1.bf16.msra.mxu0 0
    %6656 = vmatprep.subr.bf16.mxu0 0
    %6657 = vmatpush1.bf16.msra.mxu0 0
    %6658 = vmatprep.subr.bf16.mxu0 0
    %6659 = vmatpush1.bf16.msra.mxu0 0
    %6660 = vmatprep.subr.bf16.mxu0 0
    %6661 = vmatpush1.bf16.msra.mxu0 0
    %6662 = vmatprep.subr.bf16.mxu0 0
    %6663 = vmatpush1.bf16.msra.mxu0 0
    %6664 = vmatprep.subr.bf16.mxu0 0
    %6665 = vmatpush1.bf16.msra.mxu0 0
    %6666 = vmatprep.mubr.bf16.mxu0 0
    %6667 = vmatmul.mubr.bf16.gmra.mrb[0].mxu0 %v6632
    %v6668 = vpop.f32.mrb[0].mxu0
    %v6669 = vadd.f32 0.0, %v6668
    %v6670 = vpop.f32.mrb[0].mxu0
    %v6671 = vadd.f32 0.0, %v6670
    %v6672 = vpop.f32.mrb[0].mxu0
    %v6673 = vadd.f32 0.0, %v6672
    %v6674 = vpop.f32.mrb[0].mxu0
    %v6675 = vadd.f32 0.0, %v6674
    %6676 = vdwg.mxu0
    %v6677 = vadd.f32 %v6619, %v6669
    %v6678 = vadd.f32 %v6620, %v6671
    %v6679 = vadd.f32 %v6621, %v6673
    %v6680 = vadd.f32 %v6622, %v6675
    %s6681 = scalar_lea.vmem %s21, 64
    %v6682 = vld [vmem:[%s6681] sm:$0xf]
    %v6683 = vld [vmem:[%s6681 + $0x4] sm:$0xf]
    %v6686 = vunpack.c.l.b16 %v6682
    %v6687 = vunpack.c.l.b16 %v6683
    %v6688 = vpack.c.b16 %v6687, %v6686
    %v6690 = vsel %vm1830, %v6688, 0
    %6692 = vmatprep.subr.bf16.mxu0 %v6225
    %6693 = vmatpush1.bf16.msra.mxu0 %v6224
    %6694 = vmatprep.subr.bf16.mxu0 0
    %6695 = vmatpush1.bf16.msra.mxu0 0
    %6696 = vmatprep.subr.bf16.mxu0 0
    %6697 = vmatpush1.bf16.msra.mxu0 0
    %6698 = vmatprep.subr.bf16.mxu0 0
    %6699 = vmatpush1.bf16.msra.mxu0 0
    %6700 = vmatprep.subr.bf16.mxu0 0
    %6701 = vmatpush1.bf16.msra.mxu0 0
    %6702 = vmatprep.subr.bf16.mxu0 0
    %6703 = vmatpush1.bf16.msra.mxu0 0
    %6704 = vmatprep.subr.bf16.mxu0 0
    %6705 = vmatpush1.bf16.msra.mxu0 0
    %6706 = vmatprep.subr.bf16.mxu0 0
    %6707 = vmatpush1.bf16.msra.mxu0 0
    %6708 = vmatprep.subr.bf16.mxu0 0
    %6709 = vmatpush1.bf16.msra.mxu0 0
    %6710 = vmatprep.subr.bf16.mxu0 0
    %6711 = vmatpush1.bf16.msra.mxu0 0
    %6712 = vmatprep.subr.bf16.mxu0 0
    %6713 = vmatpush1.bf16.msra.mxu0 0
    %6714 = vmatprep.subr.bf16.mxu0 0
    %6715 = vmatpush1.bf16.msra.mxu0 0
    %6716 = vmatprep.subr.bf16.mxu0 0
    %6717 = vmatpush1.bf16.msra.mxu0 0
    %6718 = vmatprep.subr.bf16.mxu0 0
    %6719 = vmatpush1.bf16.msra.mxu0 0
    %6720 = vmatprep.subr.bf16.mxu0 0
    %6721 = vmatpush1.bf16.msra.mxu0 0
    %6722 = vmatprep.subr.bf16.mxu0 0
    %6723 = vmatpush1.bf16.msra.mxu0 0
    %6724 = vmatprep.mubr.bf16.mxu0 0
    %6725 = vmatmul.mubr.bf16.gmra.mrb[0].mxu0 %v6690
    %v6726 = vpop.f32.mrb[0].mxu0
    %v6727 = vadd.f32 0.0, %v6726
    %v6728 = vpop.f32.mrb[0].mxu0
    %v6729 = vadd.f32 0.0, %v6728
    %v6730 = vpop.f32.mrb[0].mxu0
    %v6731 = vadd.f32 0.0, %v6730
    %v6732 = vpop.f32.mrb[0].mxu0
    %v6733 = vadd.f32 0.0, %v6732
    %6734 = vdwg.mxu0
    %v6735 = vadd.f32 %v6677, %v6727
    %v6736 = vadd.f32 %v6678, %v6729
    %v6737 = vadd.f32 %v6679, %v6731
    %v6738 = vadd.f32 %v6680, %v6733
    %v6739 = vadd.f32 %v6735, %v6736
    %6740 = vadd.xlane.f32.xlu0 %v6739
    %v6741 = vpop.xlane.xlu0 %6740
    %v6742 = vadd.f32 %v6737, %v6738
    %6743 = vadd.xlane.f32.xlu0 %v6742
    %v6744 = vpop.xlane.xlu0 %6743
    %v6745 = vmul.f32 %v6735, %v6735
    %v6746 = vmul.f32 %v6736, %v6736
    %v6747 = vmul.f32 %v6737, %v6737
    %v6748 = vmul.f32 %v6738, %v6738
    %v6749 = vadd.f32 %v6745, %v6746
    %6750 = vadd.xlane.f32.xlu0 %v6749
    %v6751 = vpop.xlane.xlu0 %6750
    %v6752 = vadd.f32 %v6747, %v6748
    %6753 = vadd.xlane.f32.xlu0 %v6752
    %v6754 = vpop.xlane.xlu0 %6753
    %6755 = vmatprep.subr.mxu0 0.0
    %6756 = vmatpush1.msra.mxu0 %v6741
    %6757 = vmatprep.subr.mxu0 0.0
    %6758 = vmatpush1.msra.mxu0 %v6744
    %6759 = vmatprep.subr.mxu0 0.0
    %6760 = vmatpush1.msra.mxu0 0.0
    %6761 = vmatprep.subr.mxu0 0.0
    %6762 = vmatpush1.msra.mxu0 0.0
    %6763 = vmatprep.subr.mxu0 0.0
    %6764 = vmatpush1.msra.mxu0 0.0
    %6765 = vmatprep.subr.mxu0 0.0
    %6766 = vmatpush1.msra.mxu0 0.0
    %6767 = vmatprep.subr.mxu0 0.0
    %6768 = vmatpush1.msra.mxu0 0.0
    %6769 = vmatprep.subr.mxu0 0.0
    %6770 = vmatpush1.msra.mxu0 0.0
    %6771 = vmatprep.subr.mxu0 0.0
    %6772 = vmatpush1.msra.mxu0 0.0
    %6773 = vmatprep.subr.mxu0 0.0
    %6774 = vmatpush1.msra.mxu0 0.0
    %6775 = vmatprep.subr.mxu0 0.0
    %6776 = vmatpush1.msra.mxu0 0.0
    %6777 = vmatprep.subr.mxu0 0.0
    %6778 = vmatpush1.msra.mxu0 0.0
    %6779 = vmatprep.subr.mxu0 0.0
    %6780 = vmatpush1.msra.mxu0 0.0
    %6781 = vmatprep.subr.mxu0 0.0
    %6782 = vmatpush1.msra.mxu0 0.0
    %6783 = vmatprep.subr.mxu0 0.0
    %6784 = vmatpush1.msra.mxu0 0.0
    %6785 = vmatprep.subr.mxu0 0.0
    %6786 = vmatpush1.msra.mxu0 0.0
    %6787 = vmatprep.subr.mxu0 0.0
    %6788 = vmatpush1.msra.mxu0 0.0
    %6789 = vmatprep.subr.mxu0 0.0
    %6790 = vmatpush1.msra.mxu0 0.0
    %6791 = vmatprep.subr.mxu0 0.0
    %6792 = vmatpush1.msra.mxu0 0.0
    %6793 = vmatprep.subr.mxu0 0.0
    %6794 = vmatpush1.msra.mxu0 0.0
    %6795 = vmatprep.subr.mxu0 0.0
    %6796 = vmatpush1.msra.mxu0 0.0
    %6797 = vmatprep.subr.mxu0 0.0
    %6798 = vmatpush1.msra.mxu0 0.0
    %6799 = vmatprep.subr.mxu0 0.0
    %6800 = vmatpush1.msra.mxu0 0.0
    %6801 = vmatprep.subr.mxu0 0.0
    %6802 = vmatpush1.msra.mxu0 0.0
    %6803 = vmatprep.subr.mxu0 0.0
    %6804 = vmatpush1.msra.mxu0 0.0
    %6805 = vmatprep.subr.mxu0 0.0
    %6806 = vmatpush1.msra.mxu0 0.0
    %6807 = vmatprep.subr.mxu0 0.0
    %6808 = vmatpush1.msra.mxu0 0.0
    %6809 = vmatprep.subr.mxu0 0.0
    %6810 = vmatpush1.msra.mxu0 0.0
    %6811 = vmatprep.subr.mxu0 0.0
    %6812 = vmatpush1.msra.mxu0 0.0
    %6813 = vmatprep.subr.mxu0 0.0
    %6814 = vmatpush1.msra.mxu0 0.0
    %6815 = vmatprep.subr.mxu0 0.0
    %6816 = vmatpush1.msra.mxu0 0.0
    %6817 = vmatprep.subr.mxu0 0.0
    %6818 = vmatpush1.msra.mxu0 0.0
    %6819 = vmatprep.mubr.f32.mxu0 0.0
    %6820 = vmatmul.mubr.f32.gmra.mrb[0].mxu0 %v1832
    %v6821 = vpop.f32.mrb[0].mxu0
    %v6822 = vadd.f32 0.0, %v6821
    %v6823 = vpop.f32.mrb[0].mxu0
    %6824 = vmatprep.mubr.f32.mxu0 0.0
    %6825 = vmatmul.mubr.f32.gmra.mrb[0].mxu0 %v1835
    %v6826 = vpop.f32.mrb[0].mxu0
    %v6827 = vadd.f32 0.0, %v6826
    %v6828 = vpop.f32.mrb[0].mxu0
    %6829 = vdwg.mxu0
    %6830 = vmatprep.subr.mxu0 0.0
    %6831 = vmatpush1.msra.mxu0 %v6751
    %6832 = vmatprep.subr.mxu0 0.0
    %6833 = vmatpush1.msra.mxu0 %v6754
    %6834 = vmatprep.subr.mxu0 0.0
    %6835 = vmatpush1.msra.mxu0 0.0
    %6836 = vmatprep.subr.mxu0 0.0
    %6837 = vmatpush1.msra.mxu0 0.0
    %6838 = vmatprep.subr.mxu0 0.0
    %6839 = vmatpush1.msra.mxu0 0.0
    %6840 = vmatprep.subr.mxu0 0.0
    %6841 = vmatpush1.msra.mxu0 0.0
    %6842 = vmatprep.subr.mxu0 0.0
    %6843 = vmatpush1.msra.mxu0 0.0
    %6844 = vmatprep.subr.mxu0 0.0
    %6845 = vmatpush1.msra.mxu0 0.0
    %6846 = vmatprep.subr.mxu0 0.0
    %6847 = vmatpush1.msra.mxu0 0.0
    %6848 = vmatprep.subr.mxu0 0.0
    %6849 = vmatpush1.msra.mxu0 0.0
    %6850 = vmatprep.subr.mxu0 0.0
    %6851 = vmatpush1.msra.mxu0 0.0
    %6852 = vmatprep.subr.mxu0 0.0
    %6853 = vmatpush1.msra.mxu0 0.0
    %6854 = vmatprep.subr.mxu0 0.0
    %6855 = vmatpush1.msra.mxu0 0.0
    %6856 = vmatprep.subr.mxu0 0.0
    %6857 = vmatpush1.msra.mxu0 0.0
    %6858 = vmatprep.subr.mxu0 0.0
    %6859 = vmatpush1.msra.mxu0 0.0
    %6860 = vmatprep.subr.mxu0 0.0
    %6861 = vmatpush1.msra.mxu0 0.0
    %6862 = vmatprep.subr.mxu0 0.0
    %6863 = vmatpush1.msra.mxu0 0.0
    %6864 = vmatprep.subr.mxu0 0.0
    %6865 = vmatpush1.msra.mxu0 0.0
    %6866 = vmatprep.subr.mxu0 0.0
    %6867 = vmatpush1.msra.mxu0 0.0
    %6868 = vmatprep.subr.mxu0 0.0
    %6869 = vmatpush1.msra.mxu0 0.0
    %6870 = vmatprep.subr.mxu0 0.0
    %6871 = vmatpush1.msra.mxu0 0.0
    %6872 = vmatprep.subr.mxu0 0.0
    %6873 = vmatpush1.msra.mxu0 0.0
    %6874 = vmatprep.subr.mxu0 0.0
    %6875 = vmatpush1.msra.mxu0 0.0
    %6876 = vmatprep.subr.mxu0 0.0
    %6877 = vmatpush1.msra.mxu0 0.0
    %6878 = vmatprep.subr.mxu0 0.0
    %6879 = vmatpush1.msra.mxu0 0.0
    %6880 = vmatprep.subr.mxu0 0.0
    %6881 = vmatpush1.msra.mxu0 0.0
    %6882 = vmatprep.subr.mxu0 0.0
    %6883 = vmatpush1.msra.mxu0 0.0
    %6884 = vmatprep.subr.mxu0 0.0
    %6885 = vmatpush1.msra.mxu0 0.0
    %6886 = vmatprep.subr.mxu0 0.0
    %6887 = vmatpush1.msra.mxu0 0.0
    %6888 = vmatprep.subr.mxu0 0.0
    %6889 = vmatpush1.msra.mxu0 0.0
    %6890 = vmatprep.subr.mxu0 0.0
    %6891 = vmatpush1.msra.mxu0 0.0
    %6892 = vmatprep.subr.mxu0 0.0
    %6893 = vmatpush1.msra.mxu0 0.0
    %6894 = vmatprep.mubr.f32.mxu0 0.0
    %6895 = vmatmul.mubr.f32.gmra.mrb[0].mxu0 %v1832
    %v6896 = vpop.f32.mrb[0].mxu0
    %v6897 = vadd.f32 0.0, %v6896
    %v6898 = vpop.f32.mrb[0].mxu0
    %6899 = vmatprep.mubr.f32.mxu0 0.0
    %6900 = vmatmul.mubr.f32.gmra.mrb[0].mxu0 %v1835
    %v6901 = vpop.f32.mrb[0].mxu0
    %v6902 = vadd.f32 0.0, %v6901
    %v6903 = vpop.f32.mrb[0].mxu0
    %6904 = vdwg.mxu0
    %v6905 = vmul.f32 %v6822, 0.0025510204
    %v6906 = vmul.f32 %v6827, 0.0025510204
    %v6907 = vmul.f32 %v6897, 0.0025510204
    %v6908 = vmul.f32 %v6902, 0.0025510204
    %v6909 = vmul.f32 %v6905, %v6905
    %v6910 = vmul.f32 %v6906, %v6906
    %v6911 = vsub.f32 %v6907, %v6909
    %v6912 = vsub.f32 %v6908, %v6910
    %v6913 = vmax.f32 %v6911, 0.0
    %v6914 = vmax.f32 %v6912, 0.0
    %6916 = vset.pattern.permute.xlu0 0
    %6917 = vperm.xlu0 %6916, %v6905
    %v6918 = vpop.permute.xlu0 %6917
    %6921 = vset.pattern.permute.xlu0 0
    %6922 = vperm.xlu0 %6921, %v6906
    %v6923 = vpop.permute.xlu0 %6922
    %v6925 = vsub.f32 %v6735, %v6918
    %v6926 = vsub.f32 %v6736, %v6918
    %v6927 = vsub.f32 %v6737, %v6923
    %v6928 = vsub.f32 %v6738, %v6923
    %v6929 = vadd.f32 %v6913, 1e-05
    %v6930 = vadd.f32 %v6914, 1e-05
    %v6931 = vrsqrt.pop %v6929
    %v6932 = vrsqrt.pop %v6930
    %6934 = vset.pattern.permute.xlu0 0
    %6935 = vperm.xlu0 %6934, %v6931
    %v6936 = vpop.permute.xlu0 %6935
    %6939 = vset.pattern.permute.xlu0 0
    %6940 = vperm.xlu0 %6939, %v6932
    %v6941 = vpop.permute.xlu0 %6940
    %v6943 = vmul.f32 %v6925, %v6936
    %v6944 = vmul.f32 %v6926, %v6936
    %v6945 = vmul.f32 %v6927, %v6941
    %v6946 = vmul.f32 %v6928, %v6941
    %v6947 = vld [vmem:[%s22] sm:$0xff]
    %v6948 = vld [vmem:[%s22 + $0x8] sm:$0xff]
    %6950 = vset.pattern.permute.xlu0 0
    %6951 = vperm.xlu0 %6950, %v6947
    %v6952 = vpop.permute.xlu0 %6951
    %6955 = vset.pattern.permute.xlu0 0
    %6956 = vperm.xlu0 %6955, %v6948
    %v6957 = vpop.permute.xlu0 %6956
    %v6959 = vmul.f32 %v6943, %v6952
    %v6960 = vmul.f32 %v6944, %v6952
    %v6961 = vmul.f32 %v6945, %v6957
    %v6962 = vmul.f32 %v6946, %v6957
    %6963 = vset.pattern.permute.xlu0 1
    %6964 = vperm.xlu0 %6963, %v6947
    %v6965 = vpop.permute.xlu0 %6964
    %6967 = vset.pattern.permute.xlu0 1
    %6968 = vperm.xlu0 %6967, %v6948
    %v6969 = vpop.permute.xlu0 %6968
    %v6971 = vadd.f32 %v6959, %v6965
    %v6972 = vadd.f32 %v6960, %v6965
    %v6973 = vadd.f32 %v6961, %v6969
    %v6974 = vadd.f32 %v6962, %v6969
    %vm6975 = vcmp.ge.f32.partialorder %v6971, 0.0
    %vm6976 = vcmp.ge.f32.partialorder %v6972, 0.0
    %vm6977 = vcmp.ge.f32.partialorder %v6973, 0.0
    %vm6978 = vcmp.ge.f32.partialorder %v6974, 0.0
    %v6979 = vmul.f32 %v6971, 0.2
    %v6980 = vmul.f32 %v6972, 0.2
    %v6981 = vmul.f32 %v6973, 0.2
    %v6982 = vmul.f32 %v6974, 0.2
    %v6983 = vsel %vm6975, %v6971, %v6979
    %v6984 = vsel %vm6976, %v6972, %v6980
    %v6985 = vsel %vm6977, %v6973, %v6981
    %v6986 = vsel %vm6978, %v6974, %v6982
    %v6987 = vld [vmem:[%s23] sm:$0x3]
    %v6989 = vlaneseq
    %v6990 = vshrl.u32 %v6989, 7
    %v6991 = vsub.s32 0, %v6990
    %v6992 = vrot.slane %v6987, %v6991
    %v6993 = vlaneseq
    %v6994 = vshrl.u32 %v6993, 7
    %v6995 = vsub.s32 1, %v6994
    %v6996 = vrot.slane %v6987, %v6995
    %v6999 = vmul.f32 %v6983, %v6992
    %v7000 = vmul.f32 %v6984, %v6996
    %v7001 = vmul.f32 %v6985, %v6992
    %v7002 = vmul.f32 %v6986, %v6996
    %7003 = vrot.lane.b32.xlu0 %v6999, 17
    %v7004 = vpop.permute.xlu0 %7003
    %7005 = vrot.lane.b32.xlu0 %v7001, 17
    %v7006 = vpop.permute.xlu0 %7005
    %7007 = vrot.lane.b32.xlu0 %v7000, 17
    %v7008 = vpop.permute.xlu0 %7007
    %7009 = vrot.lane.b32.xlu0 %v7002, 17
    %v7010 = vpop.permute.xlu0 %7009
    %v7011 = vlaneseq
    %v7012 = vand.u32 %v7011, 127
    %vm7013 = vcmp.lt.s32.totalorder %v7012, 17
    %v7014 = vsel %vm7013, %v7004, %v7008
    %v7015 = vsel %vm7013, %v7006, %v7010
    %v7016 = vsel %vm7013, %v7008, %v7004
    %v7017 = vsel %vm7013, %v7010, %v7006
    %v7018 = vld [vmem:[#allocation13] sm:$0xf]
    %v7019 = vpack.c.bf16 %v7017, %v7016
    %v7020 = vpack.c.bf16 %v7015, %v7014
    %7021 = vrot.lane.b32.xlu0 %v6999, 16
    %v7022 = vpop.permute.xlu0 %7021
    %7023 = vrot.lane.b32.xlu0 %v7001, 16
    %v7024 = vpop.permute.xlu0 %7023
    %7025 = vrot.lane.b32.xlu0 %v7000, 16
    %v7026 = vpop.permute.xlu0 %7025
    %7027 = vrot.lane.b32.xlu0 %v7002, 16
    %v7028 = vpop.permute.xlu0 %7027
    %vm7029 = vcmp.lt.s32.totalorder %v7012, 16
    %v7030 = vsel %vm7029, %v7022, %v7026
    %v7031 = vsel %vm7029, %v7024, %v7028
    %v7032 = vsel %vm7029, %v7026, %v7022
    %v7033 = vsel %vm7029, %v7028, %v7024
    %s7034 = scalar_lea.vmem [#allocation13], 4
    %v7035 = vld [vmem:[%s7034] sm:$0xf]
    %v7036 = vpack.c.bf16 %v7033, %v7032
    %v7037 = vpack.c.bf16 %v7031, %v7030
    %v7039 = vsel %vm1830, %v7035, 0
    %7041 = vmatprep.subr.bf16.mxu0 %v7037
    %7042 = vmatpush1.bf16.msra.mxu0 %v7036
    %7043 = vmatprep.subr.bf16.mxu0 0
    %7044 = vmatpush1.bf16.msra.mxu0 0
    %7045 = vmatprep.subr.bf16.mxu0 0
    %7046 = vmatpush1.bf16.msra.mxu0 0
    %7047 = vmatprep.subr.bf16.mxu0 0
    %7048 = vmatpush1.bf16.msra.mxu0 0
    %7049 = vmatprep.subr.bf16.mxu0 0
    %7050 = vmatpush1.bf16.msra.mxu0 0
    %7051 = vmatprep.subr.bf16.mxu0 0
    %7052 = vmatpush1.bf16.msra.mxu0 0
    %7053 = vmatprep.subr.bf16.mxu0 0
    %7054 = vmatpush1.bf16.msra.mxu0 0
    %7055 = vmatprep.subr.bf16.mxu0 0
    %7056 = vmatpush1.bf16.msra.mxu0 0
    %7057 = vmatprep.subr.bf16.mxu0 0
    %7058 = vmatpush1.bf16.msra.mxu0 0
    %7059 = vmatprep.subr.bf16.mxu0 0
    %7060 = vmatpush1.bf16.msra.mxu0 0
    %7061 = vmatprep.subr.bf16.mxu0 0
    %7062 = vmatpush1.bf16.msra.mxu0 0
    %7063 = vmatprep.subr.bf16.mxu0 0
    %7064 = vmatpush1.bf16.msra.mxu0 0
    %7065 = vmatprep.subr.bf16.mxu0 0
    %7066 = vmatpush1.bf16.msra.mxu0 0
    %7067 = vmatprep.subr.bf16.mxu0 0
    %7068 = vmatpush1.bf16.msra.mxu0 0
    %7069 = vmatprep.subr.bf16.mxu0 0
    %7070 = vmatpush1.bf16.msra.mxu0 0
    %7071 = vmatprep.subr.bf16.mxu0 0
    %7072 = vmatpush1.bf16.msra.mxu0 0
    %7073 = vmatprep.mubr.bf16.mxu0 0
    %7074 = vmatmul.mubr.bf16.gmra.mrb[0].mxu0 %v7039
    %v7075 = vpop.f32.mrb[0].mxu0
    %v7076 = vadd.f32 0.0, %v7075
    %v7077 = vpop.f32.mrb[0].mxu0
    %v7078 = vadd.f32 0.0, %v7077
    %v7079 = vpop.f32.mrb[0].mxu0
    %v7080 = vpop.f32.mrb[0].mxu0
    %7081 = vdwg.mxu0
    %v7083 = vsel %vm1830, %v7018, 0
    %7085 = vmatprep.subr.bf16.mxu0 %v7020
    %7086 = vmatpush1.bf16.msra.mxu0 %v7019
    %7087 = vmatprep.subr.bf16.mxu0 0
    %7088 = vmatpush1.bf16.msra.mxu0 0
    %7089 = vmatprep.subr.bf16.mxu0 0
    %7090 = vmatpush1.bf16.msra.mxu0 0
    %7091 = vmatprep.subr.bf16.mxu0 0
    %7092 = vmatpush1.bf16.msra.mxu0 0
    %7093 = vmatprep.subr.bf16.mxu0 0
    %7094 = vmatpush1.bf16.msra.mxu0 0
    %7095 = vmatprep.subr.bf16.mxu0 0
    %7096 = vmatpush1.bf16.msra.mxu0 0
    %7097 = vmatprep.subr.bf16.mxu0 0
    %7098 = vmatpush1.bf16.msra.mxu0 0
    %7099 = vmatprep.subr.bf16.mxu0 0
    %7100 = vmatpush1.bf16.msra.mxu0 0
    %7101 = vmatprep.subr.bf16.mxu0 0
    %7102 = vmatpush1.bf16.msra.mxu0 0
    %7103 = vmatprep.subr.bf16.mxu0 0
    %7104 = vmatpush1.bf16.msra.mxu0 0
    %7105 = vmatprep.subr.bf16.mxu0 0
    %7106 = vmatpush1.bf16.msra.mxu0 0
    %7107 = vmatprep.subr.bf16.mxu0 0
    %7108 = vmatpush1.bf16.msra.mxu0 0
    %7109 = vmatprep.subr.bf16.mxu0 0
    %7110 = vmatpush1.bf16.msra.mxu0 0
    %7111 = vmatprep.subr.bf16.mxu0 0
    %7112 = vmatpush1.bf16.msra.mxu0 0
    %7113 = vmatprep.subr.bf16.mxu0 0
    %7114 = vmatpush1.bf16.msra.mxu0 0
    %7115 = vmatprep.subr.bf16.mxu0 0
    %7116 = vmatpush1.bf16.msra.mxu0 0
    %7117 = vmatprep.mubr.bf16.mxu0 0
    %7118 = vmatmul.mubr.bf16.gmra.mrb[0].mxu0 %v7083
    %v7119 = vpop.f32.mrb[0].mxu0
    %v7120 = vadd.f32 %v7076, %v7119
    %v7121 = vpop.f32.mrb[0].mxu0
    %v7122 = vadd.f32 %v7078, %v7121
    %v7123 = vpop.f32.mrb[0].mxu0
    %v7124 = vpop.f32.mrb[0].mxu0
    %7125 = vdwg.mxu0
    %7126 = vrot.lane.b32.xlu0 %v6999, 15
    %v7127 = vpop.permute.xlu0 %7126
    %7128 = vrot.lane.b32.xlu0 %v7001, 15
    %v7129 = vpop.permute.xlu0 %7128
    %7130 = vrot.lane.b32.xlu0 %v7000, 15
    %v7131 = vpop.permute.xlu0 %7130
    %7132 = vrot.lane.b32.xlu0 %v7002, 15
    %v7133 = vpop.permute.xlu0 %7132
    %vm7134 = vcmp.lt.s32.totalorder %v7012, 15
    %v7135 = vsel %vm7134, %v7127, %v7131
    %v7136 = vsel %vm7134, %v7129, %v7133
    %v7137 = vsel %vm7134, %v7131, %v7127
    %v7138 = vsel %vm7134, %v7133, %v7129
    %s7139 = scalar_lea.vmem [#allocation13], 8
    %v7140 = vld [vmem:[%s7139] sm:$0xf]
    %v7141 = vpack.c.bf16 %v7138, %v7137
    %v7142 = vpack.c.bf16 %v7136, %v7135
    %v7144 = vsel %vm1830, %v7140, 0
    %7146 = vmatprep.subr.bf16.mxu0 %v7142
    %7147 = vmatpush1.bf16.msra.mxu0 %v7141
    %7148 = vmatprep.subr.bf16.mxu0 0
    %7149 = vmatpush1.bf16.msra.mxu0 0
    %7150 = vmatprep.subr.bf16.mxu0 0
    %7151 = vmatpush1.bf16.msra.mxu0 0
    %7152 = vmatprep.subr.bf16.mxu0 0
    %7153 = vmatpush1.bf16.msra.mxu0 0
    %7154 = vmatprep.subr.bf16.mxu0 0
    %7155 = vmatpush1.bf16.msra.mxu0 0
    %7156 = vmatprep.subr.bf16.mxu0 0
    %7157 = vmatpush1.bf16.msra.mxu0 0
    %7158 = vmatprep.subr.bf16.mxu0 0
    %7159 = vmatpush1.bf16.msra.mxu0 0
    %7160 = vmatprep.subr.bf16.mxu0 0
    %7161 = vmatpush1.bf16.msra.mxu0 0
    %7162 = vmatprep.subr.bf16.mxu0 0
    %7163 = vmatpush1.bf16.msra.mxu0 0
    %7164 = vmatprep.subr.bf16.mxu0 0
    %7165 = vmatpush1.bf16.msra.mxu0 0
    %7166 = vmatprep.subr.bf16.mxu0 0
    %7167 = vmatpush1.bf16.msra.mxu0 0
    %7168 = vmatprep.subr.bf16.mxu0 0
    %7169 = vmatpush1.bf16.msra.mxu0 0
    %7170 = vmatprep.subr.bf16.mxu0 0
    %7171 = vmatpush1.bf16.msra.mxu0 0
    %7172 = vmatprep.subr.bf16.mxu0 0
    %7173 = vmatpush1.bf16.msra.mxu0 0
    %7174 = vmatprep.subr.bf16.mxu0 0
    %7175 = vmatpush1.bf16.msra.mxu0 0
    %7176 = vmatprep.subr.bf16.mxu0 0
    %7177 = vmatpush1.bf16.msra.mxu0 0
    %7178 = vmatprep.mubr.bf16.mxu0 0
    %7179 = vmatmul.mubr.bf16.gmra.mrb[0].mxu0 %v7144
    %v7180 = vpop.f32.mrb[0].mxu0
    %v7181 = vadd.f32 0.0, %v7180
    %v7182 = vpop.f32.mrb[0].mxu0
    %v7183 = vadd.f32 0.0, %v7182
    %v7184 = vpop.f32.mrb[0].mxu0
    %v7185 = vpop.f32.mrb[0].mxu0
    %7186 = vdwg.mxu0
    %v7187 = vadd.f32 %v7120, %v7181
    %v7188 = vadd.f32 %v7122, %v7183
    %7189 = vrot.lane.b32.xlu0 %v6999, 1
    %v7190 = vpop.permute.xlu0 %7189
    %7191 = vrot.lane.b32.xlu0 %v7001, 1
    %v7192 = vpop.permute.xlu0 %7191
    %7193 = vrot.lane.b32.xlu0 %v7000, 1
    %v7194 = vpop.permute.xlu0 %7193
    %7195 = vrot.lane.b32.xlu0 %v7002, 1
    %v7196 = vpop.permute.xlu0 %7195
    %vm7197 = vcmp.lt.s32.totalorder %v7012, 1
    %v7198 = vsel %vm7197, %v7190, %v7194
    %v7199 = vsel %vm7197, %v7192, %v7196
    %v7200 = vsel %vm7197, %v7194, %v7190
    %v7201 = vsel %vm7197, %v7196, %v7192
    %s7202 = scalar_lea.vmem [#allocation13], 12
    %v7203 = vld [vmem:[%s7202] sm:$0xf]
    %v7204 = vpack.c.bf16 %v7201, %v7200
    %v7205 = vpack.c.bf16 %v7199, %v7198
    %v7207 = vsel %vm1830, %v7203, 0
    %7209 = vmatprep.subr.bf16.mxu0 %v7205
    %7210 = vmatpush1.bf16.msra.mxu0 %v7204
    %7211 = vmatprep.subr.bf16.mxu0 0
    %7212 = vmatpush1.bf16.msra.mxu0 0
    %7213 = vmatprep.subr.bf16.mxu0 0
    %7214 = vmatpush1.bf16.msra.mxu0 0
    %7215 = vmatprep.subr.bf16.mxu0 0
    %7216 = vmatpush1.bf16.msra.mxu0 0
    %7217 = vmatprep.subr.bf16.mxu0 0
    %7218 = vmatpush1.bf16.msra.mxu0 0
    %7219 = vmatprep.subr.bf16.mxu0 0
    %7220 = vmatpush1.bf16.msra.mxu0 0
    %7221 = vmatprep.subr.bf16.mxu0 0
    %7222 = vmatpush1.bf16.msra.mxu0 0
    %7223 = vmatprep.subr.bf16.mxu0 0
    %7224 = vmatpush1.bf16.msra.mxu0 0
    %7225 = vmatprep.subr.bf16.mxu0 0
    %7226 = vmatpush1.bf16.msra.mxu0 0
    %7227 = vmatprep.subr.bf16.mxu0 0
    %7228 = vmatpush1.bf16.msra.mxu0 0
    %7229 = vmatprep.subr.bf16.mxu0 0
    %7230 = vmatpush1.bf16.msra.mxu0 0
    %7231 = vmatprep.subr.bf16.mxu0 0
    %7232 = vmatpush1.bf16.msra.mxu0 0
    %7233 = vmatprep.subr.bf16.mxu0 0
    %7234 = vmatpush1.bf16.msra.mxu0 0
    %7235 = vmatprep.subr.bf16.mxu0 0
    %7236 = vmatpush1.bf16.msra.mxu0 0
    %7237 = vmatprep.subr.bf16.mxu0 0
    %7238 = vmatpush1.bf16.msra.mxu0 0
    %7239 = vmatprep.subr.bf16.mxu0 0
    %7240 = vmatpush1.bf16.msra.mxu0 0
    %7241 = vmatprep.mubr.bf16.mxu0 0
    %7242 = vmatmul.mubr.bf16.gmra.mrb[0].mxu0 %v7207
    %v7243 = vpop.f32.mrb[0].mxu0
    %v7244 = vadd.f32 0.0, %v7243
    %v7245 = vpop.f32.mrb[0].mxu0
    %v7246 = vadd.f32 0.0, %v7245
    %v7247 = vpop.f32.mrb[0].mxu0
    %v7248 = vpop.f32.mrb[0].mxu0
    %7249 = vdwg.mxu0
    %v7250 = vadd.f32 %v7187, %v7244
    %v7251 = vadd.f32 %v7188, %v7246
    %s7252 = scalar_lea.vmem [#allocation13], 16
    %v7253 = vld [vmem:[%s7252] sm:$0xf]
    %v7254 = vpack.c.bf16 %v7001, %v6999
    %v7255 = vpack.c.bf16 %v7002, %v7000
    %v7257 = vsel %vm1830, %v7253, 0
    %7259 = vmatprep.subr.bf16.mxu0 %v7255
    %7260 = vmatpush1.bf16.msra.mxu0 %v7254
    %7261 = vmatprep.subr.bf16.mxu0 0
    %7262 = vmatpush1.bf16.msra.mxu0 0
    %7263 = vmatprep.subr.bf16.mxu0 0
    %7264 = vmatpush1.bf16.msra.mxu0 0
    %7265 = vmatprep.subr.bf16.mxu0 0
    %7266 = vmatpush1.bf16.msra.mxu0 0
    %7267 = vmatprep.subr.bf16.mxu0 0
    %7268 = vmatpush1.bf16.msra.mxu0 0
    %7269 = vmatprep.subr.bf16.mxu0 0
    %7270 = vmatpush1.bf16.msra.mxu0 0
    %7271 = vmatprep.subr.bf16.mxu0 0
    %7272 = vmatpush1.bf16.msra.mxu0 0
    %7273 = vmatprep.subr.bf16.mxu0 0
    %7274 = vmatpush1.bf16.msra.mxu0 0
    %7275 = vmatprep.subr.bf16.mxu0 0
    %7276 = vmatpush1.bf16.msra.mxu0 0
    %7277 = vmatprep.subr.bf16.mxu0 0
    %7278 = vmatpush1.bf16.msra.mxu0 0
    %7279 = vmatprep.subr.bf16.mxu0 0
    %7280 = vmatpush1.bf16.msra.mxu0 0
    %7281 = vmatprep.subr.bf16.mxu0 0
    %7282 = vmatpush1.bf16.msra.mxu0 0
    %7283 = vmatprep.subr.bf16.mxu0 0
    %7284 = vmatpush1.bf16.msra.mxu0 0
    %7285 = vmatprep.subr.bf16.mxu0 0
    %7286 = vmatpush1.bf16.msra.mxu0 0
    %7287 = vmatprep.subr.bf16.mxu0 0
    %7288 = vmatpush1.bf16.msra.mxu0 0
    %7289 = vmatprep.subr.bf16.mxu0 0
    %7290 = vmatpush1.bf16.msra.mxu0 0
    %7291 = vmatprep.mubr.bf16.mxu0 0
    %7292 = vmatmul.mubr.bf16.gmra.mrb[0].mxu0 %v7257
    %v7293 = vpop.f32.mrb[0].mxu0
    %v7294 = vadd.f32 0.0, %v7293
    %v7295 = vpop.f32.mrb[0].mxu0
    %v7296 = vadd.f32 0.0, %v7295
    %v7297 = vpop.f32.mrb[0].mxu0
    %v7298 = vpop.f32.mrb[0].mxu0
    %7299 = vdwg.mxu0
    %v7300 = vadd.f32 %v7250, %v7294
    %v7301 = vadd.f32 %v7251, %v7296
    %7302 = vrot.lane.b32.xlu0 %v6999, 127
    %v7303 = vpop.permute.xlu0 %7302
    %7304 = vrot.lane.b32.xlu0 %v7001, 127
    %v7305 = vpop.permute.xlu0 %7304
    %7306 = vrot.lane.b32.xlu0 %v7000, 127
    %v7307 = vpop.permute.xlu0 %7306
    %7308 = vrot.lane.b32.xlu0 %v7002, 127
    %v7309 = vpop.permute.xlu0 %7308
    %vm7310 = vcmp.lt.s32.totalorder %v7012, 127
    %v7311 = vsel %vm7310, %v7303, %v7307
    %v7312 = vsel %vm7310, %v7305, %v7309
    %v7313 = vsel %vm7310, %v7307, %v7303
    %v7314 = vsel %vm7310, %v7309, %v7305
    %s7315 = scalar_lea.vmem [#allocation13], 20
    %v7316 = vld [vmem:[%s7315] sm:$0xf]
    %v7317 = vpack.c.bf16 %v7312, %v7311
    %v7318 = vpack.c.bf16 %v7314, %v7313
    %v7320 = vsel %vm1830, %v7316, 0
    %7322 = vmatprep.subr.bf16.mxu0 %v7318
    %7323 = vmatpush1.bf16.msra.mxu0 %v7317
    %7324 = vmatprep.subr.bf16.mxu0 0
    %7325 = vmatpush1.bf16.msra.mxu0 0
    %7326 = vmatprep.subr.bf16.mxu0 0
    %7327 = vmatpush1.bf16.msra.mxu0 0
    %7328 = vmatprep.subr.bf16.mxu0 0
    %7329 = vmatpush1.bf16.msra.mxu0 0
    %7330 = vmatprep.subr.bf16.mxu0 0
    %7331 = vmatpush1.bf16.msra.mxu0 0
    %7332 = vmatprep.subr.bf16.mxu0 0
    %7333 = vmatpush1.bf16.msra.mxu0 0
    %7334 = vmatprep.subr.bf16.mxu0 0
    %7335 = vmatpush1.bf16.msra.mxu0 0
    %7336 = vmatprep.subr.bf16.mxu0 0
    %7337 = vmatpush1.bf16.msra.mxu0 0
    %7338 = vmatprep.subr.bf16.mxu0 0
    %7339 = vmatpush1.bf16.msra.mxu0 0
    %7340 = vmatprep.subr.bf16.mxu0 0
    %7341 = vmatpush1.bf16.msra.mxu0 0
    %7342 = vmatprep.subr.bf16.mxu0 0
    %7343 = vmatpush1.bf16.msra.mxu0 0
    %7344 = vmatprep.subr.bf16.mxu0 0
    %7345 = vmatpush1.bf16.msra.mxu0 0
    %7346 = vmatprep.subr.bf16.mxu0 0
    %7347 = vmatpush1.bf16.msra.mxu0 0
    %7348 = vmatprep.subr.bf16.mxu0 0
    %7349 = vmatpush1.bf16.msra.mxu0 0
    %7350 = vmatprep.subr.bf16.mxu0 0
    %7351 = vmatpush1.bf16.msra.mxu0 0
    %7352 = vmatprep.subr.bf16.mxu0 0
    %7353 = vmatpush1.bf16.msra.mxu0 0
    %7354 = vmatprep.mubr.bf16.mxu0 0
    %7355 = vmatmul.mubr.bf16.gmra.mrb[0].mxu0 %v7320
    %v7356 = vpop.f32.mrb[0].mxu0
    %v7357 = vadd.f32 0.0, %v7356
    %v7358 = vpop.f32.mrb[0].mxu0
    %v7359 = vadd.f32 0.0, %v7358
    %v7360 = vpop.f32.mrb[0].mxu0
    %v7361 = vpop.f32.mrb[0].mxu0
    %7362 = vdwg.mxu0
    %v7363 = vadd.f32 %v7300, %v7357
    %v7364 = vadd.f32 %v7301, %v7359
    %7365 = vrot.lane.b32.xlu0 %v6999, 113
    %v7366 = vpop.permute.xlu0 %7365
    %7367 = vrot.lane.b32.xlu0 %v7001, 113
    %v7368 = vpop.permute.xlu0 %7367
    %7369 = vrot.lane.b32.xlu0 %v7000, 113
    %v7370 = vpop.permute.xlu0 %7369
    %7371 = vrot.lane.b32.xlu0 %v7002, 113
    %v7372 = vpop.permute.xlu0 %7371
    %vm7373 = vcmp.lt.s32.totalorder %v7012, 113
    %v7374 = vsel %vm7373, %v7366, %v7370
    %v7375 = vsel %vm7373, %v7368, %v7372
    %v7376 = vsel %vm7373, %v7370, %v7366
    %v7377 = vsel %vm7373, %v7372, %v7368
    %s7378 = scalar_lea.vmem [#allocation13], 24
    %v7379 = vld [vmem:[%s7378] sm:$0xf]
    %v7380 = vpack.c.bf16 %v7375, %v7374
    %v7381 = vpack.c.bf16 %v7377, %v7376
    %v7383 = vsel %vm1830, %v7379, 0
    %7385 = vmatprep.subr.bf16.mxu0 %v7381
    %7386 = vmatpush1.bf16.msra.mxu0 %v7380
    %7387 = vmatprep.subr.bf16.mxu0 0
    %7388 = vmatpush1.bf16.msra.mxu0 0
    %7389 = vmatprep.subr.bf16.mxu0 0
    %7390 = vmatpush1.bf16.msra.mxu0 0
    %7391 = vmatprep.subr.bf16.mxu0 0
    %7392 = vmatpush1.bf16.msra.mxu0 0
    %7393 = vmatprep.subr.bf16.mxu0 0
    %7394 = vmatpush1.bf16.msra.mxu0 0
    %7395 = vmatprep.subr.bf16.mxu0 0
    %7396 = vmatpush1.bf16.msra.mxu0 0
    %7397 = vmatprep.subr.bf16.mxu0 0
    %7398 = vmatpush1.bf16.msra.mxu0 0
    %7399 = vmatprep.subr.bf16.mxu0 0
    %7400 = vmatpush1.bf16.msra.mxu0 0
    %7401 = vmatprep.subr.bf16.mxu0 0
    %7402 = vmatpush1.bf16.msra.mxu0 0
    %7403 = vmatprep.subr.bf16.mxu0 0
    %7404 = vmatpush1.bf16.msra.mxu0 0
    %7405 = vmatprep.subr.bf16.mxu0 0
    %7406 = vmatpush1.bf16.msra.mxu0 0
    %7407 = vmatprep.subr.bf16.mxu0 0
    %7408 = vmatpush1.bf16.msra.mxu0 0
    %7409 = vmatprep.subr.bf16.mxu0 0
    %7410 = vmatpush1.bf16.msra.mxu0 0
    %7411 = vmatprep.subr.bf16.mxu0 0
    %7412 = vmatpush1.bf16.msra.mxu0 0
    %7413 = vmatprep.subr.bf16.mxu0 0
    %7414 = vmatpush1.bf16.msra.mxu0 0
    %7415 = vmatprep.subr.bf16.mxu0 0
    %7416 = vmatpush1.bf16.msra.mxu0 0
    %7417 = vmatprep.mubr.bf16.mxu0 0
    %7418 = vmatmul.mubr.bf16.gmra.mrb[0].mxu0 %v7383
    %v7419 = vpop.f32.mrb[0].mxu0
    %v7420 = vadd.f32 0.0, %v7419
    %v7421 = vpop.f32.mrb[0].mxu0
    %v7422 = vadd.f32 0.0, %v7421
    %v7423 = vpop.f32.mrb[0].mxu0
    %v7424 = vpop.f32.mrb[0].mxu0
    %7425 = vdwg.mxu0
    %v7426 = vadd.f32 %v7363, %v7420
    %v7427 = vadd.f32 %v7364, %v7422
    %7428 = vrot.lane.b32.xlu0 %v6999, 112
    %v7429 = vpop.permute.xlu0 %7428
    %7430 = vrot.lane.b32.xlu0 %v7001, 112
    %v7431 = vpop.permute.xlu0 %7430
    %7432 = vrot.lane.b32.xlu0 %v7000, 112
    %v7433 = vpop.permute.xlu0 %7432
    %7434 = vrot.lane.b32.xlu0 %v7002, 112
    %v7435 = vpop.permute.xlu0 %7434
    %vm7436 = vcmp.lt.s32.totalorder %v7012, 112
    %v7437 = vsel %vm7436, %v7429, %v7433
    %v7438 = vsel %vm7436, %v7431, %v7435
    %v7439 = vsel %vm7436, %v7433, %v7429
    %v7440 = vsel %vm7436, %v7435, %v7431
    %s7441 = scalar_lea.vmem [#allocation13], 28
    %v7442 = vld [vmem:[%s7441] sm:$0xf]
    %v7443 = vpack.c.bf16 %v7438, %v7437
    %v7444 = vpack.c.bf16 %v7440, %v7439
    %v7446 = vsel %vm1830, %v7442, 0
    %7448 = vmatprep.subr.bf16.mxu0 %v7444
    %7449 = vmatpush1.bf16.msra.mxu0 %v7443
    %7450 = vmatprep.subr.bf16.mxu0 0
    %7451 = vmatpush1.bf16.msra.mxu0 0
    %7452 = vmatprep.subr.bf16.mxu0 0
    %7453 = vmatpush1.bf16.msra.mxu0 0
    %7454 = vmatprep.subr.bf16.mxu0 0
    %7455 = vmatpush1.bf16.msra.mxu0 0
    %7456 = vmatprep.subr.bf16.mxu0 0
    %7457 = vmatpush1.bf16.msra.mxu0 0
    %7458 = vmatprep.subr.bf16.mxu0 0
    %7459 = vmatpush1.bf16.msra.mxu0 0
    %7460 = vmatprep.subr.bf16.mxu0 0
    %7461 = vmatpush1.bf16.msra.mxu0 0
    %7462 = vmatprep.subr.bf16.mxu0 0
    %7463 = vmatpush1.bf16.msra.mxu0 0
    %7464 = vmatprep.subr.bf16.mxu0 0
    %7465 = vmatpush1.bf16.msra.mxu0 0
    %7466 = vmatprep.subr.bf16.mxu0 0
    %7467 = vmatpush1.bf16.msra.mxu0 0
    %7468 = vmatprep.subr.bf16.mxu0 0
    %7469 = vmatpush1.bf16.msra.mxu0 0
    %7470 = vmatprep.subr.bf16.mxu0 0
    %7471 = vmatpush1.bf16.msra.mxu0 0
    %7472 = vmatprep.subr.bf16.mxu0 0
    %7473 = vmatpush1.bf16.msra.mxu0 0
    %7474 = vmatprep.subr.bf16.mxu0 0
    %7475 = vmatpush1.bf16.msra.mxu0 0
    %7476 = vmatprep.subr.bf16.mxu0 0
    %7477 = vmatpush1.bf16.msra.mxu0 0
    %7478 = vmatprep.subr.bf16.mxu0 0
    %7479 = vmatpush1.bf16.msra.mxu0 0
    %7480 = vmatprep.mubr.bf16.mxu0 0
    %7481 = vmatmul.mubr.bf16.gmra.mrb[0].mxu0 %v7446
    %v7482 = vpop.f32.mrb[0].mxu0
    %v7483 = vadd.f32 0.0, %v7482
    %v7484 = vpop.f32.mrb[0].mxu0
    %v7485 = vadd.f32 0.0, %v7484
    %v7486 = vpop.f32.mrb[0].mxu0
    %v7487 = vpop.f32.mrb[0].mxu0
    %7488 = vdwg.mxu0
    %v7489 = vadd.f32 %v7426, %v7483
    %v7490 = vadd.f32 %v7427, %v7485
    %7491 = vrot.lane.b32.xlu0 %v6999, 111
    %v7492 = vpop.permute.xlu0 %7491
    %7493 = vrot.lane.b32.xlu0 %v7001, 111
    %v7494 = vpop.permute.xlu0 %7493
    %7495 = vrot.lane.b32.xlu0 %v7000, 111
    %v7496 = vpop.permute.xlu0 %7495
    %7497 = vrot.lane.b32.xlu0 %v7002, 111
    %v7498 = vpop.permute.xlu0 %7497
    %vm7499 = vcmp.lt.s32.totalorder %v7012, 111
    %v7500 = vsel %vm7499, %v7492, %v7496
    %v7501 = vsel %vm7499, %v7494, %v7498
    %v7502 = vsel %vm7499, %v7496, %v7492
    %v7503 = vsel %vm7499, %v7498, %v7494
    %s7504 = scalar_lea.vmem [#allocation13], 32
    %v7505 = vld [vmem:[%s7504] sm:$0xf]
    %v7506 = vpack.c.bf16 %v7501, %v7500
    %v7507 = vpack.c.bf16 %v7503, %v7502
    %v7509 = vsel %vm1830, %v7505, 0
    %7511 = vmatprep.subr.bf16.mxu0 %v7507
    %7512 = vmatpush1.bf16.msra.mxu0 %v7506
    %7513 = vmatprep.subr.bf16.mxu0 0
    %7514 = vmatpush1.bf16.msra.mxu0 0
    %7515 = vmatprep.subr.bf16.mxu0 0
    %7516 = vmatpush1.bf16.msra.mxu0 0
    %7517 = vmatprep.subr.bf16.mxu0 0
    %7518 = vmatpush1.bf16.msra.mxu0 0
    %7519 = vmatprep.subr.bf16.mxu0 0
    %7520 = vmatpush1.bf16.msra.mxu0 0
    %7521 = vmatprep.subr.bf16.mxu0 0
    %7522 = vmatpush1.bf16.msra.mxu0 0
    %7523 = vmatprep.subr.bf16.mxu0 0
    %7524 = vmatpush1.bf16.msra.mxu0 0
    %7525 = vmatprep.subr.bf16.mxu0 0
    %7526 = vmatpush1.bf16.msra.mxu0 0
    %7527 = vmatprep.subr.bf16.mxu0 0
    %7528 = vmatpush1.bf16.msra.mxu0 0
    %7529 = vmatprep.subr.bf16.mxu0 0
    %7530 = vmatpush1.bf16.msra.mxu0 0
    %7531 = vmatprep.subr.bf16.mxu0 0
    %7532 = vmatpush1.bf16.msra.mxu0 0
    %7533 = vmatprep.subr.bf16.mxu0 0
    %7534 = vmatpush1.bf16.msra.mxu0 0
    %7535 = vmatprep.subr.bf16.mxu0 0
    %7536 = vmatpush1.bf16.msra.mxu0 0
    %7537 = vmatprep.subr.bf16.mxu0 0
    %7538 = vmatpush1.bf16.msra.mxu0 0
    %7539 = vmatprep.subr.bf16.mxu0 0
    %7540 = vmatpush1.bf16.msra.mxu0 0
    %7541 = vmatprep.subr.bf16.mxu0 0
    %7542 = vmatpush1.bf16.msra.mxu0 0
    %7543 = vmatprep.mubr.bf16.mxu0 0
    %7544 = vmatmul.mubr.bf16.gmra.mrb[0].mxu0 %v7509
    %v7545 = vpop.f32.mrb[0].mxu0
    %v7546 = vadd.f32 0.0, %v7545
    %v7547 = vpop.f32.mrb[0].mxu0
    %v7548 = vadd.f32 0.0, %v7547
    %v7549 = vpop.f32.mrb[0].mxu0
    %v7550 = vpop.f32.mrb[0].mxu0
    %7551 = vdwg.mxu0
    %v7552 = vadd.f32 %v7489, %v7546
    %v7553 = vadd.f32 %v7490, %v7548
    %v7554 = vld [vmem:[%s25] sm:$0xff]
    %7556 = vset.pattern.permute.xlu0 0
    %7557 = vperm.xlu0 %7556, %v7554
    %v7558 = vpop.permute.xlu0 %7557
    %v7560 = vadd.f32 %v7552, %v7558
    %v7561 = vadd.f32 %v7553, %v7558
    %v7562 = vtanh.pop %v7560
    %v7563 = vtanh.pop %v7561
    %7564 = vst [vmem:[%s26] sm:$0xff] %v7562
    %7565 = vst [vmem:[%s26 + $0x8] sm:$0xff] %v7563
    // Predicated region
    $region138: #{vae_forward.1} parent=1 // pred_check
      _
    $region139: #{vae_forward.1} parent=1 // pred_check_branch
      %7567 = sbr.rel (0) target = $region141
    $region140: #{vae_forward.1} parent=1 // pred_region
      _
    $region141: #{vae_forward.1} parent=1 // pred_fallthru
      _
    // Predicated region
    $region142: #{vae_forward.1} parent=1 // pred_check
      _
    $region143: #{vae_forward.1} parent=1 // pred_check_branch
      %7569 = sbr.rel (0) target = $region145
    $region144: #{vae_forward.1} parent=1 // pred_region
      _
    $region145: #{vae_forward.1} parent=1 // pred_fallthru
      _
    // Predicated region
    $region146: #{vae_forward.1} parent=1 // pred_check
      _
    $region147: #{vae_forward.1} parent=1 // pred_check_branch
      %7571 = sbr.rel (0) target = $region149
    $region148: #{vae_forward.1} parent=1 // pred_region
      _
    $region149: #{vae_forward.1} parent=1 // pred_fallthru
      _
    // Predicated region
    $region150: #{vae_forward.1} parent=1 // pred_check
      _
    $region151: #{vae_forward.1} parent=1 // pred_check_branch
      %7573 = sbr.rel (0) target = $region153
    $region152: #{vae_forward.1} parent=1 // pred_region
      _
    $region153: #{vae_forward.1} parent=1 // pred_fallthru
      _
    %7574 = vsyncpa [#allocation3], 1
    %7575 = vsyncpa [#allocation5], 1
    %7576 = vsyncpa [#allocation8], 1
    %7577 = vsyncpa [#allocation11], 1
    %7578 = vsyncpa [#allocation14], 1

</llo_original>
